<compile_context>
chip_gen: v5e
topology: v5e:2x2
jax: 0.10.0
libtpu: 0.0.40
codegen_flags: <defaults>
</compile_context>

<pallas_src>
import numpy as np
import jax
import jax.numpy as jnp
from jax import lax
from jax.experimental import pallas as pl
from jax.experimental.pallas import tpu as pltpu


# ---------------------------------------------------------------------------
# Kernel 1: fused  x0 + RCU1(x1)  ->  RCU2  ->  1x1 out_conv   (NHWC per batch)
# ---------------------------------------------------------------------------
def _fused_rcu_outconv_kernel(x0_ref, x1_ref,
                              w11_ref, b11_ref, w12_ref, b12_ref,
                              w21_ref, b21_ref, w22_ref, b22_ref,
                              woutT_ref, bout_ref,
                              out_ref, pad_scr):
    Hp, Wp, C = pad_scr.shape
    H, W = Hp - 2, Wp - 2

    # Zero only the 1-pixel halo; the interior is fully rewritten before every
    # read.  Done every grid step so the batch axis can be "parallel"
    # (megacore) without relying on scratch state produced on another core.
    zrow = jnp.zeros((1, Wp, C), pad_scr.dtype)
    zcol = jnp.zeros((Hp, 1, C), pad_scr.dtype)
    pad_scr[0:1, :, :] = zrow
    pad_scr[Hp - 1:Hp, :, :] = zrow
    pad_scr[:, 0:1, :] = zcol
    pad_scr[:, Wp - 1:Wp, :] = zcol

    def conv3x3(w_ref, b_ref):
        # 9-tap accumulation: nine K=C bf16 MXU matmuls on shifted views of
        # the halo scratch.  No materialized (H*W, 9C) im2col patch, no
        # channel concat.  Weight ref is (9, Cin, Cout), k = kh*3 + kw.
        p = pad_scr[...]                                     # (Hp, Wp, C) f32
        acc = None
        for k in range(9):
            dy, dx = divmod(k, 3)
            tap = (p[dy:dy + H, dx:dx + W, :]
                   .reshape(H * W, C).astype(jnp.bfloat16))
            part = jnp.dot(tap, w_ref[k],
                           preferred_element_type=jnp.float32)
            acc = part if acc is None else acc + part
        return acc + b_ref[...]                              # (H*W, C) f32

    def store_act(v):
        # relu + write into the interior of the halo scratch.
        # TODO(synk): the 1-offset interior write is sublane-unaligned; use
        #   an unpadded scratch + masked border taps (or pltpu.roll shifts)
        #   once the vld/vst slot becomes the bottleneck.
        pad_scr[1:H + 1, 1:W + 1, :] = (
            jnp.maximum(v, 0.0).reshape(H, W, C).astype(pad_scr.dtype))

    x1 = x1_ref[0].astype(jnp.float32).reshape(H * W, C)
    x0 = x0_ref[0].astype(jnp.float32).reshape(H * W, C)

    # ---- resConfUnit1(x1), fused with the outer skip: t = x0 + RCU1(x1) ----
    store_act(x1)                                            # relu(x1)
    store_act(conv3x3(w11_ref, b11_ref))                     # relu(conv1 + b)
    t = conv3x3(w12_ref, b12_ref) + x1 + x0                  # conv2 + skips

    # ---- resConfUnit2(t) ----
    store_act(t)
    store_act(conv3x3(w21_ref, b21_ref))
    t = conv3x3(w22_ref, b22_ref) + t

    # ---- 1x1 out_conv, hoisted before the bilinear upsample (exact: both
    #      ops are linear and the align_corners=True rows sum to 1) ----
    z = jnp.dot(t.astype(jnp.bfloat16), woutT_ref[...],
                preferred_element_type=jnp.float32) + bout_ref[...]
    cout = z.shape[1]
    out_ref[0] = z.reshape(H, W, cout).astype(out_ref.dtype)


def fused_rcu_outconv_call(x0_nhwc, x1_nhwc,
                           w11, b11, w12, b12, w21, b21, w22, b22,
                           woutT, bout):
    """x*: (N,H,W,C) f32; conv weights: (9,C,C) bf16; biases: (1,C) f32;
    woutT: (C,Cout) bf16; bout: (1,Cout) f32.  Returns (N, H, W, Cout)."""
    N, H, W, C = x0_nhwc.shape
    Cout = woutT.shape[1]
    xspec = pl.BlockSpec((1, H, W, C), lambda n: (n, 0, 0, 0))
    wspec = pl.BlockSpec((9, C, C), lambda n: (0, 0, 0))
    bspec = pl.BlockSpec((1, C), lambda n: (0, 0))
    # TODO(synk): pipeline_mode=pl.Buffered(1) on the grid-invariant weight /
    #   bias specs, and a row-tiled grid (N, H//TH) for production shapes.
    return pl.pallas_call(
        _fused_rcu_outconv_kernel,
        out_shape=jax.ShapeDtypeStruct((N, H, W, Cout), x0_nhwc.dtype),
        grid=(N,),
        in_specs=[xspec, xspec,
                  wspec, bspec, wspec, bspec,
                  wspec, bspec, wspec, bspec,
                  pl.BlockSpec((C, Cout), lambda n: (0, 0)),
                  pl.BlockSpec((1, Cout), lambda n: (0, 0))],
        out_specs=pl.BlockSpec((1, H, W, Cout), lambda n: (n, 0, 0, 0)),
        scratch_shapes=[pltpu.VMEM((H + 2, W + 2, C), jnp.float32)],
        compiler_params=pltpu.CompilerParams(
            dimension_semantics=("parallel",),
            vmem_limit_bytes=48 * 1024 * 1024),
    )(x0_nhwc, x1_nhwc, w11, b11, w12, b12, w21, b21, w22, b22, woutT, bout)


# ---------------------------------------------------------------------------
# Kernel 2: bilinear x2 upsample (align_corners=True), NCHW, channel-tiled.
# ---------------------------------------------------------------------------
def _upsample_kernel(x_ref, rh_ref, rwt_ref, out_ref):
    x = x_ref[0].astype(jnp.bfloat16)                        # (TC, H, W)
    TC, H, W = x.shape
    H2 = rh_ref.shape[0]
    W2 = rwt_ref.shape[1]

    # W direction: one (TC*H, W) @ (W, W2) MXU matmul.
    xw = jnp.dot(x.reshape(TC * H, W), rwt_ref[...],
                 preferred_element_type=jnp.float32).reshape(TC, H, W2)
    # H direction as a batched matmul over the channel tile.  The broadcast
    # Rh operand is only (TC, H2, H) thanks to channel tiling.
    # TODO(synk): fold the upsample into kernel 1 (single 2-D H-matmul on the
    #   NHWC tile) to delete this kernel's HBM round trip entirely.
    rh_b = jnp.broadcast_to(rh_ref[...], (TC, H2, H))
    out = jnp.einsum('chk,ckw->chw', rh_b, xw.astype(jnp.bfloat16),
                     preferred_element_type=jnp.float32)
    out_ref[0] = out.astype(out_ref.dtype)


def upsample_call(x_nchw, Rh_bf16, RwT_bf16, channel_tile=None):
    """x: (N,C,H,W); Rh: (H2,H) bf16; RwT: (W,W2) bf16.  Returns
    (N, C, H2, W2), computed in channel tiles of size `channel_tile`."""
    N, C, H, W = x_nchw.shape
    H2, W2 = Rh_bf16.shape[0], RwT_bf16.shape[1]
    tc = C if channel_tile is None else channel_tile
    assert C % tc == 0, (C, tc)
    return pl.pallas_call(
        _upsample_kernel,
        out_shape=jax.ShapeDtypeStruct((N, C, H2, W2), x_nchw.dtype),
        grid=(N, C // tc),
        in_specs=[pl.BlockSpec((1, tc, H, W), lambda n, c: (n, c, 0, 0)),
                  pl.BlockSpec((H2, H), lambda n, c: (0, 0)),
                  pl.BlockSpec((W, W2), lambda n, c: (0, 0))],
        out_specs=pl.BlockSpec((1, tc, H2, W2), lambda n, c: (n, c, 0, 0)),
        compiler_params=pltpu.CompilerParams(
            dimension_semantics=("parallel", "parallel"),
            vmem_limit_bytes=48 * 1024 * 1024),
    )(x_nchw, Rh_bf16, RwT_bf16)


# ---------------------------------------------------------------------------
# FeatureFusionBlock forward (two inputs), NCHW in / NCHW out.
# ---------------------------------------------------------------------------
def feature_fusion_block(x0, x1, p, channel_tile=None):
    x0n = jnp.transpose(x0, (0, 2, 3, 1))      # NCHW -> NHWC (channels->lanes)
    x1n = jnp.transpose(x1, (0, 2, 3, 1))

    def tap_w(w):                              # OIHW -> (9, Cin, Cout) bf16
        cout, cin = w.shape[0], w.shape[1]
        return (jnp.transpose(w, (2, 3, 1, 0))
                .reshape(9, cin, cout).astype(jnp.bfloat16))

    rb = lambda b: b.reshape(1, -1).astype(jnp.float32)

    z = fused_rcu_outconv_call(
        x0n, x1n,
        tap_w(p['w1_1']), rb(p['b1_1']), tap_w(p['w1_2']), rb(p['b1_2']),
        tap_w(p['w2_1']), rb(p['b2_1']), tap_w(p['w2_2']), rb(p['b2_2']),
        jnp.transpose(p['w_out']).astype(jnp.bfloat16), rb(p['b_out']))
    # out_conv already applied, so this single layout change happens on the
    # 4x smaller pre-upsample map.
    z = jnp.transpose(z, (0, 3, 1, 2))         # NHWC -> NCHW
    return upsample_call(z,
                         p['Rh'].astype(jnp.bfloat16),
                         jnp.transpose(p['Rw']).astype(jnp.bfloat16),
                         channel_tile=channel_tile)          # (N,Cout,2H,2W)


# ---------------------------------------------------------------------------
# Pure-JAX f32 reference of the PyTorch module (for verification).
# ---------------------------------------------------------------------------
def reference_forward(x0, x1, p):
    dn = ('NCHW', 'OIHW', 'NCHW')

    def conv3(x, w, b):
        y = lax.conv_general_dilated(x, w, (1, 1), 'SAME', dimension_numbers=dn)
        return y + b[None, :, None, None]

    def rcu(x, w1, b1, w2, b2):
        out = jax.nn.relu(x)
        out = conv3(out, w1, b1)
        out = jax.nn.relu(out)
        out = conv3(out, w2, b2)
        return out + x

    out = x0 + rcu(x1, p['w1_1'], p['b1_1'], p['w1_2'], p['b1_2'])
    out = rcu(out, p['w2_1'], p['b2_1'], p['w2_2'], p['b2_2'])
    out = jnp.einsum('Hh,nchw->ncHw', p['Rh'], out)
    out = jnp.einsum('Ww,nchw->nchW', p['Rw'], out)
    out = jnp.einsum('oc,nchw->nohw', p['w_out'], out) \
        + p['b_out'][None, :, None, None]
    return out


def bilinear_matrix(n_in, n_out):
    """Dense 1-D bilinear resize matrix, align_corners=True (rows sum to 1)."""
    if n_out == 1:
        R = np.zeros((1, n_in), np.float32)
        R[0, 0] = 1.0
        return R
    j = np.arange(n_out)
    src = j * (n_in - 1) / (n_out - 1)
    i0 = np.floor(src).astype(np.int64)
    i1 = np.minimum(i0 + 1, n_in - 1)
    frac = (src - i0).astype(np.float32)
    R = np.zeros((n_out, n_in), np.float32)
    R[j, i0] += (1.0 - frac)
    R[j, i1] += frac
    return R


if __name__ == "__main__":
    # NOTE: C=8 underutilizes the 128-lane vregs / MXU K; production DPT
    # shapes (C=256) are the layout this kernel is designed for.
    N, F, H, W = 2, 8, 16, 16          # batch, features, spatial
    H2, W2 = 2 * H, 2 * W              # scale_factor=2

    key = jax.random.PRNGKey(0)
    ks = jax.random.split(key, 12)
    x0 = jax.random.normal(ks[0], (N, F, H, W), jnp.float32)
    x1 = jax.random.normal(ks[1], (N, F, H, W), jnp.float32)

    def conv_w(k, cout, cin, kh, kw):
        return 0.05 * jax.random.normal(k, (cout, cin, kh, kw), jnp.float32)

    params = {
        # resConfUnit1
        'w1_1': conv_w(ks[2], F, F, 3, 3),
        'b1_1': 0.02 * jax.random.normal(ks[3], (F,), jnp.float32),
        'w1_2': conv_w(ks[4], F, F, 3, 3),
        'b1_2': 0.02 * jax.random.normal(ks[5], (F,), jnp.float32),
        # resConfUnit2
        'w2_1': conv_w(ks[6], F, F, 3, 3),
        'b2_1': 0.02 * jax.random.normal(ks[7], (F,), jnp.float32),
        'w2_2': conv_w(ks[8], F, F, 3, 3),
        'b2_2': 0.02 * jax.random.normal(ks[9], (F,), jnp.float32),
        # out_conv (1x1, expand=False -> out_features == features)
        'w_out': conv_w(ks[10], F, F, 1, 1)[:, :, 0, 0],
        'b_out': 0.02 * jax.random.normal(ks[11], (F,), jnp.float32),
        # bilinear (align_corners=True) interpolation matrices (f32 masters)
        'Rh': jnp.asarray(bilinear_matrix(H, H2)),
        'Rw': jnp.asarray(bilinear_matrix(W, W2)),
    }

    fwd = jax.jit(lambda a, b, pp: feature_fusion_block(a, b, pp,
                                                        channel_tile=4))
    out = jax.block_until_ready(fwd(x0, x1, params))

    ref = reference_forward(x0, x1, params)

    assert out.shape == (N, F, H2, W2), out.shape
    assert bool(jnp.all(jnp.isfinite(out)))
    # Tolerance is bounded by the bf16 MXU operands (per the perf review the
    # matmul inputs are bf16); estimated worst-case abs error ~1e-2 here.
    max_err = float(jnp.max(jnp.abs(out - ref)))
    assert bool(jnp.allclose(out, ref, atol=3e-2, rtol=3e-2)), max_err

    print("KERNEL_OK")
</pallas_src>

<mosaic_0001>
module attributes {stable_mosaic.version = 11 : i64} {
  func.func @_fused_rcu_outconv_kernel(%arg0: i32, %arg1: memref<1x16x16x8xf32, #tpu.memory_space<vmem>>, %arg2: memref<1x16x16x8xf32, #tpu.memory_space<vmem>>, %arg3: memref<9x8x8xbf16, #tpu.memory_space<vmem>>, %arg4: memref<1x8xf32, #tpu.memory_space<vmem>>, %arg5: memref<9x8x8xbf16, #tpu.memory_space<vmem>>, %arg6: memref<1x8xf32, #tpu.memory_space<vmem>>, %arg7: memref<9x8x8xbf16, #tpu.memory_space<vmem>>, %arg8: memref<1x8xf32, #tpu.memory_space<vmem>>, %arg9: memref<9x8x8xbf16, #tpu.memory_space<vmem>>, %arg10: memref<1x8xf32, #tpu.memory_space<vmem>>, %arg11: memref<8x8xbf16, #tpu.memory_space<vmem>>, %arg12: memref<1x8xf32, #tpu.memory_space<vmem>>, %arg13: memref<1x16x16x8xf32, #tpu.memory_space<vmem>>, %arg14: memref<18x18x8xf32, #tpu.memory_space<vmem>>) attributes {dimension_semantics = [#tpu.dimension_semantics<parallel>], iteration_bounds = array<i64: 2>, scalar_prefetch = 0 : i64, scratch_operands = 1 : i64, tpu.core_type = #tpu.core_type<tc>, window_params = [{transform_indices = @transform_0, window_bounds = array<i64: 1, 16, 16, 8>}, {transform_indices = @transform_1, window_bounds = array<i64: 1, 16, 16, 8>}, {pipeline_mode = #tpu.pipeline_mode<synchronous>, transform_indices = @transform_2, window_bounds = array<i64: 9, 8, 8>}, {pipeline_mode = #tpu.pipeline_mode<synchronous>, transform_indices = @transform_3, window_bounds = array<i64: 1, 8>}, {pipeline_mode = #tpu.pipeline_mode<synchronous>, transform_indices = @transform_4, window_bounds = array<i64: 9, 8, 8>}, {pipeline_mode = #tpu.pipeline_mode<synchronous>, transform_indices = @transform_5, window_bounds = array<i64: 1, 8>}, {pipeline_mode = #tpu.pipeline_mode<synchronous>, transform_indices = @transform_6, window_bounds = array<i64: 9, 8, 8>}, {pipeline_mode = #tpu.pipeline_mode<synchronous>, transform_indices = @transform_7, window_bounds = array<i64: 1, 8>}, {pipeline_mode = #tpu.pipeline_mode<synchronous>, transform_indices = @transform_8, window_bounds = array<i64: 9, 8, 8>}, {pipeline_mode = #tpu.pipeline_mode<synchronous>, transform_indices = @transform_9, window_bounds = array<i64: 1, 8>}, {pipeline_mode = #tpu.pipeline_mode<synchronous>, transform_indices = @transform_10, window_bounds = array<i64: 8, 8>}, {pipeline_mode = #tpu.pipeline_mode<synchronous>, transform_indices = @transform_11, window_bounds = array<i64: 1, 8>}, {transform_indices = @transform_12, window_bounds = array<i64: 1, 16, 16, 8>}]} {
    %cst = arith.constant 0.000000e+00 : f32
    %0 = vector.broadcast %cst : f32 to vector<1x18x8xf32>
    %cst_0 = arith.constant 0.000000e+00 : f32
    %1 = vector.broadcast %cst_0 : f32 to vector<18x1x8xf32>
    %c0 = arith.constant 0 : index
    %c0_1 = arith.constant 0 : index
    %c0_2 = arith.constant 0 : index
    %2 = vector.load %arg14[%c0, %c0_1, %c0_2] : memref<18x18x8xf32, #tpu.memory_space<vmem>>, vector<1x18x8xf32>
    tpu.vector_store %arg14[%c0, %c0_1, %c0_2], %0 {strides = array<i32>} : memref<18x18x8xf32, #tpu.memory_space<vmem>>, vector<1x18x8xf32>,
    %c17 = arith.constant 17 : index
    %c0_3 = arith.constant 0 : index
    %c0_4 = arith.constant 0 : index
    %3 = vector.load %arg14[%c17, %c0_3, %c0_4] : memref<18x18x8xf32, #tpu.memory_space<vmem>>, vector<1x18x8xf32>
    tpu.vector_store %arg14[%c17, %c0_3, %c0_4], %0 {strides = array<i32>} : memref<18x18x8xf32, #tpu.memory_space<vmem>>, vector<1x18x8xf32>,
    %c0_5 = arith.constant 0 : index
    %c0_6 = arith.constant 0 : index
    %c0_7 = arith.constant 0 : index
    %4 = vector.load %arg14[%c0_5, %c0_6, %c0_7] : memref<18x18x8xf32, #tpu.memory_space<vmem>>, vector<18x1x8xf32>
    tpu.vector_store %arg14[%c0_5, %c0_6, %c0_7], %1 {strides = array<i32>} : memref<18x18x8xf32, #tpu.memory_space<vmem>>, vector<18x1x8xf32>,
    %c0_8 = arith.constant 0 : index
    %c17_9 = arith.constant 17 : index
    %c0_10 = arith.constant 0 : index
    %5 = vector.load %arg14[%c0_8, %c17_9, %c0_10] : memref<18x18x8xf32, #tpu.memory_space<vmem>>, vector<18x1x8xf32>
    tpu.vector_store %arg14[%c0_8, %c17_9, %c0_10], %1 {strides = array<i32>} : memref<18x18x8xf32, #tpu.memory_space<vmem>>, vector<18x1x8xf32>,
    %c0_11 = arith.constant 0 : index
    %c0_12 = arith.constant 0 : index
    %c0_13 = arith.constant 0 : index
    %c0_14 = arith.constant 0 : index
    %6 = vector.load %arg2[%c0_11, %c0_12, %c0_13, %c0_14] : memref<1x16x16x8xf32, #tpu.memory_space<vmem>>, vector<1x16x16x8xf32>
    %7 = vector.shape_cast %6 : vector<1x16x16x8xf32> to vector<16x16x8xf32>
    %8 = vector.shape_cast %7 : vector<16x16x8xf32> to vector<256x8xf32>
    %c0_15 = arith.constant 0 : index
    %c0_16 = arith.constant 0 : index
    %c0_17 = arith.constant 0 : index
    %c0_18 = arith.constant 0 : index
    %9 = vector.load %arg1[%c0_15, %c0_16, %c0_17, %c0_18] : memref<1x16x16x8xf32, #tpu.memory_space<vmem>>, vector<1x16x16x8xf32>
    %10 = vector.shape_cast %9 : vector<1x16x16x8xf32> to vector<16x16x8xf32>
    %11 = vector.shape_cast %10 : vector<16x16x8xf32> to vector<256x8xf32>
    %cst_19 = arith.constant 0.000000e+00 : f32
    %12 = vector.broadcast %cst_19 : f32 to vector<256x8xf32>
    %13 = arith.maximumf %8, %12 : vector<256x8xf32>
    %14 = vector.shape_cast %13 : vector<256x8xf32> to vector<16x16x8xf32>
    %c1 = arith.constant 1 : index
    %c1_20 = arith.constant 1 : index
    %c0_21 = arith.constant 0 : index
    %15 = vector.load %arg14[%c1, %c1_20, %c0_21] : memref<18x18x8xf32, #tpu.memory_space<vmem>>, vector<16x16x8xf32>
    tpu.vector_store %arg14[%c1, %c1_20, %c0_21], %14 {strides = array<i32>} : memref<18x18x8xf32, #tpu.memory_space<vmem>>, vector<16x16x8xf32>,
    %c0_22 = arith.constant 0 : index
    %c0_23 = arith.constant 0 : index
    %c0_24 = arith.constant 0 : index
    %16 = vector.load %arg14[%c0_22, %c0_23, %c0_24] : memref<18x18x8xf32, #tpu.memory_space<vmem>>, vector<18x18x8xf32>
    %17 = vector.extract_strided_slice %16 {offsets = [0, 0, 0], sizes = [16, 16, 8], strides = [1, 1, 1]} : vector<18x18x8xf32> to vector<16x16x8xf32>
    %18 = vector.shape_cast %17 : vector<16x16x8xf32> to vector<256x8xf32>
    %19 = arith.truncf %18 : vector<256x8xf32> to vector<256x8xbf16>
    %c0_25 = arith.constant 0 : index
    %c0_26 = arith.constant 0 : index
    %c0_27 = arith.constant 0 : index
    %20 = vector.load %arg3[%c0_25, %c0_26, %c0_27] : memref<9x8x8xbf16, #tpu.memory_space<vmem>>, vector<1x8x8xbf16>
    %21 = vector.shape_cast %20 : vector<1x8x8xbf16> to vector<8x8xbf16>
    %cst_28 = arith.constant dense<0.000000e+00> : vector<256x8xf32>
    %22 = tpu.matmul %19, %21, %cst_28 {dimension_numbers = #tpu.dot_dimension_numbers<[1], [0], [0], [1], [0, 0, 1, 1], [], []>} : vector<256x8xbf16>, vector<8x8xbf16>, vector<256x8xf32> -> vector<256x8xf32>
    %23 = vector.extract_strided_slice %16 {offsets = [0, 1, 0], sizes = [16, 16, 8], strides = [1, 1, 1]} : vector<18x18x8xf32> to vector<16x16x8xf32>
    %24 = vector.shape_cast %23 : vector<16x16x8xf32> to vector<256x8xf32>
    %25 = arith.truncf %24 : vector<256x8xf32> to vector<256x8xbf16>
    %c1_29 = arith.constant 1 : index
    %c0_30 = arith.constant 0 : index
    %c0_31 = arith.constant 0 : index
    %26 = vector.load %arg3[%c1_29, %c0_30, %c0_31] : memref<9x8x8xbf16, #tpu.memory_space<vmem>>, vector<1x8x8xbf16>
    %27 = vector.shape_cast %26 : vector<1x8x8xbf16> to vector<8x8xbf16>
    %cst_32 = arith.constant dense<0.000000e+00> : vector<256x8xf32>
    %28 = tpu.matmul %25, %27, %cst_32 {dimension_numbers = #tpu.dot_dimension_numbers<[1], [0], [0], [1], [0, 0, 1, 1], [], []>} : vector<256x8xbf16>, vector<8x8xbf16>, vector<256x8xf32> -> vector<256x8xf32>
    %29 = arith.addf %22, %28 : vector<256x8xf32>
    %30 = vector.extract_strided_slice %16 {offsets = [0, 2, 0], sizes = [16, 16, 8], strides = [1, 1, 1]} : vector<18x18x8xf32> to vector<16x16x8xf32>
    %31 = vector.shape_cast %30 : vector<16x16x8xf32> to vector<256x8xf32>
    %32 = arith.truncf %31 : vector<256x8xf32> to vector<256x8xbf16>
    %c2 = arith.constant 2 : index
    %c0_33 = arith.constant 0 : index
    %c0_34 = arith.constant 0 : index
    %33 = vector.load %arg3[%c2, %c0_33, %c0_34] : memref<9x8x8xbf16, #tpu.memory_space<vmem>>, vector<1x8x8xbf16>
    %34 = vector.shape_cast %33 : vector<1x8x8xbf16> to vector<8x8xbf16>
    %cst_35 = arith.constant dense<0.000000e+00> : vector<256x8xf32>
    %35 = tpu.matmul %32, %34, %cst_35 {dimension_numbers = #tpu.dot_dimension_numbers<[1], [0], [0], [1], [0, 0, 1, 1], [], []>} : vector<256x8xbf16>, vector<8x8xbf16>, vector<256x8xf32> -> vector<256x8xf32>
    %36 = arith.addf %29, %35 : vector<256x8xf32>
    %37 = vector.extract_strided_slice %16 {offsets = [1, 0, 0], sizes = [16, 16, 8], strides = [1, 1, 1]} : vector<18x18x8xf32> to vector<16x16x8xf32>
    %38 = vector.shape_cast %37 : vector<16x16x8xf32> to vector<256x8xf32>
    %39 = arith.truncf %38 : vector<256x8xf32> to vector<256x8xbf16>
    %c3 = arith.constant 3 : index
    %c0_36 = arith.constant 0 : index
    %c0_37 = arith.constant 0 : index
    %40 = vector.load %arg3[%c3, %c0_36, %c0_37] : memref<9x8x8xbf16, #tpu.memory_space<vmem>>, vector<1x8x8xbf16>
    %41 = vector.shape_cast %40 : vector<1x8x8xbf16> to vector<8x8xbf16>
    %cst_38 = arith.constant dense<0.000000e+00> : vector<256x8xf32>
    %42 = tpu.matmul %39, %41, %cst_38 {dimension_numbers = #tpu.dot_dimension_numbers<[1], [0], [0], [1], [0, 0, 1, 1], [], []>} : vector<256x8xbf16>, vector<8x8xbf16>, vector<256x8xf32> -> vector<256x8xf32>
    %43 = arith.addf %36, %42 : vector<256x8xf32>
    %44 = vector.extract_strided_slice %16 {offsets = [1, 1, 0], sizes = [16, 16, 8], strides = [1, 1, 1]} : vector<18x18x8xf32> to vector<16x16x8xf32>
    %45 = vector.shape_cast %44 : vector<16x16x8xf32> to vector<256x8xf32>
    %46 = arith.truncf %45 : vector<256x8xf32> to vector<256x8xbf16>
    %c4 = arith.constant 4 : index
    %c0_39 = arith.constant 0 : index
    %c0_40 = arith.constant 0 : index
    %47 = vector.load %arg3[%c4, %c0_39, %c0_40] : memref<9x8x8xbf16, #tpu.memory_space<vmem>>, vector<1x8x8xbf16>
    %48 = vector.shape_cast %47 : vector<1x8x8xbf16> to vector<8x8xbf16>
    %cst_41 = arith.constant dense<0.000000e+00> : vector<256x8xf32>
    %49 = tpu.matmul %46, %48, %cst_41 {dimension_numbers = #tpu.dot_dimension_numbers<[1], [0], [0], [1], [0, 0, 1, 1], [], []>} : vector<256x8xbf16>, vector<8x8xbf16>, vector<256x8xf32> -> vector<256x8xf32>
    %50 = arith.addf %43, %49 : vector<256x8xf32>
    %51 = vector.extract_strided_slice %16 {offsets = [1, 2, 0], sizes = [16, 16, 8], strides = [1, 1, 1]} : vector<18x18x8xf32> to vector<16x16x8xf32>
    %52 = vector.shape_cast %51 : vector<16x16x8xf32> to vector<256x8xf32>
    %53 = arith.truncf %52 : vector<256x8xf32> to vector<256x8xbf16>
    %c5 = arith.constant 5 : index
    %c0_42 = arith.constant 0 : index
    %c0_43 = arith.constant 0 : index
    %54 = vector.load %arg3[%c5, %c0_42, %c0_43] : memref<9x8x8xbf16, #tpu.memory_space<vmem>>, vector<1x8x8xbf16>
    %55 = vector.shape_cast %54 : vector<1x8x8xbf16> to vector<8x8xbf16>
    %cst_44 = arith.constant dense<0.000000e+00> : vector<256x8xf32>
    %56 = tpu.matmul %53, %55, %cst_44 {dimension_numbers = #tpu.dot_dimension_numbers<[1], [0], [0], [1], [0, 0, 1, 1], [], []>} : vector<256x8xbf16>, vector<8x8xbf16>, vector<256x8xf32> -> vector<256x8xf32>
    %57 = arith.addf %50, %56 : vector<256x8xf32>
    %58 = vector.extract_strided_slice %16 {offsets = [2, 0, 0], sizes = [16, 16, 8], strides = [1, 1, 1]} : vector<18x18x8xf32> to vector<16x16x8xf32>
    %59 = vector.shape_cast %58 : vector<16x16x8xf32> to vector<256x8xf32>
    %60 = arith.truncf %59 : vector<256x8xf32> to vector<256x8xbf16>
    %c6 = arith.constant 6 : index
    %c0_45 = arith.constant 0 : index
    %c0_46 = arith.constant 0 : index
    %61 = vector.load %arg3[%c6, %c0_45, %c0_46] : memref<9x8x8xbf16, #tpu.memory_space<vmem>>, vector<1x8x8xbf16>
    %62 = vector.shape_cast %61 : vector<1x8x8xbf16> to vector<8x8xbf16>
    %cst_47 = arith.constant dense<0.000000e+00> : vector<256x8xf32>
    %63 = tpu.matmul %60, %62, %cst_47 {dimension_numbers = #tpu.dot_dimension_numbers<[1], [0], [0], [1], [0, 0, 1, 1], [], []>} : vector<256x8xbf16>, vector<8x8xbf16>, vector<256x8xf32> -> vector<256x8xf32>
    %64 = arith.addf %57, %63 : vector<256x8xf32>
    %65 = vector.extract_strided_slice %16 {offsets = [2, 1, 0], sizes = [16, 16, 8], strides = [1, 1, 1]} : vector<18x18x8xf32> to vector<16x16x8xf32>
    %66 = vector.shape_cast %65 : vector<16x16x8xf32> to vector<256x8xf32>
    %67 = arith.truncf %66 : vector<256x8xf32> to vector<256x8xbf16>
    %c7 = arith.constant 7 : index
    %c0_48 = arith.constant 0 : index
    %c0_49 = arith.constant 0 : index
    %68 = vector.load %arg3[%c7, %c0_48, %c0_49] : memref<9x8x8xbf16, #tpu.memory_space<vmem>>, vector<1x8x8xbf16>
    %69 = vector.shape_cast %68 : vector<1x8x8xbf16> to vector<8x8xbf16>
    %cst_50 = arith.constant dense<0.000000e+00> : vector<256x8xf32>
    %70 = tpu.matmul %67, %69, %cst_50 {dimension_numbers = #tpu.dot_dimension_numbers<[1], [0], [0], [1], [0, 0, 1, 1], [], []>} : vector<256x8xbf16>, vector<8x8xbf16>, vector<256x8xf32> -> vector<256x8xf32>
    %71 = arith.addf %64, %70 : vector<256x8xf32>
    %72 = vector.extract_strided_slice %16 {offsets = [2, 2, 0], sizes = [16, 16, 8], strides = [1, 1, 1]} : vector<18x18x8xf32> to vector<16x16x8xf32>
    %73 = vector.shape_cast %72 : vector<16x16x8xf32> to vector<256x8xf32>
    %74 = arith.truncf %73 : vector<256x8xf32> to vector<256x8xbf16>
    %c8 = arith.constant 8 : index
    %c0_51 = arith.constant 0 : index
    %c0_52 = arith.constant 0 : index
    %75 = vector.load %arg3[%c8, %c0_51, %c0_52] : memref<9x8x8xbf16, #tpu.memory_space<vmem>>, vector<1x8x8xbf16>
    %76 = vector.shape_cast %75 : vector<1x8x8xbf16> to vector<8x8xbf16>
    %cst_53 = arith.constant dense<0.000000e+00> : vector<256x8xf32>
    %77 = tpu.matmul %74, %76, %cst_53 {dimension_numbers = #tpu.dot_dimension_numbers<[1], [0], [0], [1], [0, 0, 1, 1], [], []>} : vector<256x8xbf16>, vector<8x8xbf16>, vector<256x8xf32> -> vector<256x8xf32>
    %78 = arith.addf %71, %77 : vector<256x8xf32>
    %c0_54 = arith.constant 0 : index
    %c0_55 = arith.constant 0 : index
    %79 = vector.load %arg4[%c0_54, %c0_55] : memref<1x8xf32, #tpu.memory_space<vmem>>, vector<1x8xf32>
    %80 = vector.broadcast %79 : vector<1x8xf32> to vector<256x8xf32>
    %81 = arith.addf %78, %80 : vector<256x8xf32>
    %cst_56 = arith.constant 0.000000e+00 : f32
    %82 = vector.broadcast %cst_56 : f32 to vector<256x8xf32>
    %83 = arith.maximumf %81, %82 : vector<256x8xf32>
    %84 = vector.shape_cast %83 : vector<256x8xf32> to vector<16x16x8xf32>
    %c1_57 = arith.constant 1 : index
    %c1_58 = arith.constant 1 : index
    %c0_59 = arith.constant 0 : index
    %85 = vector.load %arg14[%c1_57, %c1_58, %c0_59] : memref<18x18x8xf32, #tpu.memory_space<vmem>>, vector<16x16x8xf32>
    tpu.vector_store %arg14[%c1_57, %c1_58, %c0_59], %84 {strides = array<i32>} : memref<18x18x8xf32, #tpu.memory_space<vmem>>, vector<16x16x8xf32>,
    %c0_60 = arith.constant 0 : index
    %c0_61 = arith.constant 0 : index
    %c0_62 = arith.constant 0 : index
    %86 = vector.load %arg14[%c0_60, %c0_61, %c0_62] : memref<18x18x8xf32, #tpu.memory_space<vmem>>, vector<18x18x8xf32>
    %87 = vector.extract_strided_slice %86 {offsets = [0, 0, 0], sizes = [16, 16, 8], strides = [1, 1, 1]} : vector<18x18x8xf32> to vector<16x16x8xf32>
    %88 = vector.shape_cast %87 : vector<16x16x8xf32> to vector<256x8xf32>
    %89 = arith.truncf %88 : vector<256x8xf32> to vector<256x8xbf16>
    %c0_63 = arith.constant 0 : index
    %c0_64 = arith.constant 0 : index
    %c0_65 = arith.constant 0 : index
    %90 = vector.load %arg5[%c0_63, %c0_64, %c0_65] : memref<9x8x8xbf16, #tpu.memory_space<vmem>>, vector<1x8x8xbf16>
    %91 = vector.shape_cast %90 : vector<1x8x8xbf16> to vector<8x8xbf16>
    %cst_66 = arith.constant dense<0.000000e+00> : vector<256x8xf32>
    %92 = tpu.matmul %89, %91, %cst_66 {dimension_numbers = #tpu.dot_dimension_numbers<[1], [0], [0], [1], [0, 0, 1, 1], [], []>} : vector<256x8xbf16>, vector<8x8xbf16>, vector<256x8xf32> -> vector<256x8xf32>
    %93 = vector.extract_strided_slice %86 {offsets = [0, 1, 0], sizes = [16, 16, 8], strides = [1, 1, 1]} : vector<18x18x8xf32> to vector<16x16x8xf32>
    %94 = vector.shape_cast %93 : vector<16x16x8xf32> to vector<256x8xf32>
    %95 = arith.truncf %94 : vector<256x8xf32> to vector<256x8xbf16>
    %c1_67 = arith.constant 1 : index
    %c0_68 = arith.constant 0 : index
    %c0_69 = arith.constant 0 : index
    %96 = vector.load %arg5[%c1_67, %c0_68, %c0_69] : memref<9x8x8xbf16, #tpu.memory_space<vmem>>, vector<1x8x8xbf16>
    %97 = vector.shape_cast %96 : vector<1x8x8xbf16> to vector<8x8xbf16>
    %cst_70 = arith.constant dense<0.000000e+00> : vector<256x8xf32>
    %98 = tpu.matmul %95, %97, %cst_70 {dimension_numbers = #tpu.dot_dimension_numbers<[1], [0], [0], [1], [0, 0, 1, 1], [], []>} : vector<256x8xbf16>, vector<8x8xbf16>, vector<256x8xf32> -> vector<256x8xf32>
    %99 = arith.addf %92, %98 : vector<256x8xf32>
    %100 = vector.extract_strided_slice %86 {offsets = [0, 2, 0], sizes = [16, 16, 8], strides = [1, 1, 1]} : vector<18x18x8xf32> to vector<16x16x8xf32>
    %101 = vector.shape_cast %100 : vector<16x16x8xf32> to vector<256x8xf32>
    %102 = arith.truncf %101 : vector<256x8xf32> to vector<256x8xbf16>
    %c2_71 = arith.constant 2 : index
    %c0_72 = arith.constant 0 : index
    %c0_73 = arith.constant 0 : index
    %103 = vector.load %arg5[%c2_71, %c0_72, %c0_73] : memref<9x8x8xbf16, #tpu.memory_space<vmem>>, vector<1x8x8xbf16>
    %104 = vector.shape_cast %103 : vector<1x8x8xbf16> to vector<8x8xbf16>
    %cst_74 = arith.constant dense<0.000000e+00> : vector<256x8xf32>
    %105 = tpu.matmul %102, %104, %cst_74 {dimension_numbers = #tpu.dot_dimension_numbers<[1], [0], [0], [1], [0, 0, 1, 1], [], []>} : vector<256x8xbf16>, vector<8x8xbf16>, vector<256x8xf32> -> vector<256x8xf32>
    %106 = arith.addf %99, %105 : vector<256x8xf32>
    %107 = vector.extract_strided_slice %86 {offsets = [1, 0, 0], sizes = [16, 16, 8], strides = [1, 1, 1]} : vector<18x18x8xf32> to vector<16x16x8xf32>
    %108 = vector.shape_cast %107 : vector<16x16x8xf32> to vector<256x8xf32>
    %109 = arith.truncf %108 : vector<256x8xf32> to vector<256x8xbf16>
    %c3_75 = arith.constant 3 : index
    %c0_76 = arith.constant 0 : index
    %c0_77 = arith.constant 0 : index
    %110 = vector.load %arg5[%c3_75, %c0_76, %c0_77] : memref<9x8x8xbf16, #tpu.memory_space<vmem>>, vector<1x8x8xbf16>
    %111 = vector.shape_cast %110 : vector<1x8x8xbf16> to vector<8x8xbf16>
    %cst_78 = arith.constant dense<0.000000e+00> : vector<256x8xf32>
    %112 = tpu.matmul %109, %111, %cst_78 {dimension_numbers = #tpu.dot_dimension_numbers<[1], [0], [0], [1], [0, 0, 1, 1], [], []>} : vector<256x8xbf16>, vector<8x8xbf16>, vector<256x8xf32> -> vector<256x8xf32>
    %113 = arith.addf %106, %112 : vector<256x8xf32>
    %114 = vector.extract_strided_slice %86 {offsets = [1, 1, 0], sizes = [16, 16, 8], strides = [1, 1, 1]} : vector<18x18x8xf32> to vector<16x16x8xf32>
    %115 = vector.shape_cast %114 : vector<16x16x8xf32> to vector<256x8xf32>
    %116 = arith.truncf %115 : vector<256x8xf32> to vector<256x8xbf16>
    %c4_79 = arith.constant 4 : index
    %c0_80 = arith.constant 0 : index
    %c0_81 = arith.constant 0 : index
    %117 = vector.load %arg5[%c4_79, %c0_80, %c0_81] : memref<9x8x8xbf16, #tpu.memory_space<vmem>>, vector<1x8x8xbf16>
    %118 = vector.shape_cast %117 : vector<1x8x8xbf16> to vector<8x8xbf16>
    %cst_82 = arith.constant dense<0.000000e+00> : vector<256x8xf32>
    %119 = tpu.matmul %116, %118, %cst_82 {dimension_numbers = #tpu.dot_dimension_numbers<[1], [0], [0], [1], [0, 0, 1, 1], [], []>} : vector<256x8xbf16>, vector<8x8xbf16>, vector<256x8xf32> -> vector<256x8xf32>
    %120 = arith.addf %113, %119 : vector<256x8xf32>
    %121 = vector.extract_strided_slice %86 {offsets = [1, 2, 0], sizes = [16, 16, 8], strides = [1, 1, 1]} : vector<18x18x8xf32> to vector<16x16x8xf32>
    %122 = vector.shape_cast %121 : vector<16x16x8xf32> to vector<256x8xf32>
    %123 = arith.truncf %122 : vector<256x8xf32> to vector<256x8xbf16>
    %c5_83 = arith.constant 5 : index
    %c0_84 = arith.constant 0 : index
    %c0_85 = arith.constant 0 : index
    %124 = vector.load %arg5[%c5_83, %c0_84, %c0_85] : memref<9x8x8xbf16, #tpu.memory_space<vmem>>, vector<1x8x8xbf16>
    %125 = vector.shape_cast %124 : vector<1x8x8xbf16> to vector<8x8xbf16>
    %cst_86 = arith.constant dense<0.000000e+00> : vector<256x8xf32>
    %126 = tpu.matmul %123, %125, %cst_86 {dimension_numbers = #tpu.dot_dimension_numbers<[1], [0], [0], [1], [0, 0, 1, 1], [], []>} : vector<256x8xbf16>, vector<8x8xbf16>, vector<256x8xf32> -> vector<256x8xf32>
    %127 = arith.addf %120, %126 : vector<256x8xf32>
    %128 = vector.extract_strided_slice %86 {offsets = [2, 0, 0], sizes = [16, 16, 8], strides = [1, 1, 1]} : vector<18x18x8xf32> to vector<16x16x8xf32>
    %129 = vector.shape_cast %128 : vector<16x16x8xf32> to vector<256x8xf32>
    %130 = arith.truncf %129 : vector<256x8xf32> to vector<256x8xbf16>
    %c6_87 = arith.constant 6 : index
    %c0_88 = arith.constant 0 : index
    %c0_89 = arith.constant 0 : index
    %131 = vector.load %arg5[%c6_87, %c0_88, %c0_89] : memref<9x8x8xbf16, #tpu.memory_space<vmem>>, vector<1x8x8xbf16>
    %132 = vector.shape_cast %131 : vector<1x8x8xbf16> to vector<8x8xbf16>
    %cst_90 = arith.constant dense<0.000000e+00> : vector<256x8xf32>
    %133 = tpu.matmul %130, %132, %cst_90 {dimension_numbers = #tpu.dot_dimension_numbers<[1], [0], [0], [1], [0, 0, 1, 1], [], []>} : vector<256x8xbf16>, vector<8x8xbf16>, vector<256x8xf32> -> vector<256x8xf32>
    %134 = arith.addf %127, %133 : vector<256x8xf32>
    %135 = vector.extract_strided_slice %86 {offsets = [2, 1, 0], sizes = [16, 16, 8], strides = [1, 1, 1]} : vector<18x18x8xf32> to vector<16x16x8xf32>
    %136 = vector.shape_cast %135 : vector<16x16x8xf32> to vector<256x8xf32>
    %137 = arith.truncf %136 : vector<256x8xf32> to vector<256x8xbf16>
    %c7_91 = arith.constant 7 : index
    %c0_92 = arith.constant 0 : index
    %c0_93 = arith.constant 0 : index
    %138 = vector.load %arg5[%c7_91, %c0_92, %c0_93] : memref<9x8x8xbf16, #tpu.memory_space<vmem>>, vector<1x8x8xbf16>
    %139 = vector.shape_cast %138 : vector<1x8x8xbf16> to vector<8x8xbf16>
    %cst_94 = arith.constant dense<0.000000e+00> : vector<256x8xf32>
    %140 = tpu.matmul %137, %139, %cst_94 {dimension_numbers = #tpu.dot_dimension_numbers<[1], [0], [0], [1], [0, 0, 1, 1], [], []>} : vector<256x8xbf16>, vector<8x8xbf16>, vector<256x8xf32> -> vector<256x8xf32>
    %141 = arith.addf %134, %140 : vector<256x8xf32>
    %142 = vector.extract_strided_slice %86 {offsets = [2, 2, 0], sizes = [16, 16, 8], strides = [1, 1, 1]} : vector<18x18x8xf32> to vector<16x16x8xf32>
    %143 = vector.shape_cast %142 : vector<16x16x8xf32> to vector<256x8xf32>
    %144 = arith.truncf %143 : vector<256x8xf32> to vector<256x8xbf16>
    %c8_95 = arith.constant 8 : index
    %c0_96 = arith.constant 0 : index
    %c0_97 = arith.constant 0 : index
    %145 = vector.load %arg5[%c8_95, %c0_96, %c0_97] : memref<9x8x8xbf16, #tpu.memory_space<vmem>>, vector<1x8x8xbf16>
    %146 = vector.shape_cast %145 : vector<1x8x8xbf16> to vector<8x8xbf16>
    %cst_98 = arith.constant dense<0.000000e+00> : vector<256x8xf32>
    %147 = tpu.matmul %144, %146, %cst_98 {dimension_numbers = #tpu.dot_dimension_numbers<[1], [0], [0], [1], [0, 0, 1, 1], [], []>} : vector<256x8xbf16>, vector<8x8xbf16>, vector<256x8xf32> -> vector<256x8xf32>
    %148 = arith.addf %141, %147 : vector<256x8xf32>
    %c0_99 = arith.constant 0 : index
    %c0_100 = arith.constant 0 : index
    %149 = vector.load %arg6[%c0_99, %c0_100] : memref<1x8xf32, #tpu.memory_space<vmem>>, vector<1x8xf32>
    %150 = vector.broadcast %149 : vector<1x8xf32> to vector<256x8xf32>
    %151 = arith.addf %148, %150 : vector<256x8xf32>
    %152 = arith.addf %151, %8 : vector<256x8xf32>
    %153 = arith.addf %152, %11 : vector<256x8xf32>
    %cst_101 = arith.constant 0.000000e+00 : f32
    %154 = vector.broadcast %cst_101 : f32 to vector<256x8xf32>
    %155 = arith.maximumf %153, %154 : vector<256x8xf32>
    %156 = vector.shape_cast %155 : vector<256x8xf32> to vector<16x16x8xf32>
    %c1_102 = arith.constant 1 : index
    %c1_103 = arith.constant 1 : index
    %c0_104 = arith.constant 0 : index
    %157 = vector.load %arg14[%c1_102, %c1_103, %c0_104] : memref<18x18x8xf32, #tpu.memory_space<vmem>>, vector<16x16x8xf32>
    tpu.vector_store %arg14[%c1_102, %c1_103, %c0_104], %156 {strides = array<i32>} : memref<18x18x8xf32, #tpu.memory_space<vmem>>, vector<16x16x8xf32>,
    %c0_105 = arith.constant 0 : index
    %c0_106 = arith.constant 0 : index
    %c0_107 = arith.constant 0 : index
    %158 = vector.load %arg14[%c0_105, %c0_106, %c0_107] : memref<18x18x8xf32, #tpu.memory_space<vmem>>, vector<18x18x8xf32>
    %159 = vector.extract_strided_slice %158 {offsets = [0, 0, 0], sizes = [16, 16, 8], strides = [1, 1, 1]} : vector<18x18x8xf32> to vector<16x16x8xf32>
    %160 = vector.shape_cast %159 : vector<16x16x8xf32> to vector<256x8xf32>
    %161 = arith.truncf %160 : vector<256x8xf32> to vector<256x8xbf16>
    %c0_108 = arith.constant 0 : index
    %c0_109 = arith.constant 0 : index
    %c0_110 = arith.constant 0 : index
    %162 = vector.load %arg7[%c0_108, %c0_109, %c0_110] : memref<9x8x8xbf16, #tpu.memory_space<vmem>>, vector<1x8x8xbf16>
    %163 = vector.shape_cast %162 : vector<1x8x8xbf16> to vector<8x8xbf16>
    %cst_111 = arith.constant dense<0.000000e+00> : vector<256x8xf32>
    %164 = tpu.matmul %161, %163, %cst_111 {dimension_numbers = #tpu.dot_dimension_numbers<[1], [0], [0], [1], [0, 0, 1, 1], [], []>} : vector<256x8xbf16>, vector<8x8xbf16>, vector<256x8xf32> -> vector<256x8xf32>
    %165 = vector.extract_strided_slice %158 {offsets = [0, 1, 0], sizes = [16, 16, 8], strides = [1, 1, 1]} : vector<18x18x8xf32> to vector<16x16x8xf32>
    %166 = vector.shape_cast %165 : vector<16x16x8xf32> to vector<256x8xf32>
    %167 = arith.truncf %166 : vector<256x8xf32> to vector<256x8xbf16>
    %c1_112 = arith.constant 1 : index
    %c0_113 = arith.constant 0 : index
    %c0_114 = arith.constant 0 : index
    %168 = vector.load %arg7[%c1_112, %c0_113, %c0_114] : memref<9x8x8xbf16, #tpu.memory_space<vmem>>, vector<1x8x8xbf16>
    %169 = vector.shape_cast %168 : vector<1x8x8xbf16> to vector<8x8xbf16>
    %cst_115 = arith.constant dense<0.000000e+00> : vector<256x8xf32>
    %170 = tpu.matmul %167, %169, %cst_115 {dimension_numbers = #tpu.dot_dimension_numbers<[1], [0], [0], [1], [0, 0, 1, 1], [], []>} : vector<256x8xbf16>, vector<8x8xbf16>, vector<256x8xf32> -> vector<256x8xf32>
    %171 = arith.addf %164, %170 : vector<256x8xf32>
    %172 = vector.extract_strided_slice %158 {offsets = [0, 2, 0], sizes = [16, 16, 8], strides = [1, 1, 1]} : vector<18x18x8xf32> to vector<16x16x8xf32>
    %173 = vector.shape_cast %172 : vector<16x16x8xf32> to vector<256x8xf32>
    %174 = arith.truncf %173 : vector<256x8xf32> to vector<256x8xbf16>
    %c2_116 = arith.constant 2 : index
    %c0_117 = arith.constant 0 : index
    %c0_118 = arith.constant 0 : index
    %175 = vector.load %arg7[%c2_116, %c0_117, %c0_118] : memref<9x8x8xbf16, #tpu.memory_space<vmem>>, vector<1x8x8xbf16>
    %176 = vector.shape_cast %175 : vector<1x8x8xbf16> to vector<8x8xbf16>
    %cst_119 = arith.constant dense<0.000000e+00> : vector<256x8xf32>
    %177 = tpu.matmul %174, %176, %cst_119 {dimension_numbers = #tpu.dot_dimension_numbers<[1], [0], [0], [1], [0, 0, 1, 1], [], []>} : vector<256x8xbf16>, vector<8x8xbf16>, vector<256x8xf32> -> vector<256x8xf32>
    %178 = arith.addf %171, %177 : vector<256x8xf32>
    %179 = vector.extract_strided_slice %158 {offsets = [1, 0, 0], sizes = [16, 16, 8], strides = [1, 1, 1]} : vector<18x18x8xf32> to vector<16x16x8xf32>
    %180 = vector.shape_cast %179 : vector<16x16x8xf32> to vector<256x8xf32>
    %181 = arith.truncf %180 : vector<256x8xf32> to vector<256x8xbf16>
    %c3_120 = arith.constant 3 : index
    %c0_121 = arith.constant 0 : index
    %c0_122 = arith.constant 0 : index
    %182 = vector.load %arg7[%c3_120, %c0_121, %c0_122] : memref<9x8x8xbf16, #tpu.memory_space<vmem>>, vector<1x8x8xbf16>
    %183 = vector.shape_cast %182 : vector<1x8x8xbf16> to vector<8x8xbf16>
    %cst_123 = arith.constant dense<0.000000e+00> : vector<256x8xf32>
    %184 = tpu.matmul %181, %183, %cst_123 {dimension_numbers = #tpu.dot_dimension_numbers<[1], [0], [0], [1], [0, 0, 1, 1], [], []>} : vector<256x8xbf16>, vector<8x8xbf16>, vector<256x8xf32> -> vector<256x8xf32>
    %185 = arith.addf %178, %184 : vector<256x8xf32>
    %186 = vector.extract_strided_slice %158 {offsets = [1, 1, 0], sizes = [16, 16, 8], strides = [1, 1, 1]} : vector<18x18x8xf32> to vector<16x16x8xf32>
    %187 = vector.shape_cast %186 : vector<16x16x8xf32> to vector<256x8xf32>
    %188 = arith.truncf %187 : vector<256x8xf32> to vector<256x8xbf16>
    %c4_124 = arith.constant 4 : index
    %c0_125 = arith.constant 0 : index
    %c0_126 = arith.constant 0 : index
    %189 = vector.load %arg7[%c4_124, %c0_125, %c0_126] : memref<9x8x8xbf16, #tpu.memory_space<vmem>>, vector<1x8x8xbf16>
    %190 = vector.shape_cast %189 : vector<1x8x8xbf16> to vector<8x8xbf16>
    %cst_127 = arith.constant dense<0.000000e+00> : vector<256x8xf32>
    %191 = tpu.matmul %188, %190, %cst_127 {dimension_numbers = #tpu.dot_dimension_numbers<[1], [0], [0], [1], [0, 0, 1, 1], [], []>} : vector<256x8xbf16>, vector<8x8xbf16>, vector<256x8xf32> -> vector<256x8xf32>
    %192 = arith.addf %185, %191 : vector<256x8xf32>
    %193 = vector.extract_strided_slice %158 {offsets = [1, 2, 0], sizes = [16, 16, 8], strides = [1, 1, 1]} : vector<18x18x8xf32> to vector<16x16x8xf32>
    %194 = vector.shape_cast %193 : vector<16x16x8xf32> to vector<256x8xf32>
    %195 = arith.truncf %194 : vector<256x8xf32> to vector<256x8xbf16>
    %c5_128 = arith.constant 5 : index
    %c0_129 = arith.constant 0 : index
    %c0_130 = arith.constant 0 : index
    %196 = vector.load %arg7[%c5_128, %c0_129, %c0_130] : memref<9x8x8xbf16, #tpu.memory_space<vmem>>, vector<1x8x8xbf16>
    %197 = vector.shape_cast %196 : vector<1x8x8xbf16> to vector<8x8xbf16>
    %cst_131 = arith.constant dense<0.000000e+00> : vector<256x8xf32>
    %198 = tpu.matmul %195, %197, %cst_131 {dimension_numbers = #tpu.dot_dimension_numbers<[1], [0], [0], [1], [0, 0, 1, 1], [], []>} : vector<256x8xbf16>, vector<8x8xbf16>, vector<256x8xf32> -> vector<256x8xf32>
    %199 = arith.addf %192, %198 : vector<256x8xf32>
    %200 = vector.extract_strided_slice %158 {offsets = [2, 0, 0], sizes = [16, 16, 8], strides = [1, 1, 1]} : vector<18x18x8xf32> to vector<16x16x8xf32>
    %201 = vector.shape_cast %200 : vector<16x16x8xf32> to vector<256x8xf32>
    %202 = arith.truncf %201 : vector<256x8xf32> to vector<256x8xbf16>
    %c6_132 = arith.constant 6 : index
    %c0_133 = arith.constant 0 : index
    %c0_134 = arith.constant 0 : index
    %203 = vector.load %arg7[%c6_132, %c0_133, %c0_134] : memref<9x8x8xbf16, #tpu.memory_space<vmem>>, vector<1x8x8xbf16>
    %204 = vector.shape_cast %203 : vector<1x8x8xbf16> to vector<8x8xbf16>
    %cst_135 = arith.constant dense<0.000000e+00> : vector<256x8xf32>
    %205 = tpu.matmul %202, %204, %cst_135 {dimension_numbers = #tpu.dot_dimension_numbers<[1], [0], [0], [1], [0, 0, 1, 1], [], []>} : vector<256x8xbf16>, vector<8x8xbf16>, vector<256x8xf32> -> vector<256x8xf32>
    %206 = arith.addf %199, %205 : vector<256x8xf32>
    %207 = vector.extract_strided_slice %158 {offsets = [2, 1, 0], sizes = [16, 16, 8], strides = [1, 1, 1]} : vector<18x18x8xf32> to vector<16x16x8xf32>
    %208 = vector.shape_cast %207 : vector<16x16x8xf32> to vector<256x8xf32>
    %209 = arith.truncf %208 : vector<256x8xf32> to vector<256x8xbf16>
    %c7_136 = arith.constant 7 : index
    %c0_137 = arith.constant 0 : index
    %c0_138 = arith.constant 0 : index
    %210 = vector.load %arg7[%c7_136, %c0_137, %c0_138] : memref<9x8x8xbf16, #tpu.memory_space<vmem>>, vector<1x8x8xbf16>
    %211 = vector.shape_cast %210 : vector<1x8x8xbf16> to vector<8x8xbf16>
    %cst_139 = arith.constant dense<0.000000e+00> : vector<256x8xf32>
    %212 = tpu.matmul %209, %211, %cst_139 {dimension_numbers = #tpu.dot_dimension_numbers<[1], [0], [0], [1], [0, 0, 1, 1], [], []>} : vector<256x8xbf16>, vector<8x8xbf16>, vector<256x8xf32> -> vector<256x8xf32>
    %213 = arith.addf %206, %212 : vector<256x8xf32>
    %214 = vector.extract_strided_slice %158 {offsets = [2, 2, 0], sizes = [16, 16, 8], strides = [1, 1, 1]} : vector<18x18x8xf32> to vector<16x16x8xf32>
    %215 = vector.shape_cast %214 : vector<16x16x8xf32> to vector<256x8xf32>
    %216 = arith.truncf %215 : vector<256x8xf32> to vector<256x8xbf16>
    %c8_140 = arith.constant 8 : index
    %c0_141 = arith.constant 0 : index
    %c0_142 = arith.constant 0 : index
    %217 = vector.load %arg7[%c8_140, %c0_141, %c0_142] : memref<9x8x8xbf16, #tpu.memory_space<vmem>>, vector<1x8x8xbf16>
    %218 = vector.shape_cast %217 : vector<1x8x8xbf16> to vector<8x8xbf16>
    %cst_143 = arith.constant dense<0.000000e+00> : vector<256x8xf32>
    %219 = tpu.matmul %216, %218, %cst_143 {dimension_numbers = #tpu.dot_dimension_numbers<[1], [0], [0], [1], [0, 0, 1, 1], [], []>} : vector<256x8xbf16>, vector<8x8xbf16>, vector<256x8xf32> -> vector<256x8xf32>
    %220 = arith.addf %213, %219 : vector<256x8xf32>
    %c0_144 = arith.constant 0 : index
    %c0_145 = arith.constant 0 : index
    %221 = vector.load %arg8[%c0_144, %c0_145] : memref<1x8xf32, #tpu.memory_space<vmem>>, vector<1x8xf32>
    %222 = vector.broadcast %221 : vector<1x8xf32> to vector<256x8xf32>
    %223 = arith.addf %220, %222 : vector<256x8xf32>
    %cst_146 = arith.constant 0.000000e+00 : f32
    %224 = vector.broadcast %cst_146 : f32 to vector<256x8xf32>
    %225 = arith.maximumf %223, %224 : vector<256x8xf32>
    %226 = vector.shape_cast %225 : vector<256x8xf32> to vector<16x16x8xf32>
    %c1_147 = arith.constant 1 : index
    %c1_148 = arith.constant 1 : index
    %c0_149 = arith.constant 0 : index
    %227 = vector.load %arg14[%c1_147, %c1_148, %c0_149] : memref<18x18x8xf32, #tpu.memory_space<vmem>>, vector<16x16x8xf32>
    tpu.vector_store %arg14[%c1_147, %c1_148, %c0_149], %226 {strides = array<i32>} : memref<18x18x8xf32, #tpu.memory_space<vmem>>, vector<16x16x8xf32>,
    %c0_150 = arith.constant 0 : index
    %c0_151 = arith.constant 0 : index
    %c0_152 = arith.constant 0 : index
    %228 = vector.load %arg14[%c0_150, %c0_151, %c0_152] : memref<18x18x8xf32, #tpu.memory_space<vmem>>, vector<18x18x8xf32>
    %229 = vector.extract_strided_slice %228 {offsets = [0, 0, 0], sizes = [16, 16, 8], strides = [1, 1, 1]} : vector<18x18x8xf32> to vector<16x16x8xf32>
    %230 = vector.shape_cast %229 : vector<16x16x8xf32> to vector<256x8xf32>
    %231 = arith.truncf %230 : vector<256x8xf32> to vector<256x8xbf16>
    %c0_153 = arith.constant 0 : index
    %c0_154 = arith.constant 0 : index
    %c0_155 = arith.constant 0 : index
    %232 = vector.load %arg9[%c0_153, %c0_154, %c0_155] : memref<9x8x8xbf16, #tpu.memory_space<vmem>>, vector<1x8x8xbf16>
    %233 = vector.shape_cast %232 : vector<1x8x8xbf16> to vector<8x8xbf16>
    %cst_156 = arith.constant dense<0.000000e+00> : vector<256x8xf32>
    %234 = tpu.matmul %231, %233, %cst_156 {dimension_numbers = #tpu.dot_dimension_numbers<[1], [0], [0], [1], [0, 0, 1, 1], [], []>} : vector<256x8xbf16>, vector<8x8xbf16>, vector<256x8xf32> -> vector<256x8xf32>
    %235 = vector.extract_strided_slice %228 {offsets = [0, 1, 0], sizes = [16, 16, 8], strides = [1, 1, 1]} : vector<18x18x8xf32> to vector<16x16x8xf32>
    %236 = vector.shape_cast %235 : vector<16x16x8xf32> to vector<256x8xf32>
    %237 = arith.truncf %236 : vector<256x8xf32> to vector<256x8xbf16>
    %c1_157 = arith.constant 1 : index
    %c0_158 = arith.constant 0 : index
    %c0_159 = arith.constant 0 : index
    %238 = vector.load %arg9[%c1_157, %c0_158, %c0_159] : memref<9x8x8xbf16, #tpu.memory_space<vmem>>, vector<1x8x8xbf16>
    %239 = vector.shape_cast %238 : vector<1x8x8xbf16> to vector<8x8xbf16>
    %cst_160 = arith.constant dense<0.000000e+00> : vector<256x8xf32>
    %240 = tpu.matmul %237, %239, %cst_160 {dimension_numbers = #tpu.dot_dimension_numbers<[1], [0], [0], [1], [0, 0, 1, 1], [], []>} : vector<256x8xbf16>, vector<8x8xbf16>, vector<256x8xf32> -> vector<256x8xf32>
    %241 = arith.addf %234, %240 : vector<256x8xf32>
    %242 = vector.extract_strided_slice %228 {offsets = [0, 2, 0], sizes = [16, 16, 8], strides = [1, 1, 1]} : vector<18x18x8xf32> to vector<16x16x8xf32>
    %243 = vector.shape_cast %242 : vector<16x16x8xf32> to vector<256x8xf32>
    %244 = arith.truncf %243 : vector<256x8xf32> to vector<256x8xbf16>
    %c2_161 = arith.constant 2 : index
    %c0_162 = arith.constant 0 : index
    %c0_163 = arith.constant 0 : index
    %245 = vector.load %arg9[%c2_161, %c0_162, %c0_163] : memref<9x8x8xbf16, #tpu.memory_space<vmem>>, vector<1x8x8xbf16>
    %246 = vector.shape_cast %245 : vector<1x8x8xbf16> to vector<8x8xbf16>
    %cst_164 = arith.constant dense<0.000000e+00> : vector<256x8xf32>
    %247 = tpu.matmul %244, %246, %cst_164 {dimension_numbers = #tpu.dot_dimension_numbers<[1], [0], [0], [1], [0, 0, 1, 1], [], []>} : vector<256x8xbf16>, vector<8x8xbf16>, vector<256x8xf32> -> vector<256x8xf32>
    %248 = arith.addf %241, %247 : vector<256x8xf32>
    %249 = vector.extract_strided_slice %228 {offsets = [1, 0, 0], sizes = [16, 16, 8], strides = [1, 1, 1]} : vector<18x18x8xf32> to vector<16x16x8xf32>
    %250 = vector.shape_cast %249 : vector<16x16x8xf32> to vector<256x8xf32>
    %251 = arith.truncf %250 : vector<256x8xf32> to vector<256x8xbf16>
    %c3_165 = arith.constant 3 : index
    %c0_166 = arith.constant 0 : index
    %c0_167 = arith.constant 0 : index
    %252 = vector.load %arg9[%c3_165, %c0_166, %c0_167] : memref<9x8x8xbf16, #tpu.memory_space<vmem>>, vector<1x8x8xbf16>
    %253 = vector.shape_cast %252 : vector<1x8x8xbf16> to vector<8x8xbf16>
    %cst_168 = arith.constant dense<0.000000e+00> : vector<256x8xf32>
    %254 = tpu.matmul %251, %253, %cst_168 {dimension_numbers = #tpu.dot_dimension_numbers<[1], [0], [0], [1], [0, 0, 1, 1], [], []>} : vector<256x8xbf16>, vector<8x8xbf16>, vector<256x8xf32> -> vector<256x8xf32>
    %255 = arith.addf %248, %254 : vector<256x8xf32>
    %256 = vector.extract_strided_slice %228 {offsets = [1, 1, 0], sizes = [16, 16, 8], strides = [1, 1, 1]} : vector<18x18x8xf32> to vector<16x16x8xf32>
    %257 = vector.shape_cast %256 : vector<16x16x8xf32> to vector<256x8xf32>
    %258 = arith.truncf %257 : vector<256x8xf32> to vector<256x8xbf16>
    %c4_169 = arith.constant 4 : index
    %c0_170 = arith.constant 0 : index
    %c0_171 = arith.constant 0 : index
    %259 = vector.load %arg9[%c4_169, %c0_170, %c0_171] : memref<9x8x8xbf16, #tpu.memory_space<vmem>>, vector<1x8x8xbf16>
    %260 = vector.shape_cast %259 : vector<1x8x8xbf16> to vector<8x8xbf16>
    %cst_172 = arith.constant dense<0.000000e+00> : vector<256x8xf32>
    %261 = tpu.matmul %258, %260, %cst_172 {dimension_numbers = #tpu.dot_dimension_numbers<[1], [0], [0], [1], [0, 0, 1, 1], [], []>} : vector<256x8xbf16>, vector<8x8xbf16>, vector<256x8xf32> -> vector<256x8xf32>
    %262 = arith.addf %255, %261 : vector<256x8xf32>
    %263 = vector.extract_strided_slice %228 {offsets = [1, 2, 0], sizes = [16, 16, 8], strides = [1, 1, 1]} : vector<18x18x8xf32> to vector<16x16x8xf32>
    %264 = vector.shape_cast %263 : vector<16x16x8xf32> to vector<256x8xf32>
    %265 = arith.truncf %264 : vector<256x8xf32> to vector<256x8xbf16>
    %c5_173 = arith.constant 5 : index
    %c0_174 = arith.constant 0 : index
    %c0_175 = arith.constant 0 : index
    %266 = vector.load %arg9[%c5_173, %c0_174, %c0_175] : memref<9x8x8xbf16, #tpu.memory_space<vmem>>, vector<1x8x8xbf16>
    %267 = vector.shape_cast %266 : vector<1x8x8xbf16> to vector<8x8xbf16>
    %cst_176 = arith.constant dense<0.000000e+00> : vector<256x8xf32>
    %268 = tpu.matmul %265, %267, %cst_176 {dimension_numbers = #tpu.dot_dimension_numbers<[1], [0], [0], [1], [0, 0, 1, 1], [], []>} : vector<256x8xbf16>, vector<8x8xbf16>, vector<256x8xf32> -> vector<256x8xf32>
    %269 = arith.addf %262, %268 : vector<256x8xf32>
    %270 = vector.extract_strided_slice %228 {offsets = [2, 0, 0], sizes = [16, 16, 8], strides = [1, 1, 1]} : vector<18x18x8xf32> to vector<16x16x8xf32>
    %271 = vector.shape_cast %270 : vector<16x16x8xf32> to vector<256x8xf32>
    %272 = arith.truncf %271 : vector<256x8xf32> to vector<256x8xbf16>
    %c6_177 = arith.constant 6 : index
    %c0_178 = arith.constant 0 : index
    %c0_179 = arith.constant 0 : index
    %273 = vector.load %arg9[%c6_177, %c0_178, %c0_179] : memref<9x8x8xbf16, #tpu.memory_space<vmem>>, vector<1x8x8xbf16>
    %274 = vector.shape_cast %273 : vector<1x8x8xbf16> to vector<8x8xbf16>
    %cst_180 = arith.constant dense<0.000000e+00> : vector<256x8xf32>
    %275 = tpu.matmul %272, %274, %cst_180 {dimension_numbers = #tpu.dot_dimension_numbers<[1], [0], [0], [1], [0, 0, 1, 1], [], []>} : vector<256x8xbf16>, vector<8x8xbf16>, vector<256x8xf32> -> vector<256x8xf32>
    %276 = arith.addf %269, %275 : vector<256x8xf32>
    %277 = vector.extract_strided_slice %228 {offsets = [2, 1, 0], sizes = [16, 16, 8], strides = [1, 1, 1]} : vector<18x18x8xf32> to vector<16x16x8xf32>
    %278 = vector.shape_cast %277 : vector<16x16x8xf32> to vector<256x8xf32>
    %279 = arith.truncf %278 : vector<256x8xf32> to vector<256x8xbf16>
    %c7_181 = arith.constant 7 : index
    %c0_182 = arith.constant 0 : index
    %c0_183 = arith.constant 0 : index
    %280 = vector.load %arg9[%c7_181, %c0_182, %c0_183] : memref<9x8x8xbf16, #tpu.memory_space<vmem>>, vector<1x8x8xbf16>
    %281 = vector.shape_cast %280 : vector<1x8x8xbf16> to vector<8x8xbf16>
    %cst_184 = arith.constant dense<0.000000e+00> : vector<256x8xf32>
    %282 = tpu.matmul %279, %281, %cst_184 {dimension_numbers = #tpu.dot_dimension_numbers<[1], [0], [0], [1], [0, 0, 1, 1], [], []>} : vector<256x8xbf16>, vector<8x8xbf16>, vector<256x8xf32> -> vector<256x8xf32>
    %283 = arith.addf %276, %282 : vector<256x8xf32>
    %284 = vector.extract_strided_slice %228 {offsets = [2, 2, 0], sizes = [16, 16, 8], strides = [1, 1, 1]} : vector<18x18x8xf32> to vector<16x16x8xf32>
    %285 = vector.shape_cast %284 : vector<16x16x8xf32> to vector<256x8xf32>
    %286 = arith.truncf %285 : vector<256x8xf32> to vector<256x8xbf16>
    %c8_185 = arith.constant 8 : index
    %c0_186 = arith.constant 0 : index
    %c0_187 = arith.constant 0 : index
    %287 = vector.load %arg9[%c8_185, %c0_186, %c0_187] : memref<9x8x8xbf16, #tpu.memory_space<vmem>>, vector<1x8x8xbf16>
    %288 = vector.shape_cast %287 : vector<1x8x8xbf16> to vector<8x8xbf16>
    %cst_188 = arith.constant dense<0.000000e+00> : vector<256x8xf32>
    %289 = tpu.matmul %286, %288, %cst_188 {dimension_numbers = #tpu.dot_dimension_numbers<[1], [0], [0], [1], [0, 0, 1, 1], [], []>} : vector<256x8xbf16>, vector<8x8xbf16>, vector<256x8xf32> -> vector<256x8xf32>
    %290 = arith.addf %283, %289 : vector<256x8xf32>
    %c0_189 = arith.constant 0 : index
    %c0_190 = arith.constant 0 : index
    %291 = vector.load %arg10[%c0_189, %c0_190] : memref<1x8xf32, #tpu.memory_space<vmem>>, vector<1x8xf32>
    %292 = vector.broadcast %291 : vector<1x8xf32> to vector<256x8xf32>
    %293 = arith.addf %290, %292 : vector<256x8xf32>
    %294 = arith.addf %293, %153 : vector<256x8xf32>
    %295 = arith.truncf %294 : vector<256x8xf32> to vector<256x8xbf16>
    %c0_191 = arith.constant 0 : index
    %c0_192 = arith.constant 0 : index
    %296 = vector.load %arg11[%c0_191, %c0_192] : memref<8x8xbf16, #tpu.memory_space<vmem>>, vector<8x8xbf16>
    %cst_193 = arith.constant dense<0.000000e+00> : vector<256x8xf32>
    %297 = tpu.matmul %295, %296, %cst_193 {dimension_numbers = #tpu.dot_dimension_numbers<[1], [0], [0], [1], [0, 0, 1, 1], [], []>} : vector<256x8xbf16>, vector<8x8xbf16>, vector<256x8xf32> -> vector<256x8xf32>
    %c0_194 = arith.constant 0 : index
    %c0_195 = arith.constant 0 : index
    %298 = vector.load %arg12[%c0_194, %c0_195] : memref<1x8xf32, #tpu.memory_space<vmem>>, vector<1x8xf32>
    %299 = vector.broadcast %298 : vector<1x8xf32> to vector<256x8xf32>
    %300 = arith.addf %297, %299 : vector<256x8xf32>
    %301 = vector.shape_cast %300 : vector<256x8xf32> to vector<16x16x8xf32>
    %c0_196 = arith.constant 0 : index
    %c0_197 = arith.constant 0 : index
    %c0_198 = arith.constant 0 : index
    %c0_199 = arith.constant 0 : index
    %302 = vector.load %arg13[%c0_196, %c0_197, %c0_198, %c0_199] : memref<1x16x16x8xf32, #tpu.memory_space<vmem>>, vector<1x16x16x8xf32>
    %303 = vector.shape_cast %302 : vector<1x16x16x8xf32> to vector<16x16x8xf32>
    %304 = vector.shape_cast %301 : vector<16x16x8xf32> to vector<1x16x16x8xf32>
    tpu.vector_store %arg13[%c0_196, %c0_197, %c0_198, %c0_199], %304 {strides = array<i32>} : memref<1x16x16x8xf32, #tpu.memory_space<vmem>>, vector<1x16x16x8xf32>,
    return
  }
  func.func @transform_0(%arg0: i32) -> (i32, i32, i32, i32) {
    %c0_i32 = arith.constant 0 : i32
    %c0_i32_0 = arith.constant 0 : i32
    %c0_i32_1 = arith.constant 0 : i32
    %c0_i32_2 = arith.constant 0 : i32
    return %arg0, %c0_i32, %c0_i32_0, %c0_i32_1 : i32, i32, i32, i32
  }
  func.func @transform_1(%arg0: i32) -> (i32, i32, i32, i32) {
    %c0_i32 = arith.constant 0 : i32
    %c0_i32_0 = arith.constant 0 : i32
    %c0_i32_1 = arith.constant 0 : i32
    %c0_i32_2 = arith.constant 0 : i32
    return %arg0, %c0_i32, %c0_i32_0, %c0_i32_1 : i32, i32, i32, i32
  }
  func.func @transform_2(%arg0: i32) -> (i32, i32, i32) {
    %c0_i32 = arith.constant 0 : i32
    %c0_i32_0 = arith.constant 0 : i32
    %c0_i32_1 = arith.constant 0 : i32
    %c0_i32_2 = arith.constant 0 : i32
    return %c0_i32, %c0_i32_0, %c0_i32_1 : i32, i32, i32
  }
  func.func @transform_3(%arg0: i32) -> (i32, i32) {
    %c0_i32 = arith.constant 0 : i32
    %c0_i32_0 = arith.constant 0 : i32
    %c0_i32_1 = arith.constant 0 : i32
    return %c0_i32, %c0_i32_0 : i32, i32
  }
  func.func @transform_4(%arg0: i32) -> (i32, i32, i32) {
    %c0_i32 = arith.constant 0 : i32
    %c0_i32_0 = arith.constant 0 : i32
    %c0_i32_1 = arith.constant 0 : i32
    %c0_i32_2 = arith.constant 0 : i32
    return %c0_i32, %c0_i32_0, %c0_i32_1 : i32, i32, i32
  }
  func.func @transform_5(%arg0: i32) -> (i32, i32) {
    %c0_i32 = arith.constant 0 : i32
    %c0_i32_0 = arith.constant 0 : i32
    %c0_i32_1 = arith.constant 0 : i32
    return %c0_i32, %c0_i32_0 : i32, i32
  }
  func.func @transform_6(%arg0: i32) -> (i32, i32, i32) {
    %c0_i32 = arith.constant 0 : i32
    %c0_i32_0 = arith.constant 0 : i32
    %c0_i32_1 = arith.constant 0 : i32
    %c0_i32_2 = arith.constant 0 : i32
    return %c0_i32, %c0_i32_0, %c0_i32_1 : i32, i32, i32
  }
  func.func @transform_7(%arg0: i32) -> (i32, i32) {
    %c0_i32 = arith.constant 0 : i32
    %c0_i32_0 = arith.constant 0 : i32
    %c0_i32_1 = arith.constant 0 : i32
    return %c0_i32, %c0_i32_0 : i32, i32
  }
  func.func @transform_8(%arg0: i32) -> (i32, i32, i32) {
    %c0_i32 = arith.constant 0 : i32
    %c0_i32_0 = arith.constant 0 : i32
    %c0_i32_1 = arith.constant 0 : i32
    %c0_i32_2 = arith.constant 0 : i32
    return %c0_i32, %c0_i32_0, %c0_i32_1 : i32, i32, i32
  }
  func.func @transform_9(%arg0: i32) -> (i32, i32) {
    %c0_i32 = arith.constant 0 : i32
    %c0_i32_0 = arith.constant 0 : i32
    %c0_i32_1 = arith.constant 0 : i32
    return %c0_i32, %c0_i32_0 : i32, i32
  }
  func.func @transform_10(%arg0: i32) -> (i32, i32) {
    %c0_i32 = arith.constant 0 : i32
    %c0_i32_0 = arith.constant 0 : i32
    %c0_i32_1 = arith.constant 0 : i32
    return %c0_i32, %c0_i32_0 : i32, i32
  }
  func.func @transform_11(%arg0: i32) -> (i32, i32) {
    %c0_i32 = arith.constant 0 : i32
    %c0_i32_0 = arith.constant 0 : i32
    %c0_i32_1 = arith.constant 0 : i32
    return %c0_i32, %c0_i32_0 : i32, i32
  }
  func.func @transform_12(%arg0: i32) -> (i32, i32, i32, i32) {
    %c0_i32 = arith.constant 0 : i32
    %c0_i32_0 = arith.constant 0 : i32
    %c0_i32_1 = arith.constant 0 : i32
    %c0_i32_2 = arith.constant 0 : i32
    return %arg0, %c0_i32, %c0_i32_0, %c0_i32_1 : i32, i32, i32, i32
  }
}

module attributes {stable_mosaic.version = 11 : i64} {
  func.func @_upsample_kernel(%arg0: i32, %arg1: i32, %arg2: memref<1x4x16x16xf32, #tpu.memory_space<vmem>>, %arg3: memref<32x16xbf16, #tpu.memory_space<vmem>>, %arg4: memref<16x32xbf16, #tpu.memory_space<vmem>>, %arg5: memref<1x4x32x32xf32, #tpu.memory_space<vmem>>) attributes {dimension_semantics = [#tpu.dimension_semantics<parallel>, #tpu.dimension_semantics<parallel>], iteration_bounds = array<i64: 2, 2>, scalar_prefetch = 0 : i64, scratch_operands = 0 : i64, tpu.core_type = #tpu.core_type<tc>, window_params = [{transform_indices = @transform_0, window_bounds = array<i64: 1, 4, 16, 16>}, {pipeline_mode = #tpu.pipeline_mode<synchronous>, transform_indices = @transform_1, window_bounds = array<i64: 32, 16>}, {pipeline_mode = #tpu.pipeline_mode<synchronous>, transform_indices = @transform_2, window_bounds = array<i64: 16, 32>}, {transform_indices = @transform_3, window_bounds = array<i64: 1, 4, 32, 32>}]} {
    %c0 = arith.constant 0 : index
    %c0_0 = arith.constant 0 : index
    %c0_1 = arith.constant 0 : index
    %c0_2 = arith.constant 0 : index
    %0 = vector.load %arg2[%c0, %c0_0, %c0_1, %c0_2] : memref<1x4x16x16xf32, #tpu.memory_space<vmem>>, vector<1x4x16x16xf32>
    %1 = vector.shape_cast %0 : vector<1x4x16x16xf32> to vector<4x16x16xf32>
    %2 = arith.truncf %1 : vector<4x16x16xf32> to vector<4x16x16xbf16>
    %3 = vector.shape_cast %2 : vector<4x16x16xbf16> to vector<64x16xbf16>
    %c0_3 = arith.constant 0 : index
    %c0_4 = arith.constant 0 : index
    %4 = vector.load %arg4[%c0_3, %c0_4] : memref<16x32xbf16, #tpu.memory_space<vmem>>, vector<16x32xbf16>
    %cst = arith.constant dense<0.000000e+00> : vector<64x32xf32>
    %5 = tpu.matmul %3, %4, %cst {dimension_numbers = #tpu.dot_dimension_numbers<[1], [0], [0], [1], [0, 0, 1, 1], [], []>} : vector<64x16xbf16>, vector<16x32xbf16>, vector<64x32xf32> -> vector<64x32xf32>
    %6 = vector.shape_cast %5 : vector<64x32xf32> to vector<4x16x32xf32>
    %c0_5 = arith.constant 0 : index
    %c0_6 = arith.constant 0 : index
    %7 = vector.load %arg3[%c0_5, %c0_6] : memref<32x16xbf16, #tpu.memory_space<vmem>>, vector<32x16xbf16>
    %8 = vector.shape_cast %7 : vector<32x16xbf16> to vector<1x32x16xbf16>
    %9 = vector.broadcast %8 : vector<1x32x16xbf16> to vector<4x32x16xbf16>
    %10 = arith.truncf %6 : vector<4x16x32xf32> to vector<4x16x32xbf16>
    "tpu.trace_start"() <{level = 10 : i32, message = "chk,ckw->chw"}> : () -> ()
    %cst_7 = arith.constant dense<0.000000e+00> : vector<4x32x32xf32>
    %11 = tpu.matmul %9, %10, %cst_7 {dimension_numbers = #tpu.dot_dimension_numbers<[2], [1], [1], [2], [0, 0, 0, 1, 1, 2], [0], [0]>} : vector<4x32x16xbf16>, vector<4x16x32xbf16>, vector<4x32x32xf32> -> vector<4x32x32xf32>
    "tpu.trace_stop"() : () -> ()
    %c0_8 = arith.constant 0 : index
    %c0_9 = arith.constant 0 : index
    %c0_10 = arith.constant 0 : index
    %c0_11 = arith.constant 0 : index
    %12 = vector.load %arg5[%c0_8, %c0_9, %c0_10, %c0_11] : memref<1x4x32x32xf32, #tpu.memory_space<vmem>>, vector<1x4x32x32xf32>
    %13 = vector.shape_cast %12 : vector<1x4x32x32xf32> to vector<4x32x32xf32>
    %14 = vector.shape_cast %11 : vector<4x32x32xf32> to vector<1x4x32x32xf32>
    tpu.vector_store %arg5[%c0_8, %c0_9, %c0_10, %c0_11], %14 {strides = array<i32>} : memref<1x4x32x32xf32, #tpu.memory_space<vmem>>, vector<1x4x32x32xf32>,
    return
  }
  func.func @transform_0(%arg0: i32, %arg1: i32) -> (i32, i32, i32, i32) {
    %c0_i32 = arith.constant 0 : i32
    %c0_i32_0 = arith.constant 0 : i32
    %c0_i32_1 = arith.constant 0 : i32
    return %arg0, %arg1, %c0_i32, %c0_i32_0 : i32, i32, i32, i32
  }
  func.func @transform_1(%arg0: i32, %arg1: i32) -> (i32, i32) {
    %c0_i32 = arith.constant 0 : i32
    %c0_i32_0 = arith.constant 0 : i32
    %c0_i32_1 = arith.constant 0 : i32
    return %c0_i32, %c0_i32_0 : i32, i32
  }
  func.func @transform_2(%arg0: i32, %arg1: i32) -> (i32, i32) {
    %c0_i32 = arith.constant 0 : i32
    %c0_i32_0 = arith.constant 0 : i32
    %c0_i32_1 = arith.constant 0 : i32
    return %c0_i32, %c0_i32_0 : i32, i32
  }
  func.func @transform_3(%arg0: i32, %arg1: i32) -> (i32, i32, i32, i32) {
    %c0_i32 = arith.constant 0 : i32
    %c0_i32_0 = arith.constant 0 : i32
    %c0_i32_1 = arith.constant 0 : i32
    return %arg0, %arg1, %c0_i32, %c0_i32_0 : i32, i32, i32, i32
  }
}

</mosaic_0001>

<llo_original>
// kernel: _lambda_.3
$region0: #{_lambda_.3}
  #allocation0 [shape = 'u32[]', space=smem, size = 0x4, offset = 0x4, fixed_abs, tag = 'smem constant byte address 0x4 - core index']
  #allocation1 [shape = 'u32[72,128]{1,0:T(1,128)}', space=vmem, size = 0x9000, scoped, tag = 'internal scratch']
  %s0 = inlined_call_operand.vmem [shape: f32[2,8,16,16], index: 0, kind: input, shape index: {}]
  %s1 = inlined_call_operand.vmem [shape: bf16[32,16], index: 1, kind: input, shape index: {}]
  %s2 = inlined_call_operand.vmem [shape: bf16[16,32], index: 2, kind: input, shape index: {}]
  %s3 = inlined_call_operand.hbm [shape: f32[2,8,32,32], index: 3, kind: output, shape index: {}]
  %s4 = sld [smem:[#allocation0]]
  $region45: #{_lambda_.3} parent=0
    _
  %s6 = ssub.s32 1, %s4
  %s7 = scalar_select 0, %s6, %s4
  $region1: #{_lambda_.3} parent=0
    #allocation2 [shape = 'u8[131072]{0}', space=vmem, size = 0x20000, scoped, tag = 'output window, operand 0']
    #allocation3 [shape = 's32[2]{0}', space=sflag, size = 0x8, scoped, tag = 'scoped memory for _lambda_.3']
    %8 = vsyncpa [#allocation3], 0
    %s9 = scalar_lea.sflag [#allocation3], 1
    %10 = vsyncpa %s9, 0
    loop: start=0, step=1, limit=6
    $region2: #{_lambda_.3} parent=1 // loop_pre_header
      _
    $region3: #{_lambda_.3} parent=1 // loop_header
      %s12 = sphi 0, %s16
      %p13 = scmp.ge.s32.totalorder %s12, 6
      %s19 = sphi 0, %s31
      %s20 = sphi 0, %s27
      %s21 = sphi 0, %s19
      %s22 = sphi 0, %s20
      %s23 = sphi 0, %s21
      %s24 = sphi 0, %s22
      %s36 = sphi 0, %s38
      %s39 = sphi 0, %s36
      %s40 = sphi 0, %s39
      %s56 = sphi 0, %s40
      %s60 = sphi 0, %s60
      %s62 = sphi 0, %s60
      %s63 = sphi 0, %s62
      %s77 = sphi 0, %s63
      %s81 = sphi 0, %s81
      %s83 = sphi 0, %s81
      %s84 = sphi 0, %s83
      %s98 = sphi 0, %s84
      %s106 = sphi 0, %s108
      %s109 = sphi 0, %s106
      %s110 = sphi 0, %s109
      %s126 = sphi 0, %s110
    $region4: #{_lambda_.3} parent=1 // loop_header_branch
      %15 = sbr.rel (%p13) target = $region8
    $region5: #{_lambda_.3} parent=1 // loop_body
      %s17 = ssub.s32 %s12, 1
      %s18 = ssub.s32 %s12, 2
      %s25 = sadd.s32 1, %s20
      %p26 = scmp.ge.s32.totalorder %s25, 2
      %s27 = scalar_select %p26, 0, %s25
      %s28 = sadd.s32 1, %s19
      %s29 = scalar_select %p26, %s28, %s19
      %p30 = scmp.ge.s32.totalorder %s29, 2
      %s31 = scalar_select %p30, 0, %s29
      %s32 = ssub.s32 %s19, %s31
      %s33 = ssub.s32 %s20, %s27
      %s34 = sor.u32 %s32, %s33
      %p35 = scmp.eq.s32.totalorder %s34, 0
      %s37 = sadd.s32 %s36, 1
      %s38 = scalar_select %p35, %s36, %s37
      %p41 = pneg %p35
      %p42 = scmp.eq.s32.totalorder %s12, 3
      %p43 = por %p41, %p42
      %p44 = scmp.ne.s32.totalorder %s36, %s39
      %p45 = scmp.eq.s32.totalorder %s12, 0
      %p46 = por %p44, %p45
      %p47 = scmp.ne.s32.totalorder %s36, %s39
      %p48 = scmp.eq.s32.totalorder %s17, 3
      %p49 = por %p47, %p48
      %p50 = scmp.ne.s32.totalorder %s39, %s40
      %p51 = scmp.eq.s32.totalorder %s17, 0
      %p52 = por %p50, %p51
      %p53 = scmp.ne.s32.totalorder %s39, %s40
      %p54 = scmp.eq.s32.totalorder %s18, 3
      %p55 = por %p53, %p54
      %p57 = scmp.ne.s32.totalorder %s40, %s56
      %p58 = scmp.eq.s32.totalorder %s18, 0
      %p59 = por %p57, %p58
      %s61 = sadd.s32 %s60, 1
      %p64 = scmp.eq.s32.totalorder %s12, 3
      %p65 = scmp.ne.s32.totalorder %s60, %s62
      %p66 = scmp.eq.s32.totalorder %s12, 0
      %p67 = por %p65, %p66
      %p68 = scmp.ne.s32.totalorder %s60, %s62
      %p69 = scmp.eq.s32.totalorder %s17, 3
      %p70 = por %p68, %p69
      %p71 = scmp.ne.s32.totalorder %s62, %s63
      %p72 = scmp.eq.s32.totalorder %s17, 0
      %p73 = por %p71, %p72
      %p74 = scmp.ne.s32.totalorder %s62, %s63
      %p75 = scmp.eq.s32.totalorder %s18, 3
      %p76 = por %p74, %p75
      %p78 = scmp.ne.s32.totalorder %s63, %s77
      %p79 = scmp.eq.s32.totalorder %s18, 0
      %p80 = por %p78, %p79
      %s82 = sadd.s32 %s81, 1
      %p85 = scmp.eq.s32.totalorder %s12, 3
      %p86 = scmp.ne.s32.totalorder %s81, %s83
      %p87 = scmp.eq.s32.totalorder %s12, 0
      %p88 = por %p86, %p87
      %p89 = scmp.ne.s32.totalorder %s81, %s83
      %p90 = scmp.eq.s32.totalorder %s17, 3
      %p91 = por %p89, %p90
      %p92 = scmp.ne.s32.totalorder %s83, %s84
      %p93 = scmp.eq.s32.totalorder %s17, 0
      %p94 = por %p92, %p93
      %p95 = scmp.ne.s32.totalorder %s83, %s84
      %p96 = scmp.eq.s32.totalorder %s18, 3
      %p97 = por %p95, %p96
      %p99 = scmp.ne.s32.totalorder %s84, %s98
      %p100 = scmp.eq.s32.totalorder %s18, 0
      %p101 = por %p99, %p100
      %s102 = ssub.s32 %s19, %s31
      %s103 = ssub.s32 %s20, %s27
      %s104 = sor.u32 %s102, %s103
      %p105 = scmp.eq.s32.totalorder %s104, 0
      %s107 = sadd.s32 %s106, 1
      %s108 = scalar_select %p105, %s106, %s107
      %p111 = pneg %p105
      %p112 = scmp.eq.s32.totalorder %s12, 3
      %p113 = por %p111, %p112
      %p114 = scmp.ne.s32.totalorder %s106, %s109
      %p115 = scmp.eq.s32.totalorder %s12, 0
      %p116 = por %p114, %p115
      %p117 = scmp.ne.s32.totalorder %s106, %s109
      %p118 = scmp.eq.s32.totalorder %s17, 3
      %p119 = por %p117, %p118
      %p120 = scmp.ne.s32.totalorder %s109, %s110
      %p121 = scmp.eq.s32.totalorder %s17, 0
      %p122 = por %p120, %p121
      %p123 = scmp.ne.s32.totalorder %s109, %s110
      %p124 = scmp.eq.s32.totalorder %s18, 3
      %p125 = por %p123, %p124
      %p127 = scmp.ne.s32.totalorder %s110, %s126
      %p128 = scmp.eq.s32.totalorder %s18, 0
      %p129 = por %p127, %p128
      %p130 = scmp.le.s32.totalorder 1, %s12
      %p131 = scmp.lt.s32.totalorder %s12, 5
      %p132 = pnand %p130, %p131
      %p133 = pneg %p132
      // Predicated region
      $region9: #{_lambda_.3} parent=5 // pred_check
        _
      $region10: #{_lambda_.3} parent=5 // pred_check_branch
        %135 = sbr.rel (%p132) target = $region12
      $region11: #{_lambda_.3} parent=5 // pred_region
        %s136 = ssub.s32 %s12, 1
        // Predicated region
        $region13: #{_lambda_.3} parent=11 // pred_check
          %p137 = pneg %p73
        $region14: #{_lambda_.3} parent=11 // pred_check_branch
          %139 = sbr.rel (%p137) target = $region16
        $region15: #{_lambda_.3} parent=11 // pred_region
          _
        $region16: #{_lambda_.3} parent=11 // pred_fallthru
          _
        // Predicated region
        $region17: #{_lambda_.3} parent=11 // pred_check
          %p140 = pneg %p94
        $region18: #{_lambda_.3} parent=11 // pred_check_branch
          %142 = sbr.rel (%p140) target = $region20
        $region19: #{_lambda_.3} parent=11 // pred_region
          _
        $region20: #{_lambda_.3} parent=11 // pred_fallthru
          _
      $region12: #{_lambda_.3} parent=5 // pred_fallthru
        _
      %p143 = scmp.lt.s32.totalorder %s12, 4
      // Predicated region
      $region21: #{_lambda_.3} parent=5 // pred_check
        %p144 = pneg %p143
      $region22: #{_lambda_.3} parent=5 // pred_check_branch
        %146 = sbr.rel (%p144) target = $region24
      $region23: #{_lambda_.3} parent=5 // pred_region
        // Predicated region
        $region25: #{_lambda_.3} parent=23 // pred_check
          %p147 = pneg %p46
        $region26: #{_lambda_.3} parent=23 // pred_check_branch
          %149 = sbr.rel (%p147) target = $region28
        $region27: #{_lambda_.3} parent=23 // pred_region
          %s150 = smul.u32 4, %s20
          %p151 = scmp.lt.s32.totalorder %s19, 1
          %s152 = scalar_select %p151, %s19, 1
          %p153 = scmp.lt.s32.totalorder %s150, 7
          %s154 = scalar_select %p153, %s150, 7
          %s155 = smul.addr %s154, 2
          %s156 = smul.addr %s152, 16
          %s157 = sadd.s32 %s155, %s156
          %s158 = smul.addr %s157, 8
          %s159 = scalar_lea.vmem %s0, %s158
          %s160 = smul.u32 4, %s20
        $region28: #{_lambda_.3} parent=23 // pred_fallthru
          _
      $region24: #{_lambda_.3} parent=5 // pred_fallthru
        _
      %p161 = scmp.le.s32.totalorder 1, %s12
      %p162 = scmp.lt.s32.totalorder %s12, 5
      %p163 = pnand %p161, %p162
      %p164 = pneg %p163
      // Predicated region
      $region29: #{_lambda_.3} parent=5 // pred_check
        _
      $region30: #{_lambda_.3} parent=5 // pred_check_branch
        %166 = sbr.rel (%p163) target = $region32
      $region31: #{_lambda_.3} parent=5 // pred_region
        %s167 = ssub.s32 %s12, 1
        %s168 = smul.u32 4, %s22
        %p169 = scmp.lt.s32.totalorder %s21, 1
        %s170 = scalar_select %p169, %s21, 1
        %p171 = scmp.lt.s32.totalorder %s168, 7
        %s172 = scalar_select %p171, %s168, 7
        %s173 = smul.addr %s172, 2
        %s174 = smul.addr %s170, 16
        %s175 = sadd.s32 %s173, %s174
        %s176 = smul.addr %s175, 8
        %s177 = scalar_lea.vmem %s0, %s176
        %p178 = pneg %p52
        %p179 = pneg %p49
        %p180 = pneg %p73
        %p181 = pneg %p70
        %p182 = pneg %p94
        %p183 = pneg %p91
        %p184 = pneg %p122
        %p185 = pneg %p119
        %s186 = sand.u32 %s109, 1
        %s187 = scalar_lea.sflag [#allocation3], %s186
        %s188 = sand.u32 %s109, 1
        %s189 = smul.addr %s188, 128
        %s190 = scalar_lea.vmem [#allocation2], %s189
        %s191 = smul.u32 4, %s22
        %p192 = scmp.lt.s32.totalorder %s21, 1
        %s193 = scalar_select %p192, %s21, 1
        %p194 = scmp.lt.s32.totalorder %s191, 7
        %s195 = scalar_select %p194, %s191, 7
        %s196 = smul.addr %s195, 2
        %s197 = smul.addr %s193, 16
        %s198 = sadd.s32 %s196, %s197
        %s199 = smul.addr %s198, 8
        %s200 = scalar_lea.vmem %s0, %s199
        %s201 = smul.u32 4, %s22
        %s202 = smul.u32 4, %s22
        %v204 = vld [vmem:[%s200] sm:$0xff]
        %v205 = vld [vmem:[%s200 + $0x8] sm:$0xff]
        %v206 = vld [vmem:[%s200 + $0x10] sm:$0xff]
        %v207 = vld [vmem:[%s200 + $0x18] sm:$0xff]
        %v208 = vld [vmem:[%s200 + $0x20] sm:$0xff]
        %v209 = vld [vmem:[%s200 + $0x28] sm:$0xff]
        %v210 = vld [vmem:[%s200 + $0x30] sm:$0xff]
        %v211 = vld [vmem:[%s200 + $0x38] sm:$0xff]
        %v212 = vpack.c.bf16 %v204, %v204
        %v213 = vpack.c.bf16 %v205, %v205
        %v214 = vpack.c.bf16 %v206, %v206
        %v215 = vpack.c.bf16 %v207, %v207
        %v216 = vpack.c.bf16 %v208, %v208
        %v217 = vpack.c.bf16 %v209, %v209
        %v218 = vpack.c.bf16 %v210, %v210
        %v219 = vpack.c.bf16 %v211, %v211
        %v220 = vld [vmem:[%s2] sm:$0xf]
        %v221 = vld [vmem:[%s2 + $0x4] sm:$0xf]
        %v230 = vunpack.c.l.b16 %v212
        %v231 = vunpack.c.l.b16 %v213
        %v232 = vunpack.c.l.b16 %v214
        %v233 = vunpack.c.l.b16 %v215
        %v234 = vunpack.c.l.b16 %v216
        %v235 = vunpack.c.l.b16 %v217
        %v236 = vunpack.c.l.b16 %v218
        %v237 = vunpack.c.l.b16 %v219
        %v238 = vpack.c.b16 %v231, %v230
        %v239 = vpack.c.b16 %v233, %v232
        %v240 = vpack.c.b16 %v235, %v234
        %v241 = vpack.c.b16 %v237, %v236
        %v244 = vunpack.c.l.b16 %v220
        %v245 = vunpack.c.l.b16 %v221
        %v246 = vpack.c.b16 %v245, %v244
        %vm248 = vcmask 130048
        %v250 = vsel %vm248, %v238, 0
        %v253 = vsel %vm248, %v239, 0
        %v256 = vsel %vm248, %v240, 0
        %v259 = vsel %vm248, %v241, 0
        %261 = vmatpush.bf16.msra.mxu0 0
        %262 = vmatpush.bf16.msra.mxu0 0
        %263 = vmatpush.bf16.msra.mxu0 0
        %264 = vmatpush.bf16.msra.mxu0 0
        %265 = vmatpush.bf16.msra.mxu0 0
        %266 = vmatpush.bf16.msra.mxu0 0
        %267 = vmatpush.bf16.msra.mxu0 0
        %268 = vmatpush.bf16.msra.mxu0 %v246
        %269 = vmatmul.bf16.gmra.mxu0 %v250
        %v270 = vpop.f32.mrf.mxu0
        %v271 = vadd.f32 0.0, %v270
        %v272 = vpop.f32.mrf.mxu0
        %v273 = vadd.f32 0.0, %v272
        %274 = vmatmul.bf16.gmra.mxu0 %v253
        %v275 = vpop.f32.mrf.mxu0
        %v276 = vadd.f32 0.0, %v275
        %v277 = vpop.f32.mrf.mxu0
        %v278 = vadd.f32 0.0, %v277
        %279 = vmatmul.bf16.gmra.mxu0 %v256
        %v280 = vpop.f32.mrf.mxu0
        %v281 = vadd.f32 0.0, %v280
        %v282 = vpop.f32.mrf.mxu0
        %v283 = vadd.f32 0.0, %v282
        %284 = vmatmul.bf16.gmra.mxu0 %v259
        %v285 = vpop.f32.mrf.mxu0
        %v286 = vadd.f32 0.0, %v285
        %v287 = vpop.f32.mrf.mxu0
        %v288 = vadd.f32 0.0, %v287
        %289 = vdwg.mxu0
        %v290 = vld [vmem:[%s1] sm:$0xf]
        %v291 = vld [vmem:[%s1 + $0x4] sm:$0xf]
        %v292 = vld [vmem:[%s1 + $0x8] sm:$0xf]
        %v293 = vld [vmem:[%s1 + $0xc] sm:$0xf]
        %v294 = vpack.c.bf16 %v271, %v271
        %v295 = vpack.c.bf16 %v273, %v273
        %v296 = vpack.c.bf16 %v276, %v276
        %v297 = vpack.c.bf16 %v278, %v278
        %v298 = vpack.c.bf16 %v281, %v281
        %v299 = vpack.c.bf16 %v283, %v283
        %v300 = vpack.c.bf16 %v286, %v286
        %v301 = vpack.c.bf16 %v288, %v288
        %v306 = vunpack.c.l.b16 %v290
        %v307 = vunpack.c.l.b16 %v291
        %v308 = vunpack.c.l.b16 %v292
        %v309 = vunpack.c.l.b16 %v293
        %v310 = vpack.c.b16 %v307, %v306
        %v311 = vpack.c.b16 %v309, %v308
        %v314 = vunpack.c.l.b16 %v294
        %v315 = vunpack.c.l.b16 %v295
        %v316 = vpack.c.b16 %v315, %v314
        %v319 = vsel %vm248, %v310, 0
        %v322 = vsel %vm248, %v311, 0
        %324 = vmatpush.bf16.msra.mxu0 0
        %325 = vmatpush.bf16.msra.mxu0 0
        %326 = vmatpush.bf16.msra.mxu0 0
        %327 = vmatpush.bf16.msra.mxu0 0
        %328 = vmatpush.bf16.msra.mxu0 0
        %329 = vmatpush.bf16.msra.mxu0 0
        %330 = vmatpush.bf16.msra.mxu0 0
        %331 = vmatpush.bf16.msra.mxu0 %v316
        %332 = vmatmul.bf16.gmra.mxu0 %v319
        %v333 = vpop.f32.mrf.mxu0
        %v334 = vadd.f32 0.0, %v333
        %v335 = vpop.f32.mrf.mxu0
        %v336 = vadd.f32 0.0, %v335
        %337 = vmatmul.bf16.gmra.mxu0 %v322
        %v338 = vpop.f32.mrf.mxu0
        %v339 = vadd.f32 0.0, %v338
        %v340 = vpop.f32.mrf.mxu0
        %v341 = vadd.f32 0.0, %v340
        %342 = vdwg.mxu0
        %v345 = vunpack.c.l.b16 %v296
        %v346 = vunpack.c.l.b16 %v297
        %v347 = vpack.c.b16 %v346, %v345
        %349 = vmatpush.bf16.msra.mxu0 0
        %350 = vmatpush.bf16.msra.mxu0 0
        %351 = vmatpush.bf16.msra.mxu0 0
        %352 = vmatpush.bf16.msra.mxu0 0
        %353 = vmatpush.bf16.msra.mxu0 0
        %354 = vmatpush.bf16.msra.mxu0 0
        %355 = vmatpush.bf16.msra.mxu0 0
        %356 = vmatpush.bf16.msra.mxu0 %v347
        %357 = vmatmul.bf16.gmra.mxu0 %v319
        %v358 = vpop.f32.mrf.mxu0
        %v359 = vadd.f32 0.0, %v358
        %v360 = vpop.f32.mrf.mxu0
        %v361 = vadd.f32 0.0, %v360
        %362 = vmatmul.bf16.gmra.mxu0 %v322
        %v363 = vpop.f32.mrf.mxu0
        %v364 = vadd.f32 0.0, %v363
        %v365 = vpop.f32.mrf.mxu0
        %v366 = vadd.f32 0.0, %v365
        %367 = vdwg.mxu0
        %v370 = vunpack.c.l.b16 %v298
        %v371 = vunpack.c.l.b16 %v299
        %v372 = vpack.c.b16 %v371, %v370
        %374 = vmatpush.bf16.msra.mxu0 0
        %375 = vmatpush.bf16.msra.mxu0 0
        %376 = vmatpush.bf16.msra.mxu0 0
        %377 = vmatpush.bf16.msra.mxu0 0
        %378 = vmatpush.bf16.msra.mxu0 0
        %379 = vmatpush.bf16.msra.mxu0 0
        %380 = vmatpush.bf16.msra.mxu0 0
        %381 = vmatpush.bf16.msra.mxu0 %v372
        %382 = vmatmul.bf16.gmra.mxu0 %v319
        %v383 = vpop.f32.mrf.mxu0
        %v384 = vadd.f32 0.0, %v383
        %v385 = vpop.f32.mrf.mxu0
        %v386 = vadd.f32 0.0, %v385
        %387 = vmatmul.bf16.gmra.mxu0 %v322
        %v388 = vpop.f32.mrf.mxu0
        %v389 = vadd.f32 0.0, %v388
        %v390 = vpop.f32.mrf.mxu0
        %v391 = vadd.f32 0.0, %v390
        %392 = vdwg.mxu0
        %v395 = vunpack.c.l.b16 %v300
        %v396 = vunpack.c.l.b16 %v301
        %v397 = vpack.c.b16 %v396, %v395
        %399 = vmatpush.bf16.msra.mxu0 0
        %400 = vmatpush.bf16.msra.mxu0 0
        %401 = vmatpush.bf16.msra.mxu0 0
        %402 = vmatpush.bf16.msra.mxu0 0
        %403 = vmatpush.bf16.msra.mxu0 0
        %404 = vmatpush.bf16.msra.mxu0 0
        %405 = vmatpush.bf16.msra.mxu0 0
        %406 = vmatpush.bf16.msra.mxu0 %v397
        %407 = vmatmul.bf16.gmra.mxu0 %v319
        %v408 = vpop.f32.mrf.mxu0
        %v409 = vadd.f32 0.0, %v408
        %v410 = vpop.f32.mrf.mxu0
        %v411 = vadd.f32 0.0, %v410
        %412 = vmatmul.bf16.gmra.mxu0 %v322
        %v413 = vpop.f32.mrf.mxu0
        %v414 = vadd.f32 0.0, %v413
        %v415 = vpop.f32.mrf.mxu0
        %v416 = vadd.f32 0.0, %v415
        %417 = vdwg.mxu0
        %vm418 = vcmask 261120
        %419 = vst.msk [vmem:[%s190] sm:$0xff] %vm418, %v334
        %420 = vst.msk [vmem:[%s190 + $0x8] sm:$0xff] %vm418, %v336
        %421 = vst.msk [vmem:[%s190 + $0x10] sm:$0xff] %vm418, %v339
        %422 = vst.msk [vmem:[%s190 + $0x18] sm:$0xff] %vm418, %v341
        %423 = vst.msk [vmem:[%s190 + $0x20] sm:$0xff] %vm418, %v359
        %424 = vst.msk [vmem:[%s190 + $0x28] sm:$0xff] %vm418, %v361
        %425 = vst.msk [vmem:[%s190 + $0x30] sm:$0xff] %vm418, %v364
        %426 = vst.msk [vmem:[%s190 + $0x38] sm:$0xff] %vm418, %v366
        %427 = vst.msk [vmem:[%s190 + $0x40] sm:$0xff] %vm418, %v384
        %428 = vst.msk [vmem:[%s190 + $0x48] sm:$0xff] %vm418, %v386
        %429 = vst.msk [vmem:[%s190 + $0x50] sm:$0xff] %vm418, %v389
        %430 = vst.msk [vmem:[%s190 + $0x58] sm:$0xff] %vm418, %v391
        %431 = vst.msk [vmem:[%s190 + $0x60] sm:$0xff] %vm418, %v409
        %432 = vst.msk [vmem:[%s190 + $0x68] sm:$0xff] %vm418, %v411
        %433 = vst.msk [vmem:[%s190 + $0x70] sm:$0xff] %vm418, %v414
        %434 = vst.msk [vmem:[%s190 + $0x78] sm:$0xff] %vm418, %v416
        %s435 = sand.u32 %s109, 1
        %s436 = scalar_lea.sflag [#allocation3], %s435
        %s437 = sand.u32 %s109, 1
        %s438 = smul.addr %s437, 128
        %s439 = scalar_lea.vmem [#allocation2], %s438
        // Predicated region
        $region33: #{_lambda_.3} parent=31 // pred_check
          %p440 = pneg %p119
        $region34: #{_lambda_.3} parent=31 // pred_check_branch
          %442 = sbr.rel (%p440) target = $region36
        $region35: #{_lambda_.3} parent=31 // pred_region
          %s443 = smul.u32 4, %s22
          %445 = vsyncadd %s436, 0
          %s446 = smul.addr %s443, 4
          %s447 = smul.addr %s21, 32
          %s448 = sadd.s32 %s446, %s447
          %s449 = smul.addr %s448, 8
          %s450 = scalar_lea.hbm %s3, %s449
          %s451 = sshll.u32 %s439, 4
          %s452 = int_to_ptr.vmem [resolvable:$true] %s451
          %s453 = sshll.u32 %s450, 4
          %s454 = int_to_ptr.hbm [resolvable:$true] %s453
          %459 = dma.vmem_to_hbm [thread:$0]  %s452, 2048, %s454, %s436, 128, 128, 8
        $region36: #{_lambda_.3} parent=31 // pred_fallthru
          _
      $region32: #{_lambda_.3} parent=5 // pred_fallthru
        _
      %p460 = scmp.le.s32.totalorder 2, %s12
      // Predicated region
      $region37: #{_lambda_.3} parent=5 // pred_check
        %p461 = pneg %p460
      $region38: #{_lambda_.3} parent=5 // pred_check_branch
        %463 = sbr.rel (%p461) target = $region40
      $region39: #{_lambda_.3} parent=5 // pred_region
        %s464 = ssub.s32 %s12, 2
        // Predicated region
        $region41: #{_lambda_.3} parent=39 // pred_check
          %p465 = pneg %p125
        $region42: #{_lambda_.3} parent=39 // pred_check_branch
          %467 = sbr.rel (%p465) target = $region44
        $region43: #{_lambda_.3} parent=39 // pred_region
          %s468 = sand.u32 %s110, 1
          %s469 = scalar_lea.sflag [#allocation3], %s468
          %s470 = sand.u32 %s110, 1
          %s471 = smul.addr %s470, 128
          %s472 = scalar_lea.vmem [#allocation2], %s471
          %474 = dma.done %s469, 2048
        $region44: #{_lambda_.3} parent=39 // pred_fallthru
          _
      $region40: #{_lambda_.3} parent=5 // pred_fallthru
        _
    $region6: #{_lambda_.3} parent=1 // loop_footer
      %s16 = sadd.s32 1, %s12
    $region7: #{_lambda_.3} parent=1 // loop_footer_branch
      %11 = sbr.rel target = $region3
    $region8: #{_lambda_.3} parent=1 // loop_exit
      _
    %475 = vsyncpa [#allocation3], 1
    %s476 = scalar_lea.sflag [#allocation3], 1
    %477 = vsyncpa %s476, 1

// kernel: _lambda_.2
$region0: #{_lambda_.2}
  #allocation0 [shape = 'u32[]', space=smem, size = 0x4, offset = 0x4, fixed_abs, tag = 'smem constant byte address 0x4 - core index']
  #allocation1 [shape = 'u32[72,128]{1,0:T(1,128)}', space=vmem, size = 0x9000, scoped, tag = 'internal scratch']
  #allocation2 [shape = 'f32[18,18,8]{2,1,0:T(8,128)}', space=vmem, size = 0x36000, scoped, tag = 'scratch operand']
  %s0 = inlined_call_operand.vmem [shape: f32[2,16,16,8], index: 0, kind: input, shape index: {}]
  %s1 = inlined_call_operand.vmem [shape: f32[2,16,16,8], index: 1, kind: input, shape index: {}]
  %s2 = inlined_call_operand.vmem [shape: bf16[9,8,8], index: 2, kind: input, shape index: {}]
  %s3 = inlined_call_operand.vmem [shape: f32[1,8], index: 3, kind: input, shape index: {}]
  %s4 = inlined_call_operand.vmem [shape: bf16[9,8,8], index: 4, kind: input, shape index: {}]
  %s5 = inlined_call_operand.vmem [shape: f32[1,8], index: 5, kind: input, shape index: {}]
  %s6 = inlined_call_operand.vmem [shape: bf16[9,8,8], index: 6, kind: input, shape index: {}]
  %s7 = inlined_call_operand.vmem [shape: f32[1,8], index: 7, kind: input, shape index: {}]
  %s8 = inlined_call_operand.vmem [shape: bf16[9,8,8], index: 8, kind: input, shape index: {}]
  %s9 = inlined_call_operand.vmem [shape: f32[1,8], index: 9, kind: input, shape index: {}]
  %s10 = inlined_call_operand.vmem [shape: bf16[8,8], index: 10, kind: input, shape index: {}]
  %s11 = inlined_call_operand.vmem [shape: f32[1,8], index: 11, kind: input, shape index: {}]
  %s12 = inlined_call_operand.vmem [shape: f32[2,16,16,8], index: 12, kind: output, shape index: {}]
  %s13 = sld [smem:[#allocation0]]
  $region81: #{_lambda_.2} parent=0
    _
  %s15 = ssub.s32 1, %s13
  %s16 = scalar_select 0, %s15, %s13
  loop: start=0, step=1, limit=4
  $region2: #{_lambda_.2} parent=0 // loop_pre_header
    _
  $region3: #{_lambda_.2} parent=0 // loop_header
    %s18 = sphi 0, %s22
    %p19 = scmp.ge.s32.totalorder %s18, 4
    %s28 = sphi 0, %s30
    %s31 = sphi 0, %s28
    %s32 = sphi 0, %s31
    %s48 = sphi 0, %s32
    %s54 = sphi 0, %s56
    %s57 = sphi 0, %s54
    %s58 = sphi 0, %s57
    %s74 = sphi 0, %s58
    %s78 = sphi 0, %s78
    %s80 = sphi 0, %s78
    %s81 = sphi 0, %s80
    %s95 = sphi 0, %s81
    %s99 = sphi 0, %s99
    %s101 = sphi 0, %s99
    %s102 = sphi 0, %s101
    %s116 = sphi 0, %s102
    %s120 = sphi 0, %s120
    %s122 = sphi 0, %s120
    %s123 = sphi 0, %s122
    %s137 = sphi 0, %s123
    %s141 = sphi 0, %s141
    %s143 = sphi 0, %s141
    %s144 = sphi 0, %s143
    %s158 = sphi 0, %s144
    %s162 = sphi 0, %s162
    %s164 = sphi 0, %s162
    %s165 = sphi 0, %s164
    %s179 = sphi 0, %s165
    %s183 = sphi 0, %s183
    %s185 = sphi 0, %s183
    %s186 = sphi 0, %s185
    %s200 = sphi 0, %s186
    %s204 = sphi 0, %s204
    %s206 = sphi 0, %s204
    %s207 = sphi 0, %s206
    %s221 = sphi 0, %s207
    %s225 = sphi 0, %s225
    %s227 = sphi 0, %s225
    %s228 = sphi 0, %s227
    %s242 = sphi 0, %s228
    %s246 = sphi 0, %s246
    %s248 = sphi 0, %s246
    %s249 = sphi 0, %s248
    %s263 = sphi 0, %s249
    %s267 = sphi 0, %s267
    %s269 = sphi 0, %s267
    %s270 = sphi 0, %s269
    %s284 = sphi 0, %s270
    %s290 = sphi 0, %s292
    %s293 = sphi 0, %s290
    %s294 = sphi 0, %s293
    %s310 = sphi 0, %s294
  $region4: #{_lambda_.2} parent=0 // loop_header_branch
    %21 = sbr.rel (%p19) target = $region8
  $region5: #{_lambda_.2} parent=0 // loop_body
    %s23 = ssub.s32 %s18, 1
    %s24 = ssub.s32 %s18, 2
    %s25 = sadd.s32 %s18, 1
    %s26 = ssub.s32 %s18, %s25
    %p27 = scmp.eq.s32.totalorder %s26, 0
    %s29 = sadd.s32 %s28, 1
    %s30 = scalar_select %p27, %s28, %s29
    %p33 = pneg %p27
    %p34 = scmp.eq.s32.totalorder %s18, 1
    %p35 = por %p33, %p34
    %p36 = scmp.ne.s32.totalorder %s28, %s31
    %p37 = scmp.eq.s32.totalorder %s18, 0
    %p38 = por %p36, %p37
    %p39 = scmp.ne.s32.totalorder %s28, %s31
    %p40 = scmp.eq.s32.totalorder %s23, 1
    %p41 = por %p39, %p40
    %p42 = scmp.ne.s32.totalorder %s31, %s32
    %p43 = scmp.eq.s32.totalorder %s23, 0
    %p44 = por %p42, %p43
    %p45 = scmp.ne.s32.totalorder %s31, %s32
    %p46 = scmp.eq.s32.totalorder %s24, 1
    %p47 = por %p45, %p46
    %p49 = scmp.ne.s32.totalorder %s32, %s48
    %p50 = scmp.eq.s32.totalorder %s24, 0
    %p51 = por %p49, %p50
    %s52 = ssub.s32 %s18, %s25
    %p53 = scmp.eq.s32.totalorder %s52, 0
    %s55 = sadd.s32 %s54, 1
    %s56 = scalar_select %p53, %s54, %s55
    %p59 = pneg %p53
    %p60 = scmp.eq.s32.totalorder %s18, 1
    %p61 = por %p59, %p60
    %p62 = scmp.ne.s32.totalorder %s54, %s57
    %p63 = scmp.eq.s32.totalorder %s18, 0
    %p64 = por %p62, %p63
    %p65 = scmp.ne.s32.totalorder %s54, %s57
    %p66 = scmp.eq.s32.totalorder %s23, 1
    %p67 = por %p65, %p66
    %p68 = scmp.ne.s32.totalorder %s57, %s58
    %p69 = scmp.eq.s32.totalorder %s23, 0
    %p70 = por %p68, %p69
    %p71 = scmp.ne.s32.totalorder %s57, %s58
    %p72 = scmp.eq.s32.totalorder %s24, 1
    %p73 = por %p71, %p72
    %p75 = scmp.ne.s32.totalorder %s58, %s74
    %p76 = scmp.eq.s32.totalorder %s24, 0
    %p77 = por %p75, %p76
    %s79 = sadd.s32 %s78, 1
    %p82 = scmp.eq.s32.totalorder %s18, 1
    %p83 = scmp.ne.s32.totalorder %s78, %s80
    %p84 = scmp.eq.s32.totalorder %s18, 0
    %p85 = por %p83, %p84
    %p86 = scmp.ne.s32.totalorder %s78, %s80
    %p87 = scmp.eq.s32.totalorder %s23, 1
    %p88 = por %p86, %p87
    %p89 = scmp.ne.s32.totalorder %s80, %s81
    %p90 = scmp.eq.s32.totalorder %s23, 0
    %p91 = por %p89, %p90
    %p92 = scmp.ne.s32.totalorder %s80, %s81
    %p93 = scmp.eq.s32.totalorder %s24, 1
    %p94 = por %p92, %p93
    %p96 = scmp.ne.s32.totalorder %s81, %s95
    %p97 = scmp.eq.s32.totalorder %s24, 0
    %p98 = por %p96, %p97
    %s100 = sadd.s32 %s99, 1
    %p103 = scmp.eq.s32.totalorder %s18, 1
    %p104 = scmp.ne.s32.totalorder %s99, %s101
    %p105 = scmp.eq.s32.totalorder %s18, 0
    %p106 = por %p104, %p105
    %p107 = scmp.ne.s32.totalorder %s99, %s101
    %p108 = scmp.eq.s32.totalorder %s23, 1
    %p109 = por %p107, %p108
    %p110 = scmp.ne.s32.totalorder %s101, %s102
    %p111 = scmp.eq.s32.totalorder %s23, 0
    %p112 = por %p110, %p111
    %p113 = scmp.ne.s32.totalorder %s101, %s102
    %p114 = scmp.eq.s32.totalorder %s24, 1
    %p115 = por %p113, %p114
    %p117 = scmp.ne.s32.totalorder %s102, %s116
    %p118 = scmp.eq.s32.totalorder %s24, 0
    %p119 = por %p117, %p118
    %s121 = sadd.s32 %s120, 1
    %p124 = scmp.eq.s32.totalorder %s18, 1
    %p125 = scmp.ne.s32.totalorder %s120, %s122
    %p126 = scmp.eq.s32.totalorder %s18, 0
    %p127 = por %p125, %p126
    %p128 = scmp.ne.s32.totalorder %s120, %s122
    %p129 = scmp.eq.s32.totalorder %s23, 1
    %p130 = por %p128, %p129
    %p131 = scmp.ne.s32.totalorder %s122, %s123
    %p132 = scmp.eq.s32.totalorder %s23, 0
    %p133 = por %p131, %p132
    %p134 = scmp.ne.s32.totalorder %s122, %s123
    %p135 = scmp.eq.s32.totalorder %s24, 1
    %p136 = por %p134, %p135
    %p138 = scmp.ne.s32.totalorder %s123, %s137
    %p139 = scmp.eq.s32.totalorder %s24, 0
    %p140 = por %p138, %p139
    %s142 = sadd.s32 %s141, 1
    %p145 = scmp.eq.s32.totalorder %s18, 1
    %p146 = scmp.ne.s32.totalorder %s141, %s143
    %p147 = scmp.eq.s32.totalorder %s18, 0
    %p148 = por %p146, %p147
    %p149 = scmp.ne.s32.totalorder %s141, %s143
    %p150 = scmp.eq.s32.totalorder %s23, 1
    %p151 = por %p149, %p150
    %p152 = scmp.ne.s32.totalorder %s143, %s144
    %p153 = scmp.eq.s32.totalorder %s23, 0
    %p154 = por %p152, %p153
    %p155 = scmp.ne.s32.totalorder %s143, %s144
    %p156 = scmp.eq.s32.totalorder %s24, 1
    %p157 = por %p155, %p156
    %p159 = scmp.ne.s32.totalorder %s144, %s158
    %p160 = scmp.eq.s32.totalorder %s24, 0
    %p161 = por %p159, %p160
    %s163 = sadd.s32 %s162, 1
    %p166 = scmp.eq.s32.totalorder %s18, 1
    %p167 = scmp.ne.s32.totalorder %s162, %s164
    %p168 = scmp.eq.s32.totalorder %s18, 0
    %p169 = por %p167, %p168
    %p170 = scmp.ne.s32.totalorder %s162, %s164
    %p171 = scmp.eq.s32.totalorder %s23, 1
    %p172 = por %p170, %p171
    %p173 = scmp.ne.s32.totalorder %s164, %s165
    %p174 = scmp.eq.s32.totalorder %s23, 0
    %p175 = por %p173, %p174
    %p176 = scmp.ne.s32.totalorder %s164, %s165
    %p177 = scmp.eq.s32.totalorder %s24, 1
    %p178 = por %p176, %p177
    %p180 = scmp.ne.s32.totalorder %s165, %s179
    %p181 = scmp.eq.s32.totalorder %s24, 0
    %p182 = por %p180, %p181
    %s184 = sadd.s32 %s183, 1
    %p187 = scmp.eq.s32.totalorder %s18, 1
    %p188 = scmp.ne.s32.totalorder %s183, %s185
    %p189 = scmp.eq.s32.totalorder %s18, 0
    %p190 = por %p188, %p189
    %p191 = scmp.ne.s32.totalorder %s183, %s185
    %p192 = scmp.eq.s32.totalorder %s23, 1
    %p193 = por %p191, %p192
    %p194 = scmp.ne.s32.totalorder %s185, %s186
    %p195 = scmp.eq.s32.totalorder %s23, 0
    %p196 = por %p194, %p195
    %p197 = scmp.ne.s32.totalorder %s185, %s186
    %p198 = scmp.eq.s32.totalorder %s24, 1
    %p199 = por %p197, %p198
    %p201 = scmp.ne.s32.totalorder %s186, %s200
    %p202 = scmp.eq.s32.totalorder %s24, 0
    %p203 = por %p201, %p202
    %s205 = sadd.s32 %s204, 1
    %p208 = scmp.eq.s32.totalorder %s18, 1
    %p209 = scmp.ne.s32.totalorder %s204, %s206
    %p210 = scmp.eq.s32.totalorder %s18, 0
    %p211 = por %p209, %p210
    %p212 = scmp.ne.s32.totalorder %s204, %s206
    %p213 = scmp.eq.s32.totalorder %s23, 1
    %p214 = por %p212, %p213
    %p215 = scmp.ne.s32.totalorder %s206, %s207
    %p216 = scmp.eq.s32.totalorder %s23, 0
    %p217 = por %p215, %p216
    %p218 = scmp.ne.s32.totalorder %s206, %s207
    %p219 = scmp.eq.s32.totalorder %s24, 1
    %p220 = por %p218, %p219
    %p222 = scmp.ne.s32.totalorder %s207, %s221
    %p223 = scmp.eq.s32.totalorder %s24, 0
    %p224 = por %p222, %p223
    %s226 = sadd.s32 %s225, 1
    %p229 = scmp.eq.s32.totalorder %s18, 1
    %p230 = scmp.ne.s32.totalorder %s225, %s227
    %p231 = scmp.eq.s32.totalorder %s18, 0
    %p232 = por %p230, %p231
    %p233 = scmp.ne.s32.totalorder %s225, %s227
    %p234 = scmp.eq.s32.totalorder %s23, 1
    %p235 = por %p233, %p234
    %p236 = scmp.ne.s32.totalorder %s227, %s228
    %p237 = scmp.eq.s32.totalorder %s23, 0
    %p238 = por %p236, %p237
    %p239 = scmp.ne.s32.totalorder %s227, %s228
    %p240 = scmp.eq.s32.totalorder %s24, 1
    %p241 = por %p239, %p240
    %p243 = scmp.ne.s32.totalorder %s228, %s242
    %p244 = scmp.eq.s32.totalorder %s24, 0
    %p245 = por %p243, %p244
    %s247 = sadd.s32 %s246, 1
    %p250 = scmp.eq.s32.totalorder %s18, 1
    %p251 = scmp.ne.s32.totalorder %s246, %s248
    %p252 = scmp.eq.s32.totalorder %s18, 0
    %p253 = por %p251, %p252
    %p254 = scmp.ne.s32.totalorder %s246, %s248
    %p255 = scmp.eq.s32.totalorder %s23, 1
    %p256 = por %p254, %p255
    %p257 = scmp.ne.s32.totalorder %s248, %s249
    %p258 = scmp.eq.s32.totalorder %s23, 0
    %p259 = por %p257, %p258
    %p260 = scmp.ne.s32.totalorder %s248, %s249
    %p261 = scmp.eq.s32.totalorder %s24, 1
    %p262 = por %p260, %p261
    %p264 = scmp.ne.s32.totalorder %s249, %s263
    %p265 = scmp.eq.s32.totalorder %s24, 0
    %p266 = por %p264, %p265
    %s268 = sadd.s32 %s267, 1
    %p271 = scmp.eq.s32.totalorder %s18, 1
    %p272 = scmp.ne.s32.totalorder %s267, %s269
    %p273 = scmp.eq.s32.totalorder %s18, 0
    %p274 = por %p272, %p273
    %p275 = scmp.ne.s32.totalorder %s267, %s269
    %p276 = scmp.eq.s32.totalorder %s23, 1
    %p277 = por %p275, %p276
    %p278 = scmp.ne.s32.totalorder %s269, %s270
    %p279 = scmp.eq.s32.totalorder %s23, 0
    %p280 = por %p278, %p279
    %p281 = scmp.ne.s32.totalorder %s269, %s270
    %p282 = scmp.eq.s32.totalorder %s24, 1
    %p283 = por %p281, %p282
    %p285 = scmp.ne.s32.totalorder %s270, %s284
    %p286 = scmp.eq.s32.totalorder %s24, 0
    %p287 = por %p285, %p286
    %s288 = ssub.s32 %s18, %s25
    %p289 = scmp.eq.s32.totalorder %s288, 0
    %s291 = sadd.s32 %s290, 1
    %s292 = scalar_select %p289, %s290, %s291
    %p295 = pneg %p289
    %p296 = scmp.eq.s32.totalorder %s18, 1
    %p297 = por %p295, %p296
    %p298 = scmp.ne.s32.totalorder %s290, %s293
    %p299 = scmp.eq.s32.totalorder %s18, 0
    %p300 = por %p298, %p299
    %p301 = scmp.ne.s32.totalorder %s290, %s293
    %p302 = scmp.eq.s32.totalorder %s23, 1
    %p303 = por %p301, %p302
    %p304 = scmp.ne.s32.totalorder %s293, %s294
    %p305 = scmp.eq.s32.totalorder %s23, 0
    %p306 = por %p304, %p305
    %p307 = scmp.ne.s32.totalorder %s293, %s294
    %p308 = scmp.eq.s32.totalorder %s24, 1
    %p309 = por %p307, %p308
    %p311 = scmp.ne.s32.totalorder %s294, %s310
    %p312 = scmp.eq.s32.totalorder %s24, 0
    %p313 = por %p311, %p312
    %p314 = scmp.le.s32.totalorder 1, %s18
    %p315 = scmp.lt.s32.totalorder %s18, 3
    %p316 = pnand %p314, %p315
    %p317 = pneg %p316
    // Predicated region
    $region9: #{_lambda_.2} parent=5 // pred_check
      _
    $region10: #{_lambda_.2} parent=5 // pred_check_branch
      %319 = sbr.rel (%p316) target = $region12
    $region11: #{_lambda_.2} parent=5 // pred_region
      %s320 = ssub.s32 %s18, 1
      // Predicated region
      $region13: #{_lambda_.2} parent=11 // pred_check
        %p321 = pneg %p91
      $region14: #{_lambda_.2} parent=11 // pred_check_branch
        %323 = sbr.rel (%p321) target = $region16
      $region15: #{_lambda_.2} parent=11 // pred_region
        _
      $region16: #{_lambda_.2} parent=11 // pred_fallthru
        _
      // Predicated region
      $region17: #{_lambda_.2} parent=11 // pred_check
        %p324 = pneg %p112
      $region18: #{_lambda_.2} parent=11 // pred_check_branch
        %326 = sbr.rel (%p324) target = $region20
      $region19: #{_lambda_.2} parent=11 // pred_region
        _
      $region20: #{_lambda_.2} parent=11 // pred_fallthru
        _
      // Predicated region
      $region21: #{_lambda_.2} parent=11 // pred_check
        %p327 = pneg %p133
      $region22: #{_lambda_.2} parent=11 // pred_check_branch
        %329 = sbr.rel (%p327) target = $region24
      $region23: #{_lambda_.2} parent=11 // pred_region
        _
      $region24: #{_lambda_.2} parent=11 // pred_fallthru
        _
      // Predicated region
      $region25: #{_lambda_.2} parent=11 // pred_check
        %p330 = pneg %p154
      $region26: #{_lambda_.2} parent=11 // pred_check_branch
        %332 = sbr.rel (%p330) target = $region28
      $region27: #{_lambda_.2} parent=11 // pred_region
        _
      $region28: #{_lambda_.2} parent=11 // pred_fallthru
        _
      // Predicated region
      $region29: #{_lambda_.2} parent=11 // pred_check
        %p333 = pneg %p175
      $region30: #{_lambda_.2} parent=11 // pred_check_branch
        %335 = sbr.rel (%p333) target = $region32
      $region31: #{_lambda_.2} parent=11 // pred_region
        _
      $region32: #{_lambda_.2} parent=11 // pred_fallthru
        _
      // Predicated region
      $region33: #{_lambda_.2} parent=11 // pred_check
        %p336 = pneg %p196
      $region34: #{_lambda_.2} parent=11 // pred_check_branch
        %338 = sbr.rel (%p336) target = $region36
      $region35: #{_lambda_.2} parent=11 // pred_region
        _
      $region36: #{_lambda_.2} parent=11 // pred_fallthru
        _
      // Predicated region
      $region37: #{_lambda_.2} parent=11 // pred_check
        %p339 = pneg %p217
      $region38: #{_lambda_.2} parent=11 // pred_check_branch
        %341 = sbr.rel (%p339) target = $region40
      $region39: #{_lambda_.2} parent=11 // pred_region
        _
      $region40: #{_lambda_.2} parent=11 // pred_fallthru
        _
      // Predicated region
      $region41: #{_lambda_.2} parent=11 // pred_check
        %p342 = pneg %p238
      $region42: #{_lambda_.2} parent=11 // pred_check_branch
        %344 = sbr.rel (%p342) target = $region44
      $region43: #{_lambda_.2} parent=11 // pred_region
        _
      $region44: #{_lambda_.2} parent=11 // pred_fallthru
        _
      // Predicated region
      $region45: #{_lambda_.2} parent=11 // pred_check
        %p345 = pneg %p259
      $region46: #{_lambda_.2} parent=11 // pred_check_branch
        %347 = sbr.rel (%p345) target = $region48
      $region47: #{_lambda_.2} parent=11 // pred_region
        _
      $region48: #{_lambda_.2} parent=11 // pred_fallthru
        _
      // Predicated region
      $region49: #{_lambda_.2} parent=11 // pred_check
        %p348 = pneg %p280
      $region50: #{_lambda_.2} parent=11 // pred_check_branch
        %350 = sbr.rel (%p348) target = $region52
      $region51: #{_lambda_.2} parent=11 // pred_region
        _
      $region52: #{_lambda_.2} parent=11 // pred_fallthru
        _
    $region12: #{_lambda_.2} parent=5 // pred_fallthru
      _
    %p351 = scmp.lt.s32.totalorder %s18, 2
    // Predicated region
    $region53: #{_lambda_.2} parent=5 // pred_check
      %p352 = pneg %p351
    $region54: #{_lambda_.2} parent=5 // pred_check_branch
      %354 = sbr.rel (%p352) target = $region56
    $region55: #{_lambda_.2} parent=5 // pred_region
      // Predicated region
      $region57: #{_lambda_.2} parent=55 // pred_check
        %p355 = pneg %p38
      $region58: #{_lambda_.2} parent=55 // pred_check_branch
        %357 = sbr.rel (%p355) target = $region60
      $region59: #{_lambda_.2} parent=55 // pred_region
        %p358 = scmp.lt.s32.totalorder %s18, 1
        %s359 = scalar_select %p358, %s18, 1
        %s360 = smul.addr %s359, 32
        %s361 = smul.addr %s360, 8
        %s362 = scalar_lea.vmem %s0, %s361
      $region60: #{_lambda_.2} parent=55 // pred_fallthru
        _
      // Predicated region
      $region61: #{_lambda_.2} parent=55 // pred_check
        %p363 = pneg %p64
      $region62: #{_lambda_.2} parent=55 // pred_check_branch
        %365 = sbr.rel (%p363) target = $region64
      $region63: #{_lambda_.2} parent=55 // pred_region
        %p366 = scmp.lt.s32.totalorder %s18, 1
        %s367 = scalar_select %p366, %s18, 1
        %s368 = smul.addr %s367, 32
        %s369 = smul.addr %s368, 8
        %s370 = scalar_lea.vmem %s1, %s369
      $region64: #{_lambda_.2} parent=55 // pred_fallthru
        _
    $region56: #{_lambda_.2} parent=5 // pred_fallthru
      _
    %p371 = scmp.le.s32.totalorder 1, %s18
    %p372 = scmp.lt.s32.totalorder %s18, 3
    %p373 = pnand %p371, %p372
    %p374 = pneg %p373
    // Predicated region
    $region65: #{_lambda_.2} parent=5 // pred_check
      _
    $region66: #{_lambda_.2} parent=5 // pred_check_branch
      %376 = sbr.rel (%p373) target = $region68
    $region67: #{_lambda_.2} parent=5 // pred_region
      %s377 = ssub.s32 %s18, 1
      %p378 = scmp.lt.s32.totalorder %s23, 1
      %s379 = scalar_select %p378, %s23, 1
      %s380 = smul.addr %s379, 32
      %s381 = smul.addr %s380, 8
      %s382 = scalar_lea.vmem %s0, %s381
      %p383 = pneg %p44
      %p384 = pneg %p41
      %p385 = scmp.lt.s32.totalorder %s23, 1
      %s386 = scalar_select %p385, %s23, 1
      %s387 = smul.addr %s386, 32
      %s388 = smul.addr %s387, 8
      %s389 = scalar_lea.vmem %s1, %s388
      %p390 = pneg %p70
      %p391 = pneg %p67
      %p392 = pneg %p91
      %p393 = pneg %p88
      %p394 = pneg %p112
      %p395 = pneg %p109
      %p396 = pneg %p133
      %p397 = pneg %p130
      %p398 = pneg %p154
      %p399 = pneg %p151
      %p400 = pneg %p175
      %p401 = pneg %p172
      %p402 = pneg %p196
      %p403 = pneg %p193
      %p404 = pneg %p217
      %p405 = pneg %p214
      %p406 = pneg %p238
      %p407 = pneg %p235
      %p408 = pneg %p259
      %p409 = pneg %p256
      %p410 = pneg %p280
      %p411 = pneg %p277
      %p412 = pneg %p306
      %p413 = pneg %p303
      %p414 = scmp.lt.s32.totalorder %s23, 1
      %s415 = scalar_select %p414, %s23, 1
      %s416 = smul.addr %s415, 32
      %s417 = smul.addr %s416, 8
      %s418 = scalar_lea.vmem %s12, %s417
      %p419 = scmp.lt.s32.totalorder %s23, 1
      %s420 = scalar_select %p419, %s23, 1
      %s421 = smul.addr %s420, 32
      %s422 = smul.addr %s421, 8
      %s423 = scalar_lea.vmem %s0, %s422
      %p424 = scmp.lt.s32.totalorder %s23, 1
      %s425 = scalar_select %p424, %s23, 1
      %s426 = smul.addr %s425, 32
      %s427 = smul.addr %s426, 8
      %s428 = scalar_lea.vmem %s1, %s427
      %p429 = scmp.lt.s32.totalorder %s23, 1
      %s430 = scalar_select %p429, %s23, 1
      %s431 = smul.addr %s430, 32
      %s432 = smul.addr %s431, 8
      %s433 = scalar_lea.vmem %s12, %s432
      %vm435 = vcmask 64512
      %436 = vst.msk [vmem:[#allocation2] sm:$0xff] %vm435, 0.0
      %437 = vst.msk [vmem:[#allocation2 + $0x8] sm:$0xff] %vm435, 0.0
      %vm438 = vcmask 58368
      %439 = vst.msk [vmem:[#allocation2 + $0x10] sm:$0x3] %vm438, 0.0
      %s440 = scalar_lea.vmem [#allocation2], 408
      %441 = vst.msk [vmem:[%s440] sm:$0xff] %vm435, 0.0
      %442 = vst.msk [vmem:[%s440 + $0x8] sm:$0xff] %vm435, 0.0
      %443 = vst.msk [vmem:[%s440 + $0x10] sm:$0x3] %vm438, 0.0
      %vm444 = vcmask 57344
      %445 = vst.msk [vmem:[#allocation2] sm:$0x1] %vm444, 0.0
      %446 = vst.msk [vmem:[#allocation2 + $0x18] sm:$0x1] %vm444, 0.0
      %447 = vst.msk [vmem:[#allocation2 + $0x30] sm:$0x1] %vm444, 0.0
      %448 = vst.msk [vmem:[#allocation2 + $0x48] sm:$0x1] %vm444, 0.0
      %449 = vst.msk [vmem:[#allocation2 + $0x60] sm:$0x1] %vm444, 0.0
      %450 = vst.msk [vmem:[#allocation2 + $0x78] sm:$0x1] %vm444, 0.0
      %451 = vst.msk [vmem:[#allocation2 + $0x90] sm:$0x1] %vm444, 0.0
      %452 = vst.msk [vmem:[#allocation2 + $0xa8] sm:$0x1] %vm444, 0.0
      %453 = vst.msk [vmem:[#allocation2 + $0xc0] sm:$0x1] %vm444, 0.0
      %454 = vst.msk [vmem:[#allocation2 + $0xd8] sm:$0x1] %vm444, 0.0
      %455 = vst.msk [vmem:[#allocation2 + $0xf0] sm:$0x1] %vm444, 0.0
      %456 = vst.msk [vmem:[#allocation2 + $0x108] sm:$0x1] %vm444, 0.0
      %457 = vst.msk [vmem:[#allocation2 + $0x120] sm:$0x1] %vm444, 0.0
      %458 = vst.msk [vmem:[#allocation2 + $0x138] sm:$0x1] %vm444, 0.0
      %459 = vst.msk [vmem:[#allocation2 + $0x150] sm:$0x1] %vm444, 0.0
      %460 = vst.msk [vmem:[#allocation2 + $0x168] sm:$0x1] %vm444, 0.0
      %461 = vst.msk [vmem:[#allocation2 + $0x180] sm:$0x1] %vm444, 0.0
      %462 = vst.msk [vmem:[#allocation2 + $0x198] sm:$0x1] %vm444, 0.0
      %463 = vst.msk [vmem:[#allocation2 + $0x11] sm:$0x1] %vm444, 0.0
      %464 = vst.msk [vmem:[#allocation2 + $0x29] sm:$0x1] %vm444, 0.0
      %465 = vst.msk [vmem:[#allocation2 + $0x41] sm:$0x1] %vm444, 0.0
      %466 = vst.msk [vmem:[#allocation2 + $0x59] sm:$0x1] %vm444, 0.0
      %467 = vst.msk [vmem:[#allocation2 + $0x71] sm:$0x1] %vm444, 0.0
      %468 = vst.msk [vmem:[#allocation2 + $0x89] sm:$0x1] %vm444, 0.0
      %469 = vst.msk [vmem:[#allocation2 + $0xa1] sm:$0x1] %vm444, 0.0
      %470 = vst.msk [vmem:[#allocation2 + $0xb9] sm:$0x1] %vm444, 0.0
      %471 = vst.msk [vmem:[#allocation2 + $0xd1] sm:$0x1] %vm444, 0.0
      %472 = vst.msk [vmem:[#allocation2 + $0xe9] sm:$0x1] %vm444, 0.0
      %473 = vst.msk [vmem:[#allocation2 + $0x101] sm:$0x1] %vm444, 0.0
      %474 = vst.msk [vmem:[#allocation2 + $0x119] sm:$0x1] %vm444, 0.0
      %475 = vst.msk [vmem:[#allocation2 + $0x131] sm:$0x1] %vm444, 0.0
      %476 = vst.msk [vmem:[#allocation2 + $0x149] sm:$0x1] %vm444, 0.0
      %477 = vst.msk [vmem:[#allocation2 + $0x161] sm:$0x1] %vm444, 0.0
      %478 = vst.msk [vmem:[#allocation2 + $0x179] sm:$0x1] %vm444, 0.0
      %479 = vst.msk [vmem:[#allocation2 + $0x191] sm:$0x1] %vm444, 0.0
      %480 = vst.msk [vmem:[#allocation2 + $0x1a9] sm:$0x1] %vm444, 0.0
      %v481 = vld [vmem:[%s428] sm:$0xff]
      %v482 = vld [vmem:[%s428 + $0x8] sm:$0xff]
      %v483 = vld [vmem:[%s428 + $0x10] sm:$0xff]
      %v484 = vld [vmem:[%s428 + $0x18] sm:$0xff]
      %v485 = vld [vmem:[%s428 + $0x20] sm:$0xff]
      %v486 = vld [vmem:[%s428 + $0x28] sm:$0xff]
      %v487 = vld [vmem:[%s428 + $0x30] sm:$0xff]
      %v488 = vld [vmem:[%s428 + $0x38] sm:$0xff]
      %v489 = vld [vmem:[%s428 + $0x40] sm:$0xff]
      %v490 = vld [vmem:[%s428 + $0x48] sm:$0xff]
      %v491 = vld [vmem:[%s428 + $0x50] sm:$0xff]
      %v492 = vld [vmem:[%s428 + $0x58] sm:$0xff]
      %v493 = vld [vmem:[%s428 + $0x60] sm:$0xff]
      %v494 = vld [vmem:[%s428 + $0x68] sm:$0xff]
      %v495 = vld [vmem:[%s428 + $0x70] sm:$0xff]
      %v496 = vld [vmem:[%s428 + $0x78] sm:$0xff]
      %v497 = vld [vmem:[%s428 + $0x80] sm:$0xff]
      %v498 = vld [vmem:[%s428 + $0x88] sm:$0xff]
      %v499 = vld [vmem:[%s428 + $0x90] sm:$0xff]
      %v500 = vld [vmem:[%s428 + $0x98] sm:$0xff]
      %v501 = vld [vmem:[%s428 + $0xa0] sm:$0xff]
      %v502 = vld [vmem:[%s428 + $0xa8] sm:$0xff]
      %v503 = vld [vmem:[%s428 + $0xb0] sm:$0xff]
      %v504 = vld [vmem:[%s428 + $0xb8] sm:$0xff]
      %v505 = vld [vmem:[%s428 + $0xc0] sm:$0xff]
      %v506 = vld [vmem:[%s428 + $0xc8] sm:$0xff]
      %v507 = vld [vmem:[%s428 + $0xd0] sm:$0xff]
      %v508 = vld [vmem:[%s428 + $0xd8] sm:$0xff]
      %v509 = vld [vmem:[%s428 + $0xe0] sm:$0xff]
      %v510 = vld [vmem:[%s428 + $0xe8] sm:$0xff]
      %v511 = vld [vmem:[%s428 + $0xf0] sm:$0xff]
      %v512 = vld [vmem:[%s428 + $0xf8] sm:$0xff]
      %v513 = vld [vmem:[%s423] sm:$0xff]
      %v514 = vld [vmem:[%s423 + $0x8] sm:$0xff]
      %v515 = vld [vmem:[%s423 + $0x10] sm:$0xff]
      %v516 = vld [vmem:[%s423 + $0x18] sm:$0xff]
      %v517 = vld [vmem:[%s423 + $0x20] sm:$0xff]
      %v518 = vld [vmem:[%s423 + $0x28] sm:$0xff]
      %v519 = vld [vmem:[%s423 + $0x30] sm:$0xff]
      %v520 = vld [vmem:[%s423 + $0x38] sm:$0xff]
      %v521 = vld [vmem:[%s423 + $0x40] sm:$0xff]
      %v522 = vld [vmem:[%s423 + $0x48] sm:$0xff]
      %v523 = vld [vmem:[%s423 + $0x50] sm:$0xff]
      %v524 = vld [vmem:[%s423 + $0x58] sm:$0xff]
      %v525 = vld [vmem:[%s423 + $0x60] sm:$0xff]
      %v526 = vld [vmem:[%s423 + $0x68] sm:$0xff]
      %v527 = vld [vmem:[%s423 + $0x70] sm:$0xff]
      %v528 = vld [vmem:[%s423 + $0x78] sm:$0xff]
      %v529 = vld [vmem:[%s423 + $0x80] sm:$0xff]
      %v530 = vld [vmem:[%s423 + $0x88] sm:$0xff]
      %v531 = vld [vmem:[%s423 + $0x90] sm:$0xff]
      %v532 = vld [vmem:[%s423 + $0x98] sm:$0xff]
      %v533 = vld [vmem:[%s423 + $0xa0] sm:$0xff]
      %v534 = vld [vmem:[%s423 + $0xa8] sm:$0xff]
      %v535 = vld [vmem:[%s423 + $0xb0] sm:$0xff]
      %v536 = vld [vmem:[%s423 + $0xb8] sm:$0xff]
      %v537 = vld [vmem:[%s423 + $0xc0] sm:$0xff]
      %v538 = vld [vmem:[%s423 + $0xc8] sm:$0xff]
      %v539 = vld [vmem:[%s423 + $0xd0] sm:$0xff]
      %v540 = vld [vmem:[%s423 + $0xd8] sm:$0xff]
      %v541 = vld [vmem:[%s423 + $0xe0] sm:$0xff]
      %v542 = vld [vmem:[%s423 + $0xe8] sm:$0xff]
      %v543 = vld [vmem:[%s423 + $0xf0] sm:$0xff]
      %v544 = vld [vmem:[%s423 + $0xf8] sm:$0xff]
      %v545 = vmax.f32 %v481, 0.0
      %v546 = vmax.f32 %v482, 0.0
      %v547 = vmax.f32 %v483, 0.0
      %v548 = vmax.f32 %v484, 0.0
      %v549 = vmax.f32 %v485, 0.0
      %v550 = vmax.f32 %v486, 0.0
      %v551 = vmax.f32 %v487, 0.0
      %v552 = vmax.f32 %v488, 0.0
      %v553 = vmax.f32 %v489, 0.0
      %v554 = vmax.f32 %v490, 0.0
      %v555 = vmax.f32 %v491, 0.0
      %v556 = vmax.f32 %v492, 0.0
      %v557 = vmax.f32 %v493, 0.0
      %v558 = vmax.f32 %v494, 0.0
      %v559 = vmax.f32 %v495, 0.0
      %v560 = vmax.f32 %v496, 0.0
      %v561 = vmax.f32 %v497, 0.0
      %v562 = vmax.f32 %v498, 0.0
      %v563 = vmax.f32 %v499, 0.0
      %v564 = vmax.f32 %v500, 0.0
      %v565 = vmax.f32 %v501, 0.0
      %v566 = vmax.f32 %v502, 0.0
      %v567 = vmax.f32 %v503, 0.0
      %v568 = vmax.f32 %v504, 0.0
      %v569 = vmax.f32 %v505, 0.0
      %v570 = vmax.f32 %v506, 0.0
      %v571 = vmax.f32 %v507, 0.0
      %v572 = vmax.f32 %v508, 0.0
      %v573 = vmax.f32 %v509, 0.0
      %v574 = vmax.f32 %v510, 0.0
      %v575 = vmax.f32 %v511, 0.0
      %v576 = vmax.f32 %v512, 0.0
      %s577 = scalar_lea.vmem [#allocation2], 24
      %578 = vst.msk [vmem:[%s577 + $0x1] sm:$0xff] %vm435, %v545
      %579 = vst.msk [vmem:[%s577 + $0x9] sm:$0xff] %vm435, %v546
      %580 = vst.msk [vmem:[%s577 + $0x19] sm:$0xff] %vm435, %v547
      %581 = vst.msk [vmem:[%s577 + $0x21] sm:$0xff] %vm435, %v548
      %582 = vst.msk [vmem:[%s577 + $0x31] sm:$0xff] %vm435, %v549
      %583 = vst.msk [vmem:[%s577 + $0x39] sm:$0xff] %vm435, %v550
      %584 = vst.msk [vmem:[%s577 + $0x49] sm:$0xff] %vm435, %v551
      %585 = vst.msk [vmem:[%s577 + $0x51] sm:$0xff] %vm435, %v552
      %586 = vst.msk [vmem:[%s577 + $0x61] sm:$0xff] %vm435, %v553
      %587 = vst.msk [vmem:[%s577 + $0x69] sm:$0xff] %vm435, %v554
      %588 = vst.msk [vmem:[%s577 + $0x79] sm:$0xff] %vm435, %v555
      %589 = vst.msk [vmem:[%s577 + $0x81] sm:$0xff] %vm435, %v556
      %590 = vst.msk [vmem:[%s577 + $0x91] sm:$0xff] %vm435, %v557
      %591 = vst.msk [vmem:[%s577 + $0x99] sm:$0xff] %vm435, %v558
      %592 = vst.msk [vmem:[%s577 + $0xa9] sm:$0xff] %vm435, %v559
      %593 = vst.msk [vmem:[%s577 + $0xb1] sm:$0xff] %vm435, %v560
      %594 = vst.msk [vmem:[%s577 + $0xc1] sm:$0xff] %vm435, %v561
      %595 = vst.msk [vmem:[%s577 + $0xc9] sm:$0xff] %vm435, %v562
      %596 = vst.msk [vmem:[%s577 + $0xd9] sm:$0xff] %vm435, %v563
      %597 = vst.msk [vmem:[%s577 + $0xe1] sm:$0xff] %vm435, %v564
      %598 = vst.msk [vmem:[%s577 + $0xf1] sm:$0xff] %vm435, %v565
      %599 = vst.msk [vmem:[%s577 + $0xf9] sm:$0xff] %vm435, %v566
      %600 = vst.msk [vmem:[%s577 + $0x109] sm:$0xff] %vm435, %v567
      %601 = vst.msk [vmem:[%s577 + $0x111] sm:$0xff] %vm435, %v568
      %602 = vst.msk [vmem:[%s577 + $0x121] sm:$0xff] %vm435, %v569
      %603 = vst.msk [vmem:[%s577 + $0x129] sm:$0xff] %vm435, %v570
      %604 = vst.msk [vmem:[%s577 + $0x139] sm:$0xff] %vm435, %v571
      %605 = vst.msk [vmem:[%s577 + $0x141] sm:$0xff] %vm435, %v572
      %606 = vst.msk [vmem:[%s577 + $0x151] sm:$0xff] %vm435, %v573
      %607 = vst.msk [vmem:[%s577 + $0x159] sm:$0xff] %vm435, %v574
      %608 = vst.msk [vmem:[%s577 + $0x169] sm:$0xff] %vm435, %v575
      %609 = vst.msk [vmem:[%s577 + $0x171] sm:$0xff] %vm435, %v576
      %v610 = vld [vmem:[#allocation2] sm:$0xff]
      %v611 = vld [vmem:[#allocation2 + $0x8] sm:$0xff]
      %v612 = vld [vmem:[#allocation2 + $0x10] sm:$0x3]
      %v613 = vld [vmem:[#allocation2 + $0x18] sm:$0xff]
      %v614 = vld [vmem:[#allocation2 + $0x20] sm:$0xff]
      %v615 = vld [vmem:[#allocation2 + $0x28] sm:$0x3]
      %v616 = vld [vmem:[#allocation2 + $0x30] sm:$0xff]
      %v617 = vld [vmem:[#allocation2 + $0x38] sm:$0xff]
      %v618 = vld [vmem:[#allocation2 + $0x40] sm:$0x3]
      %v619 = vld [vmem:[#allocation2 + $0x48] sm:$0xff]
      %v620 = vld [vmem:[#allocation2 + $0x50] sm:$0xff]
      %v621 = vld [vmem:[#allocation2 + $0x58] sm:$0x3]
      %v622 = vld [vmem:[#allocation2 + $0x60] sm:$0xff]
      %v623 = vld [vmem:[#allocation2 + $0x68] sm:$0xff]
      %v624 = vld [vmem:[#allocation2 + $0x70] sm:$0x3]
      %v625 = vld [vmem:[#allocation2 + $0x78] sm:$0xff]
      %v626 = vld [vmem:[#allocation2 + $0x80] sm:$0xff]
      %v627 = vld [vmem:[#allocation2 + $0x88] sm:$0x3]
      %v628 = vld [vmem:[#allocation2 + $0x90] sm:$0xff]
      %v629 = vld [vmem:[#allocation2 + $0x98] sm:$0xff]
      %v630 = vld [vmem:[#allocation2 + $0xa0] sm:$0x3]
      %v631 = vld [vmem:[#allocation2 + $0xa8] sm:$0xff]
      %v632 = vld [vmem:[#allocation2 + $0xb0] sm:$0xff]
      %v633 = vld [vmem:[#allocation2 + $0xb8] sm:$0x3]
      %v634 = vld [vmem:[#allocation2 + $0xc0] sm:$0xff]
      %v635 = vld [vmem:[#allocation2 + $0xc8] sm:$0xff]
      %v636 = vld [vmem:[#allocation2 + $0xd0] sm:$0x3]
      %v637 = vld [vmem:[#allocation2 + $0xd8] sm:$0xff]
      %v638 = vld [vmem:[#allocation2 + $0xe0] sm:$0xff]
      %v639 = vld [vmem:[#allocation2 + $0xe8] sm:$0x3]
      %v640 = vld [vmem:[#allocation2 + $0xf0] sm:$0xff]
      %v641 = vld [vmem:[#allocation2 + $0xf8] sm:$0xff]
      %v642 = vld [vmem:[#allocation2 + $0x100] sm:$0x3]
      %v643 = vld [vmem:[#allocation2 + $0x108] sm:$0xff]
      %v644 = vld [vmem:[#allocation2 + $0x110] sm:$0xff]
      %v645 = vld [vmem:[#allocation2 + $0x118] sm:$0x3]
      %v646 = vld [vmem:[#allocation2 + $0x120] sm:$0xff]
      %v647 = vld [vmem:[#allocation2 + $0x128] sm:$0xff]
      %v648 = vld [vmem:[#allocation2 + $0x130] sm:$0x3]
      %v649 = vld [vmem:[#allocation2 + $0x138] sm:$0xff]
      %v650 = vld [vmem:[#allocation2 + $0x140] sm:$0xff]
      %v651 = vld [vmem:[#allocation2 + $0x148] sm:$0x3]
      %v652 = vld [vmem:[#allocation2 + $0x150] sm:$0xff]
      %v653 = vld [vmem:[#allocation2 + $0x158] sm:$0xff]
      %v654 = vld [vmem:[#allocation2 + $0x160] sm:$0x3]
      %v655 = vld [vmem:[#allocation2 + $0x168] sm:$0xff]
      %v656 = vld [vmem:[#allocation2 + $0x170] sm:$0xff]
      %v657 = vld [vmem:[#allocation2 + $0x178] sm:$0x3]
      %v658 = vld [vmem:[#allocation2 + $0x180] sm:$0xff]
      %v659 = vld [vmem:[#allocation2 + $0x188] sm:$0xff]
      %v660 = vld [vmem:[#allocation2 + $0x190] sm:$0x3]
      %v661 = vld [vmem:[#allocation2 + $0x198] sm:$0xff]
      %v662 = vld [vmem:[#allocation2 + $0x1a0] sm:$0xff]
      %v663 = vld [vmem:[#allocation2 + $0x1a8] sm:$0x3]
      %v664 = vpack.c.bf16 %v611, %v610
      %v665 = vpack.c.bf16 %v614, %v613
      %v666 = vpack.c.bf16 %v617, %v616
      %v667 = vpack.c.bf16 %v620, %v619
      %v668 = vpack.c.bf16 %v623, %v622
      %v669 = vpack.c.bf16 %v626, %v625
      %v670 = vpack.c.bf16 %v629, %v628
      %v671 = vpack.c.bf16 %v632, %v631
      %v672 = vpack.c.bf16 %v635, %v634
      %v673 = vpack.c.bf16 %v638, %v637
      %v674 = vpack.c.bf16 %v641, %v640
      %v675 = vpack.c.bf16 %v644, %v643
      %v676 = vpack.c.bf16 %v647, %v646
      %v677 = vpack.c.bf16 %v650, %v649
      %v678 = vpack.c.bf16 %v653, %v652
      %v679 = vpack.c.bf16 %v656, %v655
      %v680 = vld [vmem:[%s2] sm:$0xf]
      %vm729 = vcmask 1046528
      %v730 = vrot.slane %v610, 1
      %v731 = vrot.slane %v611, 1
      %v732 = vsel %vm729, %v730, %v731
      %v733 = vrot.slane %v612, 1
      %v734 = vsel %vm729, %v731, %v733
      %v735 = vrot.slane %v613, 1
      %v736 = vrot.slane %v614, 1
      %v737 = vsel %vm729, %v735, %v736
      %v738 = vrot.slane %v615, 1
      %v739 = vsel %vm729, %v736, %v738
      %v740 = vrot.slane %v616, 1
      %v741 = vrot.slane %v617, 1
      %v742 = vsel %vm729, %v740, %v741
      %v743 = vrot.slane %v618, 1
      %v744 = vsel %vm729, %v741, %v743
      %v745 = vrot.slane %v619, 1
      %v746 = vrot.slane %v620, 1
      %v747 = vsel %vm729, %v745, %v746
      %v748 = vrot.slane %v621, 1
      %v749 = vsel %vm729, %v746, %v748
      %v750 = vrot.slane %v622, 1
      %v751 = vrot.slane %v623, 1
      %v752 = vsel %vm729, %v750, %v751
      %v753 = vrot.slane %v624, 1
      %v754 = vsel %vm729, %v751, %v753
      %v755 = vrot.slane %v625, 1
      %v756 = vrot.slane %v626, 1
      %v757 = vsel %vm729, %v755, %v756
      %v758 = vrot.slane %v627, 1
      %v759 = vsel %vm729, %v756, %v758
      %v760 = vrot.slane %v628, 1
      %v761 = vrot.slane %v629, 1
      %v762 = vsel %vm729, %v760, %v761
      %v763 = vrot.slane %v630, 1
      %v764 = vsel %vm729, %v761, %v763
      %v765 = vrot.slane %v631, 1
      %v766 = vrot.slane %v632, 1
      %v767 = vsel %vm729, %v765, %v766
      %v768 = vrot.slane %v633, 1
      %v769 = vsel %vm729, %v766, %v768
      %v770 = vrot.slane %v634, 1
      %v771 = vrot.slane %v635, 1
      %v772 = vsel %vm729, %v770, %v771
      %v773 = vrot.slane %v636, 1
      %v774 = vsel %vm729, %v771, %v773
      %v775 = vrot.slane %v637, 1
      %v776 = vrot.slane %v638, 1
      %v777 = vsel %vm729, %v775, %v776
      %v778 = vrot.slane %v639, 1
      %v779 = vsel %vm729, %v776, %v778
      %v780 = vrot.slane %v640, 1
      %v781 = vrot.slane %v641, 1
      %v782 = vsel %vm729, %v780, %v781
      %v783 = vrot.slane %v642, 1
      %v784 = vsel %vm729, %v781, %v783
      %v785 = vrot.slane %v643, 1
      %v786 = vrot.slane %v644, 1
      %v787 = vsel %vm729, %v785, %v786
      %v788 = vrot.slane %v645, 1
      %v789 = vsel %vm729, %v786, %v788
      %v790 = vrot.slane %v646, 1
      %v791 = vrot.slane %v647, 1
      %v792 = vsel %vm729, %v790, %v791
      %v793 = vrot.slane %v648, 1
      %v794 = vsel %vm729, %v791, %v793
      %v795 = vrot.slane %v649, 1
      %v796 = vrot.slane %v650, 1
      %v797 = vsel %vm729, %v795, %v796
      %v798 = vrot.slane %v651, 1
      %v799 = vsel %vm729, %v796, %v798
      %v800 = vrot.slane %v652, 1
      %v801 = vrot.slane %v653, 1
      %v802 = vsel %vm729, %v800, %v801
      %v803 = vrot.slane %v654, 1
      %v804 = vsel %vm729, %v801, %v803
      %v805 = vrot.slane %v655, 1
      %v806 = vrot.slane %v656, 1
      %v807 = vsel %vm729, %v805, %v806
      %v808 = vrot.slane %v657, 1
      %v809 = vsel %vm729, %v806, %v808
      %v842 = vpack.c.bf16 %v734, %v732
      %v843 = vpack.c.bf16 %v739, %v737
      %v844 = vpack.c.bf16 %v744, %v742
      %v845 = vpack.c.bf16 %v749, %v747
      %v846 = vpack.c.bf16 %v754, %v752
      %v847 = vpack.c.bf16 %v759, %v757
      %v848 = vpack.c.bf16 %v764, %v762
      %v849 = vpack.c.bf16 %v769, %v767
      %v850 = vpack.c.bf16 %v774, %v772
      %v851 = vpack.c.bf16 %v779, %v777
      %v852 = vpack.c.bf16 %v784, %v782
      %v853 = vpack.c.bf16 %v789, %v787
      %v854 = vpack.c.bf16 %v794, %v792
      %v855 = vpack.c.bf16 %v799, %v797
      %v856 = vpack.c.bf16 %v804, %v802
      %v857 = vpack.c.bf16 %v809, %v807
      %s858 = scalar_lea.vmem %s2, 4
      %v859 = vld [vmem:[%s858] sm:$0xf]
      %v861 = vsel %vm435, %v842, 0
      %v864 = vsel %vm435, %v843, 0
      %v867 = vsel %vm435, %v844, 0
      %v870 = vsel %vm435, %v845, 0
      %v873 = vsel %vm435, %v846, 0
      %v876 = vsel %vm435, %v847, 0
      %v879 = vsel %vm435, %v848, 0
      %v882 = vsel %vm435, %v849, 0
      %v885 = vsel %vm435, %v850, 0
      %v888 = vsel %vm435, %v851, 0
      %v891 = vsel %vm435, %v852, 0
      %v894 = vsel %vm435, %v853, 0
      %v897 = vsel %vm435, %v854, 0
      %v900 = vsel %vm435, %v855, 0
      %v903 = vsel %vm435, %v856, 0
      %v906 = vsel %vm435, %v857, 0
      %vm908 = vcmask 1043456
      %v910 = vsel %vm908, %v859, 0
      %912 = vmatpush.bf16.msra.mxu0 0
      %913 = vmatpush.bf16.msra.mxu0 0
      %914 = vmatpush.bf16.msra.mxu0 0
      %915 = vmatpush.bf16.msra.mxu0 0
      %916 = vmatpush.bf16.msra.mxu0 0
      %917 = vmatpush.bf16.msra.mxu0 0
      %918 = vmatpush.bf16.msra.mxu0 0
      %919 = vmatpush.bf16.msra.mxu0 %v910
      %920 = vmatmul.bf16.gmra.mxu0 %v861
      %v921 = vpop.f32.mrf.mxu0
      %v922 = vadd.f32 0.0, %v921
      %v923 = vpop.f32.mrf.mxu0
      %v924 = vadd.f32 0.0, %v923
      %925 = vmatmul.bf16.gmra.mxu0 %v864
      %v926 = vpop.f32.mrf.mxu0
      %v927 = vadd.f32 0.0, %v926
      %v928 = vpop.f32.mrf.mxu0
      %v929 = vadd.f32 0.0, %v928
      %930 = vmatmul.bf16.gmra.mxu0 %v867
      %v931 = vpop.f32.mrf.mxu0
      %v932 = vadd.f32 0.0, %v931
      %v933 = vpop.f32.mrf.mxu0
      %v934 = vadd.f32 0.0, %v933
      %935 = vmatmul.bf16.gmra.mxu0 %v870
      %v936 = vpop.f32.mrf.mxu0
      %v937 = vadd.f32 0.0, %v936
      %v938 = vpop.f32.mrf.mxu0
      %v939 = vadd.f32 0.0, %v938
      %940 = vmatmul.bf16.gmra.mxu0 %v873
      %v941 = vpop.f32.mrf.mxu0
      %v942 = vadd.f32 0.0, %v941
      %v943 = vpop.f32.mrf.mxu0
      %v944 = vadd.f32 0.0, %v943
      %945 = vmatmul.bf16.gmra.mxu0 %v876
      %v946 = vpop.f32.mrf.mxu0
      %v947 = vadd.f32 0.0, %v946
      %v948 = vpop.f32.mrf.mxu0
      %v949 = vadd.f32 0.0, %v948
      %950 = vmatmul.bf16.gmra.mxu0 %v879
      %v951 = vpop.f32.mrf.mxu0
      %v952 = vadd.f32 0.0, %v951
      %v953 = vpop.f32.mrf.mxu0
      %v954 = vadd.f32 0.0, %v953
      %955 = vmatmul.bf16.gmra.mxu0 %v882
      %v956 = vpop.f32.mrf.mxu0
      %v957 = vadd.f32 0.0, %v956
      %v958 = vpop.f32.mrf.mxu0
      %v959 = vadd.f32 0.0, %v958
      %960 = vmatmul.bf16.gmra.mxu0 %v885
      %v961 = vpop.f32.mrf.mxu0
      %v962 = vadd.f32 0.0, %v961
      %v963 = vpop.f32.mrf.mxu0
      %v964 = vadd.f32 0.0, %v963
      %965 = vmatmul.bf16.gmra.mxu0 %v888
      %v966 = vpop.f32.mrf.mxu0
      %v967 = vadd.f32 0.0, %v966
      %v968 = vpop.f32.mrf.mxu0
      %v969 = vadd.f32 0.0, %v968
      %970 = vmatmul.bf16.gmra.mxu0 %v891
      %v971 = vpop.f32.mrf.mxu0
      %v972 = vadd.f32 0.0, %v971
      %v973 = vpop.f32.mrf.mxu0
      %v974 = vadd.f32 0.0, %v973
      %975 = vmatmul.bf16.gmra.mxu0 %v894
      %v976 = vpop.f32.mrf.mxu0
      %v977 = vadd.f32 0.0, %v976
      %v978 = vpop.f32.mrf.mxu0
      %v979 = vadd.f32 0.0, %v978
      %980 = vmatmul.bf16.gmra.mxu0 %v897
      %v981 = vpop.f32.mrf.mxu0
      %v982 = vadd.f32 0.0, %v981
      %v983 = vpop.f32.mrf.mxu0
      %v984 = vadd.f32 0.0, %v983
      %985 = vmatmul.bf16.gmra.mxu0 %v900
      %v986 = vpop.f32.mrf.mxu0
      %v987 = vadd.f32 0.0, %v986
      %v988 = vpop.f32.mrf.mxu0
      %v989 = vadd.f32 0.0, %v988
      %990 = vmatmul.bf16.gmra.mxu0 %v903
      %v991 = vpop.f32.mrf.mxu0
      %v992 = vadd.f32 0.0, %v991
      %v993 = vpop.f32.mrf.mxu0
      %v994 = vadd.f32 0.0, %v993
      %995 = vmatmul.bf16.gmra.mxu0 %v906
      %v996 = vpop.f32.mrf.mxu0
      %v997 = vadd.f32 0.0, %v996
      %v998 = vpop.f32.mrf.mxu0
      %v999 = vadd.f32 0.0, %v998
      %1000 = vdwg.mxu0
      %v1002 = vsel %vm435, %v664, 0
      %v1005 = vsel %vm435, %v665, 0
      %v1008 = vsel %vm435, %v666, 0
      %v1011 = vsel %vm435, %v667, 0
      %v1014 = vsel %vm435, %v668, 0
      %v1017 = vsel %vm435, %v669, 0
      %v1020 = vsel %vm435, %v670, 0
      %v1023 = vsel %vm435, %v671, 0
      %v1026 = vsel %vm435, %v672, 0
      %v1029 = vsel %vm435, %v673, 0
      %v1032 = vsel %vm435, %v674, 0
      %v1035 = vsel %vm435, %v675, 0
      %v1038 = vsel %vm435, %v676, 0
      %v1041 = vsel %vm435, %v677, 0
      %v1044 = vsel %vm435, %v678, 0
      %v1047 = vsel %vm435, %v679, 0
      %v1050 = vsel %vm908, %v680, 0
      %1052 = vmatpush.bf16.msra.mxu0 0
      %1053 = vmatpush.bf16.msra.mxu0 0
      %1054 = vmatpush.bf16.msra.mxu0 0
      %1055 = vmatpush.bf16.msra.mxu0 0
      %1056 = vmatpush.bf16.msra.mxu0 0
      %1057 = vmatpush.bf16.msra.mxu0 0
      %1058 = vmatpush.bf16.msra.mxu0 0
      %1059 = vmatpush.bf16.msra.mxu0 %v1050
      %1060 = vmatmul.bf16.gmra.mxu0 %v1002
      %v1061 = vpop.f32.mrf.mxu0
      %v1062 = vadd.f32 %v922, %v1061
      %v1063 = vpop.f32.mrf.mxu0
      %v1064 = vadd.f32 %v924, %v1063
      %1065 = vmatmul.bf16.gmra.mxu0 %v1005
      %v1066 = vpop.f32.mrf.mxu0
      %v1067 = vadd.f32 %v927, %v1066
      %v1068 = vpop.f32.mrf.mxu0
      %v1069 = vadd.f32 %v929, %v1068
      %1070 = vmatmul.bf16.gmra.mxu0 %v1008
      %v1071 = vpop.f32.mrf.mxu0
      %v1072 = vadd.f32 %v932, %v1071
      %v1073 = vpop.f32.mrf.mxu0
      %v1074 = vadd.f32 %v934, %v1073
      %1075 = vmatmul.bf16.gmra.mxu0 %v1011
      %v1076 = vpop.f32.mrf.mxu0
      %v1077 = vadd.f32 %v937, %v1076
      %v1078 = vpop.f32.mrf.mxu0
      %v1079 = vadd.f32 %v939, %v1078
      %1080 = vmatmul.bf16.gmra.mxu0 %v1014
      %v1081 = vpop.f32.mrf.mxu0
      %v1082 = vadd.f32 %v942, %v1081
      %v1083 = vpop.f32.mrf.mxu0
      %v1084 = vadd.f32 %v944, %v1083
      %1085 = vmatmul.bf16.gmra.mxu0 %v1017
      %v1086 = vpop.f32.mrf.mxu0
      %v1087 = vadd.f32 %v947, %v1086
      %v1088 = vpop.f32.mrf.mxu0
      %v1089 = vadd.f32 %v949, %v1088
      %1090 = vmatmul.bf16.gmra.mxu0 %v1020
      %v1091 = vpop.f32.mrf.mxu0
      %v1092 = vadd.f32 %v952, %v1091
      %v1093 = vpop.f32.mrf.mxu0
      %v1094 = vadd.f32 %v954, %v1093
      %1095 = vmatmul.bf16.gmra.mxu0 %v1023
      %v1096 = vpop.f32.mrf.mxu0
      %v1097 = vadd.f32 %v957, %v1096
      %v1098 = vpop.f32.mrf.mxu0
      %v1099 = vadd.f32 %v959, %v1098
      %1100 = vmatmul.bf16.gmra.mxu0 %v1026
      %v1101 = vpop.f32.mrf.mxu0
      %v1102 = vadd.f32 %v962, %v1101
      %v1103 = vpop.f32.mrf.mxu0
      %v1104 = vadd.f32 %v964, %v1103
      %1105 = vmatmul.bf16.gmra.mxu0 %v1029
      %v1106 = vpop.f32.mrf.mxu0
      %v1107 = vadd.f32 %v967, %v1106
      %v1108 = vpop.f32.mrf.mxu0
      %v1109 = vadd.f32 %v969, %v1108
      %1110 = vmatmul.bf16.gmra.mxu0 %v1032
      %v1111 = vpop.f32.mrf.mxu0
      %v1112 = vadd.f32 %v972, %v1111
      %v1113 = vpop.f32.mrf.mxu0
      %v1114 = vadd.f32 %v974, %v1113
      %1115 = vmatmul.bf16.gmra.mxu0 %v1035
      %v1116 = vpop.f32.mrf.mxu0
      %v1117 = vadd.f32 %v977, %v1116
      %v1118 = vpop.f32.mrf.mxu0
      %v1119 = vadd.f32 %v979, %v1118
      %1120 = vmatmul.bf16.gmra.mxu0 %v1038
      %v1121 = vpop.f32.mrf.mxu0
      %v1122 = vadd.f32 %v982, %v1121
      %v1123 = vpop.f32.mrf.mxu0
      %v1124 = vadd.f32 %v984, %v1123
      %1125 = vmatmul.bf16.gmra.mxu0 %v1041
      %v1126 = vpop.f32.mrf.mxu0
      %v1127 = vadd.f32 %v987, %v1126
      %v1128 = vpop.f32.mrf.mxu0
      %v1129 = vadd.f32 %v989, %v1128
      %1130 = vmatmul.bf16.gmra.mxu0 %v1044
      %v1131 = vpop.f32.mrf.mxu0
      %v1132 = vadd.f32 %v992, %v1131
      %v1133 = vpop.f32.mrf.mxu0
      %v1134 = vadd.f32 %v994, %v1133
      %1135 = vmatmul.bf16.gmra.mxu0 %v1047
      %v1136 = vpop.f32.mrf.mxu0
      %v1137 = vadd.f32 %v997, %v1136
      %v1138 = vpop.f32.mrf.mxu0
      %v1139 = vadd.f32 %v999, %v1138
      %1140 = vdwg.mxu0
      %vm1141 = vcmask 1045504
      %v1142 = vrot.slane %v610, 2
      %v1143 = vrot.slane %v611, 2
      %v1144 = vsel %vm1141, %v1142, %v1143
      %v1145 = vrot.slane %v612, 2
      %v1146 = vsel %vm1141, %v1143, %v1145
      %v1147 = vrot.slane %v613, 2
      %v1148 = vrot.slane %v614, 2
      %v1149 = vsel %vm1141, %v1147, %v1148
      %v1150 = vrot.slane %v615, 2
      %v1151 = vsel %vm1141, %v1148, %v1150
      %v1152 = vrot.slane %v616, 2
      %v1153 = vrot.slane %v617, 2
      %v1154 = vsel %vm1141, %v1152, %v1153
      %v1155 = vrot.slane %v618, 2
      %v1156 = vsel %vm1141, %v1153, %v1155
      %v1157 = vrot.slane %v619, 2
      %v1158 = vrot.slane %v620, 2
      %v1159 = vsel %vm1141, %v1157, %v1158
      %v1160 = vrot.slane %v621, 2
      %v1161 = vsel %vm1141, %v1158, %v1160
      %v1162 = vrot.slane %v622, 2
      %v1163 = vrot.slane %v623, 2
      %v1164 = vsel %vm1141, %v1162, %v1163
      %v1165 = vrot.slane %v624, 2
      %v1166 = vsel %vm1141, %v1163, %v1165
      %v1167 = vrot.slane %v625, 2
      %v1168 = vrot.slane %v626, 2
      %v1169 = vsel %vm1141, %v1167, %v1168
      %v1170 = vrot.slane %v627, 2
      %v1171 = vsel %vm1141, %v1168, %v1170
      %v1172 = vrot.slane %v628, 2
      %v1173 = vrot.slane %v629, 2
      %v1174 = vsel %vm1141, %v1172, %v1173
      %v1175 = vrot.slane %v630, 2
      %v1176 = vsel %vm1141, %v1173, %v1175
      %v1177 = vrot.slane %v631, 2
      %v1178 = vrot.slane %v632, 2
      %v1179 = vsel %vm1141, %v1177, %v1178
      %v1180 = vrot.slane %v633, 2
      %v1181 = vsel %vm1141, %v1178, %v1180
      %v1182 = vrot.slane %v634, 2
      %v1183 = vrot.slane %v635, 2
      %v1184 = vsel %vm1141, %v1182, %v1183
      %v1185 = vrot.slane %v636, 2
      %v1186 = vsel %vm1141, %v1183, %v1185
      %v1187 = vrot.slane %v637, 2
      %v1188 = vrot.slane %v638, 2
      %v1189 = vsel %vm1141, %v1187, %v1188
      %v1190 = vrot.slane %v639, 2
      %v1191 = vsel %vm1141, %v1188, %v1190
      %v1192 = vrot.slane %v640, 2
      %v1193 = vrot.slane %v641, 2
      %v1194 = vsel %vm1141, %v1192, %v1193
      %v1195 = vrot.slane %v642, 2
      %v1196 = vsel %vm1141, %v1193, %v1195
      %v1197 = vrot.slane %v643, 2
      %v1198 = vrot.slane %v644, 2
      %v1199 = vsel %vm1141, %v1197, %v1198
      %v1200 = vrot.slane %v645, 2
      %v1201 = vsel %vm1141, %v1198, %v1200
      %v1202 = vrot.slane %v646, 2
      %v1203 = vrot.slane %v647, 2
      %v1204 = vsel %vm1141, %v1202, %v1203
      %v1205 = vrot.slane %v648, 2
      %v1206 = vsel %vm1141, %v1203, %v1205
      %v1207 = vrot.slane %v649, 2
      %v1208 = vrot.slane %v650, 2
      %v1209 = vsel %vm1141, %v1207, %v1208
      %v1210 = vrot.slane %v651, 2
      %v1211 = vsel %vm1141, %v1208, %v1210
      %v1212 = vrot.slane %v652, 2
      %v1213 = vrot.slane %v653, 2
      %v1214 = vsel %vm1141, %v1212, %v1213
      %v1215 = vrot.slane %v654, 2
      %v1216 = vsel %vm1141, %v1213, %v1215
      %v1217 = vrot.slane %v655, 2
      %v1218 = vrot.slane %v656, 2
      %v1219 = vsel %vm1141, %v1217, %v1218
      %v1220 = vrot.slane %v657, 2
      %v1221 = vsel %vm1141, %v1218, %v1220
      %v1254 = vpack.c.bf16 %v1146, %v1144
      %v1255 = vpack.c.bf16 %v1151, %v1149
      %v1256 = vpack.c.bf16 %v1156, %v1154
      %v1257 = vpack.c.bf16 %v1161, %v1159
      %v1258 = vpack.c.bf16 %v1166, %v1164
      %v1259 = vpack.c.bf16 %v1171, %v1169
      %v1260 = vpack.c.bf16 %v1176, %v1174
      %v1261 = vpack.c.bf16 %v1181, %v1179
      %v1262 = vpack.c.bf16 %v1186, %v1184
      %v1263 = vpack.c.bf16 %v1191, %v1189
      %v1264 = vpack.c.bf16 %v1196, %v1194
      %v1265 = vpack.c.bf16 %v1201, %v1199
      %v1266 = vpack.c.bf16 %v1206, %v1204
      %v1267 = vpack.c.bf16 %v1211, %v1209
      %v1268 = vpack.c.bf16 %v1216, %v1214
      %v1269 = vpack.c.bf16 %v1221, %v1219
      %s1270 = scalar_lea.vmem %s2, 8
      %v1271 = vld [vmem:[%s1270] sm:$0xf]
      %v1273 = vsel %vm435, %v1254, 0
      %v1276 = vsel %vm435, %v1255, 0
      %v1279 = vsel %vm435, %v1256, 0
      %v1282 = vsel %vm435, %v1257, 0
      %v1285 = vsel %vm435, %v1258, 0
      %v1288 = vsel %vm435, %v1259, 0
      %v1291 = vsel %vm435, %v1260, 0
      %v1294 = vsel %vm435, %v1261, 0
      %v1297 = vsel %vm435, %v1262, 0
      %v1300 = vsel %vm435, %v1263, 0
      %v1303 = vsel %vm435, %v1264, 0
      %v1306 = vsel %vm435, %v1265, 0
      %v1309 = vsel %vm435, %v1266, 0
      %v1312 = vsel %vm435, %v1267, 0
      %v1315 = vsel %vm435, %v1268, 0
      %v1318 = vsel %vm435, %v1269, 0
      %v1321 = vsel %vm908, %v1271, 0
      %1323 = vmatpush.bf16.msra.mxu0 0
      %1324 = vmatpush.bf16.msra.mxu0 0
      %1325 = vmatpush.bf16.msra.mxu0 0
      %1326 = vmatpush.bf16.msra.mxu0 0
      %1327 = vmatpush.bf16.msra.mxu0 0
      %1328 = vmatpush.bf16.msra.mxu0 0
      %1329 = vmatpush.bf16.msra.mxu0 0
      %1330 = vmatpush.bf16.msra.mxu0 %v1321
      %1331 = vmatmul.bf16.gmra.mxu0 %v1273
      %v1332 = vpop.f32.mrf.mxu0
      %v1333 = vadd.f32 0.0, %v1332
      %v1334 = vpop.f32.mrf.mxu0
      %v1335 = vadd.f32 0.0, %v1334
      %1336 = vmatmul.bf16.gmra.mxu0 %v1276
      %v1337 = vpop.f32.mrf.mxu0
      %v1338 = vadd.f32 0.0, %v1337
      %v1339 = vpop.f32.mrf.mxu0
      %v1340 = vadd.f32 0.0, %v1339
      %1341 = vmatmul.bf16.gmra.mxu0 %v1279
      %v1342 = vpop.f32.mrf.mxu0
      %v1343 = vadd.f32 0.0, %v1342
      %v1344 = vpop.f32.mrf.mxu0
      %v1345 = vadd.f32 0.0, %v1344
      %1346 = vmatmul.bf16.gmra.mxu0 %v1282
      %v1347 = vpop.f32.mrf.mxu0
      %v1348 = vadd.f32 0.0, %v1347
      %v1349 = vpop.f32.mrf.mxu0
      %v1350 = vadd.f32 0.0, %v1349
      %1351 = vmatmul.bf16.gmra.mxu0 %v1285
      %v1352 = vpop.f32.mrf.mxu0
      %v1353 = vadd.f32 0.0, %v1352
      %v1354 = vpop.f32.mrf.mxu0
      %v1355 = vadd.f32 0.0, %v1354
      %1356 = vmatmul.bf16.gmra.mxu0 %v1288
      %v1357 = vpop.f32.mrf.mxu0
      %v1358 = vadd.f32 0.0, %v1357
      %v1359 = vpop.f32.mrf.mxu0
      %v1360 = vadd.f32 0.0, %v1359
      %1361 = vmatmul.bf16.gmra.mxu0 %v1291
      %v1362 = vpop.f32.mrf.mxu0
      %v1363 = vadd.f32 0.0, %v1362
      %v1364 = vpop.f32.mrf.mxu0
      %v1365 = vadd.f32 0.0, %v1364
      %1366 = vmatmul.bf16.gmra.mxu0 %v1294
      %v1367 = vpop.f32.mrf.mxu0
      %v1368 = vadd.f32 0.0, %v1367
      %v1369 = vpop.f32.mrf.mxu0
      %v1370 = vadd.f32 0.0, %v1369
      %1371 = vmatmul.bf16.gmra.mxu0 %v1297
      %v1372 = vpop.f32.mrf.mxu0
      %v1373 = vadd.f32 0.0, %v1372
      %v1374 = vpop.f32.mrf.mxu0
      %v1375 = vadd.f32 0.0, %v1374
      %1376 = vmatmul.bf16.gmra.mxu0 %v1300
      %v1377 = vpop.f32.mrf.mxu0
      %v1378 = vadd.f32 0.0, %v1377
      %v1379 = vpop.f32.mrf.mxu0
      %v1380 = vadd.f32 0.0, %v1379
      %1381 = vmatmul.bf16.gmra.mxu0 %v1303
      %v1382 = vpop.f32.mrf.mxu0
      %v1383 = vadd.f32 0.0, %v1382
      %v1384 = vpop.f32.mrf.mxu0
      %v1385 = vadd.f32 0.0, %v1384
      %1386 = vmatmul.bf16.gmra.mxu0 %v1306
      %v1387 = vpop.f32.mrf.mxu0
      %v1388 = vadd.f32 0.0, %v1387
      %v1389 = vpop.f32.mrf.mxu0
      %v1390 = vadd.f32 0.0, %v1389
      %1391 = vmatmul.bf16.gmra.mxu0 %v1309
      %v1392 = vpop.f32.mrf.mxu0
      %v1393 = vadd.f32 0.0, %v1392
      %v1394 = vpop.f32.mrf.mxu0
      %v1395 = vadd.f32 0.0, %v1394
      %1396 = vmatmul.bf16.gmra.mxu0 %v1312
      %v1397 = vpop.f32.mrf.mxu0
      %v1398 = vadd.f32 0.0, %v1397
      %v1399 = vpop.f32.mrf.mxu0
      %v1400 = vadd.f32 0.0, %v1399
      %1401 = vmatmul.bf16.gmra.mxu0 %v1315
      %v1402 = vpop.f32.mrf.mxu0
      %v1403 = vadd.f32 0.0, %v1402
      %v1404 = vpop.f32.mrf.mxu0
      %v1405 = vadd.f32 0.0, %v1404
      %1406 = vmatmul.bf16.gmra.mxu0 %v1318
      %v1407 = vpop.f32.mrf.mxu0
      %v1408 = vadd.f32 0.0, %v1407
      %v1409 = vpop.f32.mrf.mxu0
      %v1410 = vadd.f32 0.0, %v1409
      %1411 = vdwg.mxu0
      %v1412 = vadd.f32 %v1062, %v1333
      %v1413 = vadd.f32 %v1064, %v1335
      %v1414 = vadd.f32 %v1067, %v1338
      %v1415 = vadd.f32 %v1069, %v1340
      %v1416 = vadd.f32 %v1072, %v1343
      %v1417 = vadd.f32 %v1074, %v1345
      %v1418 = vadd.f32 %v1077, %v1348
      %v1419 = vadd.f32 %v1079, %v1350
      %v1420 = vadd.f32 %v1082, %v1353
      %v1421 = vadd.f32 %v1084, %v1355
      %v1422 = vadd.f32 %v1087, %v1358
      %v1423 = vadd.f32 %v1089, %v1360
      %v1424 = vadd.f32 %v1092, %v1363
      %v1425 = vadd.f32 %v1094, %v1365
      %v1426 = vadd.f32 %v1097, %v1368
      %v1427 = vadd.f32 %v1099, %v1370
      %v1428 = vadd.f32 %v1102, %v1373
      %v1429 = vadd.f32 %v1104, %v1375
      %v1430 = vadd.f32 %v1107, %v1378
      %v1431 = vadd.f32 %v1109, %v1380
      %v1432 = vadd.f32 %v1112, %v1383
      %v1433 = vadd.f32 %v1114, %v1385
      %v1434 = vadd.f32 %v1117, %v1388
      %v1435 = vadd.f32 %v1119, %v1390
      %v1436 = vadd.f32 %v1122, %v1393
      %v1437 = vadd.f32 %v1124, %v1395
      %v1438 = vadd.f32 %v1127, %v1398
      %v1439 = vadd.f32 %v1129, %v1400
      %v1440 = vadd.f32 %v1132, %v1403
      %v1441 = vadd.f32 %v1134, %v1405
      %v1442 = vadd.f32 %v1137, %v1408
      %v1443 = vadd.f32 %v1139, %v1410
      %v1444 = vpack.c.bf16 %v659, %v658
      %s1445 = scalar_lea.vmem %s2, 12
      %v1446 = vld [vmem:[%s1445] sm:$0xf]
      %v1448 = vsel %vm435, %v1444, 0
      %v1451 = vsel %vm908, %v1446, 0
      %1453 = vmatpush.bf16.msra.mxu0 0
      %1454 = vmatpush.bf16.msra.mxu0 0
      %1455 = vmatpush.bf16.msra.mxu0 0
      %1456 = vmatpush.bf16.msra.mxu0 0
      %1457 = vmatpush.bf16.msra.mxu0 0
      %1458 = vmatpush.bf16.msra.mxu0 0
      %1459 = vmatpush.bf16.msra.mxu0 0
      %1460 = vmatpush.bf16.msra.mxu0 %v1451
      %1461 = vmatmul.bf16.gmra.mxu0 %v1005
      %v1462 = vpop.f32.mrf.mxu0
      %v1463 = vadd.f32 0.0, %v1462
      %v1464 = vpop.f32.mrf.mxu0
      %v1465 = vadd.f32 0.0, %v1464
      %1466 = vmatmul.bf16.gmra.mxu0 %v1008
      %v1467 = vpop.f32.mrf.mxu0
      %v1468 = vadd.f32 0.0, %v1467
      %v1469 = vpop.f32.mrf.mxu0
      %v1470 = vadd.f32 0.0, %v1469
      %1471 = vmatmul.bf16.gmra.mxu0 %v1011
      %v1472 = vpop.f32.mrf.mxu0
      %v1473 = vadd.f32 0.0, %v1472
      %v1474 = vpop.f32.mrf.mxu0
      %v1475 = vadd.f32 0.0, %v1474
      %1476 = vmatmul.bf16.gmra.mxu0 %v1014
      %v1477 = vpop.f32.mrf.mxu0
      %v1478 = vadd.f32 0.0, %v1477
      %v1479 = vpop.f32.mrf.mxu0
      %v1480 = vadd.f32 0.0, %v1479
      %1481 = vmatmul.bf16.gmra.mxu0 %v1017
      %v1482 = vpop.f32.mrf.mxu0
      %v1483 = vadd.f32 0.0, %v1482
      %v1484 = vpop.f32.mrf.mxu0
      %v1485 = vadd.f32 0.0, %v1484
      %1486 = vmatmul.bf16.gmra.mxu0 %v1020
      %v1487 = vpop.f32.mrf.mxu0
      %v1488 = vadd.f32 0.0, %v1487
      %v1489 = vpop.f32.mrf.mxu0
      %v1490 = vadd.f32 0.0, %v1489
      %1491 = vmatmul.bf16.gmra.mxu0 %v1023
      %v1492 = vpop.f32.mrf.mxu0
      %v1493 = vadd.f32 0.0, %v1492
      %v1494 = vpop.f32.mrf.mxu0
      %v1495 = vadd.f32 0.0, %v1494
      %1496 = vmatmul.bf16.gmra.mxu0 %v1026
      %v1497 = vpop.f32.mrf.mxu0
      %v1498 = vadd.f32 0.0, %v1497
      %v1499 = vpop.f32.mrf.mxu0
      %v1500 = vadd.f32 0.0, %v1499
      %1501 = vmatmul.bf16.gmra.mxu0 %v1029
      %v1502 = vpop.f32.mrf.mxu0
      %v1503 = vadd.f32 0.0, %v1502
      %v1504 = vpop.f32.mrf.mxu0
      %v1505 = vadd.f32 0.0, %v1504
      %1506 = vmatmul.bf16.gmra.mxu0 %v1032
      %v1507 = vpop.f32.mrf.mxu0
      %v1508 = vadd.f32 0.0, %v1507
      %v1509 = vpop.f32.mrf.mxu0
      %v1510 = vadd.f32 0.0, %v1509
      %1511 = vmatmul.bf16.gmra.mxu0 %v1035
      %v1512 = vpop.f32.mrf.mxu0
      %v1513 = vadd.f32 0.0, %v1512
      %v1514 = vpop.f32.mrf.mxu0
      %v1515 = vadd.f32 0.0, %v1514
      %1516 = vmatmul.bf16.gmra.mxu0 %v1038
      %v1517 = vpop.f32.mrf.mxu0
      %v1518 = vadd.f32 0.0, %v1517
      %v1519 = vpop.f32.mrf.mxu0
      %v1520 = vadd.f32 0.0, %v1519
      %1521 = vmatmul.bf16.gmra.mxu0 %v1041
      %v1522 = vpop.f32.mrf.mxu0
      %v1523 = vadd.f32 0.0, %v1522
      %v1524 = vpop.f32.mrf.mxu0
      %v1525 = vadd.f32 0.0, %v1524
      %1526 = vmatmul.bf16.gmra.mxu0 %v1044
      %v1527 = vpop.f32.mrf.mxu0
      %v1528 = vadd.f32 0.0, %v1527
      %v1529 = vpop.f32.mrf.mxu0
      %v1530 = vadd.f32 0.0, %v1529
      %1531 = vmatmul.bf16.gmra.mxu0 %v1047
      %v1532 = vpop.f32.mrf.mxu0
      %v1533 = vadd.f32 0.0, %v1532
      %v1534 = vpop.f32.mrf.mxu0
      %v1535 = vadd.f32 0.0, %v1534
      %1536 = vmatmul.bf16.gmra.mxu0 %v1448
      %v1537 = vpop.f32.mrf.mxu0
      %v1538 = vadd.f32 0.0, %v1537
      %v1539 = vpop.f32.mrf.mxu0
      %v1540 = vadd.f32 0.0, %v1539
      %1541 = vdwg.mxu0
      %v1542 = vadd.f32 %v1412, %v1463
      %v1543 = vadd.f32 %v1413, %v1465
      %v1544 = vadd.f32 %v1414, %v1468
      %v1545 = vadd.f32 %v1415, %v1470
      %v1546 = vadd.f32 %v1416, %v1473
      %v1547 = vadd.f32 %v1417, %v1475
      %v1548 = vadd.f32 %v1418, %v1478
      %v1549 = vadd.f32 %v1419, %v1480
      %v1550 = vadd.f32 %v1420, %v1483
      %v1551 = vadd.f32 %v1421, %v1485
      %v1552 = vadd.f32 %v1422, %v1488
      %v1553 = vadd.f32 %v1423, %v1490
      %v1554 = vadd.f32 %v1424, %v1493
      %v1555 = vadd.f32 %v1425, %v1495
      %v1556 = vadd.f32 %v1426, %v1498
      %v1557 = vadd.f32 %v1427, %v1500
      %v1558 = vadd.f32 %v1428, %v1503
      %v1559 = vadd.f32 %v1429, %v1505
      %v1560 = vadd.f32 %v1430, %v1508
      %v1561 = vadd.f32 %v1431, %v1510
      %v1562 = vadd.f32 %v1432, %v1513
      %v1563 = vadd.f32 %v1433, %v1515
      %v1564 = vadd.f32 %v1434, %v1518
      %v1565 = vadd.f32 %v1435, %v1520
      %v1566 = vadd.f32 %v1436, %v1523
      %v1567 = vadd.f32 %v1437, %v1525
      %v1568 = vadd.f32 %v1438, %v1528
      %v1569 = vadd.f32 %v1439, %v1530
      %v1570 = vadd.f32 %v1440, %v1533
      %v1571 = vadd.f32 %v1441, %v1535
      %v1572 = vadd.f32 %v1442, %v1538
      %v1573 = vadd.f32 %v1443, %v1540
      %v1577 = vrot.slane %v658, 1
      %v1578 = vrot.slane %v659, 1
      %v1579 = vsel %vm729, %v1577, %v1578
      %v1580 = vrot.slane %v660, 1
      %v1581 = vsel %vm729, %v1578, %v1580
      %v1584 = vpack.c.bf16 %v1581, %v1579
      %s1585 = scalar_lea.vmem %s2, 16
      %v1586 = vld [vmem:[%s1585] sm:$0xf]
      %v1588 = vsel %vm435, %v1584, 0
      %v1591 = vsel %vm908, %v1586, 0
      %1593 = vmatpush.bf16.msra.mxu0 0
      %1594 = vmatpush.bf16.msra.mxu0 0
      %1595 = vmatpush.bf16.msra.mxu0 0
      %1596 = vmatpush.bf16.msra.mxu0 0
      %1597 = vmatpush.bf16.msra.mxu0 0
      %1598 = vmatpush.bf16.msra.mxu0 0
      %1599 = vmatpush.bf16.msra.mxu0 0
      %1600 = vmatpush.bf16.msra.mxu0 %v1591
      %1601 = vmatmul.bf16.gmra.mxu0 %v864
      %v1602 = vpop.f32.mrf.mxu0
      %v1603 = vadd.f32 0.0, %v1602
      %v1604 = vpop.f32.mrf.mxu0
      %v1605 = vadd.f32 0.0, %v1604
      %1606 = vmatmul.bf16.gmra.mxu0 %v867
      %v1607 = vpop.f32.mrf.mxu0
      %v1608 = vadd.f32 0.0, %v1607
      %v1609 = vpop.f32.mrf.mxu0
      %v1610 = vadd.f32 0.0, %v1609
      %1611 = vmatmul.bf16.gmra.mxu0 %v870
      %v1612 = vpop.f32.mrf.mxu0
      %v1613 = vadd.f32 0.0, %v1612
      %v1614 = vpop.f32.mrf.mxu0
      %v1615 = vadd.f32 0.0, %v1614
      %1616 = vmatmul.bf16.gmra.mxu0 %v873
      %v1617 = vpop.f32.mrf.mxu0
      %v1618 = vadd.f32 0.0, %v1617
      %v1619 = vpop.f32.mrf.mxu0
      %v1620 = vadd.f32 0.0, %v1619
      %1621 = vmatmul.bf16.gmra.mxu0 %v876
      %v1622 = vpop.f32.mrf.mxu0
      %v1623 = vadd.f32 0.0, %v1622
      %v1624 = vpop.f32.mrf.mxu0
      %v1625 = vadd.f32 0.0, %v1624
      %1626 = vmatmul.bf16.gmra.mxu0 %v879
      %v1627 = vpop.f32.mrf.mxu0
      %v1628 = vadd.f32 0.0, %v1627
      %v1629 = vpop.f32.mrf.mxu0
      %v1630 = vadd.f32 0.0, %v1629
      %1631 = vmatmul.bf16.gmra.mxu0 %v882
      %v1632 = vpop.f32.mrf.mxu0
      %v1633 = vadd.f32 0.0, %v1632
      %v1634 = vpop.f32.mrf.mxu0
      %v1635 = vadd.f32 0.0, %v1634
      %1636 = vmatmul.bf16.gmra.mxu0 %v885
      %v1637 = vpop.f32.mrf.mxu0
      %v1638 = vadd.f32 0.0, %v1637
      %v1639 = vpop.f32.mrf.mxu0
      %v1640 = vadd.f32 0.0, %v1639
      %1641 = vmatmul.bf16.gmra.mxu0 %v888
      %v1642 = vpop.f32.mrf.mxu0
      %v1643 = vadd.f32 0.0, %v1642
      %v1644 = vpop.f32.mrf.mxu0
      %v1645 = vadd.f32 0.0, %v1644
      %1646 = vmatmul.bf16.gmra.mxu0 %v891
      %v1647 = vpop.f32.mrf.mxu0
      %v1648 = vadd.f32 0.0, %v1647
      %v1649 = vpop.f32.mrf.mxu0
      %v1650 = vadd.f32 0.0, %v1649
      %1651 = vmatmul.bf16.gmra.mxu0 %v894
      %v1652 = vpop.f32.mrf.mxu0
      %v1653 = vadd.f32 0.0, %v1652
      %v1654 = vpop.f32.mrf.mxu0
      %v1655 = vadd.f32 0.0, %v1654
      %1656 = vmatmul.bf16.gmra.mxu0 %v897
      %v1657 = vpop.f32.mrf.mxu0
      %v1658 = vadd.f32 0.0, %v1657
      %v1659 = vpop.f32.mrf.mxu0
      %v1660 = vadd.f32 0.0, %v1659
      %1661 = vmatmul.bf16.gmra.mxu0 %v900
      %v1662 = vpop.f32.mrf.mxu0
      %v1663 = vadd.f32 0.0, %v1662
      %v1664 = vpop.f32.mrf.mxu0
      %v1665 = vadd.f32 0.0, %v1664
      %1666 = vmatmul.bf16.gmra.mxu0 %v903
      %v1667 = vpop.f32.mrf.mxu0
      %v1668 = vadd.f32 0.0, %v1667
      %v1669 = vpop.f32.mrf.mxu0
      %v1670 = vadd.f32 0.0, %v1669
      %1671 = vmatmul.bf16.gmra.mxu0 %v906
      %v1672 = vpop.f32.mrf.mxu0
      %v1673 = vadd.f32 0.0, %v1672
      %v1674 = vpop.f32.mrf.mxu0
      %v1675 = vadd.f32 0.0, %v1674
      %1676 = vmatmul.bf16.gmra.mxu0 %v1588
      %v1677 = vpop.f32.mrf.mxu0
      %v1678 = vadd.f32 0.0, %v1677
      %v1679 = vpop.f32.mrf.mxu0
      %v1680 = vadd.f32 0.0, %v1679
      %1681 = vdwg.mxu0
      %v1682 = vadd.f32 %v1542, %v1603
      %v1683 = vadd.f32 %v1543, %v1605
      %v1684 = vadd.f32 %v1544, %v1608
      %v1685 = vadd.f32 %v1545, %v1610
      %v1686 = vadd.f32 %v1546, %v1613
      %v1687 = vadd.f32 %v1547, %v1615
      %v1688 = vadd.f32 %v1548, %v1618
      %v1689 = vadd.f32 %v1549, %v1620
      %v1690 = vadd.f32 %v1550, %v1623
      %v1691 = vadd.f32 %v1551, %v1625
      %v1692 = vadd.f32 %v1552, %v1628
      %v1693 = vadd.f32 %v1553, %v1630
      %v1694 = vadd.f32 %v1554, %v1633
      %v1695 = vadd.f32 %v1555, %v1635
      %v1696 = vadd.f32 %v1556, %v1638
      %v1697 = vadd.f32 %v1557, %v1640
      %v1698 = vadd.f32 %v1558, %v1643
      %v1699 = vadd.f32 %v1559, %v1645
      %v1700 = vadd.f32 %v1560, %v1648
      %v1701 = vadd.f32 %v1561, %v1650
      %v1702 = vadd.f32 %v1562, %v1653
      %v1703 = vadd.f32 %v1563, %v1655
      %v1704 = vadd.f32 %v1564, %v1658
      %v1705 = vadd.f32 %v1565, %v1660
      %v1706 = vadd.f32 %v1566, %v1663
      %v1707 = vadd.f32 %v1567, %v1665
      %v1708 = vadd.f32 %v1568, %v1668
      %v1709 = vadd.f32 %v1569, %v1670
      %v1710 = vadd.f32 %v1570, %v1673
      %v1711 = vadd.f32 %v1571, %v1675
      %v1712 = vadd.f32 %v1572, %v1678
      %v1713 = vadd.f32 %v1573, %v1680
      %v1714 = vrot.slane %v658, 2
      %v1715 = vrot.slane %v659, 2
      %v1716 = vsel %vm1141, %v1714, %v1715
      %v1717 = vrot.slane %v660, 2
      %v1718 = vsel %vm1141, %v1715, %v1717
      %v1721 = vpack.c.bf16 %v1718, %v1716
      %s1722 = scalar_lea.vmem %s2, 20
      %v1723 = vld [vmem:[%s1722] sm:$0xf]
      %v1725 = vsel %vm435, %v1721, 0
      %v1728 = vsel %vm908, %v1723, 0
      %1730 = vmatpush.bf16.msra.mxu0 0
      %1731 = vmatpush.bf16.msra.mxu0 0
      %1732 = vmatpush.bf16.msra.mxu0 0
      %1733 = vmatpush.bf16.msra.mxu0 0
      %1734 = vmatpush.bf16.msra.mxu0 0
      %1735 = vmatpush.bf16.msra.mxu0 0
      %1736 = vmatpush.bf16.msra.mxu0 0
      %1737 = vmatpush.bf16.msra.mxu0 %v1728
      %1738 = vmatmul.bf16.gmra.mxu0 %v1276
      %v1739 = vpop.f32.mrf.mxu0
      %v1740 = vadd.f32 0.0, %v1739
      %v1741 = vpop.f32.mrf.mxu0
      %v1742 = vadd.f32 0.0, %v1741
      %1743 = vmatmul.bf16.gmra.mxu0 %v1279
      %v1744 = vpop.f32.mrf.mxu0
      %v1745 = vadd.f32 0.0, %v1744
      %v1746 = vpop.f32.mrf.mxu0
      %v1747 = vadd.f32 0.0, %v1746
      %1748 = vmatmul.bf16.gmra.mxu0 %v1282
      %v1749 = vpop.f32.mrf.mxu0
      %v1750 = vadd.f32 0.0, %v1749
      %v1751 = vpop.f32.mrf.mxu0
      %v1752 = vadd.f32 0.0, %v1751
      %1753 = vmatmul.bf16.gmra.mxu0 %v1285
      %v1754 = vpop.f32.mrf.mxu0
      %v1755 = vadd.f32 0.0, %v1754
      %v1756 = vpop.f32.mrf.mxu0
      %v1757 = vadd.f32 0.0, %v1756
      %1758 = vmatmul.bf16.gmra.mxu0 %v1288
      %v1759 = vpop.f32.mrf.mxu0
      %v1760 = vadd.f32 0.0, %v1759
      %v1761 = vpop.f32.mrf.mxu0
      %v1762 = vadd.f32 0.0, %v1761
      %1763 = vmatmul.bf16.gmra.mxu0 %v1291
      %v1764 = vpop.f32.mrf.mxu0
      %v1765 = vadd.f32 0.0, %v1764
      %v1766 = vpop.f32.mrf.mxu0
      %v1767 = vadd.f32 0.0, %v1766
      %1768 = vmatmul.bf16.gmra.mxu0 %v1294
      %v1769 = vpop.f32.mrf.mxu0
      %v1770 = vadd.f32 0.0, %v1769
      %v1771 = vpop.f32.mrf.mxu0
      %v1772 = vadd.f32 0.0, %v1771
      %1773 = vmatmul.bf16.gmra.mxu0 %v1297
      %v1774 = vpop.f32.mrf.mxu0
      %v1775 = vadd.f32 0.0, %v1774
      %v1776 = vpop.f32.mrf.mxu0
      %v1777 = vadd.f32 0.0, %v1776
      %1778 = vmatmul.bf16.gmra.mxu0 %v1300
      %v1779 = vpop.f32.mrf.mxu0
      %v1780 = vadd.f32 0.0, %v1779
      %v1781 = vpop.f32.mrf.mxu0
      %v1782 = vadd.f32 0.0, %v1781
      %1783 = vmatmul.bf16.gmra.mxu0 %v1303
      %v1784 = vpop.f32.mrf.mxu0
      %v1785 = vadd.f32 0.0, %v1784
      %v1786 = vpop.f32.mrf.mxu0
      %v1787 = vadd.f32 0.0, %v1786
      %1788 = vmatmul.bf16.gmra.mxu0 %v1306
      %v1789 = vpop.f32.mrf.mxu0
      %v1790 = vadd.f32 0.0, %v1789
      %v1791 = vpop.f32.mrf.mxu0
      %v1792 = vadd.f32 0.0, %v1791
      %1793 = vmatmul.bf16.gmra.mxu0 %v1309
      %v1794 = vpop.f32.mrf.mxu0
      %v1795 = vadd.f32 0.0, %v1794
      %v1796 = vpop.f32.mrf.mxu0
      %v1797 = vadd.f32 0.0, %v1796
      %1798 = vmatmul.bf16.gmra.mxu0 %v1312
      %v1799 = vpop.f32.mrf.mxu0
      %v1800 = vadd.f32 0.0, %v1799
      %v1801 = vpop.f32.mrf.mxu0
      %v1802 = vadd.f32 0.0, %v1801
      %1803 = vmatmul.bf16.gmra.mxu0 %v1315
      %v1804 = vpop.f32.mrf.mxu0
      %v1805 = vadd.f32 0.0, %v1804
      %v1806 = vpop.f32.mrf.mxu0
      %v1807 = vadd.f32 0.0, %v1806
      %1808 = vmatmul.bf16.gmra.mxu0 %v1318
      %v1809 = vpop.f32.mrf.mxu0
      %v1810 = vadd.f32 0.0, %v1809
      %v1811 = vpop.f32.mrf.mxu0
      %v1812 = vadd.f32 0.0, %v1811
      %1813 = vmatmul.bf16.gmra.mxu0 %v1725
      %v1814 = vpop.f32.mrf.mxu0
      %v1815 = vadd.f32 0.0, %v1814
      %v1816 = vpop.f32.mrf.mxu0
      %v1817 = vadd.f32 0.0, %v1816
      %1818 = vdwg.mxu0
      %v1819 = vadd.f32 %v1682, %v1740
      %v1820 = vadd.f32 %v1683, %v1742
      %v1821 = vadd.f32 %v1684, %v1745
      %v1822 = vadd.f32 %v1685, %v1747
      %v1823 = vadd.f32 %v1686, %v1750
      %v1824 = vadd.f32 %v1687, %v1752
      %v1825 = vadd.f32 %v1688, %v1755
      %v1826 = vadd.f32 %v1689, %v1757
      %v1827 = vadd.f32 %v1690, %v1760
      %v1828 = vadd.f32 %v1691, %v1762
      %v1829 = vadd.f32 %v1692, %v1765
      %v1830 = vadd.f32 %v1693, %v1767
      %v1831 = vadd.f32 %v1694, %v1770
      %v1832 = vadd.f32 %v1695, %v1772
      %v1833 = vadd.f32 %v1696, %v1775
      %v1834 = vadd.f32 %v1697, %v1777
      %v1835 = vadd.f32 %v1698, %v1780
      %v1836 = vadd.f32 %v1699, %v1782
      %v1837 = vadd.f32 %v1700, %v1785
      %v1838 = vadd.f32 %v1701, %v1787
      %v1839 = vadd.f32 %v1702, %v1790
      %v1840 = vadd.f32 %v1703, %v1792
      %v1841 = vadd.f32 %v1704, %v1795
      %v1842 = vadd.f32 %v1705, %v1797
      %v1843 = vadd.f32 %v1706, %v1800
      %v1844 = vadd.f32 %v1707, %v1802
      %v1845 = vadd.f32 %v1708, %v1805
      %v1846 = vadd.f32 %v1709, %v1807
      %v1847 = vadd.f32 %v1710, %v1810
      %v1848 = vadd.f32 %v1711, %v1812
      %v1849 = vadd.f32 %v1712, %v1815
      %v1850 = vadd.f32 %v1713, %v1817
      %v1851 = vpack.c.bf16 %v662, %v661
      %s1852 = scalar_lea.vmem %s2, 24
      %v1853 = vld [vmem:[%s1852] sm:$0xf]
      %v1855 = vsel %vm435, %v1851, 0
      %v1858 = vsel %vm908, %v1853, 0
      %1860 = vmatpush.bf16.msra.mxu0 0
      %1861 = vmatpush.bf16.msra.mxu0 0
      %1862 = vmatpush.bf16.msra.mxu0 0
      %1863 = vmatpush.bf16.msra.mxu0 0
      %1864 = vmatpush.bf16.msra.mxu0 0
      %1865 = vmatpush.bf16.msra.mxu0 0
      %1866 = vmatpush.bf16.msra.mxu0 0
      %1867 = vmatpush.bf16.msra.mxu0 %v1858
      %1868 = vmatmul.bf16.gmra.mxu0 %v1008
      %v1869 = vpop.f32.mrf.mxu0
      %v1870 = vadd.f32 0.0, %v1869
      %v1871 = vpop.f32.mrf.mxu0
      %v1872 = vadd.f32 0.0, %v1871
      %1873 = vmatmul.bf16.gmra.mxu0 %v1011
      %v1874 = vpop.f32.mrf.mxu0
      %v1875 = vadd.f32 0.0, %v1874
      %v1876 = vpop.f32.mrf.mxu0
      %v1877 = vadd.f32 0.0, %v1876
      %1878 = vmatmul.bf16.gmra.mxu0 %v1014
      %v1879 = vpop.f32.mrf.mxu0
      %v1880 = vadd.f32 0.0, %v1879
      %v1881 = vpop.f32.mrf.mxu0
      %v1882 = vadd.f32 0.0, %v1881
      %1883 = vmatmul.bf16.gmra.mxu0 %v1017
      %v1884 = vpop.f32.mrf.mxu0
      %v1885 = vadd.f32 0.0, %v1884
      %v1886 = vpop.f32.mrf.mxu0
      %v1887 = vadd.f32 0.0, %v1886
      %1888 = vmatmul.bf16.gmra.mxu0 %v1020
      %v1889 = vpop.f32.mrf.mxu0
      %v1890 = vadd.f32 0.0, %v1889
      %v1891 = vpop.f32.mrf.mxu0
      %v1892 = vadd.f32 0.0, %v1891
      %1893 = vmatmul.bf16.gmra.mxu0 %v1023
      %v1894 = vpop.f32.mrf.mxu0
      %v1895 = vadd.f32 0.0, %v1894
      %v1896 = vpop.f32.mrf.mxu0
      %v1897 = vadd.f32 0.0, %v1896
      %1898 = vmatmul.bf16.gmra.mxu0 %v1026
      %v1899 = vpop.f32.mrf.mxu0
      %v1900 = vadd.f32 0.0, %v1899
      %v1901 = vpop.f32.mrf.mxu0
      %v1902 = vadd.f32 0.0, %v1901
      %1903 = vmatmul.bf16.gmra.mxu0 %v1029
      %v1904 = vpop.f32.mrf.mxu0
      %v1905 = vadd.f32 0.0, %v1904
      %v1906 = vpop.f32.mrf.mxu0
      %v1907 = vadd.f32 0.0, %v1906
      %1908 = vmatmul.bf16.gmra.mxu0 %v1032
      %v1909 = vpop.f32.mrf.mxu0
      %v1910 = vadd.f32 0.0, %v1909
      %v1911 = vpop.f32.mrf.mxu0
      %v1912 = vadd.f32 0.0, %v1911
      %1913 = vmatmul.bf16.gmra.mxu0 %v1035
      %v1914 = vpop.f32.mrf.mxu0
      %v1915 = vadd.f32 0.0, %v1914
      %v1916 = vpop.f32.mrf.mxu0
      %v1917 = vadd.f32 0.0, %v1916
      %1918 = vmatmul.bf16.gmra.mxu0 %v1038
      %v1919 = vpop.f32.mrf.mxu0
      %v1920 = vadd.f32 0.0, %v1919
      %v1921 = vpop.f32.mrf.mxu0
      %v1922 = vadd.f32 0.0, %v1921
      %1923 = vmatmul.bf16.gmra.mxu0 %v1041
      %v1924 = vpop.f32.mrf.mxu0
      %v1925 = vadd.f32 0.0, %v1924
      %v1926 = vpop.f32.mrf.mxu0
      %v1927 = vadd.f32 0.0, %v1926
      %1928 = vmatmul.bf16.gmra.mxu0 %v1044
      %v1929 = vpop.f32.mrf.mxu0
      %v1930 = vadd.f32 0.0, %v1929
      %v1931 = vpop.f32.mrf.mxu0
      %v1932 = vadd.f32 0.0, %v1931
      %1933 = vmatmul.bf16.gmra.mxu0 %v1047
      %v1934 = vpop.f32.mrf.mxu0
      %v1935 = vadd.f32 0.0, %v1934
      %v1936 = vpop.f32.mrf.mxu0
      %v1937 = vadd.f32 0.0, %v1936
      %1938 = vmatmul.bf16.gmra.mxu0 %v1448
      %v1939 = vpop.f32.mrf.mxu0
      %v1940 = vadd.f32 0.0, %v1939
      %v1941 = vpop.f32.mrf.mxu0
      %v1942 = vadd.f32 0.0, %v1941
      %1943 = vmatmul.bf16.gmra.mxu0 %v1855
      %v1944 = vpop.f32.mrf.mxu0
      %v1945 = vadd.f32 0.0, %v1944
      %v1946 = vpop.f32.mrf.mxu0
      %v1947 = vadd.f32 0.0, %v1946
      %1948 = vdwg.mxu0
      %v1949 = vadd.f32 %v1819, %v1870
      %v1950 = vadd.f32 %v1820, %v1872
      %v1951 = vadd.f32 %v1821, %v1875
      %v1952 = vadd.f32 %v1822, %v1877
      %v1953 = vadd.f32 %v1823, %v1880
      %v1954 = vadd.f32 %v1824, %v1882
      %v1955 = vadd.f32 %v1825, %v1885
      %v1956 = vadd.f32 %v1826, %v1887
      %v1957 = vadd.f32 %v1827, %v1890
      %v1958 = vadd.f32 %v1828, %v1892
      %v1959 = vadd.f32 %v1829, %v1895
      %v1960 = vadd.f32 %v1830, %v1897
      %v1961 = vadd.f32 %v1831, %v1900
      %v1962 = vadd.f32 %v1832, %v1902
      %v1963 = vadd.f32 %v1833, %v1905
      %v1964 = vadd.f32 %v1834, %v1907
      %v1965 = vadd.f32 %v1835, %v1910
      %v1966 = vadd.f32 %v1836, %v1912
      %v1967 = vadd.f32 %v1837, %v1915
      %v1968 = vadd.f32 %v1838, %v1917
      %v1969 = vadd.f32 %v1839, %v1920
      %v1970 = vadd.f32 %v1840, %v1922
      %v1971 = vadd.f32 %v1841, %v1925
      %v1972 = vadd.f32 %v1842, %v1927
      %v1973 = vadd.f32 %v1843, %v1930
      %v1974 = vadd.f32 %v1844, %v1932
      %v1975 = vadd.f32 %v1845, %v1935
      %v1976 = vadd.f32 %v1846, %v1937
      %v1977 = vadd.f32 %v1847, %v1940
      %v1978 = vadd.f32 %v1848, %v1942
      %v1979 = vadd.f32 %v1849, %v1945
      %v1980 = vadd.f32 %v1850, %v1947
      %v1984 = vrot.slane %v661, 1
      %v1985 = vrot.slane %v662, 1
      %v1986 = vsel %vm729, %v1984, %v1985
      %v1987 = vrot.slane %v663, 1
      %v1988 = vsel %vm729, %v1985, %v1987
      %v1991 = vpack.c.bf16 %v1988, %v1986
      %s1992 = scalar_lea.vmem %s2, 28
      %v1993 = vld [vmem:[%s1992] sm:$0xf]
      %v1995 = vsel %vm435, %v1991, 0
      %v1998 = vsel %vm908, %v1993, 0
      %2000 = vmatpush.bf16.msra.mxu0 0
      %2001 = vmatpush.bf16.msra.mxu0 0
      %2002 = vmatpush.bf16.msra.mxu0 0
      %2003 = vmatpush.bf16.msra.mxu0 0
      %2004 = vmatpush.bf16.msra.mxu0 0
      %2005 = vmatpush.bf16.msra.mxu0 0
      %2006 = vmatpush.bf16.msra.mxu0 0
      %2007 = vmatpush.bf16.msra.mxu0 %v1998
      %2008 = vmatmul.bf16.gmra.mxu0 %v867
      %v2009 = vpop.f32.mrf.mxu0
      %v2010 = vadd.f32 0.0, %v2009
      %v2011 = vpop.f32.mrf.mxu0
      %v2012 = vadd.f32 0.0, %v2011
      %2013 = vmatmul.bf16.gmra.mxu0 %v870
      %v2014 = vpop.f32.mrf.mxu0
      %v2015 = vadd.f32 0.0, %v2014
      %v2016 = vpop.f32.mrf.mxu0
      %v2017 = vadd.f32 0.0, %v2016
      %2018 = vmatmul.bf16.gmra.mxu0 %v873
      %v2019 = vpop.f32.mrf.mxu0
      %v2020 = vadd.f32 0.0, %v2019
      %v2021 = vpop.f32.mrf.mxu0
      %v2022 = vadd.f32 0.0, %v2021
      %2023 = vmatmul.bf16.gmra.mxu0 %v876
      %v2024 = vpop.f32.mrf.mxu0
      %v2025 = vadd.f32 0.0, %v2024
      %v2026 = vpop.f32.mrf.mxu0
      %v2027 = vadd.f32 0.0, %v2026
      %2028 = vmatmul.bf16.gmra.mxu0 %v879
      %v2029 = vpop.f32.mrf.mxu0
      %v2030 = vadd.f32 0.0, %v2029
      %v2031 = vpop.f32.mrf.mxu0
      %v2032 = vadd.f32 0.0, %v2031
      %2033 = vmatmul.bf16.gmra.mxu0 %v882
      %v2034 = vpop.f32.mrf.mxu0
      %v2035 = vadd.f32 0.0, %v2034
      %v2036 = vpop.f32.mrf.mxu0
      %v2037 = vadd.f32 0.0, %v2036
      %2038 = vmatmul.bf16.gmra.mxu0 %v885
      %v2039 = vpop.f32.mrf.mxu0
      %v2040 = vadd.f32 0.0, %v2039
      %v2041 = vpop.f32.mrf.mxu0
      %v2042 = vadd.f32 0.0, %v2041
      %2043 = vmatmul.bf16.gmra.mxu0 %v888
      %v2044 = vpop.f32.mrf.mxu0
      %v2045 = vadd.f32 0.0, %v2044
      %v2046 = vpop.f32.mrf.mxu0
      %v2047 = vadd.f32 0.0, %v2046
      %2048 = vmatmul.bf16.gmra.mxu0 %v891
      %v2049 = vpop.f32.mrf.mxu0
      %v2050 = vadd.f32 0.0, %v2049
      %v2051 = vpop.f32.mrf.mxu0
      %v2052 = vadd.f32 0.0, %v2051
      %2053 = vmatmul.bf16.gmra.mxu0 %v894
      %v2054 = vpop.f32.mrf.mxu0
      %v2055 = vadd.f32 0.0, %v2054
      %v2056 = vpop.f32.mrf.mxu0
      %v2057 = vadd.f32 0.0, %v2056
      %2058 = vmatmul.bf16.gmra.mxu0 %v897
      %v2059 = vpop.f32.mrf.mxu0
      %v2060 = vadd.f32 0.0, %v2059
      %v2061 = vpop.f32.mrf.mxu0
      %v2062 = vadd.f32 0.0, %v2061
      %2063 = vmatmul.bf16.gmra.mxu0 %v900
      %v2064 = vpop.f32.mrf.mxu0
      %v2065 = vadd.f32 0.0, %v2064
      %v2066 = vpop.f32.mrf.mxu0
      %v2067 = vadd.f32 0.0, %v2066
      %2068 = vmatmul.bf16.gmra.mxu0 %v903
      %v2069 = vpop.f32.mrf.mxu0
      %v2070 = vadd.f32 0.0, %v2069
      %v2071 = vpop.f32.mrf.mxu0
      %v2072 = vadd.f32 0.0, %v2071
      %2073 = vmatmul.bf16.gmra.mxu0 %v906
      %v2074 = vpop.f32.mrf.mxu0
      %v2075 = vadd.f32 0.0, %v2074
      %v2076 = vpop.f32.mrf.mxu0
      %v2077 = vadd.f32 0.0, %v2076
      %2078 = vmatmul.bf16.gmra.mxu0 %v1588
      %v2079 = vpop.f32.mrf.mxu0
      %v2080 = vadd.f32 0.0, %v2079
      %v2081 = vpop.f32.mrf.mxu0
      %v2082 = vadd.f32 0.0, %v2081
      %2083 = vmatmul.bf16.gmra.mxu0 %v1995
      %v2084 = vpop.f32.mrf.mxu0
      %v2085 = vadd.f32 0.0, %v2084
      %v2086 = vpop.f32.mrf.mxu0
      %v2087 = vadd.f32 0.0, %v2086
      %2088 = vdwg.mxu0
      %v2089 = vadd.f32 %v1949, %v2010
      %v2090 = vadd.f32 %v1950, %v2012
      %v2091 = vadd.f32 %v1951, %v2015
      %v2092 = vadd.f32 %v1952, %v2017
      %v2093 = vadd.f32 %v1953, %v2020
      %v2094 = vadd.f32 %v1954, %v2022
      %v2095 = vadd.f32 %v1955, %v2025
      %v2096 = vadd.f32 %v1956, %v2027
      %v2097 = vadd.f32 %v1957, %v2030
      %v2098 = vadd.f32 %v1958, %v2032
      %v2099 = vadd.f32 %v1959, %v2035
      %v2100 = vadd.f32 %v1960, %v2037
      %v2101 = vadd.f32 %v1961, %v2040
      %v2102 = vadd.f32 %v1962, %v2042
      %v2103 = vadd.f32 %v1963, %v2045
      %v2104 = vadd.f32 %v1964, %v2047
      %v2105 = vadd.f32 %v1965, %v2050
      %v2106 = vadd.f32 %v1966, %v2052
      %v2107 = vadd.f32 %v1967, %v2055
      %v2108 = vadd.f32 %v1968, %v2057
      %v2109 = vadd.f32 %v1969, %v2060
      %v2110 = vadd.f32 %v1970, %v2062
      %v2111 = vadd.f32 %v1971, %v2065
      %v2112 = vadd.f32 %v1972, %v2067
      %v2113 = vadd.f32 %v1973, %v2070
      %v2114 = vadd.f32 %v1974, %v2072
      %v2115 = vadd.f32 %v1975, %v2075
      %v2116 = vadd.f32 %v1976, %v2077
      %v2117 = vadd.f32 %v1977, %v2080
      %v2118 = vadd.f32 %v1978, %v2082
      %v2119 = vadd.f32 %v1979, %v2085
      %v2120 = vadd.f32 %v1980, %v2087
      %v2121 = vrot.slane %v661, 2
      %v2122 = vrot.slane %v662, 2
      %v2123 = vsel %vm1141, %v2121, %v2122
      %v2124 = vrot.slane %v663, 2
      %v2125 = vsel %vm1141, %v2122, %v2124
      %v2128 = vpack.c.bf16 %v2125, %v2123
      %s2129 = scalar_lea.vmem %s2, 32
      %v2130 = vld [vmem:[%s2129] sm:$0xf]
      %v2132 = vsel %vm435, %v2128, 0
      %v2135 = vsel %vm908, %v2130, 0
      %2137 = vmatpush.bf16.msra.mxu0 0
      %2138 = vmatpush.bf16.msra.mxu0 0
      %2139 = vmatpush.bf16.msra.mxu0 0
      %2140 = vmatpush.bf16.msra.mxu0 0
      %2141 = vmatpush.bf16.msra.mxu0 0
      %2142 = vmatpush.bf16.msra.mxu0 0
      %2143 = vmatpush.bf16.msra.mxu0 0
      %2144 = vmatpush.bf16.msra.mxu0 %v2135
      %2145 = vmatmul.bf16.gmra.mxu0 %v1279
      %v2146 = vpop.f32.mrf.mxu0
      %v2147 = vadd.f32 0.0, %v2146
      %v2148 = vpop.f32.mrf.mxu0
      %v2149 = vadd.f32 0.0, %v2148
      %2150 = vmatmul.bf16.gmra.mxu0 %v1282
      %v2151 = vpop.f32.mrf.mxu0
      %v2152 = vadd.f32 0.0, %v2151
      %v2153 = vpop.f32.mrf.mxu0
      %v2154 = vadd.f32 0.0, %v2153
      %2155 = vmatmul.bf16.gmra.mxu0 %v1285
      %v2156 = vpop.f32.mrf.mxu0
      %v2157 = vadd.f32 0.0, %v2156
      %v2158 = vpop.f32.mrf.mxu0
      %v2159 = vadd.f32 0.0, %v2158
      %2160 = vmatmul.bf16.gmra.mxu0 %v1288
      %v2161 = vpop.f32.mrf.mxu0
      %v2162 = vadd.f32 0.0, %v2161
      %v2163 = vpop.f32.mrf.mxu0
      %v2164 = vadd.f32 0.0, %v2163
      %2165 = vmatmul.bf16.gmra.mxu0 %v1291
      %v2166 = vpop.f32.mrf.mxu0
      %v2167 = vadd.f32 0.0, %v2166
      %v2168 = vpop.f32.mrf.mxu0
      %v2169 = vadd.f32 0.0, %v2168
      %2170 = vmatmul.bf16.gmra.mxu0 %v1294
      %v2171 = vpop.f32.mrf.mxu0
      %v2172 = vadd.f32 0.0, %v2171
      %v2173 = vpop.f32.mrf.mxu0
      %v2174 = vadd.f32 0.0, %v2173
      %2175 = vmatmul.bf16.gmra.mxu0 %v1297
      %v2176 = vpop.f32.mrf.mxu0
      %v2177 = vadd.f32 0.0, %v2176
      %v2178 = vpop.f32.mrf.mxu0
      %v2179 = vadd.f32 0.0, %v2178
      %2180 = vmatmul.bf16.gmra.mxu0 %v1300
      %v2181 = vpop.f32.mrf.mxu0
      %v2182 = vadd.f32 0.0, %v2181
      %v2183 = vpop.f32.mrf.mxu0
      %v2184 = vadd.f32 0.0, %v2183
      %2185 = vmatmul.bf16.gmra.mxu0 %v1303
      %v2186 = vpop.f32.mrf.mxu0
      %v2187 = vadd.f32 0.0, %v2186
      %v2188 = vpop.f32.mrf.mxu0
      %v2189 = vadd.f32 0.0, %v2188
      %2190 = vmatmul.bf16.gmra.mxu0 %v1306
      %v2191 = vpop.f32.mrf.mxu0
      %v2192 = vadd.f32 0.0, %v2191
      %v2193 = vpop.f32.mrf.mxu0
      %v2194 = vadd.f32 0.0, %v2193
      %2195 = vmatmul.bf16.gmra.mxu0 %v1309
      %v2196 = vpop.f32.mrf.mxu0
      %v2197 = vadd.f32 0.0, %v2196
      %v2198 = vpop.f32.mrf.mxu0
      %v2199 = vadd.f32 0.0, %v2198
      %2200 = vmatmul.bf16.gmra.mxu0 %v1312
      %v2201 = vpop.f32.mrf.mxu0
      %v2202 = vadd.f32 0.0, %v2201
      %v2203 = vpop.f32.mrf.mxu0
      %v2204 = vadd.f32 0.0, %v2203
      %2205 = vmatmul.bf16.gmra.mxu0 %v1315
      %v2206 = vpop.f32.mrf.mxu0
      %v2207 = vadd.f32 0.0, %v2206
      %v2208 = vpop.f32.mrf.mxu0
      %v2209 = vadd.f32 0.0, %v2208
      %2210 = vmatmul.bf16.gmra.mxu0 %v1318
      %v2211 = vpop.f32.mrf.mxu0
      %v2212 = vadd.f32 0.0, %v2211
      %v2213 = vpop.f32.mrf.mxu0
      %v2214 = vadd.f32 0.0, %v2213
      %2215 = vmatmul.bf16.gmra.mxu0 %v1725
      %v2216 = vpop.f32.mrf.mxu0
      %v2217 = vadd.f32 0.0, %v2216
      %v2218 = vpop.f32.mrf.mxu0
      %v2219 = vadd.f32 0.0, %v2218
      %2220 = vmatmul.bf16.gmra.mxu0 %v2132
      %v2221 = vpop.f32.mrf.mxu0
      %v2222 = vadd.f32 0.0, %v2221
      %v2223 = vpop.f32.mrf.mxu0
      %v2224 = vadd.f32 0.0, %v2223
      %2225 = vdwg.mxu0
      %v2226 = vadd.f32 %v2089, %v2147
      %v2227 = vadd.f32 %v2090, %v2149
      %v2228 = vadd.f32 %v2091, %v2152
      %v2229 = vadd.f32 %v2092, %v2154
      %v2230 = vadd.f32 %v2093, %v2157
      %v2231 = vadd.f32 %v2094, %v2159
      %v2232 = vadd.f32 %v2095, %v2162
      %v2233 = vadd.f32 %v2096, %v2164
      %v2234 = vadd.f32 %v2097, %v2167
      %v2235 = vadd.f32 %v2098, %v2169
      %v2236 = vadd.f32 %v2099, %v2172
      %v2237 = vadd.f32 %v2100, %v2174
      %v2238 = vadd.f32 %v2101, %v2177
      %v2239 = vadd.f32 %v2102, %v2179
      %v2240 = vadd.f32 %v2103, %v2182
      %v2241 = vadd.f32 %v2104, %v2184
      %v2242 = vadd.f32 %v2105, %v2187
      %v2243 = vadd.f32 %v2106, %v2189
      %v2244 = vadd.f32 %v2107, %v2192
      %v2245 = vadd.f32 %v2108, %v2194
      %v2246 = vadd.f32 %v2109, %v2197
      %v2247 = vadd.f32 %v2110, %v2199
      %v2248 = vadd.f32 %v2111, %v2202
      %v2249 = vadd.f32 %v2112, %v2204
      %v2250 = vadd.f32 %v2113, %v2207
      %v2251 = vadd.f32 %v2114, %v2209
      %v2252 = vadd.f32 %v2115, %v2212
      %v2253 = vadd.f32 %v2116, %v2214
      %v2254 = vadd.f32 %v2117, %v2217
      %v2255 = vadd.f32 %v2118, %v2219
      %v2256 = vadd.f32 %v2119, %v2222
      %v2257 = vadd.f32 %v2120, %v2224
      %v2258 = vld [vmem:[%s3] sm:$0x1]
      %v2260 = vperm.slane %v2258, 0
      %v2262 = vadd.f32 %v2226, %v2260
      %v2263 = vadd.f32 %v2227, %v2260
      %v2264 = vadd.f32 %v2228, %v2260
      %v2265 = vadd.f32 %v2229, %v2260
      %v2266 = vadd.f32 %v2230, %v2260
      %v2267 = vadd.f32 %v2231, %v2260
      %v2268 = vadd.f32 %v2232, %v2260
      %v2269 = vadd.f32 %v2233, %v2260
      %v2270 = vadd.f32 %v2234, %v2260
      %v2271 = vadd.f32 %v2235, %v2260
      %v2272 = vadd.f32 %v2236, %v2260
      %v2273 = vadd.f32 %v2237, %v2260
      %v2274 = vadd.f32 %v2238, %v2260
      %v2275 = vadd.f32 %v2239, %v2260
      %v2276 = vadd.f32 %v2240, %v2260
      %v2277 = vadd.f32 %v2241, %v2260
      %v2278 = vadd.f32 %v2242, %v2260
      %v2279 = vadd.f32 %v2243, %v2260
      %v2280 = vadd.f32 %v2244, %v2260
      %v2281 = vadd.f32 %v2245, %v2260
      %v2282 = vadd.f32 %v2246, %v2260
      %v2283 = vadd.f32 %v2247, %v2260
      %v2284 = vadd.f32 %v2248, %v2260
      %v2285 = vadd.f32 %v2249, %v2260
      %v2286 = vadd.f32 %v2250, %v2260
      %v2287 = vadd.f32 %v2251, %v2260
      %v2288 = vadd.f32 %v2252, %v2260
      %v2289 = vadd.f32 %v2253, %v2260
      %v2290 = vadd.f32 %v2254, %v2260
      %v2291 = vadd.f32 %v2255, %v2260
      %v2292 = vadd.f32 %v2256, %v2260
      %v2293 = vadd.f32 %v2257, %v2260
      %v2294 = vmax.f32 %v2262, 0.0
      %v2295 = vmax.f32 %v2263, 0.0
      %v2296 = vmax.f32 %v2264, 0.0
      %v2297 = vmax.f32 %v2265, 0.0
      %v2298 = vmax.f32 %v2266, 0.0
      %v2299 = vmax.f32 %v2267, 0.0
      %v2300 = vmax.f32 %v2268, 0.0
      %v2301 = vmax.f32 %v2269, 0.0
      %v2302 = vmax.f32 %v2270, 0.0
      %v2303 = vmax.f32 %v2271, 0.0
      %v2304 = vmax.f32 %v2272, 0.0
      %v2305 = vmax.f32 %v2273, 0.0
      %v2306 = vmax.f32 %v2274, 0.0
      %v2307 = vmax.f32 %v2275, 0.0
      %v2308 = vmax.f32 %v2276, 0.0
      %v2309 = vmax.f32 %v2277, 0.0
      %v2310 = vmax.f32 %v2278, 0.0
      %v2311 = vmax.f32 %v2279, 0.0
      %v2312 = vmax.f32 %v2280, 0.0
      %v2313 = vmax.f32 %v2281, 0.0
      %v2314 = vmax.f32 %v2282, 0.0
      %v2315 = vmax.f32 %v2283, 0.0
      %v2316 = vmax.f32 %v2284, 0.0
      %v2317 = vmax.f32 %v2285, 0.0
      %v2318 = vmax.f32 %v2286, 0.0
      %v2319 = vmax.f32 %v2287, 0.0
      %v2320 = vmax.f32 %v2288, 0.0
      %v2321 = vmax.f32 %v2289, 0.0
      %v2322 = vmax.f32 %v2290, 0.0
      %v2323 = vmax.f32 %v2291, 0.0
      %v2324 = vmax.f32 %v2292, 0.0
      %v2325 = vmax.f32 %v2293, 0.0
      %2326 = vst.msk [vmem:[%s577 + $0x1] sm:$0xff] %vm435, %v2294
      %2327 = vst.msk [vmem:[%s577 + $0x9] sm:$0xff] %vm435, %v2295
      %2328 = vst.msk [vmem:[%s577 + $0x19] sm:$0xff] %vm435, %v2296
      %2329 = vst.msk [vmem:[%s577 + $0x21] sm:$0xff] %vm435, %v2297
      %2330 = vst.msk [vmem:[%s577 + $0x31] sm:$0xff] %vm435, %v2298
      %2331 = vst.msk [vmem:[%s577 + $0x39] sm:$0xff] %vm435, %v2299
      %2332 = vst.msk [vmem:[%s577 + $0x49] sm:$0xff] %vm435, %v2300
      %2333 = vst.msk [vmem:[%s577 + $0x51] sm:$0xff] %vm435, %v2301
      %2334 = vst.msk [vmem:[%s577 + $0x61] sm:$0xff] %vm435, %v2302
      %2335 = vst.msk [vmem:[%s577 + $0x69] sm:$0xff] %vm435, %v2303
      %2336 = vst.msk [vmem:[%s577 + $0x79] sm:$0xff] %vm435, %v2304
      %2337 = vst.msk [vmem:[%s577 + $0x81] sm:$0xff] %vm435, %v2305
      %2338 = vst.msk [vmem:[%s577 + $0x91] sm:$0xff] %vm435, %v2306
      %2339 = vst.msk [vmem:[%s577 + $0x99] sm:$0xff] %vm435, %v2307
      %2340 = vst.msk [vmem:[%s577 + $0xa9] sm:$0xff] %vm435, %v2308
      %2341 = vst.msk [vmem:[%s577 + $0xb1] sm:$0xff] %vm435, %v2309
      %2342 = vst.msk [vmem:[%s577 + $0xc1] sm:$0xff] %vm435, %v2310
      %2343 = vst.msk [vmem:[%s577 + $0xc9] sm:$0xff] %vm435, %v2311
      %2344 = vst.msk [vmem:[%s577 + $0xd9] sm:$0xff] %vm435, %v2312
      %2345 = vst.msk [vmem:[%s577 + $0xe1] sm:$0xff] %vm435, %v2313
      %2346 = vst.msk [vmem:[%s577 + $0xf1] sm:$0xff] %vm435, %v2314
      %2347 = vst.msk [vmem:[%s577 + $0xf9] sm:$0xff] %vm435, %v2315
      %2348 = vst.msk [vmem:[%s577 + $0x109] sm:$0xff] %vm435, %v2316
      %2349 = vst.msk [vmem:[%s577 + $0x111] sm:$0xff] %vm435, %v2317
      %2350 = vst.msk [vmem:[%s577 + $0x121] sm:$0xff] %vm435, %v2318
      %2351 = vst.msk [vmem:[%s577 + $0x129] sm:$0xff] %vm435, %v2319
      %2352 = vst.msk [vmem:[%s577 + $0x139] sm:$0xff] %vm435, %v2320
      %2353 = vst.msk [vmem:[%s577 + $0x141] sm:$0xff] %vm435, %v2321
      %2354 = vst.msk [vmem:[%s577 + $0x151] sm:$0xff] %vm435, %v2322
      %2355 = vst.msk [vmem:[%s577 + $0x159] sm:$0xff] %vm435, %v2323
      %2356 = vst.msk [vmem:[%s577 + $0x169] sm:$0xff] %vm435, %v2324
      %2357 = vst.msk [vmem:[%s577 + $0x171] sm:$0xff] %vm435, %v2325
      %v2358 = vld [vmem:[#allocation2] sm:$0xff]
      %v2359 = vld [vmem:[#allocation2 + $0x8] sm:$0xff]
      %v2360 = vld [vmem:[#allocation2 + $0x10] sm:$0x3]
      %v2361 = vld [vmem:[#allocation2 + $0x18] sm:$0xff]
      %v2362 = vld [vmem:[#allocation2 + $0x20] sm:$0xff]
      %v2363 = vld [vmem:[#allocation2 + $0x28] sm:$0x3]
      %v2364 = vld [vmem:[#allocation2 + $0x30] sm:$0xff]
      %v2365 = vld [vmem:[#allocation2 + $0x38] sm:$0xff]
      %v2366 = vld [vmem:[#allocation2 + $0x40] sm:$0x3]
      %v2367 = vld [vmem:[#allocation2 + $0x48] sm:$0xff]
      %v2368 = vld [vmem:[#allocation2 + $0x50] sm:$0xff]
      %v2369 = vld [vmem:[#allocation2 + $0x58] sm:$0x3]
      %v2370 = vld [vmem:[#allocation2 + $0x60] sm:$0xff]
      %v2371 = vld [vmem:[#allocation2 + $0x68] sm:$0xff]
      %v2372 = vld [vmem:[#allocation2 + $0x70] sm:$0x3]
      %v2373 = vld [vmem:[#allocation2 + $0x78] sm:$0xff]
      %v2374 = vld [vmem:[#allocation2 + $0x80] sm:$0xff]
      %v2375 = vld [vmem:[#allocation2 + $0x88] sm:$0x3]
      %v2376 = vld [vmem:[#allocation2 + $0x90] sm:$0xff]
      %v2377 = vld [vmem:[#allocation2 + $0x98] sm:$0xff]
      %v2378 = vld [vmem:[#allocation2 + $0xa0] sm:$0x3]
      %v2379 = vld [vmem:[#allocation2 + $0xa8] sm:$0xff]
      %v2380 = vld [vmem:[#allocation2 + $0xb0] sm:$0xff]
      %v2381 = vld [vmem:[#allocation2 + $0xb8] sm:$0x3]
      %v2382 = vld [vmem:[#allocation2 + $0xc0] sm:$0xff]
      %v2383 = vld [vmem:[#allocation2 + $0xc8] sm:$0xff]
      %v2384 = vld [vmem:[#allocation2 + $0xd0] sm:$0x3]
      %v2385 = vld [vmem:[#allocation2 + $0xd8] sm:$0xff]
      %v2386 = vld [vmem:[#allocation2 + $0xe0] sm:$0xff]
      %v2387 = vld [vmem:[#allocation2 + $0xe8] sm:$0x3]
      %v2388 = vld [vmem:[#allocation2 + $0xf0] sm:$0xff]
      %v2389 = vld [vmem:[#allocation2 + $0xf8] sm:$0xff]
      %v2390 = vld [vmem:[#allocation2 + $0x100] sm:$0x3]
      %v2391 = vld [vmem:[#allocation2 + $0x108] sm:$0xff]
      %v2392 = vld [vmem:[#allocation2 + $0x110] sm:$0xff]
      %v2393 = vld [vmem:[#allocation2 + $0x118] sm:$0x3]
      %v2394 = vld [vmem:[#allocation2 + $0x120] sm:$0xff]
      %v2395 = vld [vmem:[#allocation2 + $0x128] sm:$0xff]
      %v2396 = vld [vmem:[#allocation2 + $0x130] sm:$0x3]
      %v2397 = vld [vmem:[#allocation2 + $0x138] sm:$0xff]
      %v2398 = vld [vmem:[#allocation2 + $0x140] sm:$0xff]
      %v2399 = vld [vmem:[#allocation2 + $0x148] sm:$0x3]
      %v2400 = vld [vmem:[#allocation2 + $0x150] sm:$0xff]
      %v2401 = vld [vmem:[#allocation2 + $0x158] sm:$0xff]
      %v2402 = vld [vmem:[#allocation2 + $0x160] sm:$0x3]
      %v2403 = vld [vmem:[#allocation2 + $0x168] sm:$0xff]
      %v2404 = vld [vmem:[#allocation2 + $0x170] sm:$0xff]
      %v2405 = vld [vmem:[#allocation2 + $0x178] sm:$0x3]
      %v2406 = vld [vmem:[#allocation2 + $0x180] sm:$0xff]
      %v2407 = vld [vmem:[#allocation2 + $0x188] sm:$0xff]
      %v2408 = vld [vmem:[#allocation2 + $0x190] sm:$0x3]
      %v2409 = vld [vmem:[#allocation2 + $0x198] sm:$0xff]
      %v2410 = vld [vmem:[#allocation2 + $0x1a0] sm:$0xff]
      %v2411 = vld [vmem:[#allocation2 + $0x1a8] sm:$0x3]
      %v2412 = vpack.c.bf16 %v2359, %v2358
      %v2413 = vpack.c.bf16 %v2362, %v2361
      %v2414 = vpack.c.bf16 %v2365, %v2364
      %v2415 = vpack.c.bf16 %v2368, %v2367
      %v2416 = vpack.c.bf16 %v2371, %v2370
      %v2417 = vpack.c.bf16 %v2374, %v2373
      %v2418 = vpack.c.bf16 %v2377, %v2376
      %v2419 = vpack.c.bf16 %v2380, %v2379
      %v2420 = vpack.c.bf16 %v2383, %v2382
      %v2421 = vpack.c.bf16 %v2386, %v2385
      %v2422 = vpack.c.bf16 %v2389, %v2388
      %v2423 = vpack.c.bf16 %v2392, %v2391
      %v2424 = vpack.c.bf16 %v2395, %v2394
      %v2425 = vpack.c.bf16 %v2398, %v2397
      %v2426 = vpack.c.bf16 %v2401, %v2400
      %v2427 = vpack.c.bf16 %v2404, %v2403
      %v2428 = vld [vmem:[%s4] sm:$0xf]
      %v2477 = vrot.slane %v2358, 1
      %v2478 = vrot.slane %v2359, 1
      %v2479 = vsel %vm729, %v2477, %v2478
      %v2480 = vrot.slane %v2360, 1
      %v2481 = vsel %vm729, %v2478, %v2480
      %v2482 = vrot.slane %v2361, 1
      %v2483 = vrot.slane %v2362, 1
      %v2484 = vsel %vm729, %v2482, %v2483
      %v2485 = vrot.slane %v2363, 1
      %v2486 = vsel %vm729, %v2483, %v2485
      %v2487 = vrot.slane %v2364, 1
      %v2488 = vrot.slane %v2365, 1
      %v2489 = vsel %vm729, %v2487, %v2488
      %v2490 = vrot.slane %v2366, 1
      %v2491 = vsel %vm729, %v2488, %v2490
      %v2492 = vrot.slane %v2367, 1
      %v2493 = vrot.slane %v2368, 1
      %v2494 = vsel %vm729, %v2492, %v2493
      %v2495 = vrot.slane %v2369, 1
      %v2496 = vsel %vm729, %v2493, %v2495
      %v2497 = vrot.slane %v2370, 1
      %v2498 = vrot.slane %v2371, 1
      %v2499 = vsel %vm729, %v2497, %v2498
      %v2500 = vrot.slane %v2372, 1
      %v2501 = vsel %vm729, %v2498, %v2500
      %v2502 = vrot.slane %v2373, 1
      %v2503 = vrot.slane %v2374, 1
      %v2504 = vsel %vm729, %v2502, %v2503
      %v2505 = vrot.slane %v2375, 1
      %v2506 = vsel %vm729, %v2503, %v2505
      %v2507 = vrot.slane %v2376, 1
      %v2508 = vrot.slane %v2377, 1
      %v2509 = vsel %vm729, %v2507, %v2508
      %v2510 = vrot.slane %v2378, 1
      %v2511 = vsel %vm729, %v2508, %v2510
      %v2512 = vrot.slane %v2379, 1
      %v2513 = vrot.slane %v2380, 1
      %v2514 = vsel %vm729, %v2512, %v2513
      %v2515 = vrot.slane %v2381, 1
      %v2516 = vsel %vm729, %v2513, %v2515
      %v2517 = vrot.slane %v2382, 1
      %v2518 = vrot.slane %v2383, 1
      %v2519 = vsel %vm729, %v2517, %v2518
      %v2520 = vrot.slane %v2384, 1
      %v2521 = vsel %vm729, %v2518, %v2520
      %v2522 = vrot.slane %v2385, 1
      %v2523 = vrot.slane %v2386, 1
      %v2524 = vsel %vm729, %v2522, %v2523
      %v2525 = vrot.slane %v2387, 1
      %v2526 = vsel %vm729, %v2523, %v2525
      %v2527 = vrot.slane %v2388, 1
      %v2528 = vrot.slane %v2389, 1
      %v2529 = vsel %vm729, %v2527, %v2528
      %v2530 = vrot.slane %v2390, 1
      %v2531 = vsel %vm729, %v2528, %v2530
      %v2532 = vrot.slane %v2391, 1
      %v2533 = vrot.slane %v2392, 1
      %v2534 = vsel %vm729, %v2532, %v2533
      %v2535 = vrot.slane %v2393, 1
      %v2536 = vsel %vm729, %v2533, %v2535
      %v2537 = vrot.slane %v2394, 1
      %v2538 = vrot.slane %v2395, 1
      %v2539 = vsel %vm729, %v2537, %v2538
      %v2540 = vrot.slane %v2396, 1
      %v2541 = vsel %vm729, %v2538, %v2540
      %v2542 = vrot.slane %v2397, 1
      %v2543 = vrot.slane %v2398, 1
      %v2544 = vsel %vm729, %v2542, %v2543
      %v2545 = vrot.slane %v2399, 1
      %v2546 = vsel %vm729, %v2543, %v2545
      %v2547 = vrot.slane %v2400, 1
      %v2548 = vrot.slane %v2401, 1
      %v2549 = vsel %vm729, %v2547, %v2548
      %v2550 = vrot.slane %v2402, 1
      %v2551 = vsel %vm729, %v2548, %v2550
      %v2552 = vrot.slane %v2403, 1
      %v2553 = vrot.slane %v2404, 1
      %v2554 = vsel %vm729, %v2552, %v2553
      %v2555 = vrot.slane %v2405, 1
      %v2556 = vsel %vm729, %v2553, %v2555
      %v2589 = vpack.c.bf16 %v2481, %v2479
      %v2590 = vpack.c.bf16 %v2486, %v2484
      %v2591 = vpack.c.bf16 %v2491, %v2489
      %v2592 = vpack.c.bf16 %v2496, %v2494
      %v2593 = vpack.c.bf16 %v2501, %v2499
      %v2594 = vpack.c.bf16 %v2506, %v2504
      %v2595 = vpack.c.bf16 %v2511, %v2509
      %v2596 = vpack.c.bf16 %v2516, %v2514
      %v2597 = vpack.c.bf16 %v2521, %v2519
      %v2598 = vpack.c.bf16 %v2526, %v2524
      %v2599 = vpack.c.bf16 %v2531, %v2529
      %v2600 = vpack.c.bf16 %v2536, %v2534
      %v2601 = vpack.c.bf16 %v2541, %v2539
      %v2602 = vpack.c.bf16 %v2546, %v2544
      %v2603 = vpack.c.bf16 %v2551, %v2549
      %v2604 = vpack.c.bf16 %v2556, %v2554
      %s2605 = scalar_lea.vmem %s4, 4
      %v2606 = vld [vmem:[%s2605] sm:$0xf]
      %v2608 = vsel %vm435, %v2589, 0
      %v2611 = vsel %vm435, %v2590, 0
      %v2614 = vsel %vm435, %v2591, 0
      %v2617 = vsel %vm435, %v2592, 0
      %v2620 = vsel %vm435, %v2593, 0
      %v2623 = vsel %vm435, %v2594, 0
      %v2626 = vsel %vm435, %v2595, 0
      %v2629 = vsel %vm435, %v2596, 0
      %v2632 = vsel %vm435, %v2597, 0
      %v2635 = vsel %vm435, %v2598, 0
      %v2638 = vsel %vm435, %v2599, 0
      %v2641 = vsel %vm435, %v2600, 0
      %v2644 = vsel %vm435, %v2601, 0
      %v2647 = vsel %vm435, %v2602, 0
      %v2650 = vsel %vm435, %v2603, 0
      %v2653 = vsel %vm435, %v2604, 0
      %v2656 = vsel %vm908, %v2606, 0
      %2658 = vmatpush.bf16.msra.mxu0 0
      %2659 = vmatpush.bf16.msra.mxu0 0
      %2660 = vmatpush.bf16.msra.mxu0 0
      %2661 = vmatpush.bf16.msra.mxu0 0
      %2662 = vmatpush.bf16.msra.mxu0 0
      %2663 = vmatpush.bf16.msra.mxu0 0
      %2664 = vmatpush.bf16.msra.mxu0 0
      %2665 = vmatpush.bf16.msra.mxu0 %v2656
      %2666 = vmatmul.bf16.gmra.mxu0 %v2608
      %v2667 = vpop.f32.mrf.mxu0
      %v2668 = vadd.f32 0.0, %v2667
      %v2669 = vpop.f32.mrf.mxu0
      %v2670 = vadd.f32 0.0, %v2669
      %2671 = vmatmul.bf16.gmra.mxu0 %v2611
      %v2672 = vpop.f32.mrf.mxu0
      %v2673 = vadd.f32 0.0, %v2672
      %v2674 = vpop.f32.mrf.mxu0
      %v2675 = vadd.f32 0.0, %v2674
      %2676 = vmatmul.bf16.gmra.mxu0 %v2614
      %v2677 = vpop.f32.mrf.mxu0
      %v2678 = vadd.f32 0.0, %v2677
      %v2679 = vpop.f32.mrf.mxu0
      %v2680 = vadd.f32 0.0, %v2679
      %2681 = vmatmul.bf16.gmra.mxu0 %v2617
      %v2682 = vpop.f32.mrf.mxu0
      %v2683 = vadd.f32 0.0, %v2682
      %v2684 = vpop.f32.mrf.mxu0
      %v2685 = vadd.f32 0.0, %v2684
      %2686 = vmatmul.bf16.gmra.mxu0 %v2620
      %v2687 = vpop.f32.mrf.mxu0
      %v2688 = vadd.f32 0.0, %v2687
      %v2689 = vpop.f32.mrf.mxu0
      %v2690 = vadd.f32 0.0, %v2689
      %2691 = vmatmul.bf16.gmra.mxu0 %v2623
      %v2692 = vpop.f32.mrf.mxu0
      %v2693 = vadd.f32 0.0, %v2692
      %v2694 = vpop.f32.mrf.mxu0
      %v2695 = vadd.f32 0.0, %v2694
      %2696 = vmatmul.bf16.gmra.mxu0 %v2626
      %v2697 = vpop.f32.mrf.mxu0
      %v2698 = vadd.f32 0.0, %v2697
      %v2699 = vpop.f32.mrf.mxu0
      %v2700 = vadd.f32 0.0, %v2699
      %2701 = vmatmul.bf16.gmra.mxu0 %v2629
      %v2702 = vpop.f32.mrf.mxu0
      %v2703 = vadd.f32 0.0, %v2702
      %v2704 = vpop.f32.mrf.mxu0
      %v2705 = vadd.f32 0.0, %v2704
      %2706 = vmatmul.bf16.gmra.mxu0 %v2632
      %v2707 = vpop.f32.mrf.mxu0
      %v2708 = vadd.f32 0.0, %v2707
      %v2709 = vpop.f32.mrf.mxu0
      %v2710 = vadd.f32 0.0, %v2709
      %2711 = vmatmul.bf16.gmra.mxu0 %v2635
      %v2712 = vpop.f32.mrf.mxu0
      %v2713 = vadd.f32 0.0, %v2712
      %v2714 = vpop.f32.mrf.mxu0
      %v2715 = vadd.f32 0.0, %v2714
      %2716 = vmatmul.bf16.gmra.mxu0 %v2638
      %v2717 = vpop.f32.mrf.mxu0
      %v2718 = vadd.f32 0.0, %v2717
      %v2719 = vpop.f32.mrf.mxu0
      %v2720 = vadd.f32 0.0, %v2719
      %2721 = vmatmul.bf16.gmra.mxu0 %v2641
      %v2722 = vpop.f32.mrf.mxu0
      %v2723 = vadd.f32 0.0, %v2722
      %v2724 = vpop.f32.mrf.mxu0
      %v2725 = vadd.f32 0.0, %v2724
      %2726 = vmatmul.bf16.gmra.mxu0 %v2644
      %v2727 = vpop.f32.mrf.mxu0
      %v2728 = vadd.f32 0.0, %v2727
      %v2729 = vpop.f32.mrf.mxu0
      %v2730 = vadd.f32 0.0, %v2729
      %2731 = vmatmul.bf16.gmra.mxu0 %v2647
      %v2732 = vpop.f32.mrf.mxu0
      %v2733 = vadd.f32 0.0, %v2732
      %v2734 = vpop.f32.mrf.mxu0
      %v2735 = vadd.f32 0.0, %v2734
      %2736 = vmatmul.bf16.gmra.mxu0 %v2650
      %v2737 = vpop.f32.mrf.mxu0
      %v2738 = vadd.f32 0.0, %v2737
      %v2739 = vpop.f32.mrf.mxu0
      %v2740 = vadd.f32 0.0, %v2739
      %2741 = vmatmul.bf16.gmra.mxu0 %v2653
      %v2742 = vpop.f32.mrf.mxu0
      %v2743 = vadd.f32 0.0, %v2742
      %v2744 = vpop.f32.mrf.mxu0
      %v2745 = vadd.f32 0.0, %v2744
      %2746 = vdwg.mxu0
      %v2748 = vsel %vm435, %v2412, 0
      %v2751 = vsel %vm435, %v2413, 0
      %v2754 = vsel %vm435, %v2414, 0
      %v2757 = vsel %vm435, %v2415, 0
      %v2760 = vsel %vm435, %v2416, 0
      %v2763 = vsel %vm435, %v2417, 0
      %v2766 = vsel %vm435, %v2418, 0
      %v2769 = vsel %vm435, %v2419, 0
      %v2772 = vsel %vm435, %v2420, 0
      %v2775 = vsel %vm435, %v2421, 0
      %v2778 = vsel %vm435, %v2422, 0
      %v2781 = vsel %vm435, %v2423, 0
      %v2784 = vsel %vm435, %v2424, 0
      %v2787 = vsel %vm435, %v2425, 0
      %v2790 = vsel %vm435, %v2426, 0
      %v2793 = vsel %vm435, %v2427, 0
      %v2796 = vsel %vm908, %v2428, 0
      %2798 = vmatpush.bf16.msra.mxu0 0
      %2799 = vmatpush.bf16.msra.mxu0 0
      %2800 = vmatpush.bf16.msra.mxu0 0
      %2801 = vmatpush.bf16.msra.mxu0 0
      %2802 = vmatpush.bf16.msra.mxu0 0
      %2803 = vmatpush.bf16.msra.mxu0 0
      %2804 = vmatpush.bf16.msra.mxu0 0
      %2805 = vmatpush.bf16.msra.mxu0 %v2796
      %2806 = vmatmul.bf16.gmra.mxu0 %v2748
      %v2807 = vpop.f32.mrf.mxu0
      %v2808 = vadd.f32 %v2668, %v2807
      %v2809 = vpop.f32.mrf.mxu0
      %v2810 = vadd.f32 %v2670, %v2809
      %2811 = vmatmul.bf16.gmra.mxu0 %v2751
      %v2812 = vpop.f32.mrf.mxu0
      %v2813 = vadd.f32 %v2673, %v2812
      %v2814 = vpop.f32.mrf.mxu0
      %v2815 = vadd.f32 %v2675, %v2814
      %2816 = vmatmul.bf16.gmra.mxu0 %v2754
      %v2817 = vpop.f32.mrf.mxu0
      %v2818 = vadd.f32 %v2678, %v2817
      %v2819 = vpop.f32.mrf.mxu0
      %v2820 = vadd.f32 %v2680, %v2819
      %2821 = vmatmul.bf16.gmra.mxu0 %v2757
      %v2822 = vpop.f32.mrf.mxu0
      %v2823 = vadd.f32 %v2683, %v2822
      %v2824 = vpop.f32.mrf.mxu0
      %v2825 = vadd.f32 %v2685, %v2824
      %2826 = vmatmul.bf16.gmra.mxu0 %v2760
      %v2827 = vpop.f32.mrf.mxu0
      %v2828 = vadd.f32 %v2688, %v2827
      %v2829 = vpop.f32.mrf.mxu0
      %v2830 = vadd.f32 %v2690, %v2829
      %2831 = vmatmul.bf16.gmra.mxu0 %v2763
      %v2832 = vpop.f32.mrf.mxu0
      %v2833 = vadd.f32 %v2693, %v2832
      %v2834 = vpop.f32.mrf.mxu0
      %v2835 = vadd.f32 %v2695, %v2834
      %2836 = vmatmul.bf16.gmra.mxu0 %v2766
      %v2837 = vpop.f32.mrf.mxu0
      %v2838 = vadd.f32 %v2698, %v2837
      %v2839 = vpop.f32.mrf.mxu0
      %v2840 = vadd.f32 %v2700, %v2839
      %2841 = vmatmul.bf16.gmra.mxu0 %v2769
      %v2842 = vpop.f32.mrf.mxu0
      %v2843 = vadd.f32 %v2703, %v2842
      %v2844 = vpop.f32.mrf.mxu0
      %v2845 = vadd.f32 %v2705, %v2844
      %2846 = vmatmul.bf16.gmra.mxu0 %v2772
      %v2847 = vpop.f32.mrf.mxu0
      %v2848 = vadd.f32 %v2708, %v2847
      %v2849 = vpop.f32.mrf.mxu0
      %v2850 = vadd.f32 %v2710, %v2849
      %2851 = vmatmul.bf16.gmra.mxu0 %v2775
      %v2852 = vpop.f32.mrf.mxu0
      %v2853 = vadd.f32 %v2713, %v2852
      %v2854 = vpop.f32.mrf.mxu0
      %v2855 = vadd.f32 %v2715, %v2854
      %2856 = vmatmul.bf16.gmra.mxu0 %v2778
      %v2857 = vpop.f32.mrf.mxu0
      %v2858 = vadd.f32 %v2718, %v2857
      %v2859 = vpop.f32.mrf.mxu0
      %v2860 = vadd.f32 %v2720, %v2859
      %2861 = vmatmul.bf16.gmra.mxu0 %v2781
      %v2862 = vpop.f32.mrf.mxu0
      %v2863 = vadd.f32 %v2723, %v2862
      %v2864 = vpop.f32.mrf.mxu0
      %v2865 = vadd.f32 %v2725, %v2864
      %2866 = vmatmul.bf16.gmra.mxu0 %v2784
      %v2867 = vpop.f32.mrf.mxu0
      %v2868 = vadd.f32 %v2728, %v2867
      %v2869 = vpop.f32.mrf.mxu0
      %v2870 = vadd.f32 %v2730, %v2869
      %2871 = vmatmul.bf16.gmra.mxu0 %v2787
      %v2872 = vpop.f32.mrf.mxu0
      %v2873 = vadd.f32 %v2733, %v2872
      %v2874 = vpop.f32.mrf.mxu0
      %v2875 = vadd.f32 %v2735, %v2874
      %2876 = vmatmul.bf16.gmra.mxu0 %v2790
      %v2877 = vpop.f32.mrf.mxu0
      %v2878 = vadd.f32 %v2738, %v2877
      %v2879 = vpop.f32.mrf.mxu0
      %v2880 = vadd.f32 %v2740, %v2879
      %2881 = vmatmul.bf16.gmra.mxu0 %v2793
      %v2882 = vpop.f32.mrf.mxu0
      %v2883 = vadd.f32 %v2743, %v2882
      %v2884 = vpop.f32.mrf.mxu0
      %v2885 = vadd.f32 %v2745, %v2884
      %2886 = vdwg.mxu0
      %v2887 = vrot.slane %v2358, 2
      %v2888 = vrot.slane %v2359, 2
      %v2889 = vsel %vm1141, %v2887, %v2888
      %v2890 = vrot.slane %v2360, 2
      %v2891 = vsel %vm1141, %v2888, %v2890
      %v2892 = vrot.slane %v2361, 2
      %v2893 = vrot.slane %v2362, 2
      %v2894 = vsel %vm1141, %v2892, %v2893
      %v2895 = vrot.slane %v2363, 2
      %v2896 = vsel %vm1141, %v2893, %v2895
      %v2897 = vrot.slane %v2364, 2
      %v2898 = vrot.slane %v2365, 2
      %v2899 = vsel %vm1141, %v2897, %v2898
      %v2900 = vrot.slane %v2366, 2
      %v2901 = vsel %vm1141, %v2898, %v2900
      %v2902 = vrot.slane %v2367, 2
      %v2903 = vrot.slane %v2368, 2
      %v2904 = vsel %vm1141, %v2902, %v2903
      %v2905 = vrot.slane %v2369, 2
      %v2906 = vsel %vm1141, %v2903, %v2905
      %v2907 = vrot.slane %v2370, 2
      %v2908 = vrot.slane %v2371, 2
      %v2909 = vsel %vm1141, %v2907, %v2908
      %v2910 = vrot.slane %v2372, 2
      %v2911 = vsel %vm1141, %v2908, %v2910
      %v2912 = vrot.slane %v2373, 2
      %v2913 = vrot.slane %v2374, 2
      %v2914 = vsel %vm1141, %v2912, %v2913
      %v2915 = vrot.slane %v2375, 2
      %v2916 = vsel %vm1141, %v2913, %v2915
      %v2917 = vrot.slane %v2376, 2
      %v2918 = vrot.slane %v2377, 2
      %v2919 = vsel %vm1141, %v2917, %v2918
      %v2920 = vrot.slane %v2378, 2
      %v2921 = vsel %vm1141, %v2918, %v2920
      %v2922 = vrot.slane %v2379, 2
      %v2923 = vrot.slane %v2380, 2
      %v2924 = vsel %vm1141, %v2922, %v2923
      %v2925 = vrot.slane %v2381, 2
      %v2926 = vsel %vm1141, %v2923, %v2925
      %v2927 = vrot.slane %v2382, 2
      %v2928 = vrot.slane %v2383, 2
      %v2929 = vsel %vm1141, %v2927, %v2928
      %v2930 = vrot.slane %v2384, 2
      %v2931 = vsel %vm1141, %v2928, %v2930
      %v2932 = vrot.slane %v2385, 2
      %v2933 = vrot.slane %v2386, 2
      %v2934 = vsel %vm1141, %v2932, %v2933
      %v2935 = vrot.slane %v2387, 2
      %v2936 = vsel %vm1141, %v2933, %v2935
      %v2937 = vrot.slane %v2388, 2
      %v2938 = vrot.slane %v2389, 2
      %v2939 = vsel %vm1141, %v2937, %v2938
      %v2940 = vrot.slane %v2390, 2
      %v2941 = vsel %vm1141, %v2938, %v2940
      %v2942 = vrot.slane %v2391, 2
      %v2943 = vrot.slane %v2392, 2
      %v2944 = vsel %vm1141, %v2942, %v2943
      %v2945 = vrot.slane %v2393, 2
      %v2946 = vsel %vm1141, %v2943, %v2945
      %v2947 = vrot.slane %v2394, 2
      %v2948 = vrot.slane %v2395, 2
      %v2949 = vsel %vm1141, %v2947, %v2948
      %v2950 = vrot.slane %v2396, 2
      %v2951 = vsel %vm1141, %v2948, %v2950
      %v2952 = vrot.slane %v2397, 2
      %v2953 = vrot.slane %v2398, 2
      %v2954 = vsel %vm1141, %v2952, %v2953
      %v2955 = vrot.slane %v2399, 2
      %v2956 = vsel %vm1141, %v2953, %v2955
      %v2957 = vrot.slane %v2400, 2
      %v2958 = vrot.slane %v2401, 2
      %v2959 = vsel %vm1141, %v2957, %v2958
      %v2960 = vrot.slane %v2402, 2
      %v2961 = vsel %vm1141, %v2958, %v2960
      %v2962 = vrot.slane %v2403, 2
      %v2963 = vrot.slane %v2404, 2
      %v2964 = vsel %vm1141, %v2962, %v2963
      %v2965 = vrot.slane %v2405, 2
      %v2966 = vsel %vm1141, %v2963, %v2965
      %v2999 = vpack.c.bf16 %v2891, %v2889
      %v3000 = vpack.c.bf16 %v2896, %v2894
      %v3001 = vpack.c.bf16 %v2901, %v2899
      %v3002 = vpack.c.bf16 %v2906, %v2904
      %v3003 = vpack.c.bf16 %v2911, %v2909
      %v3004 = vpack.c.bf16 %v2916, %v2914
      %v3005 = vpack.c.bf16 %v2921, %v2919
      %v3006 = vpack.c.bf16 %v2926, %v2924
      %v3007 = vpack.c.bf16 %v2931, %v2929
      %v3008 = vpack.c.bf16 %v2936, %v2934
      %v3009 = vpack.c.bf16 %v2941, %v2939
      %v3010 = vpack.c.bf16 %v2946, %v2944
      %v3011 = vpack.c.bf16 %v2951, %v2949
      %v3012 = vpack.c.bf16 %v2956, %v2954
      %v3013 = vpack.c.bf16 %v2961, %v2959
      %v3014 = vpack.c.bf16 %v2966, %v2964
      %s3015 = scalar_lea.vmem %s4, 8
      %v3016 = vld [vmem:[%s3015] sm:$0xf]
      %v3018 = vsel %vm435, %v2999, 0
      %v3021 = vsel %vm435, %v3000, 0
      %v3024 = vsel %vm435, %v3001, 0
      %v3027 = vsel %vm435, %v3002, 0
      %v3030 = vsel %vm435, %v3003, 0
      %v3033 = vsel %vm435, %v3004, 0
      %v3036 = vsel %vm435, %v3005, 0
      %v3039 = vsel %vm435, %v3006, 0
      %v3042 = vsel %vm435, %v3007, 0
      %v3045 = vsel %vm435, %v3008, 0
      %v3048 = vsel %vm435, %v3009, 0
      %v3051 = vsel %vm435, %v3010, 0
      %v3054 = vsel %vm435, %v3011, 0
      %v3057 = vsel %vm435, %v3012, 0
      %v3060 = vsel %vm435, %v3013, 0
      %v3063 = vsel %vm435, %v3014, 0
      %v3066 = vsel %vm908, %v3016, 0
      %3068 = vmatpush.bf16.msra.mxu0 0
      %3069 = vmatpush.bf16.msra.mxu0 0
      %3070 = vmatpush.bf16.msra.mxu0 0
      %3071 = vmatpush.bf16.msra.mxu0 0
      %3072 = vmatpush.bf16.msra.mxu0 0
      %3073 = vmatpush.bf16.msra.mxu0 0
      %3074 = vmatpush.bf16.msra.mxu0 0
      %3075 = vmatpush.bf16.msra.mxu0 %v3066
      %3076 = vmatmul.bf16.gmra.mxu0 %v3018
      %v3077 = vpop.f32.mrf.mxu0
      %v3078 = vadd.f32 0.0, %v3077
      %v3079 = vpop.f32.mrf.mxu0
      %v3080 = vadd.f32 0.0, %v3079
      %3081 = vmatmul.bf16.gmra.mxu0 %v3021
      %v3082 = vpop.f32.mrf.mxu0
      %v3083 = vadd.f32 0.0, %v3082
      %v3084 = vpop.f32.mrf.mxu0
      %v3085 = vadd.f32 0.0, %v3084
      %3086 = vmatmul.bf16.gmra.mxu0 %v3024
      %v3087 = vpop.f32.mrf.mxu0
      %v3088 = vadd.f32 0.0, %v3087
      %v3089 = vpop.f32.mrf.mxu0
      %v3090 = vadd.f32 0.0, %v3089
      %3091 = vmatmul.bf16.gmra.mxu0 %v3027
      %v3092 = vpop.f32.mrf.mxu0
      %v3093 = vadd.f32 0.0, %v3092
      %v3094 = vpop.f32.mrf.mxu0
      %v3095 = vadd.f32 0.0, %v3094
      %3096 = vmatmul.bf16.gmra.mxu0 %v3030
      %v3097 = vpop.f32.mrf.mxu0
      %v3098 = vadd.f32 0.0, %v3097
      %v3099 = vpop.f32.mrf.mxu0
      %v3100 = vadd.f32 0.0, %v3099
      %3101 = vmatmul.bf16.gmra.mxu0 %v3033
      %v3102 = vpop.f32.mrf.mxu0
      %v3103 = vadd.f32 0.0, %v3102
      %v3104 = vpop.f32.mrf.mxu0
      %v3105 = vadd.f32 0.0, %v3104
      %3106 = vmatmul.bf16.gmra.mxu0 %v3036
      %v3107 = vpop.f32.mrf.mxu0
      %v3108 = vadd.f32 0.0, %v3107
      %v3109 = vpop.f32.mrf.mxu0
      %v3110 = vadd.f32 0.0, %v3109
      %3111 = vmatmul.bf16.gmra.mxu0 %v3039
      %v3112 = vpop.f32.mrf.mxu0
      %v3113 = vadd.f32 0.0, %v3112
      %v3114 = vpop.f32.mrf.mxu0
      %v3115 = vadd.f32 0.0, %v3114
      %3116 = vmatmul.bf16.gmra.mxu0 %v3042
      %v3117 = vpop.f32.mrf.mxu0
      %v3118 = vadd.f32 0.0, %v3117
      %v3119 = vpop.f32.mrf.mxu0
      %v3120 = vadd.f32 0.0, %v3119
      %3121 = vmatmul.bf16.gmra.mxu0 %v3045
      %v3122 = vpop.f32.mrf.mxu0
      %v3123 = vadd.f32 0.0, %v3122
      %v3124 = vpop.f32.mrf.mxu0
      %v3125 = vadd.f32 0.0, %v3124
      %3126 = vmatmul.bf16.gmra.mxu0 %v3048
      %v3127 = vpop.f32.mrf.mxu0
      %v3128 = vadd.f32 0.0, %v3127
      %v3129 = vpop.f32.mrf.mxu0
      %v3130 = vadd.f32 0.0, %v3129
      %3131 = vmatmul.bf16.gmra.mxu0 %v3051
      %v3132 = vpop.f32.mrf.mxu0
      %v3133 = vadd.f32 0.0, %v3132
      %v3134 = vpop.f32.mrf.mxu0
      %v3135 = vadd.f32 0.0, %v3134
      %3136 = vmatmul.bf16.gmra.mxu0 %v3054
      %v3137 = vpop.f32.mrf.mxu0
      %v3138 = vadd.f32 0.0, %v3137
      %v3139 = vpop.f32.mrf.mxu0
      %v3140 = vadd.f32 0.0, %v3139
      %3141 = vmatmul.bf16.gmra.mxu0 %v3057
      %v3142 = vpop.f32.mrf.mxu0
      %v3143 = vadd.f32 0.0, %v3142
      %v3144 = vpop.f32.mrf.mxu0
      %v3145 = vadd.f32 0.0, %v3144
      %3146 = vmatmul.bf16.gmra.mxu0 %v3060
      %v3147 = vpop.f32.mrf.mxu0
      %v3148 = vadd.f32 0.0, %v3147
      %v3149 = vpop.f32.mrf.mxu0
      %v3150 = vadd.f32 0.0, %v3149
      %3151 = vmatmul.bf16.gmra.mxu0 %v3063
      %v3152 = vpop.f32.mrf.mxu0
      %v3153 = vadd.f32 0.0, %v3152
      %v3154 = vpop.f32.mrf.mxu0
      %v3155 = vadd.f32 0.0, %v3154
      %3156 = vdwg.mxu0
      %v3157 = vadd.f32 %v2808, %v3078
      %v3158 = vadd.f32 %v2810, %v3080
      %v3159 = vadd.f32 %v2813, %v3083
      %v3160 = vadd.f32 %v2815, %v3085
      %v3161 = vadd.f32 %v2818, %v3088
      %v3162 = vadd.f32 %v2820, %v3090
      %v3163 = vadd.f32 %v2823, %v3093
      %v3164 = vadd.f32 %v2825, %v3095
      %v3165 = vadd.f32 %v2828, %v3098
      %v3166 = vadd.f32 %v2830, %v3100
      %v3167 = vadd.f32 %v2833, %v3103
      %v3168 = vadd.f32 %v2835, %v3105
      %v3169 = vadd.f32 %v2838, %v3108
      %v3170 = vadd.f32 %v2840, %v3110
      %v3171 = vadd.f32 %v2843, %v3113
      %v3172 = vadd.f32 %v2845, %v3115
      %v3173 = vadd.f32 %v2848, %v3118
      %v3174 = vadd.f32 %v2850, %v3120
      %v3175 = vadd.f32 %v2853, %v3123
      %v3176 = vadd.f32 %v2855, %v3125
      %v3177 = vadd.f32 %v2858, %v3128
      %v3178 = vadd.f32 %v2860, %v3130
      %v3179 = vadd.f32 %v2863, %v3133
      %v3180 = vadd.f32 %v2865, %v3135
      %v3181 = vadd.f32 %v2868, %v3138
      %v3182 = vadd.f32 %v2870, %v3140
      %v3183 = vadd.f32 %v2873, %v3143
      %v3184 = vadd.f32 %v2875, %v3145
      %v3185 = vadd.f32 %v2878, %v3148
      %v3186 = vadd.f32 %v2880, %v3150
      %v3187 = vadd.f32 %v2883, %v3153
      %v3188 = vadd.f32 %v2885, %v3155
      %v3189 = vpack.c.bf16 %v2407, %v2406
      %s3190 = scalar_lea.vmem %s4, 12
      %v3191 = vld [vmem:[%s3190] sm:$0xf]
      %v3193 = vsel %vm435, %v3189, 0
      %v3196 = vsel %vm908, %v3191, 0
      %3198 = vmatpush.bf16.msra.mxu0 0
      %3199 = vmatpush.bf16.msra.mxu0 0
      %3200 = vmatpush.bf16.msra.mxu0 0
      %3201 = vmatpush.bf16.msra.mxu0 0
      %3202 = vmatpush.bf16.msra.mxu0 0
      %3203 = vmatpush.bf16.msra.mxu0 0
      %3204 = vmatpush.bf16.msra.mxu0 0
      %3205 = vmatpush.bf16.msra.mxu0 %v3196
      %3206 = vmatmul.bf16.gmra.mxu0 %v2751
      %v3207 = vpop.f32.mrf.mxu0
      %v3208 = vadd.f32 0.0, %v3207
      %v3209 = vpop.f32.mrf.mxu0
      %v3210 = vadd.f32 0.0, %v3209
      %3211 = vmatmul.bf16.gmra.mxu0 %v2754
      %v3212 = vpop.f32.mrf.mxu0
      %v3213 = vadd.f32 0.0, %v3212
      %v3214 = vpop.f32.mrf.mxu0
      %v3215 = vadd.f32 0.0, %v3214
      %3216 = vmatmul.bf16.gmra.mxu0 %v2757
      %v3217 = vpop.f32.mrf.mxu0
      %v3218 = vadd.f32 0.0, %v3217
      %v3219 = vpop.f32.mrf.mxu0
      %v3220 = vadd.f32 0.0, %v3219
      %3221 = vmatmul.bf16.gmra.mxu0 %v2760
      %v3222 = vpop.f32.mrf.mxu0
      %v3223 = vadd.f32 0.0, %v3222
      %v3224 = vpop.f32.mrf.mxu0
      %v3225 = vadd.f32 0.0, %v3224
      %3226 = vmatmul.bf16.gmra.mxu0 %v2763
      %v3227 = vpop.f32.mrf.mxu0
      %v3228 = vadd.f32 0.0, %v3227
      %v3229 = vpop.f32.mrf.mxu0
      %v3230 = vadd.f32 0.0, %v3229
      %3231 = vmatmul.bf16.gmra.mxu0 %v2766
      %v3232 = vpop.f32.mrf.mxu0
      %v3233 = vadd.f32 0.0, %v3232
      %v3234 = vpop.f32.mrf.mxu0
      %v3235 = vadd.f32 0.0, %v3234
      %3236 = vmatmul.bf16.gmra.mxu0 %v2769
      %v3237 = vpop.f32.mrf.mxu0
      %v3238 = vadd.f32 0.0, %v3237
      %v3239 = vpop.f32.mrf.mxu0
      %v3240 = vadd.f32 0.0, %v3239
      %3241 = vmatmul.bf16.gmra.mxu0 %v2772
      %v3242 = vpop.f32.mrf.mxu0
      %v3243 = vadd.f32 0.0, %v3242
      %v3244 = vpop.f32.mrf.mxu0
      %v3245 = vadd.f32 0.0, %v3244
      %3246 = vmatmul.bf16.gmra.mxu0 %v2775
      %v3247 = vpop.f32.mrf.mxu0
      %v3248 = vadd.f32 0.0, %v3247
      %v3249 = vpop.f32.mrf.mxu0
      %v3250 = vadd.f32 0.0, %v3249
      %3251 = vmatmul.bf16.gmra.mxu0 %v2778
      %v3252 = vpop.f32.mrf.mxu0
      %v3253 = vadd.f32 0.0, %v3252
      %v3254 = vpop.f32.mrf.mxu0
      %v3255 = vadd.f32 0.0, %v3254
      %3256 = vmatmul.bf16.gmra.mxu0 %v2781
      %v3257 = vpop.f32.mrf.mxu0
      %v3258 = vadd.f32 0.0, %v3257
      %v3259 = vpop.f32.mrf.mxu0
      %v3260 = vadd.f32 0.0, %v3259
      %3261 = vmatmul.bf16.gmra.mxu0 %v2784
      %v3262 = vpop.f32.mrf.mxu0
      %v3263 = vadd.f32 0.0, %v3262
      %v3264 = vpop.f32.mrf.mxu0
      %v3265 = vadd.f32 0.0, %v3264
      %3266 = vmatmul.bf16.gmra.mxu0 %v2787
      %v3267 = vpop.f32.mrf.mxu0
      %v3268 = vadd.f32 0.0, %v3267
      %v3269 = vpop.f32.mrf.mxu0
      %v3270 = vadd.f32 0.0, %v3269
      %3271 = vmatmul.bf16.gmra.mxu0 %v2790
      %v3272 = vpop.f32.mrf.mxu0
      %v3273 = vadd.f32 0.0, %v3272
      %v3274 = vpop.f32.mrf.mxu0
      %v3275 = vadd.f32 0.0, %v3274
      %3276 = vmatmul.bf16.gmra.mxu0 %v2793
      %v3277 = vpop.f32.mrf.mxu0
      %v3278 = vadd.f32 0.0, %v3277
      %v3279 = vpop.f32.mrf.mxu0
      %v3280 = vadd.f32 0.0, %v3279
      %3281 = vmatmul.bf16.gmra.mxu0 %v3193
      %v3282 = vpop.f32.mrf.mxu0
      %v3283 = vadd.f32 0.0, %v3282
      %v3284 = vpop.f32.mrf.mxu0
      %v3285 = vadd.f32 0.0, %v3284
      %3286 = vdwg.mxu0
      %v3287 = vadd.f32 %v3157, %v3208
      %v3288 = vadd.f32 %v3158, %v3210
      %v3289 = vadd.f32 %v3159, %v3213
      %v3290 = vadd.f32 %v3160, %v3215
      %v3291 = vadd.f32 %v3161, %v3218
      %v3292 = vadd.f32 %v3162, %v3220
      %v3293 = vadd.f32 %v3163, %v3223
      %v3294 = vadd.f32 %v3164, %v3225
      %v3295 = vadd.f32 %v3165, %v3228
      %v3296 = vadd.f32 %v3166, %v3230
      %v3297 = vadd.f32 %v3167, %v3233
      %v3298 = vadd.f32 %v3168, %v3235
      %v3299 = vadd.f32 %v3169, %v3238
      %v3300 = vadd.f32 %v3170, %v3240
      %v3301 = vadd.f32 %v3171, %v3243
      %v3302 = vadd.f32 %v3172, %v3245
      %v3303 = vadd.f32 %v3173, %v3248
      %v3304 = vadd.f32 %v3174, %v3250
      %v3305 = vadd.f32 %v3175, %v3253
      %v3306 = vadd.f32 %v3176, %v3255
      %v3307 = vadd.f32 %v3177, %v3258
      %v3308 = vadd.f32 %v3178, %v3260
      %v3309 = vadd.f32 %v3179, %v3263
      %v3310 = vadd.f32 %v3180, %v3265
      %v3311 = vadd.f32 %v3181, %v3268
      %v3312 = vadd.f32 %v3182, %v3270
      %v3313 = vadd.f32 %v3183, %v3273
      %v3314 = vadd.f32 %v3184, %v3275
      %v3315 = vadd.f32 %v3185, %v3278
      %v3316 = vadd.f32 %v3186, %v3280
      %v3317 = vadd.f32 %v3187, %v3283
      %v3318 = vadd.f32 %v3188, %v3285
      %v3322 = vrot.slane %v2406, 1
      %v3323 = vrot.slane %v2407, 1
      %v3324 = vsel %vm729, %v3322, %v3323
      %v3325 = vrot.slane %v2408, 1
      %v3326 = vsel %vm729, %v3323, %v3325
      %v3329 = vpack.c.bf16 %v3326, %v3324
      %s3330 = scalar_lea.vmem %s4, 16
      %v3331 = vld [vmem:[%s3330] sm:$0xf]
      %v3333 = vsel %vm435, %v3329, 0
      %v3336 = vsel %vm908, %v3331, 0
      %3338 = vmatpush.bf16.msra.mxu0 0
      %3339 = vmatpush.bf16.msra.mxu0 0
      %3340 = vmatpush.bf16.msra.mxu0 0
      %3341 = vmatpush.bf16.msra.mxu0 0
      %3342 = vmatpush.bf16.msra.mxu0 0
      %3343 = vmatpush.bf16.msra.mxu0 0
      %3344 = vmatpush.bf16.msra.mxu0 0
      %3345 = vmatpush.bf16.msra.mxu0 %v3336
      %3346 = vmatmul.bf16.gmra.mxu0 %v2611
      %v3347 = vpop.f32.mrf.mxu0
      %v3348 = vadd.f32 0.0, %v3347
      %v3349 = vpop.f32.mrf.mxu0
      %v3350 = vadd.f32 0.0, %v3349
      %3351 = vmatmul.bf16.gmra.mxu0 %v2614
      %v3352 = vpop.f32.mrf.mxu0
      %v3353 = vadd.f32 0.0, %v3352
      %v3354 = vpop.f32.mrf.mxu0
      %v3355 = vadd.f32 0.0, %v3354
      %3356 = vmatmul.bf16.gmra.mxu0 %v2617
      %v3357 = vpop.f32.mrf.mxu0
      %v3358 = vadd.f32 0.0, %v3357
      %v3359 = vpop.f32.mrf.mxu0
      %v3360 = vadd.f32 0.0, %v3359
      %3361 = vmatmul.bf16.gmra.mxu0 %v2620
      %v3362 = vpop.f32.mrf.mxu0
      %v3363 = vadd.f32 0.0, %v3362
      %v3364 = vpop.f32.mrf.mxu0
      %v3365 = vadd.f32 0.0, %v3364
      %3366 = vmatmul.bf16.gmra.mxu0 %v2623
      %v3367 = vpop.f32.mrf.mxu0
      %v3368 = vadd.f32 0.0, %v3367
      %v3369 = vpop.f32.mrf.mxu0
      %v3370 = vadd.f32 0.0, %v3369
      %3371 = vmatmul.bf16.gmra.mxu0 %v2626
      %v3372 = vpop.f32.mrf.mxu0
      %v3373 = vadd.f32 0.0, %v3372
      %v3374 = vpop.f32.mrf.mxu0
      %v3375 = vadd.f32 0.0, %v3374
      %3376 = vmatmul.bf16.gmra.mxu0 %v2629
      %v3377 = vpop.f32.mrf.mxu0
      %v3378 = vadd.f32 0.0, %v3377
      %v3379 = vpop.f32.mrf.mxu0
      %v3380 = vadd.f32 0.0, %v3379
      %3381 = vmatmul.bf16.gmra.mxu0 %v2632
      %v3382 = vpop.f32.mrf.mxu0
      %v3383 = vadd.f32 0.0, %v3382
      %v3384 = vpop.f32.mrf.mxu0
      %v3385 = vadd.f32 0.0, %v3384
      %3386 = vmatmul.bf16.gmra.mxu0 %v2635
      %v3387 = vpop.f32.mrf.mxu0
      %v3388 = vadd.f32 0.0, %v3387
      %v3389 = vpop.f32.mrf.mxu0
      %v3390 = vadd.f32 0.0, %v3389
      %3391 = vmatmul.bf16.gmra.mxu0 %v2638
      %v3392 = vpop.f32.mrf.mxu0
      %v3393 = vadd.f32 0.0, %v3392
      %v3394 = vpop.f32.mrf.mxu0
      %v3395 = vadd.f32 0.0, %v3394
      %3396 = vmatmul.bf16.gmra.mxu0 %v2641
      %v3397 = vpop.f32.mrf.mxu0
      %v3398 = vadd.f32 0.0, %v3397
      %v3399 = vpop.f32.mrf.mxu0
      %v3400 = vadd.f32 0.0, %v3399
      %3401 = vmatmul.bf16.gmra.mxu0 %v2644
      %v3402 = vpop.f32.mrf.mxu0
      %v3403 = vadd.f32 0.0, %v3402
      %v3404 = vpop.f32.mrf.mxu0
      %v3405 = vadd.f32 0.0, %v3404
      %3406 = vmatmul.bf16.gmra.mxu0 %v2647
      %v3407 = vpop.f32.mrf.mxu0
      %v3408 = vadd.f32 0.0, %v3407
      %v3409 = vpop.f32.mrf.mxu0
      %v3410 = vadd.f32 0.0, %v3409
      %3411 = vmatmul.bf16.gmra.mxu0 %v2650
      %v3412 = vpop.f32.mrf.mxu0
      %v3413 = vadd.f32 0.0, %v3412
      %v3414 = vpop.f32.mrf.mxu0
      %v3415 = vadd.f32 0.0, %v3414
      %3416 = vmatmul.bf16.gmra.mxu0 %v2653
      %v3417 = vpop.f32.mrf.mxu0
      %v3418 = vadd.f32 0.0, %v3417
      %v3419 = vpop.f32.mrf.mxu0
      %v3420 = vadd.f32 0.0, %v3419
      %3421 = vmatmul.bf16.gmra.mxu0 %v3333
      %v3422 = vpop.f32.mrf.mxu0
      %v3423 = vadd.f32 0.0, %v3422
      %v3424 = vpop.f32.mrf.mxu0
      %v3425 = vadd.f32 0.0, %v3424
      %3426 = vdwg.mxu0
      %v3427 = vadd.f32 %v3287, %v3348
      %v3428 = vadd.f32 %v3288, %v3350
      %v3429 = vadd.f32 %v3289, %v3353
      %v3430 = vadd.f32 %v3290, %v3355
      %v3431 = vadd.f32 %v3291, %v3358
      %v3432 = vadd.f32 %v3292, %v3360
      %v3433 = vadd.f32 %v3293, %v3363
      %v3434 = vadd.f32 %v3294, %v3365
      %v3435 = vadd.f32 %v3295, %v3368
      %v3436 = vadd.f32 %v3296, %v3370
      %v3437 = vadd.f32 %v3297, %v3373
      %v3438 = vadd.f32 %v3298, %v3375
      %v3439 = vadd.f32 %v3299, %v3378
      %v3440 = vadd.f32 %v3300, %v3380
      %v3441 = vadd.f32 %v3301, %v3383
      %v3442 = vadd.f32 %v3302, %v3385
      %v3443 = vadd.f32 %v3303, %v3388
      %v3444 = vadd.f32 %v3304, %v3390
      %v3445 = vadd.f32 %v3305, %v3393
      %v3446 = vadd.f32 %v3306, %v3395
      %v3447 = vadd.f32 %v3307, %v3398
      %v3448 = vadd.f32 %v3308, %v3400
      %v3449 = vadd.f32 %v3309, %v3403
      %v3450 = vadd.f32 %v3310, %v3405
      %v3451 = vadd.f32 %v3311, %v3408
      %v3452 = vadd.f32 %v3312, %v3410
      %v3453 = vadd.f32 %v3313, %v3413
      %v3454 = vadd.f32 %v3314, %v3415
      %v3455 = vadd.f32 %v3315, %v3418
      %v3456 = vadd.f32 %v3316, %v3420
      %v3457 = vadd.f32 %v3317, %v3423
      %v3458 = vadd.f32 %v3318, %v3425
      %v3459 = vrot.slane %v2406, 2
      %v3460 = vrot.slane %v2407, 2
      %v3461 = vsel %vm1141, %v3459, %v3460
      %v3462 = vrot.slane %v2408, 2
      %v3463 = vsel %vm1141, %v3460, %v3462
      %v3466 = vpack.c.bf16 %v3463, %v3461
      %s3467 = scalar_lea.vmem %s4, 20
      %v3468 = vld [vmem:[%s3467] sm:$0xf]
      %v3470 = vsel %vm435, %v3466, 0
      %v3473 = vsel %vm908, %v3468, 0
      %3475 = vmatpush.bf16.msra.mxu0 0
      %3476 = vmatpush.bf16.msra.mxu0 0
      %3477 = vmatpush.bf16.msra.mxu0 0
      %3478 = vmatpush.bf16.msra.mxu0 0
      %3479 = vmatpush.bf16.msra.mxu0 0
      %3480 = vmatpush.bf16.msra.mxu0 0
      %3481 = vmatpush.bf16.msra.mxu0 0
      %3482 = vmatpush.bf16.msra.mxu0 %v3473
      %3483 = vmatmul.bf16.gmra.mxu0 %v3021
      %v3484 = vpop.f32.mrf.mxu0
      %v3485 = vadd.f32 0.0, %v3484
      %v3486 = vpop.f32.mrf.mxu0
      %v3487 = vadd.f32 0.0, %v3486
      %3488 = vmatmul.bf16.gmra.mxu0 %v3024
      %v3489 = vpop.f32.mrf.mxu0
      %v3490 = vadd.f32 0.0, %v3489
      %v3491 = vpop.f32.mrf.mxu0
      %v3492 = vadd.f32 0.0, %v3491
      %3493 = vmatmul.bf16.gmra.mxu0 %v3027
      %v3494 = vpop.f32.mrf.mxu0
      %v3495 = vadd.f32 0.0, %v3494
      %v3496 = vpop.f32.mrf.mxu0
      %v3497 = vadd.f32 0.0, %v3496
      %3498 = vmatmul.bf16.gmra.mxu0 %v3030
      %v3499 = vpop.f32.mrf.mxu0
      %v3500 = vadd.f32 0.0, %v3499
      %v3501 = vpop.f32.mrf.mxu0
      %v3502 = vadd.f32 0.0, %v3501
      %3503 = vmatmul.bf16.gmra.mxu0 %v3033
      %v3504 = vpop.f32.mrf.mxu0
      %v3505 = vadd.f32 0.0, %v3504
      %v3506 = vpop.f32.mrf.mxu0
      %v3507 = vadd.f32 0.0, %v3506
      %3508 = vmatmul.bf16.gmra.mxu0 %v3036
      %v3509 = vpop.f32.mrf.mxu0
      %v3510 = vadd.f32 0.0, %v3509
      %v3511 = vpop.f32.mrf.mxu0
      %v3512 = vadd.f32 0.0, %v3511
      %3513 = vmatmul.bf16.gmra.mxu0 %v3039
      %v3514 = vpop.f32.mrf.mxu0
      %v3515 = vadd.f32 0.0, %v3514
      %v3516 = vpop.f32.mrf.mxu0
      %v3517 = vadd.f32 0.0, %v3516
      %3518 = vmatmul.bf16.gmra.mxu0 %v3042
      %v3519 = vpop.f32.mrf.mxu0
      %v3520 = vadd.f32 0.0, %v3519
      %v3521 = vpop.f32.mrf.mxu0
      %v3522 = vadd.f32 0.0, %v3521
      %3523 = vmatmul.bf16.gmra.mxu0 %v3045
      %v3524 = vpop.f32.mrf.mxu0
      %v3525 = vadd.f32 0.0, %v3524
      %v3526 = vpop.f32.mrf.mxu0
      %v3527 = vadd.f32 0.0, %v3526
      %3528 = vmatmul.bf16.gmra.mxu0 %v3048
      %v3529 = vpop.f32.mrf.mxu0
      %v3530 = vadd.f32 0.0, %v3529
      %v3531 = vpop.f32.mrf.mxu0
      %v3532 = vadd.f32 0.0, %v3531
      %3533 = vmatmul.bf16.gmra.mxu0 %v3051
      %v3534 = vpop.f32.mrf.mxu0
      %v3535 = vadd.f32 0.0, %v3534
      %v3536 = vpop.f32.mrf.mxu0
      %v3537 = vadd.f32 0.0, %v3536
      %3538 = vmatmul.bf16.gmra.mxu0 %v3054
      %v3539 = vpop.f32.mrf.mxu0
      %v3540 = vadd.f32 0.0, %v3539
      %v3541 = vpop.f32.mrf.mxu0
      %v3542 = vadd.f32 0.0, %v3541
      %3543 = vmatmul.bf16.gmra.mxu0 %v3057
      %v3544 = vpop.f32.mrf.mxu0
      %v3545 = vadd.f32 0.0, %v3544
      %v3546 = vpop.f32.mrf.mxu0
      %v3547 = vadd.f32 0.0, %v3546
      %3548 = vmatmul.bf16.gmra.mxu0 %v3060
      %v3549 = vpop.f32.mrf.mxu0
      %v3550 = vadd.f32 0.0, %v3549
      %v3551 = vpop.f32.mrf.mxu0
      %v3552 = vadd.f32 0.0, %v3551
      %3553 = vmatmul.bf16.gmra.mxu0 %v3063
      %v3554 = vpop.f32.mrf.mxu0
      %v3555 = vadd.f32 0.0, %v3554
      %v3556 = vpop.f32.mrf.mxu0
      %v3557 = vadd.f32 0.0, %v3556
      %3558 = vmatmul.bf16.gmra.mxu0 %v3470
      %v3559 = vpop.f32.mrf.mxu0
      %v3560 = vadd.f32 0.0, %v3559
      %v3561 = vpop.f32.mrf.mxu0
      %v3562 = vadd.f32 0.0, %v3561
      %3563 = vdwg.mxu0
      %v3564 = vadd.f32 %v3427, %v3485
      %v3565 = vadd.f32 %v3428, %v3487
      %v3566 = vadd.f32 %v3429, %v3490
      %v3567 = vadd.f32 %v3430, %v3492
      %v3568 = vadd.f32 %v3431, %v3495
      %v3569 = vadd.f32 %v3432, %v3497
      %v3570 = vadd.f32 %v3433, %v3500
      %v3571 = vadd.f32 %v3434, %v3502
      %v3572 = vadd.f32 %v3435, %v3505
      %v3573 = vadd.f32 %v3436, %v3507
      %v3574 = vadd.f32 %v3437, %v3510
      %v3575 = vadd.f32 %v3438, %v3512
      %v3576 = vadd.f32 %v3439, %v3515
      %v3577 = vadd.f32 %v3440, %v3517
      %v3578 = vadd.f32 %v3441, %v3520
      %v3579 = vadd.f32 %v3442, %v3522
      %v3580 = vadd.f32 %v3443, %v3525
      %v3581 = vadd.f32 %v3444, %v3527
      %v3582 = vadd.f32 %v3445, %v3530
      %v3583 = vadd.f32 %v3446, %v3532
      %v3584 = vadd.f32 %v3447, %v3535
      %v3585 = vadd.f32 %v3448, %v3537
      %v3586 = vadd.f32 %v3449, %v3540
      %v3587 = vadd.f32 %v3450, %v3542
      %v3588 = vadd.f32 %v3451, %v3545
      %v3589 = vadd.f32 %v3452, %v3547
      %v3590 = vadd.f32 %v3453, %v3550
      %v3591 = vadd.f32 %v3454, %v3552
      %v3592 = vadd.f32 %v3455, %v3555
      %v3593 = vadd.f32 %v3456, %v3557
      %v3594 = vadd.f32 %v3457, %v3560
      %v3595 = vadd.f32 %v3458, %v3562
      %v3596 = vpack.c.bf16 %v2410, %v2409
      %s3597 = scalar_lea.vmem %s4, 24
      %v3598 = vld [vmem:[%s3597] sm:$0xf]
      %v3600 = vsel %vm435, %v3596, 0
      %v3603 = vsel %vm908, %v3598, 0
      %3605 = vmatpush.bf16.msra.mxu0 0
      %3606 = vmatpush.bf16.msra.mxu0 0
      %3607 = vmatpush.bf16.msra.mxu0 0
      %3608 = vmatpush.bf16.msra.mxu0 0
      %3609 = vmatpush.bf16.msra.mxu0 0
      %3610 = vmatpush.bf16.msra.mxu0 0
      %3611 = vmatpush.bf16.msra.mxu0 0
      %3612 = vmatpush.bf16.msra.mxu0 %v3603
      %3613 = vmatmul.bf16.gmra.mxu0 %v2754
      %v3614 = vpop.f32.mrf.mxu0
      %v3615 = vadd.f32 0.0, %v3614
      %v3616 = vpop.f32.mrf.mxu0
      %v3617 = vadd.f32 0.0, %v3616
      %3618 = vmatmul.bf16.gmra.mxu0 %v2757
      %v3619 = vpop.f32.mrf.mxu0
      %v3620 = vadd.f32 0.0, %v3619
      %v3621 = vpop.f32.mrf.mxu0
      %v3622 = vadd.f32 0.0, %v3621
      %3623 = vmatmul.bf16.gmra.mxu0 %v2760
      %v3624 = vpop.f32.mrf.mxu0
      %v3625 = vadd.f32 0.0, %v3624
      %v3626 = vpop.f32.mrf.mxu0
      %v3627 = vadd.f32 0.0, %v3626
      %3628 = vmatmul.bf16.gmra.mxu0 %v2763
      %v3629 = vpop.f32.mrf.mxu0
      %v3630 = vadd.f32 0.0, %v3629
      %v3631 = vpop.f32.mrf.mxu0
      %v3632 = vadd.f32 0.0, %v3631
      %3633 = vmatmul.bf16.gmra.mxu0 %v2766
      %v3634 = vpop.f32.mrf.mxu0
      %v3635 = vadd.f32 0.0, %v3634
      %v3636 = vpop.f32.mrf.mxu0
      %v3637 = vadd.f32 0.0, %v3636
      %3638 = vmatmul.bf16.gmra.mxu0 %v2769
      %v3639 = vpop.f32.mrf.mxu0
      %v3640 = vadd.f32 0.0, %v3639
      %v3641 = vpop.f32.mrf.mxu0
      %v3642 = vadd.f32 0.0, %v3641
      %3643 = vmatmul.bf16.gmra.mxu0 %v2772
      %v3644 = vpop.f32.mrf.mxu0
      %v3645 = vadd.f32 0.0, %v3644
      %v3646 = vpop.f32.mrf.mxu0
      %v3647 = vadd.f32 0.0, %v3646
      %3648 = vmatmul.bf16.gmra.mxu0 %v2775
      %v3649 = vpop.f32.mrf.mxu0
      %v3650 = vadd.f32 0.0, %v3649
      %v3651 = vpop.f32.mrf.mxu0
      %v3652 = vadd.f32 0.0, %v3651
      %3653 = vmatmul.bf16.gmra.mxu0 %v2778
      %v3654 = vpop.f32.mrf.mxu0
      %v3655 = vadd.f32 0.0, %v3654
      %v3656 = vpop.f32.mrf.mxu0
      %v3657 = vadd.f32 0.0, %v3656
      %3658 = vmatmul.bf16.gmra.mxu0 %v2781
      %v3659 = vpop.f32.mrf.mxu0
      %v3660 = vadd.f32 0.0, %v3659
      %v3661 = vpop.f32.mrf.mxu0
      %v3662 = vadd.f32 0.0, %v3661
      %3663 = vmatmul.bf16.gmra.mxu0 %v2784
      %v3664 = vpop.f32.mrf.mxu0
      %v3665 = vadd.f32 0.0, %v3664
      %v3666 = vpop.f32.mrf.mxu0
      %v3667 = vadd.f32 0.0, %v3666
      %3668 = vmatmul.bf16.gmra.mxu0 %v2787
      %v3669 = vpop.f32.mrf.mxu0
      %v3670 = vadd.f32 0.0, %v3669
      %v3671 = vpop.f32.mrf.mxu0
      %v3672 = vadd.f32 0.0, %v3671
      %3673 = vmatmul.bf16.gmra.mxu0 %v2790
      %v3674 = vpop.f32.mrf.mxu0
      %v3675 = vadd.f32 0.0, %v3674
      %v3676 = vpop.f32.mrf.mxu0
      %v3677 = vadd.f32 0.0, %v3676
      %3678 = vmatmul.bf16.gmra.mxu0 %v2793
      %v3679 = vpop.f32.mrf.mxu0
      %v3680 = vadd.f32 0.0, %v3679
      %v3681 = vpop.f32.mrf.mxu0
      %v3682 = vadd.f32 0.0, %v3681
      %3683 = vmatmul.bf16.gmra.mxu0 %v3193
      %v3684 = vpop.f32.mrf.mxu0
      %v3685 = vadd.f32 0.0, %v3684
      %v3686 = vpop.f32.mrf.mxu0
      %v3687 = vadd.f32 0.0, %v3686
      %3688 = vmatmul.bf16.gmra.mxu0 %v3600
      %v3689 = vpop.f32.mrf.mxu0
      %v3690 = vadd.f32 0.0, %v3689
      %v3691 = vpop.f32.mrf.mxu0
      %v3692 = vadd.f32 0.0, %v3691
      %3693 = vdwg.mxu0
      %v3694 = vadd.f32 %v3564, %v3615
      %v3695 = vadd.f32 %v3565, %v3617
      %v3696 = vadd.f32 %v3566, %v3620
      %v3697 = vadd.f32 %v3567, %v3622
      %v3698 = vadd.f32 %v3568, %v3625
      %v3699 = vadd.f32 %v3569, %v3627
      %v3700 = vadd.f32 %v3570, %v3630
      %v3701 = vadd.f32 %v3571, %v3632
      %v3702 = vadd.f32 %v3572, %v3635
      %v3703 = vadd.f32 %v3573, %v3637
      %v3704 = vadd.f32 %v3574, %v3640
      %v3705 = vadd.f32 %v3575, %v3642
      %v3706 = vadd.f32 %v3576, %v3645
      %v3707 = vadd.f32 %v3577, %v3647
      %v3708 = vadd.f32 %v3578, %v3650
      %v3709 = vadd.f32 %v3579, %v3652
      %v3710 = vadd.f32 %v3580, %v3655
      %v3711 = vadd.f32 %v3581, %v3657
      %v3712 = vadd.f32 %v3582, %v3660
      %v3713 = vadd.f32 %v3583, %v3662
      %v3714 = vadd.f32 %v3584, %v3665
      %v3715 = vadd.f32 %v3585, %v3667
      %v3716 = vadd.f32 %v3586, %v3670
      %v3717 = vadd.f32 %v3587, %v3672
      %v3718 = vadd.f32 %v3588, %v3675
      %v3719 = vadd.f32 %v3589, %v3677
      %v3720 = vadd.f32 %v3590, %v3680
      %v3721 = vadd.f32 %v3591, %v3682
      %v3722 = vadd.f32 %v3592, %v3685
      %v3723 = vadd.f32 %v3593, %v3687
      %v3724 = vadd.f32 %v3594, %v3690
      %v3725 = vadd.f32 %v3595, %v3692
      %v3729 = vrot.slane %v2409, 1
      %v3730 = vrot.slane %v2410, 1
      %v3731 = vsel %vm729, %v3729, %v3730
      %v3732 = vrot.slane %v2411, 1
      %v3733 = vsel %vm729, %v3730, %v3732
      %v3736 = vpack.c.bf16 %v3733, %v3731
      %s3737 = scalar_lea.vmem %s4, 28
      %v3738 = vld [vmem:[%s3737] sm:$0xf]
      %v3740 = vsel %vm435, %v3736, 0
      %v3743 = vsel %vm908, %v3738, 0
      %3745 = vmatpush.bf16.msra.mxu0 0
      %3746 = vmatpush.bf16.msra.mxu0 0
      %3747 = vmatpush.bf16.msra.mxu0 0
      %3748 = vmatpush.bf16.msra.mxu0 0
      %3749 = vmatpush.bf16.msra.mxu0 0
      %3750 = vmatpush.bf16.msra.mxu0 0
      %3751 = vmatpush.bf16.msra.mxu0 0
      %3752 = vmatpush.bf16.msra.mxu0 %v3743
      %3753 = vmatmul.bf16.gmra.mxu0 %v2614
      %v3754 = vpop.f32.mrf.mxu0
      %v3755 = vadd.f32 0.0, %v3754
      %v3756 = vpop.f32.mrf.mxu0
      %v3757 = vadd.f32 0.0, %v3756
      %3758 = vmatmul.bf16.gmra.mxu0 %v2617
      %v3759 = vpop.f32.mrf.mxu0
      %v3760 = vadd.f32 0.0, %v3759
      %v3761 = vpop.f32.mrf.mxu0
      %v3762 = vadd.f32 0.0, %v3761
      %3763 = vmatmul.bf16.gmra.mxu0 %v2620
      %v3764 = vpop.f32.mrf.mxu0
      %v3765 = vadd.f32 0.0, %v3764
      %v3766 = vpop.f32.mrf.mxu0
      %v3767 = vadd.f32 0.0, %v3766
      %3768 = vmatmul.bf16.gmra.mxu0 %v2623
      %v3769 = vpop.f32.mrf.mxu0
      %v3770 = vadd.f32 0.0, %v3769
      %v3771 = vpop.f32.mrf.mxu0
      %v3772 = vadd.f32 0.0, %v3771
      %3773 = vmatmul.bf16.gmra.mxu0 %v2626
      %v3774 = vpop.f32.mrf.mxu0
      %v3775 = vadd.f32 0.0, %v3774
      %v3776 = vpop.f32.mrf.mxu0
      %v3777 = vadd.f32 0.0, %v3776
      %3778 = vmatmul.bf16.gmra.mxu0 %v2629
      %v3779 = vpop.f32.mrf.mxu0
      %v3780 = vadd.f32 0.0, %v3779
      %v3781 = vpop.f32.mrf.mxu0
      %v3782 = vadd.f32 0.0, %v3781
      %3783 = vmatmul.bf16.gmra.mxu0 %v2632
      %v3784 = vpop.f32.mrf.mxu0
      %v3785 = vadd.f32 0.0, %v3784
      %v3786 = vpop.f32.mrf.mxu0
      %v3787 = vadd.f32 0.0, %v3786
      %3788 = vmatmul.bf16.gmra.mxu0 %v2635
      %v3789 = vpop.f32.mrf.mxu0
      %v3790 = vadd.f32 0.0, %v3789
      %v3791 = vpop.f32.mrf.mxu0
      %v3792 = vadd.f32 0.0, %v3791
      %3793 = vmatmul.bf16.gmra.mxu0 %v2638
      %v3794 = vpop.f32.mrf.mxu0
      %v3795 = vadd.f32 0.0, %v3794
      %v3796 = vpop.f32.mrf.mxu0
      %v3797 = vadd.f32 0.0, %v3796
      %3798 = vmatmul.bf16.gmra.mxu0 %v2641
      %v3799 = vpop.f32.mrf.mxu0
      %v3800 = vadd.f32 0.0, %v3799
      %v3801 = vpop.f32.mrf.mxu0
      %v3802 = vadd.f32 0.0, %v3801
      %3803 = vmatmul.bf16.gmra.mxu0 %v2644
      %v3804 = vpop.f32.mrf.mxu0
      %v3805 = vadd.f32 0.0, %v3804
      %v3806 = vpop.f32.mrf.mxu0
      %v3807 = vadd.f32 0.0, %v3806
      %3808 = vmatmul.bf16.gmra.mxu0 %v2647
      %v3809 = vpop.f32.mrf.mxu0
      %v3810 = vadd.f32 0.0, %v3809
      %v3811 = vpop.f32.mrf.mxu0
      %v3812 = vadd.f32 0.0, %v3811
      %3813 = vmatmul.bf16.gmra.mxu0 %v2650
      %v3814 = vpop.f32.mrf.mxu0
      %v3815 = vadd.f32 0.0, %v3814
      %v3816 = vpop.f32.mrf.mxu0
      %v3817 = vadd.f32 0.0, %v3816
      %3818 = vmatmul.bf16.gmra.mxu0 %v2653
      %v3819 = vpop.f32.mrf.mxu0
      %v3820 = vadd.f32 0.0, %v3819
      %v3821 = vpop.f32.mrf.mxu0
      %v3822 = vadd.f32 0.0, %v3821
      %3823 = vmatmul.bf16.gmra.mxu0 %v3333
      %v3824 = vpop.f32.mrf.mxu0
      %v3825 = vadd.f32 0.0, %v3824
      %v3826 = vpop.f32.mrf.mxu0
      %v3827 = vadd.f32 0.0, %v3826
      %3828 = vmatmul.bf16.gmra.mxu0 %v3740
      %v3829 = vpop.f32.mrf.mxu0
      %v3830 = vadd.f32 0.0, %v3829
      %v3831 = vpop.f32.mrf.mxu0
      %v3832 = vadd.f32 0.0, %v3831
      %3833 = vdwg.mxu0
      %v3834 = vadd.f32 %v3694, %v3755
      %v3835 = vadd.f32 %v3695, %v3757
      %v3836 = vadd.f32 %v3696, %v3760
      %v3837 = vadd.f32 %v3697, %v3762
      %v3838 = vadd.f32 %v3698, %v3765
      %v3839 = vadd.f32 %v3699, %v3767
      %v3840 = vadd.f32 %v3700, %v3770
      %v3841 = vadd.f32 %v3701, %v3772
      %v3842 = vadd.f32 %v3702, %v3775
      %v3843 = vadd.f32 %v3703, %v3777
      %v3844 = vadd.f32 %v3704, %v3780
      %v3845 = vadd.f32 %v3705, %v3782
      %v3846 = vadd.f32 %v3706, %v3785
      %v3847 = vadd.f32 %v3707, %v3787
      %v3848 = vadd.f32 %v3708, %v3790
      %v3849 = vadd.f32 %v3709, %v3792
      %v3850 = vadd.f32 %v3710, %v3795
      %v3851 = vadd.f32 %v3711, %v3797
      %v3852 = vadd.f32 %v3712, %v3800
      %v3853 = vadd.f32 %v3713, %v3802
      %v3854 = vadd.f32 %v3714, %v3805
      %v3855 = vadd.f32 %v3715, %v3807
      %v3856 = vadd.f32 %v3716, %v3810
      %v3857 = vadd.f32 %v3717, %v3812
      %v3858 = vadd.f32 %v3718, %v3815
      %v3859 = vadd.f32 %v3719, %v3817
      %v3860 = vadd.f32 %v3720, %v3820
      %v3861 = vadd.f32 %v3721, %v3822
      %v3862 = vadd.f32 %v3722, %v3825
      %v3863 = vadd.f32 %v3723, %v3827
      %v3864 = vadd.f32 %v3724, %v3830
      %v3865 = vadd.f32 %v3725, %v3832
      %v3866 = vrot.slane %v2409, 2
      %v3867 = vrot.slane %v2410, 2
      %v3868 = vsel %vm1141, %v3866, %v3867
      %v3869 = vrot.slane %v2411, 2
      %v3870 = vsel %vm1141, %v3867, %v3869
      %v3873 = vpack.c.bf16 %v3870, %v3868
      %s3874 = scalar_lea.vmem %s4, 32
      %v3875 = vld [vmem:[%s3874] sm:$0xf]
      %v3877 = vsel %vm435, %v3873, 0
      %v3880 = vsel %vm908, %v3875, 0
      %3882 = vmatpush.bf16.msra.mxu0 0
      %3883 = vmatpush.bf16.msra.mxu0 0
      %3884 = vmatpush.bf16.msra.mxu0 0
      %3885 = vmatpush.bf16.msra.mxu0 0
      %3886 = vmatpush.bf16.msra.mxu0 0
      %3887 = vmatpush.bf16.msra.mxu0 0
      %3888 = vmatpush.bf16.msra.mxu0 0
      %3889 = vmatpush.bf16.msra.mxu0 %v3880
      %3890 = vmatmul.bf16.gmra.mxu0 %v3024
      %v3891 = vpop.f32.mrf.mxu0
      %v3892 = vadd.f32 0.0, %v3891
      %v3893 = vpop.f32.mrf.mxu0
      %v3894 = vadd.f32 0.0, %v3893
      %3895 = vmatmul.bf16.gmra.mxu0 %v3027
      %v3896 = vpop.f32.mrf.mxu0
      %v3897 = vadd.f32 0.0, %v3896
      %v3898 = vpop.f32.mrf.mxu0
      %v3899 = vadd.f32 0.0, %v3898
      %3900 = vmatmul.bf16.gmra.mxu0 %v3030
      %v3901 = vpop.f32.mrf.mxu0
      %v3902 = vadd.f32 0.0, %v3901
      %v3903 = vpop.f32.mrf.mxu0
      %v3904 = vadd.f32 0.0, %v3903
      %3905 = vmatmul.bf16.gmra.mxu0 %v3033
      %v3906 = vpop.f32.mrf.mxu0
      %v3907 = vadd.f32 0.0, %v3906
      %v3908 = vpop.f32.mrf.mxu0
      %v3909 = vadd.f32 0.0, %v3908
      %3910 = vmatmul.bf16.gmra.mxu0 %v3036
      %v3911 = vpop.f32.mrf.mxu0
      %v3912 = vadd.f32 0.0, %v3911
      %v3913 = vpop.f32.mrf.mxu0
      %v3914 = vadd.f32 0.0, %v3913
      %3915 = vmatmul.bf16.gmra.mxu0 %v3039
      %v3916 = vpop.f32.mrf.mxu0
      %v3917 = vadd.f32 0.0, %v3916
      %v3918 = vpop.f32.mrf.mxu0
      %v3919 = vadd.f32 0.0, %v3918
      %3920 = vmatmul.bf16.gmra.mxu0 %v3042
      %v3921 = vpop.f32.mrf.mxu0
      %v3922 = vadd.f32 0.0, %v3921
      %v3923 = vpop.f32.mrf.mxu0
      %v3924 = vadd.f32 0.0, %v3923
      %3925 = vmatmul.bf16.gmra.mxu0 %v3045
      %v3926 = vpop.f32.mrf.mxu0
      %v3927 = vadd.f32 0.0, %v3926
      %v3928 = vpop.f32.mrf.mxu0
      %v3929 = vadd.f32 0.0, %v3928
      %3930 = vmatmul.bf16.gmra.mxu0 %v3048
      %v3931 = vpop.f32.mrf.mxu0
      %v3932 = vadd.f32 0.0, %v3931
      %v3933 = vpop.f32.mrf.mxu0
      %v3934 = vadd.f32 0.0, %v3933
      %3935 = vmatmul.bf16.gmra.mxu0 %v3051
      %v3936 = vpop.f32.mrf.mxu0
      %v3937 = vadd.f32 0.0, %v3936
      %v3938 = vpop.f32.mrf.mxu0
      %v3939 = vadd.f32 0.0, %v3938
      %3940 = vmatmul.bf16.gmra.mxu0 %v3054
      %v3941 = vpop.f32.mrf.mxu0
      %v3942 = vadd.f32 0.0, %v3941
      %v3943 = vpop.f32.mrf.mxu0
      %v3944 = vadd.f32 0.0, %v3943
      %3945 = vmatmul.bf16.gmra.mxu0 %v3057
      %v3946 = vpop.f32.mrf.mxu0
      %v3947 = vadd.f32 0.0, %v3946
      %v3948 = vpop.f32.mrf.mxu0
      %v3949 = vadd.f32 0.0, %v3948
      %3950 = vmatmul.bf16.gmra.mxu0 %v3060
      %v3951 = vpop.f32.mrf.mxu0
      %v3952 = vadd.f32 0.0, %v3951
      %v3953 = vpop.f32.mrf.mxu0
      %v3954 = vadd.f32 0.0, %v3953
      %3955 = vmatmul.bf16.gmra.mxu0 %v3063
      %v3956 = vpop.f32.mrf.mxu0
      %v3957 = vadd.f32 0.0, %v3956
      %v3958 = vpop.f32.mrf.mxu0
      %v3959 = vadd.f32 0.0, %v3958
      %3960 = vmatmul.bf16.gmra.mxu0 %v3470
      %v3961 = vpop.f32.mrf.mxu0
      %v3962 = vadd.f32 0.0, %v3961
      %v3963 = vpop.f32.mrf.mxu0
      %v3964 = vadd.f32 0.0, %v3963
      %3965 = vmatmul.bf16.gmra.mxu0 %v3877
      %v3966 = vpop.f32.mrf.mxu0
      %v3967 = vadd.f32 0.0, %v3966
      %v3968 = vpop.f32.mrf.mxu0
      %v3969 = vadd.f32 0.0, %v3968
      %3970 = vdwg.mxu0
      %v3971 = vadd.f32 %v3834, %v3892
      %v3972 = vadd.f32 %v3835, %v3894
      %v3973 = vadd.f32 %v3836, %v3897
      %v3974 = vadd.f32 %v3837, %v3899
      %v3975 = vadd.f32 %v3838, %v3902
      %v3976 = vadd.f32 %v3839, %v3904
      %v3977 = vadd.f32 %v3840, %v3907
      %v3978 = vadd.f32 %v3841, %v3909
      %v3979 = vadd.f32 %v3842, %v3912
      %v3980 = vadd.f32 %v3843, %v3914
      %v3981 = vadd.f32 %v3844, %v3917
      %v3982 = vadd.f32 %v3845, %v3919
      %v3983 = vadd.f32 %v3846, %v3922
      %v3984 = vadd.f32 %v3847, %v3924
      %v3985 = vadd.f32 %v3848, %v3927
      %v3986 = vadd.f32 %v3849, %v3929
      %v3987 = vadd.f32 %v3850, %v3932
      %v3988 = vadd.f32 %v3851, %v3934
      %v3989 = vadd.f32 %v3852, %v3937
      %v3990 = vadd.f32 %v3853, %v3939
      %v3991 = vadd.f32 %v3854, %v3942
      %v3992 = vadd.f32 %v3855, %v3944
      %v3993 = vadd.f32 %v3856, %v3947
      %v3994 = vadd.f32 %v3857, %v3949
      %v3995 = vadd.f32 %v3858, %v3952
      %v3996 = vadd.f32 %v3859, %v3954
      %v3997 = vadd.f32 %v3860, %v3957
      %v3998 = vadd.f32 %v3861, %v3959
      %v3999 = vadd.f32 %v3862, %v3962
      %v4000 = vadd.f32 %v3863, %v3964
      %v4001 = vadd.f32 %v3864, %v3967
      %v4002 = vadd.f32 %v3865, %v3969
      %v4003 = vld [vmem:[%s5] sm:$0x1]
      %v4005 = vperm.slane %v4003, 0
      %v4007 = vadd.f32 %v3971, %v4005
      %v4008 = vadd.f32 %v3972, %v4005
      %v4009 = vadd.f32 %v3973, %v4005
      %v4010 = vadd.f32 %v3974, %v4005
      %v4011 = vadd.f32 %v3975, %v4005
      %v4012 = vadd.f32 %v3976, %v4005
      %v4013 = vadd.f32 %v3977, %v4005
      %v4014 = vadd.f32 %v3978, %v4005
      %v4015 = vadd.f32 %v3979, %v4005
      %v4016 = vadd.f32 %v3980, %v4005
      %v4017 = vadd.f32 %v3981, %v4005
      %v4018 = vadd.f32 %v3982, %v4005
      %v4019 = vadd.f32 %v3983, %v4005
      %v4020 = vadd.f32 %v3984, %v4005
      %v4021 = vadd.f32 %v3985, %v4005
      %v4022 = vadd.f32 %v3986, %v4005
      %v4023 = vadd.f32 %v3987, %v4005
      %v4024 = vadd.f32 %v3988, %v4005
      %v4025 = vadd.f32 %v3989, %v4005
      %v4026 = vadd.f32 %v3990, %v4005
      %v4027 = vadd.f32 %v3991, %v4005
      %v4028 = vadd.f32 %v3992, %v4005
      %v4029 = vadd.f32 %v3993, %v4005
      %v4030 = vadd.f32 %v3994, %v4005
      %v4031 = vadd.f32 %v3995, %v4005
      %v4032 = vadd.f32 %v3996, %v4005
      %v4033 = vadd.f32 %v3997, %v4005
      %v4034 = vadd.f32 %v3998, %v4005
      %v4035 = vadd.f32 %v3999, %v4005
      %v4036 = vadd.f32 %v4000, %v4005
      %v4037 = vadd.f32 %v4001, %v4005
      %v4038 = vadd.f32 %v4002, %v4005
      %v4039 = vadd.f32 %v4007, %v481
      %v4040 = vadd.f32 %v4008, %v482
      %v4041 = vadd.f32 %v4009, %v483
      %v4042 = vadd.f32 %v4010, %v484
      %v4043 = vadd.f32 %v4011, %v485
      %v4044 = vadd.f32 %v4012, %v486
      %v4045 = vadd.f32 %v4013, %v487
      %v4046 = vadd.f32 %v4014, %v488
      %v4047 = vadd.f32 %v4015, %v489
      %v4048 = vadd.f32 %v4016, %v490
      %v4049 = vadd.f32 %v4017, %v491
      %v4050 = vadd.f32 %v4018, %v492
      %v4051 = vadd.f32 %v4019, %v493
      %v4052 = vadd.f32 %v4020, %v494
      %v4053 = vadd.f32 %v4021, %v495
      %v4054 = vadd.f32 %v4022, %v496
      %v4055 = vadd.f32 %v4023, %v497
      %v4056 = vadd.f32 %v4024, %v498
      %v4057 = vadd.f32 %v4025, %v499
      %v4058 = vadd.f32 %v4026, %v500
      %v4059 = vadd.f32 %v4027, %v501
      %v4060 = vadd.f32 %v4028, %v502
      %v4061 = vadd.f32 %v4029, %v503
      %v4062 = vadd.f32 %v4030, %v504
      %v4063 = vadd.f32 %v4031, %v505
      %v4064 = vadd.f32 %v4032, %v506
      %v4065 = vadd.f32 %v4033, %v507
      %v4066 = vadd.f32 %v4034, %v508
      %v4067 = vadd.f32 %v4035, %v509
      %v4068 = vadd.f32 %v4036, %v510
      %v4069 = vadd.f32 %v4037, %v511
      %v4070 = vadd.f32 %v4038, %v512
      %v4071 = vadd.f32 %v4039, %v513
      %v4072 = vadd.f32 %v4040, %v514
      %v4073 = vadd.f32 %v4041, %v515
      %v4074 = vadd.f32 %v4042, %v516
      %v4075 = vadd.f32 %v4043, %v517
      %v4076 = vadd.f32 %v4044, %v518
      %v4077 = vadd.f32 %v4045, %v519
      %v4078 = vadd.f32 %v4046, %v520
      %v4079 = vadd.f32 %v4047, %v521
      %v4080 = vadd.f32 %v4048, %v522
      %v4081 = vadd.f32 %v4049, %v523
      %v4082 = vadd.f32 %v4050, %v524
      %v4083 = vadd.f32 %v4051, %v525
      %v4084 = vadd.f32 %v4052, %v526
      %v4085 = vadd.f32 %v4053, %v527
      %v4086 = vadd.f32 %v4054, %v528
      %v4087 = vadd.f32 %v4055, %v529
      %v4088 = vadd.f32 %v4056, %v530
      %v4089 = vadd.f32 %v4057, %v531
      %v4090 = vadd.f32 %v4058, %v532
      %v4091 = vadd.f32 %v4059, %v533
      %v4092 = vadd.f32 %v4060, %v534
      %v4093 = vadd.f32 %v4061, %v535
      %v4094 = vadd.f32 %v4062, %v536
      %v4095 = vadd.f32 %v4063, %v537
      %v4096 = vadd.f32 %v4064, %v538
      %v4097 = vadd.f32 %v4065, %v539
      %v4098 = vadd.f32 %v4066, %v540
      %v4099 = vadd.f32 %v4067, %v541
      %v4100 = vadd.f32 %v4068, %v542
      %v4101 = vadd.f32 %v4069, %v543
      %v4102 = vadd.f32 %v4070, %v544
      %v4103 = vmax.f32 %v4071, 0.0
      %v4104 = vmax.f32 %v4072, 0.0
      %v4105 = vmax.f32 %v4073, 0.0
      %v4106 = vmax.f32 %v4074, 0.0
      %v4107 = vmax.f32 %v4075, 0.0
      %v4108 = vmax.f32 %v4076, 0.0
      %v4109 = vmax.f32 %v4077, 0.0
      %v4110 = vmax.f32 %v4078, 0.0
      %v4111 = vmax.f32 %v4079, 0.0
      %v4112 = vmax.f32 %v4080, 0.0
      %v4113 = vmax.f32 %v4081, 0.0
      %v4114 = vmax.f32 %v4082, 0.0
      %v4115 = vmax.f32 %v4083, 0.0
      %v4116 = vmax.f32 %v4084, 0.0
      %v4117 = vmax.f32 %v4085, 0.0
      %v4118 = vmax.f32 %v4086, 0.0
      %v4119 = vmax.f32 %v4087, 0.0
      %v4120 = vmax.f32 %v4088, 0.0
      %v4121 = vmax.f32 %v4089, 0.0
      %v4122 = vmax.f32 %v4090, 0.0
      %v4123 = vmax.f32 %v4091, 0.0
      %v4124 = vmax.f32 %v4092, 0.0
      %v4125 = vmax.f32 %v4093, 0.0
      %v4126 = vmax.f32 %v4094, 0.0
      %v4127 = vmax.f32 %v4095, 0.0
      %v4128 = vmax.f32 %v4096, 0.0
      %v4129 = vmax.f32 %v4097, 0.0
      %v4130 = vmax.f32 %v4098, 0.0
      %v4131 = vmax.f32 %v4099, 0.0
      %v4132 = vmax.f32 %v4100, 0.0
      %v4133 = vmax.f32 %v4101, 0.0
      %v4134 = vmax.f32 %v4102, 0.0
      %4135 = vst.msk [vmem:[%s577 + $0x1] sm:$0xff] %vm435, %v4103
      %4136 = vst.msk [vmem:[%s577 + $0x9] sm:$0xff] %vm435, %v4104
      %4137 = vst.msk [vmem:[%s577 + $0x19] sm:$0xff] %vm435, %v4105
      %4138 = vst.msk [vmem:[%s577 + $0x21] sm:$0xff] %vm435, %v4106
      %4139 = vst.msk [vmem:[%s577 + $0x31] sm:$0xff] %vm435, %v4107
      %4140 = vst.msk [vmem:[%s577 + $0x39] sm:$0xff] %vm435, %v4108
      %4141 = vst.msk [vmem:[%s577 + $0x49] sm:$0xff] %vm435, %v4109
      %4142 = vst.msk [vmem:[%s577 + $0x51] sm:$0xff] %vm435, %v4110
      %4143 = vst.msk [vmem:[%s577 + $0x61] sm:$0xff] %vm435, %v4111
      %4144 = vst.msk [vmem:[%s577 + $0x69] sm:$0xff] %vm435, %v4112
      %4145 = vst.msk [vmem:[%s577 + $0x79] sm:$0xff] %vm435, %v4113
      %4146 = vst.msk [vmem:[%s577 + $0x81] sm:$0xff] %vm435, %v4114
      %4147 = vst.msk [vmem:[%s577 + $0x91] sm:$0xff] %vm435, %v4115
      %4148 = vst.msk [vmem:[%s577 + $0x99] sm:$0xff] %vm435, %v4116
      %4149 = vst.msk [vmem:[%s577 + $0xa9] sm:$0xff] %vm435, %v4117
      %4150 = vst.msk [vmem:[%s577 + $0xb1] sm:$0xff] %vm435, %v4118
      %4151 = vst.msk [vmem:[%s577 + $0xc1] sm:$0xff] %vm435, %v4119
      %4152 = vst.msk [vmem:[%s577 + $0xc9] sm:$0xff] %vm435, %v4120
      %4153 = vst.msk [vmem:[%s577 + $0xd9] sm:$0xff] %vm435, %v4121
      %4154 = vst.msk [vmem:[%s577 + $0xe1] sm:$0xff] %vm435, %v4122
      %4155 = vst.msk [vmem:[%s577 + $0xf1] sm:$0xff] %vm435, %v4123
      %4156 = vst.msk [vmem:[%s577 + $0xf9] sm:$0xff] %vm435, %v4124
      %4157 = vst.msk [vmem:[%s577 + $0x109] sm:$0xff] %vm435, %v4125
      %4158 = vst.msk [vmem:[%s577 + $0x111] sm:$0xff] %vm435, %v4126
      %4159 = vst.msk [vmem:[%s577 + $0x121] sm:$0xff] %vm435, %v4127
      %4160 = vst.msk [vmem:[%s577 + $0x129] sm:$0xff] %vm435, %v4128
      %4161 = vst.msk [vmem:[%s577 + $0x139] sm:$0xff] %vm435, %v4129
      %4162 = vst.msk [vmem:[%s577 + $0x141] sm:$0xff] %vm435, %v4130
      %4163 = vst.msk [vmem:[%s577 + $0x151] sm:$0xff] %vm435, %v4131
      %4164 = vst.msk [vmem:[%s577 + $0x159] sm:$0xff] %vm435, %v4132
      %4165 = vst.msk [vmem:[%s577 + $0x169] sm:$0xff] %vm435, %v4133
      %4166 = vst.msk [vmem:[%s577 + $0x171] sm:$0xff] %vm435, %v4134
      %v4167 = vld [vmem:[#allocation2] sm:$0xff]
      %v4168 = vld [vmem:[#allocation2 + $0x8] sm:$0xff]
      %v4169 = vld [vmem:[#allocation2 + $0x10] sm:$0x3]
      %v4170 = vld [vmem:[#allocation2 + $0x18] sm:$0xff]
      %v4171 = vld [vmem:[#allocation2 + $0x20] sm:$0xff]
      %v4172 = vld [vmem:[#allocation2 + $0x28] sm:$0x3]
      %v4173 = vld [vmem:[#allocation2 + $0x30] sm:$0xff]
      %v4174 = vld [vmem:[#allocation2 + $0x38] sm:$0xff]
      %v4175 = vld [vmem:[#allocation2 + $0x40] sm:$0x3]
      %v4176 = vld [vmem:[#allocation2 + $0x48] sm:$0xff]
      %v4177 = vld [vmem:[#allocation2 + $0x50] sm:$0xff]
      %v4178 = vld [vmem:[#allocation2 + $0x58] sm:$0x3]
      %v4179 = vld [vmem:[#allocation2 + $0x60] sm:$0xff]
      %v4180 = vld [vmem:[#allocation2 + $0x68] sm:$0xff]
      %v4181 = vld [vmem:[#allocation2 + $0x70] sm:$0x3]
      %v4182 = vld [vmem:[#allocation2 + $0x78] sm:$0xff]
      %v4183 = vld [vmem:[#allocation2 + $0x80] sm:$0xff]
      %v4184 = vld [vmem:[#allocation2 + $0x88] sm:$0x3]
      %v4185 = vld [vmem:[#allocation2 + $0x90] sm:$0xff]
      %v4186 = vld [vmem:[#allocation2 + $0x98] sm:$0xff]
      %v4187 = vld [vmem:[#allocation2 + $0xa0] sm:$0x3]
      %v4188 = vld [vmem:[#allocation2 + $0xa8] sm:$0xff]
      %v4189 = vld [vmem:[#allocation2 + $0xb0] sm:$0xff]
      %v4190 = vld [vmem:[#allocation2 + $0xb8] sm:$0x3]
      %v4191 = vld [vmem:[#allocation2 + $0xc0] sm:$0xff]
      %v4192 = vld [vmem:[#allocation2 + $0xc8] sm:$0xff]
      %v4193 = vld [vmem:[#allocation2 + $0xd0] sm:$0x3]
      %v4194 = vld [vmem:[#allocation2 + $0xd8] sm:$0xff]
      %v4195 = vld [vmem:[#allocation2 + $0xe0] sm:$0xff]
      %v4196 = vld [vmem:[#allocation2 + $0xe8] sm:$0x3]
      %v4197 = vld [vmem:[#allocation2 + $0xf0] sm:$0xff]
      %v4198 = vld [vmem:[#allocation2 + $0xf8] sm:$0xff]
      %v4199 = vld [vmem:[#allocation2 + $0x100] sm:$0x3]
      %v4200 = vld [vmem:[#allocation2 + $0x108] sm:$0xff]
      %v4201 = vld [vmem:[#allocation2 + $0x110] sm:$0xff]
      %v4202 = vld [vmem:[#allocation2 + $0x118] sm:$0x3]
      %v4203 = vld [vmem:[#allocation2 + $0x120] sm:$0xff]
      %v4204 = vld [vmem:[#allocation2 + $0x128] sm:$0xff]
      %v4205 = vld [vmem:[#allocation2 + $0x130] sm:$0x3]
      %v4206 = vld [vmem:[#allocation2 + $0x138] sm:$0xff]
      %v4207 = vld [vmem:[#allocation2 + $0x140] sm:$0xff]
      %v4208 = vld [vmem:[#allocation2 + $0x148] sm:$0x3]
      %v4209 = vld [vmem:[#allocation2 + $0x150] sm:$0xff]
      %v4210 = vld [vmem:[#allocation2 + $0x158] sm:$0xff]
      %v4211 = vld [vmem:[#allocation2 + $0x160] sm:$0x3]
      %v4212 = vld [vmem:[#allocation2 + $0x168] sm:$0xff]
      %v4213 = vld [vmem:[#allocation2 + $0x170] sm:$0xff]
      %v4214 = vld [vmem:[#allocation2 + $0x178] sm:$0x3]
      %v4215 = vld [vmem:[#allocation2 + $0x180] sm:$0xff]
      %v4216 = vld [vmem:[#allocation2 + $0x188] sm:$0xff]
      %v4217 = vld [vmem:[#allocation2 + $0x190] sm:$0x3]
      %v4218 = vld [vmem:[#allocation2 + $0x198] sm:$0xff]
      %v4219 = vld [vmem:[#allocation2 + $0x1a0] sm:$0xff]
      %v4220 = vld [vmem:[#allocation2 + $0x1a8] sm:$0x3]
      %v4221 = vpack.c.bf16 %v4168, %v4167
      %v4222 = vpack.c.bf16 %v4171, %v4170
      %v4223 = vpack.c.bf16 %v4174, %v4173
      %v4224 = vpack.c.bf16 %v4177, %v4176
      %v4225 = vpack.c.bf16 %v4180, %v4179
      %v4226 = vpack.c.bf16 %v4183, %v4182
      %v4227 = vpack.c.bf16 %v4186, %v4185
      %v4228 = vpack.c.bf16 %v4189, %v4188
      %v4229 = vpack.c.bf16 %v4192, %v4191
      %v4230 = vpack.c.bf16 %v4195, %v4194
      %v4231 = vpack.c.bf16 %v4198, %v4197
      %v4232 = vpack.c.bf16 %v4201, %v4200
      %v4233 = vpack.c.bf16 %v4204, %v4203
      %v4234 = vpack.c.bf16 %v4207, %v4206
      %v4235 = vpack.c.bf16 %v4210, %v4209
      %v4236 = vpack.c.bf16 %v4213, %v4212
      %v4237 = vld [vmem:[%s6] sm:$0xf]
      %v4286 = vrot.slane %v4167, 1
      %v4287 = vrot.slane %v4168, 1
      %v4288 = vsel %vm729, %v4286, %v4287
      %v4289 = vrot.slane %v4169, 1
      %v4290 = vsel %vm729, %v4287, %v4289
      %v4291 = vrot.slane %v4170, 1
      %v4292 = vrot.slane %v4171, 1
      %v4293 = vsel %vm729, %v4291, %v4292
      %v4294 = vrot.slane %v4172, 1
      %v4295 = vsel %vm729, %v4292, %v4294
      %v4296 = vrot.slane %v4173, 1
      %v4297 = vrot.slane %v4174, 1
      %v4298 = vsel %vm729, %v4296, %v4297
      %v4299 = vrot.slane %v4175, 1
      %v4300 = vsel %vm729, %v4297, %v4299
      %v4301 = vrot.slane %v4176, 1
      %v4302 = vrot.slane %v4177, 1
      %v4303 = vsel %vm729, %v4301, %v4302
      %v4304 = vrot.slane %v4178, 1
      %v4305 = vsel %vm729, %v4302, %v4304
      %v4306 = vrot.slane %v4179, 1
      %v4307 = vrot.slane %v4180, 1
      %v4308 = vsel %vm729, %v4306, %v4307
      %v4309 = vrot.slane %v4181, 1
      %v4310 = vsel %vm729, %v4307, %v4309
      %v4311 = vrot.slane %v4182, 1
      %v4312 = vrot.slane %v4183, 1
      %v4313 = vsel %vm729, %v4311, %v4312
      %v4314 = vrot.slane %v4184, 1
      %v4315 = vsel %vm729, %v4312, %v4314
      %v4316 = vrot.slane %v4185, 1
      %v4317 = vrot.slane %v4186, 1
      %v4318 = vsel %vm729, %v4316, %v4317
      %v4319 = vrot.slane %v4187, 1
      %v4320 = vsel %vm729, %v4317, %v4319
      %v4321 = vrot.slane %v4188, 1
      %v4322 = vrot.slane %v4189, 1
      %v4323 = vsel %vm729, %v4321, %v4322
      %v4324 = vrot.slane %v4190, 1
      %v4325 = vsel %vm729, %v4322, %v4324
      %v4326 = vrot.slane %v4191, 1
      %v4327 = vrot.slane %v4192, 1
      %v4328 = vsel %vm729, %v4326, %v4327
      %v4329 = vrot.slane %v4193, 1
      %v4330 = vsel %vm729, %v4327, %v4329
      %v4331 = vrot.slane %v4194, 1
      %v4332 = vrot.slane %v4195, 1
      %v4333 = vsel %vm729, %v4331, %v4332
      %v4334 = vrot.slane %v4196, 1
      %v4335 = vsel %vm729, %v4332, %v4334
      %v4336 = vrot.slane %v4197, 1
      %v4337 = vrot.slane %v4198, 1
      %v4338 = vsel %vm729, %v4336, %v4337
      %v4339 = vrot.slane %v4199, 1
      %v4340 = vsel %vm729, %v4337, %v4339
      %v4341 = vrot.slane %v4200, 1
      %v4342 = vrot.slane %v4201, 1
      %v4343 = vsel %vm729, %v4341, %v4342
      %v4344 = vrot.slane %v4202, 1
      %v4345 = vsel %vm729, %v4342, %v4344
      %v4346 = vrot.slane %v4203, 1
      %v4347 = vrot.slane %v4204, 1
      %v4348 = vsel %vm729, %v4346, %v4347
      %v4349 = vrot.slane %v4205, 1
      %v4350 = vsel %vm729, %v4347, %v4349
      %v4351 = vrot.slane %v4206, 1
      %v4352 = vrot.slane %v4207, 1
      %v4353 = vsel %vm729, %v4351, %v4352
      %v4354 = vrot.slane %v4208, 1
      %v4355 = vsel %vm729, %v4352, %v4354
      %v4356 = vrot.slane %v4209, 1
      %v4357 = vrot.slane %v4210, 1
      %v4358 = vsel %vm729, %v4356, %v4357
      %v4359 = vrot.slane %v4211, 1
      %v4360 = vsel %vm729, %v4357, %v4359
      %v4361 = vrot.slane %v4212, 1
      %v4362 = vrot.slane %v4213, 1
      %v4363 = vsel %vm729, %v4361, %v4362
      %v4364 = vrot.slane %v4214, 1
      %v4365 = vsel %vm729, %v4362, %v4364
      %v4398 = vpack.c.bf16 %v4290, %v4288
      %v4399 = vpack.c.bf16 %v4295, %v4293
      %v4400 = vpack.c.bf16 %v4300, %v4298
      %v4401 = vpack.c.bf16 %v4305, %v4303
      %v4402 = vpack.c.bf16 %v4310, %v4308
      %v4403 = vpack.c.bf16 %v4315, %v4313
      %v4404 = vpack.c.bf16 %v4320, %v4318
      %v4405 = vpack.c.bf16 %v4325, %v4323
      %v4406 = vpack.c.bf16 %v4330, %v4328
      %v4407 = vpack.c.bf16 %v4335, %v4333
      %v4408 = vpack.c.bf16 %v4340, %v4338
      %v4409 = vpack.c.bf16 %v4345, %v4343
      %v4410 = vpack.c.bf16 %v4350, %v4348
      %v4411 = vpack.c.bf16 %v4355, %v4353
      %v4412 = vpack.c.bf16 %v4360, %v4358
      %v4413 = vpack.c.bf16 %v4365, %v4363
      %s4414 = scalar_lea.vmem %s6, 4
      %v4415 = vld [vmem:[%s4414] sm:$0xf]
      %v4417 = vsel %vm435, %v4398, 0
      %v4420 = vsel %vm435, %v4399, 0
      %v4423 = vsel %vm435, %v4400, 0
      %v4426 = vsel %vm435, %v4401, 0
      %v4429 = vsel %vm435, %v4402, 0
      %v4432 = vsel %vm435, %v4403, 0
      %v4435 = vsel %vm435, %v4404, 0
      %v4438 = vsel %vm435, %v4405, 0
      %v4441 = vsel %vm435, %v4406, 0
      %v4444 = vsel %vm435, %v4407, 0
      %v4447 = vsel %vm435, %v4408, 0
      %v4450 = vsel %vm435, %v4409, 0
      %v4453 = vsel %vm435, %v4410, 0
      %v4456 = vsel %vm435, %v4411, 0
      %v4459 = vsel %vm435, %v4412, 0
      %v4462 = vsel %vm435, %v4413, 0
      %v4465 = vsel %vm908, %v4415, 0
      %4467 = vmatpush.bf16.msra.mxu0 0
      %4468 = vmatpush.bf16.msra.mxu0 0
      %4469 = vmatpush.bf16.msra.mxu0 0
      %4470 = vmatpush.bf16.msra.mxu0 0
      %4471 = vmatpush.bf16.msra.mxu0 0
      %4472 = vmatpush.bf16.msra.mxu0 0
      %4473 = vmatpush.bf16.msra.mxu0 0
      %4474 = vmatpush.bf16.msra.mxu0 %v4465
      %4475 = vmatmul.bf16.gmra.mxu0 %v4417
      %v4476 = vpop.f32.mrf.mxu0
      %v4477 = vadd.f32 0.0, %v4476
      %v4478 = vpop.f32.mrf.mxu0
      %v4479 = vadd.f32 0.0, %v4478
      %4480 = vmatmul.bf16.gmra.mxu0 %v4420
      %v4481 = vpop.f32.mrf.mxu0
      %v4482 = vadd.f32 0.0, %v4481
      %v4483 = vpop.f32.mrf.mxu0
      %v4484 = vadd.f32 0.0, %v4483
      %4485 = vmatmul.bf16.gmra.mxu0 %v4423
      %v4486 = vpop.f32.mrf.mxu0
      %v4487 = vadd.f32 0.0, %v4486
      %v4488 = vpop.f32.mrf.mxu0
      %v4489 = vadd.f32 0.0, %v4488
      %4490 = vmatmul.bf16.gmra.mxu0 %v4426
      %v4491 = vpop.f32.mrf.mxu0
      %v4492 = vadd.f32 0.0, %v4491
      %v4493 = vpop.f32.mrf.mxu0
      %v4494 = vadd.f32 0.0, %v4493
      %4495 = vmatmul.bf16.gmra.mxu0 %v4429
      %v4496 = vpop.f32.mrf.mxu0
      %v4497 = vadd.f32 0.0, %v4496
      %v4498 = vpop.f32.mrf.mxu0
      %v4499 = vadd.f32 0.0, %v4498
      %4500 = vmatmul.bf16.gmra.mxu0 %v4432
      %v4501 = vpop.f32.mrf.mxu0
      %v4502 = vadd.f32 0.0, %v4501
      %v4503 = vpop.f32.mrf.mxu0
      %v4504 = vadd.f32 0.0, %v4503
      %4505 = vmatmul.bf16.gmra.mxu0 %v4435
      %v4506 = vpop.f32.mrf.mxu0
      %v4507 = vadd.f32 0.0, %v4506
      %v4508 = vpop.f32.mrf.mxu0
      %v4509 = vadd.f32 0.0, %v4508
      %4510 = vmatmul.bf16.gmra.mxu0 %v4438
      %v4511 = vpop.f32.mrf.mxu0
      %v4512 = vadd.f32 0.0, %v4511
      %v4513 = vpop.f32.mrf.mxu0
      %v4514 = vadd.f32 0.0, %v4513
      %4515 = vmatmul.bf16.gmra.mxu0 %v4441
      %v4516 = vpop.f32.mrf.mxu0
      %v4517 = vadd.f32 0.0, %v4516
      %v4518 = vpop.f32.mrf.mxu0
      %v4519 = vadd.f32 0.0, %v4518
      %4520 = vmatmul.bf16.gmra.mxu0 %v4444
      %v4521 = vpop.f32.mrf.mxu0
      %v4522 = vadd.f32 0.0, %v4521
      %v4523 = vpop.f32.mrf.mxu0
      %v4524 = vadd.f32 0.0, %v4523
      %4525 = vmatmul.bf16.gmra.mxu0 %v4447
      %v4526 = vpop.f32.mrf.mxu0
      %v4527 = vadd.f32 0.0, %v4526
      %v4528 = vpop.f32.mrf.mxu0
      %v4529 = vadd.f32 0.0, %v4528
      %4530 = vmatmul.bf16.gmra.mxu0 %v4450
      %v4531 = vpop.f32.mrf.mxu0
      %v4532 = vadd.f32 0.0, %v4531
      %v4533 = vpop.f32.mrf.mxu0
      %v4534 = vadd.f32 0.0, %v4533
      %4535 = vmatmul.bf16.gmra.mxu0 %v4453
      %v4536 = vpop.f32.mrf.mxu0
      %v4537 = vadd.f32 0.0, %v4536
      %v4538 = vpop.f32.mrf.mxu0
      %v4539 = vadd.f32 0.0, %v4538
      %4540 = vmatmul.bf16.gmra.mxu0 %v4456
      %v4541 = vpop.f32.mrf.mxu0
      %v4542 = vadd.f32 0.0, %v4541
      %v4543 = vpop.f32.mrf.mxu0
      %v4544 = vadd.f32 0.0, %v4543
      %4545 = vmatmul.bf16.gmra.mxu0 %v4459
      %v4546 = vpop.f32.mrf.mxu0
      %v4547 = vadd.f32 0.0, %v4546
      %v4548 = vpop.f32.mrf.mxu0
      %v4549 = vadd.f32 0.0, %v4548
      %4550 = vmatmul.bf16.gmra.mxu0 %v4462
      %v4551 = vpop.f32.mrf.mxu0
      %v4552 = vadd.f32 0.0, %v4551
      %v4553 = vpop.f32.mrf.mxu0
      %v4554 = vadd.f32 0.0, %v4553
      %4555 = vdwg.mxu0
      %v4557 = vsel %vm435, %v4221, 0
      %v4560 = vsel %vm435, %v4222, 0
      %v4563 = vsel %vm435, %v4223, 0
      %v4566 = vsel %vm435, %v4224, 0
      %v4569 = vsel %vm435, %v4225, 0
      %v4572 = vsel %vm435, %v4226, 0
      %v4575 = vsel %vm435, %v4227, 0
      %v4578 = vsel %vm435, %v4228, 0
      %v4581 = vsel %vm435, %v4229, 0
      %v4584 = vsel %vm435, %v4230, 0
      %v4587 = vsel %vm435, %v4231, 0
      %v4590 = vsel %vm435, %v4232, 0
      %v4593 = vsel %vm435, %v4233, 0
      %v4596 = vsel %vm435, %v4234, 0
      %v4599 = vsel %vm435, %v4235, 0
      %v4602 = vsel %vm435, %v4236, 0
      %v4605 = vsel %vm908, %v4237, 0
      %4607 = vmatpush.bf16.msra.mxu0 0
      %4608 = vmatpush.bf16.msra.mxu0 0
      %4609 = vmatpush.bf16.msra.mxu0 0
      %4610 = vmatpush.bf16.msra.mxu0 0
      %4611 = vmatpush.bf16.msra.mxu0 0
      %4612 = vmatpush.bf16.msra.mxu0 0
      %4613 = vmatpush.bf16.msra.mxu0 0
      %4614 = vmatpush.bf16.msra.mxu0 %v4605
      %4615 = vmatmul.bf16.gmra.mxu0 %v4557
      %v4616 = vpop.f32.mrf.mxu0
      %v4617 = vadd.f32 %v4477, %v4616
      %v4618 = vpop.f32.mrf.mxu0
      %v4619 = vadd.f32 %v4479, %v4618
      %4620 = vmatmul.bf16.gmra.mxu0 %v4560
      %v4621 = vpop.f32.mrf.mxu0
      %v4622 = vadd.f32 %v4482, %v4621
      %v4623 = vpop.f32.mrf.mxu0
      %v4624 = vadd.f32 %v4484, %v4623
      %4625 = vmatmul.bf16.gmra.mxu0 %v4563
      %v4626 = vpop.f32.mrf.mxu0
      %v4627 = vadd.f32 %v4487, %v4626
      %v4628 = vpop.f32.mrf.mxu0
      %v4629 = vadd.f32 %v4489, %v4628
      %4630 = vmatmul.bf16.gmra.mxu0 %v4566
      %v4631 = vpop.f32.mrf.mxu0
      %v4632 = vadd.f32 %v4492, %v4631
      %v4633 = vpop.f32.mrf.mxu0
      %v4634 = vadd.f32 %v4494, %v4633
      %4635 = vmatmul.bf16.gmra.mxu0 %v4569
      %v4636 = vpop.f32.mrf.mxu0
      %v4637 = vadd.f32 %v4497, %v4636
      %v4638 = vpop.f32.mrf.mxu0
      %v4639 = vadd.f32 %v4499, %v4638
      %4640 = vmatmul.bf16.gmra.mxu0 %v4572
      %v4641 = vpop.f32.mrf.mxu0
      %v4642 = vadd.f32 %v4502, %v4641
      %v4643 = vpop.f32.mrf.mxu0
      %v4644 = vadd.f32 %v4504, %v4643
      %4645 = vmatmul.bf16.gmra.mxu0 %v4575
      %v4646 = vpop.f32.mrf.mxu0
      %v4647 = vadd.f32 %v4507, %v4646
      %v4648 = vpop.f32.mrf.mxu0
      %v4649 = vadd.f32 %v4509, %v4648
      %4650 = vmatmul.bf16.gmra.mxu0 %v4578
      %v4651 = vpop.f32.mrf.mxu0
      %v4652 = vadd.f32 %v4512, %v4651
      %v4653 = vpop.f32.mrf.mxu0
      %v4654 = vadd.f32 %v4514, %v4653
      %4655 = vmatmul.bf16.gmra.mxu0 %v4581
      %v4656 = vpop.f32.mrf.mxu0
      %v4657 = vadd.f32 %v4517, %v4656
      %v4658 = vpop.f32.mrf.mxu0
      %v4659 = vadd.f32 %v4519, %v4658
      %4660 = vmatmul.bf16.gmra.mxu0 %v4584
      %v4661 = vpop.f32.mrf.mxu0
      %v4662 = vadd.f32 %v4522, %v4661
      %v4663 = vpop.f32.mrf.mxu0
      %v4664 = vadd.f32 %v4524, %v4663
      %4665 = vmatmul.bf16.gmra.mxu0 %v4587
      %v4666 = vpop.f32.mrf.mxu0
      %v4667 = vadd.f32 %v4527, %v4666
      %v4668 = vpop.f32.mrf.mxu0
      %v4669 = vadd.f32 %v4529, %v4668
      %4670 = vmatmul.bf16.gmra.mxu0 %v4590
      %v4671 = vpop.f32.mrf.mxu0
      %v4672 = vadd.f32 %v4532, %v4671
      %v4673 = vpop.f32.mrf.mxu0
      %v4674 = vadd.f32 %v4534, %v4673
      %4675 = vmatmul.bf16.gmra.mxu0 %v4593
      %v4676 = vpop.f32.mrf.mxu0
      %v4677 = vadd.f32 %v4537, %v4676
      %v4678 = vpop.f32.mrf.mxu0
      %v4679 = vadd.f32 %v4539, %v4678
      %4680 = vmatmul.bf16.gmra.mxu0 %v4596
      %v4681 = vpop.f32.mrf.mxu0
      %v4682 = vadd.f32 %v4542, %v4681
      %v4683 = vpop.f32.mrf.mxu0
      %v4684 = vadd.f32 %v4544, %v4683
      %4685 = vmatmul.bf16.gmra.mxu0 %v4599
      %v4686 = vpop.f32.mrf.mxu0
      %v4687 = vadd.f32 %v4547, %v4686
      %v4688 = vpop.f32.mrf.mxu0
      %v4689 = vadd.f32 %v4549, %v4688
      %4690 = vmatmul.bf16.gmra.mxu0 %v4602
      %v4691 = vpop.f32.mrf.mxu0
      %v4692 = vadd.f32 %v4552, %v4691
      %v4693 = vpop.f32.mrf.mxu0
      %v4694 = vadd.f32 %v4554, %v4693
      %4695 = vdwg.mxu0
      %v4696 = vrot.slane %v4167, 2
      %v4697 = vrot.slane %v4168, 2
      %v4698 = vsel %vm1141, %v4696, %v4697
      %v4699 = vrot.slane %v4169, 2
      %v4700 = vsel %vm1141, %v4697, %v4699
      %v4701 = vrot.slane %v4170, 2
      %v4702 = vrot.slane %v4171, 2
      %v4703 = vsel %vm1141, %v4701, %v4702
      %v4704 = vrot.slane %v4172, 2
      %v4705 = vsel %vm1141, %v4702, %v4704
      %v4706 = vrot.slane %v4173, 2
      %v4707 = vrot.slane %v4174, 2
      %v4708 = vsel %vm1141, %v4706, %v4707
      %v4709 = vrot.slane %v4175, 2
      %v4710 = vsel %vm1141, %v4707, %v4709
      %v4711 = vrot.slane %v4176, 2
      %v4712 = vrot.slane %v4177, 2
      %v4713 = vsel %vm1141, %v4711, %v4712
      %v4714 = vrot.slane %v4178, 2
      %v4715 = vsel %vm1141, %v4712, %v4714
      %v4716 = vrot.slane %v4179, 2
      %v4717 = vrot.slane %v4180, 2
      %v4718 = vsel %vm1141, %v4716, %v4717
      %v4719 = vrot.slane %v4181, 2
      %v4720 = vsel %vm1141, %v4717, %v4719
      %v4721 = vrot.slane %v4182, 2
      %v4722 = vrot.slane %v4183, 2
      %v4723 = vsel %vm1141, %v4721, %v4722
      %v4724 = vrot.slane %v4184, 2
      %v4725 = vsel %vm1141, %v4722, %v4724
      %v4726 = vrot.slane %v4185, 2
      %v4727 = vrot.slane %v4186, 2
      %v4728 = vsel %vm1141, %v4726, %v4727
      %v4729 = vrot.slane %v4187, 2
      %v4730 = vsel %vm1141, %v4727, %v4729
      %v4731 = vrot.slane %v4188, 2
      %v4732 = vrot.slane %v4189, 2
      %v4733 = vsel %vm1141, %v4731, %v4732
      %v4734 = vrot.slane %v4190, 2
      %v4735 = vsel %vm1141, %v4732, %v4734
      %v4736 = vrot.slane %v4191, 2
      %v4737 = vrot.slane %v4192, 2
      %v4738 = vsel %vm1141, %v4736, %v4737
      %v4739 = vrot.slane %v4193, 2
      %v4740 = vsel %vm1141, %v4737, %v4739
      %v4741 = vrot.slane %v4194, 2
      %v4742 = vrot.slane %v4195, 2
      %v4743 = vsel %vm1141, %v4741, %v4742
      %v4744 = vrot.slane %v4196, 2
      %v4745 = vsel %vm1141, %v4742, %v4744
      %v4746 = vrot.slane %v4197, 2
      %v4747 = vrot.slane %v4198, 2
      %v4748 = vsel %vm1141, %v4746, %v4747
      %v4749 = vrot.slane %v4199, 2
      %v4750 = vsel %vm1141, %v4747, %v4749
      %v4751 = vrot.slane %v4200, 2
      %v4752 = vrot.slane %v4201, 2
      %v4753 = vsel %vm1141, %v4751, %v4752
      %v4754 = vrot.slane %v4202, 2
      %v4755 = vsel %vm1141, %v4752, %v4754
      %v4756 = vrot.slane %v4203, 2
      %v4757 = vrot.slane %v4204, 2
      %v4758 = vsel %vm1141, %v4756, %v4757
      %v4759 = vrot.slane %v4205, 2
      %v4760 = vsel %vm1141, %v4757, %v4759
      %v4761 = vrot.slane %v4206, 2
      %v4762 = vrot.slane %v4207, 2
      %v4763 = vsel %vm1141, %v4761, %v4762
      %v4764 = vrot.slane %v4208, 2
      %v4765 = vsel %vm1141, %v4762, %v4764
      %v4766 = vrot.slane %v4209, 2
      %v4767 = vrot.slane %v4210, 2
      %v4768 = vsel %vm1141, %v4766, %v4767
      %v4769 = vrot.slane %v4211, 2
      %v4770 = vsel %vm1141, %v4767, %v4769
      %v4771 = vrot.slane %v4212, 2
      %v4772 = vrot.slane %v4213, 2
      %v4773 = vsel %vm1141, %v4771, %v4772
      %v4774 = vrot.slane %v4214, 2
      %v4775 = vsel %vm1141, %v4772, %v4774
      %v4808 = vpack.c.bf16 %v4700, %v4698
      %v4809 = vpack.c.bf16 %v4705, %v4703
      %v4810 = vpack.c.bf16 %v4710, %v4708
      %v4811 = vpack.c.bf16 %v4715, %v4713
      %v4812 = vpack.c.bf16 %v4720, %v4718
      %v4813 = vpack.c.bf16 %v4725, %v4723
      %v4814 = vpack.c.bf16 %v4730, %v4728
      %v4815 = vpack.c.bf16 %v4735, %v4733
      %v4816 = vpack.c.bf16 %v4740, %v4738
      %v4817 = vpack.c.bf16 %v4745, %v4743
      %v4818 = vpack.c.bf16 %v4750, %v4748
      %v4819 = vpack.c.bf16 %v4755, %v4753
      %v4820 = vpack.c.bf16 %v4760, %v4758
      %v4821 = vpack.c.bf16 %v4765, %v4763
      %v4822 = vpack.c.bf16 %v4770, %v4768
      %v4823 = vpack.c.bf16 %v4775, %v4773
      %s4824 = scalar_lea.vmem %s6, 8
      %v4825 = vld [vmem:[%s4824] sm:$0xf]
      %v4827 = vsel %vm435, %v4808, 0
      %v4830 = vsel %vm435, %v4809, 0
      %v4833 = vsel %vm435, %v4810, 0
      %v4836 = vsel %vm435, %v4811, 0
      %v4839 = vsel %vm435, %v4812, 0
      %v4842 = vsel %vm435, %v4813, 0
      %v4845 = vsel %vm435, %v4814, 0
      %v4848 = vsel %vm435, %v4815, 0
      %v4851 = vsel %vm435, %v4816, 0
      %v4854 = vsel %vm435, %v4817, 0
      %v4857 = vsel %vm435, %v4818, 0
      %v4860 = vsel %vm435, %v4819, 0
      %v4863 = vsel %vm435, %v4820, 0
      %v4866 = vsel %vm435, %v4821, 0
      %v4869 = vsel %vm435, %v4822, 0
      %v4872 = vsel %vm435, %v4823, 0
      %v4875 = vsel %vm908, %v4825, 0
      %4877 = vmatpush.bf16.msra.mxu0 0
      %4878 = vmatpush.bf16.msra.mxu0 0
      %4879 = vmatpush.bf16.msra.mxu0 0
      %4880 = vmatpush.bf16.msra.mxu0 0
      %4881 = vmatpush.bf16.msra.mxu0 0
      %4882 = vmatpush.bf16.msra.mxu0 0
      %4883 = vmatpush.bf16.msra.mxu0 0
      %4884 = vmatpush.bf16.msra.mxu0 %v4875
      %4885 = vmatmul.bf16.gmra.mxu0 %v4827
      %v4886 = vpop.f32.mrf.mxu0
      %v4887 = vadd.f32 0.0, %v4886
      %v4888 = vpop.f32.mrf.mxu0
      %v4889 = vadd.f32 0.0, %v4888
      %4890 = vmatmul.bf16.gmra.mxu0 %v4830
      %v4891 = vpop.f32.mrf.mxu0
      %v4892 = vadd.f32 0.0, %v4891
      %v4893 = vpop.f32.mrf.mxu0
      %v4894 = vadd.f32 0.0, %v4893
      %4895 = vmatmul.bf16.gmra.mxu0 %v4833
      %v4896 = vpop.f32.mrf.mxu0
      %v4897 = vadd.f32 0.0, %v4896
      %v4898 = vpop.f32.mrf.mxu0
      %v4899 = vadd.f32 0.0, %v4898
      %4900 = vmatmul.bf16.gmra.mxu0 %v4836
      %v4901 = vpop.f32.mrf.mxu0
      %v4902 = vadd.f32 0.0, %v4901
      %v4903 = vpop.f32.mrf.mxu0
      %v4904 = vadd.f32 0.0, %v4903
      %4905 = vmatmul.bf16.gmra.mxu0 %v4839
      %v4906 = vpop.f32.mrf.mxu0
      %v4907 = vadd.f32 0.0, %v4906
      %v4908 = vpop.f32.mrf.mxu0
      %v4909 = vadd.f32 0.0, %v4908
      %4910 = vmatmul.bf16.gmra.mxu0 %v4842
      %v4911 = vpop.f32.mrf.mxu0
      %v4912 = vadd.f32 0.0, %v4911
      %v4913 = vpop.f32.mrf.mxu0
      %v4914 = vadd.f32 0.0, %v4913
      %4915 = vmatmul.bf16.gmra.mxu0 %v4845
      %v4916 = vpop.f32.mrf.mxu0
      %v4917 = vadd.f32 0.0, %v4916
      %v4918 = vpop.f32.mrf.mxu0
      %v4919 = vadd.f32 0.0, %v4918
      %4920 = vmatmul.bf16.gmra.mxu0 %v4848
      %v4921 = vpop.f32.mrf.mxu0
      %v4922 = vadd.f32 0.0, %v4921
      %v4923 = vpop.f32.mrf.mxu0
      %v4924 = vadd.f32 0.0, %v4923
      %4925 = vmatmul.bf16.gmra.mxu0 %v4851
      %v4926 = vpop.f32.mrf.mxu0
      %v4927 = vadd.f32 0.0, %v4926
      %v4928 = vpop.f32.mrf.mxu0
      %v4929 = vadd.f32 0.0, %v4928
      %4930 = vmatmul.bf16.gmra.mxu0 %v4854
      %v4931 = vpop.f32.mrf.mxu0
      %v4932 = vadd.f32 0.0, %v4931
      %v4933 = vpop.f32.mrf.mxu0
      %v4934 = vadd.f32 0.0, %v4933
      %4935 = vmatmul.bf16.gmra.mxu0 %v4857
      %v4936 = vpop.f32.mrf.mxu0
      %v4937 = vadd.f32 0.0, %v4936
      %v4938 = vpop.f32.mrf.mxu0
      %v4939 = vadd.f32 0.0, %v4938
      %4940 = vmatmul.bf16.gmra.mxu0 %v4860
      %v4941 = vpop.f32.mrf.mxu0
      %v4942 = vadd.f32 0.0, %v4941
      %v4943 = vpop.f32.mrf.mxu0
      %v4944 = vadd.f32 0.0, %v4943
      %4945 = vmatmul.bf16.gmra.mxu0 %v4863
      %v4946 = vpop.f32.mrf.mxu0
      %v4947 = vadd.f32 0.0, %v4946
      %v4948 = vpop.f32.mrf.mxu0
      %v4949 = vadd.f32 0.0, %v4948
      %4950 = vmatmul.bf16.gmra.mxu0 %v4866
      %v4951 = vpop.f32.mrf.mxu0
      %v4952 = vadd.f32 0.0, %v4951
      %v4953 = vpop.f32.mrf.mxu0
      %v4954 = vadd.f32 0.0, %v4953
      %4955 = vmatmul.bf16.gmra.mxu0 %v4869
      %v4956 = vpop.f32.mrf.mxu0
      %v4957 = vadd.f32 0.0, %v4956
      %v4958 = vpop.f32.mrf.mxu0
      %v4959 = vadd.f32 0.0, %v4958
      %4960 = vmatmul.bf16.gmra.mxu0 %v4872
      %v4961 = vpop.f32.mrf.mxu0
      %v4962 = vadd.f32 0.0, %v4961
      %v4963 = vpop.f32.mrf.mxu0
      %v4964 = vadd.f32 0.0, %v4963
      %4965 = vdwg.mxu0
      %v4966 = vadd.f32 %v4617, %v4887
      %v4967 = vadd.f32 %v4619, %v4889
      %v4968 = vadd.f32 %v4622, %v4892
      %v4969 = vadd.f32 %v4624, %v4894
      %v4970 = vadd.f32 %v4627, %v4897
      %v4971 = vadd.f32 %v4629, %v4899
      %v4972 = vadd.f32 %v4632, %v4902
      %v4973 = vadd.f32 %v4634, %v4904
      %v4974 = vadd.f32 %v4637, %v4907
      %v4975 = vadd.f32 %v4639, %v4909
      %v4976 = vadd.f32 %v4642, %v4912
      %v4977 = vadd.f32 %v4644, %v4914
      %v4978 = vadd.f32 %v4647, %v4917
      %v4979 = vadd.f32 %v4649, %v4919
      %v4980 = vadd.f32 %v4652, %v4922
      %v4981 = vadd.f32 %v4654, %v4924
      %v4982 = vadd.f32 %v4657, %v4927
      %v4983 = vadd.f32 %v4659, %v4929
      %v4984 = vadd.f32 %v4662, %v4932
      %v4985 = vadd.f32 %v4664, %v4934
      %v4986 = vadd.f32 %v4667, %v4937
      %v4987 = vadd.f32 %v4669, %v4939
      %v4988 = vadd.f32 %v4672, %v4942
      %v4989 = vadd.f32 %v4674, %v4944
      %v4990 = vadd.f32 %v4677, %v4947
      %v4991 = vadd.f32 %v4679, %v4949
      %v4992 = vadd.f32 %v4682, %v4952
      %v4993 = vadd.f32 %v4684, %v4954
      %v4994 = vadd.f32 %v4687, %v4957
      %v4995 = vadd.f32 %v4689, %v4959
      %v4996 = vadd.f32 %v4692, %v4962
      %v4997 = vadd.f32 %v4694, %v4964
      %v4998 = vpack.c.bf16 %v4216, %v4215
      %s4999 = scalar_lea.vmem %s6, 12
      %v5000 = vld [vmem:[%s4999] sm:$0xf]
      %v5002 = vsel %vm435, %v4998, 0
      %v5005 = vsel %vm908, %v5000, 0
      %5007 = vmatpush.bf16.msra.mxu0 0
      %5008 = vmatpush.bf16.msra.mxu0 0
      %5009 = vmatpush.bf16.msra.mxu0 0
      %5010 = vmatpush.bf16.msra.mxu0 0
      %5011 = vmatpush.bf16.msra.mxu0 0
      %5012 = vmatpush.bf16.msra.mxu0 0
      %5013 = vmatpush.bf16.msra.mxu0 0
      %5014 = vmatpush.bf16.msra.mxu0 %v5005
      %5015 = vmatmul.bf16.gmra.mxu0 %v4560
      %v5016 = vpop.f32.mrf.mxu0
      %v5017 = vadd.f32 0.0, %v5016
      %v5018 = vpop.f32.mrf.mxu0
      %v5019 = vadd.f32 0.0, %v5018
      %5020 = vmatmul.bf16.gmra.mxu0 %v4563
      %v5021 = vpop.f32.mrf.mxu0
      %v5022 = vadd.f32 0.0, %v5021
      %v5023 = vpop.f32.mrf.mxu0
      %v5024 = vadd.f32 0.0, %v5023
      %5025 = vmatmul.bf16.gmra.mxu0 %v4566
      %v5026 = vpop.f32.mrf.mxu0
      %v5027 = vadd.f32 0.0, %v5026
      %v5028 = vpop.f32.mrf.mxu0
      %v5029 = vadd.f32 0.0, %v5028
      %5030 = vmatmul.bf16.gmra.mxu0 %v4569
      %v5031 = vpop.f32.mrf.mxu0
      %v5032 = vadd.f32 0.0, %v5031
      %v5033 = vpop.f32.mrf.mxu0
      %v5034 = vadd.f32 0.0, %v5033
      %5035 = vmatmul.bf16.gmra.mxu0 %v4572
      %v5036 = vpop.f32.mrf.mxu0
      %v5037 = vadd.f32 0.0, %v5036
      %v5038 = vpop.f32.mrf.mxu0
      %v5039 = vadd.f32 0.0, %v5038
      %5040 = vmatmul.bf16.gmra.mxu0 %v4575
      %v5041 = vpop.f32.mrf.mxu0
      %v5042 = vadd.f32 0.0, %v5041
      %v5043 = vpop.f32.mrf.mxu0
      %v5044 = vadd.f32 0.0, %v5043
      %5045 = vmatmul.bf16.gmra.mxu0 %v4578
      %v5046 = vpop.f32.mrf.mxu0
      %v5047 = vadd.f32 0.0, %v5046
      %v5048 = vpop.f32.mrf.mxu0
      %v5049 = vadd.f32 0.0, %v5048
      %5050 = vmatmul.bf16.gmra.mxu0 %v4581
      %v5051 = vpop.f32.mrf.mxu0
      %v5052 = vadd.f32 0.0, %v5051
      %v5053 = vpop.f32.mrf.mxu0
      %v5054 = vadd.f32 0.0, %v5053
      %5055 = vmatmul.bf16.gmra.mxu0 %v4584
      %v5056 = vpop.f32.mrf.mxu0
      %v5057 = vadd.f32 0.0, %v5056
      %v5058 = vpop.f32.mrf.mxu0
      %v5059 = vadd.f32 0.0, %v5058
      %5060 = vmatmul.bf16.gmra.mxu0 %v4587
      %v5061 = vpop.f32.mrf.mxu0
      %v5062 = vadd.f32 0.0, %v5061
      %v5063 = vpop.f32.mrf.mxu0
      %v5064 = vadd.f32 0.0, %v5063
      %5065 = vmatmul.bf16.gmra.mxu0 %v4590
      %v5066 = vpop.f32.mrf.mxu0
      %v5067 = vadd.f32 0.0, %v5066
      %v5068 = vpop.f32.mrf.mxu0
      %v5069 = vadd.f32 0.0, %v5068
      %5070 = vmatmul.bf16.gmra.mxu0 %v4593
      %v5071 = vpop.f32.mrf.mxu0
      %v5072 = vadd.f32 0.0, %v5071
      %v5073 = vpop.f32.mrf.mxu0
      %v5074 = vadd.f32 0.0, %v5073
      %5075 = vmatmul.bf16.gmra.mxu0 %v4596
      %v5076 = vpop.f32.mrf.mxu0
      %v5077 = vadd.f32 0.0, %v5076
      %v5078 = vpop.f32.mrf.mxu0
      %v5079 = vadd.f32 0.0, %v5078
      %5080 = vmatmul.bf16.gmra.mxu0 %v4599
      %v5081 = vpop.f32.mrf.mxu0
      %v5082 = vadd.f32 0.0, %v5081
      %v5083 = vpop.f32.mrf.mxu0
      %v5084 = vadd.f32 0.0, %v5083
      %5085 = vmatmul.bf16.gmra.mxu0 %v4602
      %v5086 = vpop.f32.mrf.mxu0
      %v5087 = vadd.f32 0.0, %v5086
      %v5088 = vpop.f32.mrf.mxu0
      %v5089 = vadd.f32 0.0, %v5088
      %5090 = vmatmul.bf16.gmra.mxu0 %v5002
      %v5091 = vpop.f32.mrf.mxu0
      %v5092 = vadd.f32 0.0, %v5091
      %v5093 = vpop.f32.mrf.mxu0
      %v5094 = vadd.f32 0.0, %v5093
      %5095 = vdwg.mxu0
      %v5096 = vadd.f32 %v4966, %v5017
      %v5097 = vadd.f32 %v4967, %v5019
      %v5098 = vadd.f32 %v4968, %v5022
      %v5099 = vadd.f32 %v4969, %v5024
      %v5100 = vadd.f32 %v4970, %v5027
      %v5101 = vadd.f32 %v4971, %v5029
      %v5102 = vadd.f32 %v4972, %v5032
      %v5103 = vadd.f32 %v4973, %v5034
      %v5104 = vadd.f32 %v4974, %v5037
      %v5105 = vadd.f32 %v4975, %v5039
      %v5106 = vadd.f32 %v4976, %v5042
      %v5107 = vadd.f32 %v4977, %v5044
      %v5108 = vadd.f32 %v4978, %v5047
      %v5109 = vadd.f32 %v4979, %v5049
      %v5110 = vadd.f32 %v4980, %v5052
      %v5111 = vadd.f32 %v4981, %v5054
      %v5112 = vadd.f32 %v4982, %v5057
      %v5113 = vadd.f32 %v4983, %v5059
      %v5114 = vadd.f32 %v4984, %v5062
      %v5115 = vadd.f32 %v4985, %v5064
      %v5116 = vadd.f32 %v4986, %v5067
      %v5117 = vadd.f32 %v4987, %v5069
      %v5118 = vadd.f32 %v4988, %v5072
      %v5119 = vadd.f32 %v4989, %v5074
      %v5120 = vadd.f32 %v4990, %v5077
      %v5121 = vadd.f32 %v4991, %v5079
      %v5122 = vadd.f32 %v4992, %v5082
      %v5123 = vadd.f32 %v4993, %v5084
      %v5124 = vadd.f32 %v4994, %v5087
      %v5125 = vadd.f32 %v4995, %v5089
      %v5126 = vadd.f32 %v4996, %v5092
      %v5127 = vadd.f32 %v4997, %v5094
      %v5131 = vrot.slane %v4215, 1
      %v5132 = vrot.slane %v4216, 1
      %v5133 = vsel %vm729, %v5131, %v5132
      %v5134 = vrot.slane %v4217, 1
      %v5135 = vsel %vm729, %v5132, %v5134
      %v5138 = vpack.c.bf16 %v5135, %v5133
      %s5139 = scalar_lea.vmem %s6, 16
      %v5140 = vld [vmem:[%s5139] sm:$0xf]
      %v5142 = vsel %vm435, %v5138, 0
      %v5145 = vsel %vm908, %v5140, 0
      %5147 = vmatpush.bf16.msra.mxu0 0
      %5148 = vmatpush.bf16.msra.mxu0 0
      %5149 = vmatpush.bf16.msra.mxu0 0
      %5150 = vmatpush.bf16.msra.mxu0 0
      %5151 = vmatpush.bf16.msra.mxu0 0
      %5152 = vmatpush.bf16.msra.mxu0 0
      %5153 = vmatpush.bf16.msra.mxu0 0
      %5154 = vmatpush.bf16.msra.mxu0 %v5145
      %5155 = vmatmul.bf16.gmra.mxu0 %v4420
      %v5156 = vpop.f32.mrf.mxu0
      %v5157 = vadd.f32 0.0, %v5156
      %v5158 = vpop.f32.mrf.mxu0
      %v5159 = vadd.f32 0.0, %v5158
      %5160 = vmatmul.bf16.gmra.mxu0 %v4423
      %v5161 = vpop.f32.mrf.mxu0
      %v5162 = vadd.f32 0.0, %v5161
      %v5163 = vpop.f32.mrf.mxu0
      %v5164 = vadd.f32 0.0, %v5163
      %5165 = vmatmul.bf16.gmra.mxu0 %v4426
      %v5166 = vpop.f32.mrf.mxu0
      %v5167 = vadd.f32 0.0, %v5166
      %v5168 = vpop.f32.mrf.mxu0
      %v5169 = vadd.f32 0.0, %v5168
      %5170 = vmatmul.bf16.gmra.mxu0 %v4429
      %v5171 = vpop.f32.mrf.mxu0
      %v5172 = vadd.f32 0.0, %v5171
      %v5173 = vpop.f32.mrf.mxu0
      %v5174 = vadd.f32 0.0, %v5173
      %5175 = vmatmul.bf16.gmra.mxu0 %v4432
      %v5176 = vpop.f32.mrf.mxu0
      %v5177 = vadd.f32 0.0, %v5176
      %v5178 = vpop.f32.mrf.mxu0
      %v5179 = vadd.f32 0.0, %v5178
      %5180 = vmatmul.bf16.gmra.mxu0 %v4435
      %v5181 = vpop.f32.mrf.mxu0
      %v5182 = vadd.f32 0.0, %v5181
      %v5183 = vpop.f32.mrf.mxu0
      %v5184 = vadd.f32 0.0, %v5183
      %5185 = vmatmul.bf16.gmra.mxu0 %v4438
      %v5186 = vpop.f32.mrf.mxu0
      %v5187 = vadd.f32 0.0, %v5186
      %v5188 = vpop.f32.mrf.mxu0
      %v5189 = vadd.f32 0.0, %v5188
      %5190 = vmatmul.bf16.gmra.mxu0 %v4441
      %v5191 = vpop.f32.mrf.mxu0
      %v5192 = vadd.f32 0.0, %v5191
      %v5193 = vpop.f32.mrf.mxu0
      %v5194 = vadd.f32 0.0, %v5193
      %5195 = vmatmul.bf16.gmra.mxu0 %v4444
      %v5196 = vpop.f32.mrf.mxu0
      %v5197 = vadd.f32 0.0, %v5196
      %v5198 = vpop.f32.mrf.mxu0
      %v5199 = vadd.f32 0.0, %v5198
      %5200 = vmatmul.bf16.gmra.mxu0 %v4447
      %v5201 = vpop.f32.mrf.mxu0
      %v5202 = vadd.f32 0.0, %v5201
      %v5203 = vpop.f32.mrf.mxu0
      %v5204 = vadd.f32 0.0, %v5203
      %5205 = vmatmul.bf16.gmra.mxu0 %v4450
      %v5206 = vpop.f32.mrf.mxu0
      %v5207 = vadd.f32 0.0, %v5206
      %v5208 = vpop.f32.mrf.mxu0
      %v5209 = vadd.f32 0.0, %v5208
      %5210 = vmatmul.bf16.gmra.mxu0 %v4453
      %v5211 = vpop.f32.mrf.mxu0
      %v5212 = vadd.f32 0.0, %v5211
      %v5213 = vpop.f32.mrf.mxu0
      %v5214 = vadd.f32 0.0, %v5213
      %5215 = vmatmul.bf16.gmra.mxu0 %v4456
      %v5216 = vpop.f32.mrf.mxu0
      %v5217 = vadd.f32 0.0, %v5216
      %v5218 = vpop.f32.mrf.mxu0
      %v5219 = vadd.f32 0.0, %v5218
      %5220 = vmatmul.bf16.gmra.mxu0 %v4459
      %v5221 = vpop.f32.mrf.mxu0
      %v5222 = vadd.f32 0.0, %v5221
      %v5223 = vpop.f32.mrf.mxu0
      %v5224 = vadd.f32 0.0, %v5223
      %5225 = vmatmul.bf16.gmra.mxu0 %v4462
      %v5226 = vpop.f32.mrf.mxu0
      %v5227 = vadd.f32 0.0, %v5226
      %v5228 = vpop.f32.mrf.mxu0
      %v5229 = vadd.f32 0.0, %v5228
      %5230 = vmatmul.bf16.gmra.mxu0 %v5142
      %v5231 = vpop.f32.mrf.mxu0
      %v5232 = vadd.f32 0.0, %v5231
      %v5233 = vpop.f32.mrf.mxu0
      %v5234 = vadd.f32 0.0, %v5233
      %5235 = vdwg.mxu0
      %v5236 = vadd.f32 %v5096, %v5157
      %v5237 = vadd.f32 %v5097, %v5159
      %v5238 = vadd.f32 %v5098, %v5162
      %v5239 = vadd.f32 %v5099, %v5164
      %v5240 = vadd.f32 %v5100, %v5167
      %v5241 = vadd.f32 %v5101, %v5169
      %v5242 = vadd.f32 %v5102, %v5172
      %v5243 = vadd.f32 %v5103, %v5174
      %v5244 = vadd.f32 %v5104, %v5177
      %v5245 = vadd.f32 %v5105, %v5179
      %v5246 = vadd.f32 %v5106, %v5182
      %v5247 = vadd.f32 %v5107, %v5184
      %v5248 = vadd.f32 %v5108, %v5187
      %v5249 = vadd.f32 %v5109, %v5189
      %v5250 = vadd.f32 %v5110, %v5192
      %v5251 = vadd.f32 %v5111, %v5194
      %v5252 = vadd.f32 %v5112, %v5197
      %v5253 = vadd.f32 %v5113, %v5199
      %v5254 = vadd.f32 %v5114, %v5202
      %v5255 = vadd.f32 %v5115, %v5204
      %v5256 = vadd.f32 %v5116, %v5207
      %v5257 = vadd.f32 %v5117, %v5209
      %v5258 = vadd.f32 %v5118, %v5212
      %v5259 = vadd.f32 %v5119, %v5214
      %v5260 = vadd.f32 %v5120, %v5217
      %v5261 = vadd.f32 %v5121, %v5219
      %v5262 = vadd.f32 %v5122, %v5222
      %v5263 = vadd.f32 %v5123, %v5224
      %v5264 = vadd.f32 %v5124, %v5227
      %v5265 = vadd.f32 %v5125, %v5229
      %v5266 = vadd.f32 %v5126, %v5232
      %v5267 = vadd.f32 %v5127, %v5234
      %v5268 = vrot.slane %v4215, 2
      %v5269 = vrot.slane %v4216, 2
      %v5270 = vsel %vm1141, %v5268, %v5269
      %v5271 = vrot.slane %v4217, 2
      %v5272 = vsel %vm1141, %v5269, %v5271
      %v5275 = vpack.c.bf16 %v5272, %v5270
      %s5276 = scalar_lea.vmem %s6, 20
      %v5277 = vld [vmem:[%s5276] sm:$0xf]
      %v5279 = vsel %vm435, %v5275, 0
      %v5282 = vsel %vm908, %v5277, 0
      %5284 = vmatpush.bf16.msra.mxu0 0
      %5285 = vmatpush.bf16.msra.mxu0 0
      %5286 = vmatpush.bf16.msra.mxu0 0
      %5287 = vmatpush.bf16.msra.mxu0 0
      %5288 = vmatpush.bf16.msra.mxu0 0
      %5289 = vmatpush.bf16.msra.mxu0 0
      %5290 = vmatpush.bf16.msra.mxu0 0
      %5291 = vmatpush.bf16.msra.mxu0 %v5282
      %5292 = vmatmul.bf16.gmra.mxu0 %v4830
      %v5293 = vpop.f32.mrf.mxu0
      %v5294 = vadd.f32 0.0, %v5293
      %v5295 = vpop.f32.mrf.mxu0
      %v5296 = vadd.f32 0.0, %v5295
      %5297 = vmatmul.bf16.gmra.mxu0 %v4833
      %v5298 = vpop.f32.mrf.mxu0
      %v5299 = vadd.f32 0.0, %v5298
      %v5300 = vpop.f32.mrf.mxu0
      %v5301 = vadd.f32 0.0, %v5300
      %5302 = vmatmul.bf16.gmra.mxu0 %v4836
      %v5303 = vpop.f32.mrf.mxu0
      %v5304 = vadd.f32 0.0, %v5303
      %v5305 = vpop.f32.mrf.mxu0
      %v5306 = vadd.f32 0.0, %v5305
      %5307 = vmatmul.bf16.gmra.mxu0 %v4839
      %v5308 = vpop.f32.mrf.mxu0
      %v5309 = vadd.f32 0.0, %v5308
      %v5310 = vpop.f32.mrf.mxu0
      %v5311 = vadd.f32 0.0, %v5310
      %5312 = vmatmul.bf16.gmra.mxu0 %v4842
      %v5313 = vpop.f32.mrf.mxu0
      %v5314 = vadd.f32 0.0, %v5313
      %v5315 = vpop.f32.mrf.mxu0
      %v5316 = vadd.f32 0.0, %v5315
      %5317 = vmatmul.bf16.gmra.mxu0 %v4845
      %v5318 = vpop.f32.mrf.mxu0
      %v5319 = vadd.f32 0.0, %v5318
      %v5320 = vpop.f32.mrf.mxu0
      %v5321 = vadd.f32 0.0, %v5320
      %5322 = vmatmul.bf16.gmra.mxu0 %v4848
      %v5323 = vpop.f32.mrf.mxu0
      %v5324 = vadd.f32 0.0, %v5323
      %v5325 = vpop.f32.mrf.mxu0
      %v5326 = vadd.f32 0.0, %v5325
      %5327 = vmatmul.bf16.gmra.mxu0 %v4851
      %v5328 = vpop.f32.mrf.mxu0
      %v5329 = vadd.f32 0.0, %v5328
      %v5330 = vpop.f32.mrf.mxu0
      %v5331 = vadd.f32 0.0, %v5330
      %5332 = vmatmul.bf16.gmra.mxu0 %v4854
      %v5333 = vpop.f32.mrf.mxu0
      %v5334 = vadd.f32 0.0, %v5333
      %v5335 = vpop.f32.mrf.mxu0
      %v5336 = vadd.f32 0.0, %v5335
      %5337 = vmatmul.bf16.gmra.mxu0 %v4857
      %v5338 = vpop.f32.mrf.mxu0
      %v5339 = vadd.f32 0.0, %v5338
      %v5340 = vpop.f32.mrf.mxu0
      %v5341 = vadd.f32 0.0, %v5340
      %5342 = vmatmul.bf16.gmra.mxu0 %v4860
      %v5343 = vpop.f32.mrf.mxu0
      %v5344 = vadd.f32 0.0, %v5343
      %v5345 = vpop.f32.mrf.mxu0
      %v5346 = vadd.f32 0.0, %v5345
      %5347 = vmatmul.bf16.gmra.mxu0 %v4863
      %v5348 = vpop.f32.mrf.mxu0
      %v5349 = vadd.f32 0.0, %v5348
      %v5350 = vpop.f32.mrf.mxu0
      %v5351 = vadd.f32 0.0, %v5350
      %5352 = vmatmul.bf16.gmra.mxu0 %v4866
      %v5353 = vpop.f32.mrf.mxu0
      %v5354 = vadd.f32 0.0, %v5353
      %v5355 = vpop.f32.mrf.mxu0
      %v5356 = vadd.f32 0.0, %v5355
      %5357 = vmatmul.bf16.gmra.mxu0 %v4869
      %v5358 = vpop.f32.mrf.mxu0
      %v5359 = vadd.f32 0.0, %v5358
      %v5360 = vpop.f32.mrf.mxu0
      %v5361 = vadd.f32 0.0, %v5360
      %5362 = vmatmul.bf16.gmra.mxu0 %v4872
      %v5363 = vpop.f32.mrf.mxu0
      %v5364 = vadd.f32 0.0, %v5363
      %v5365 = vpop.f32.mrf.mxu0
      %v5366 = vadd.f32 0.0, %v5365
      %5367 = vmatmul.bf16.gmra.mxu0 %v5279
      %v5368 = vpop.f32.mrf.mxu0
      %v5369 = vadd.f32 0.0, %v5368
      %v5370 = vpop.f32.mrf.mxu0
      %v5371 = vadd.f32 0.0, %v5370
      %5372 = vdwg.mxu0
      %v5373 = vadd.f32 %v5236, %v5294
      %v5374 = vadd.f32 %v5237, %v5296
      %v5375 = vadd.f32 %v5238, %v5299
      %v5376 = vadd.f32 %v5239, %v5301
      %v5377 = vadd.f32 %v5240, %v5304
      %v5378 = vadd.f32 %v5241, %v5306
      %v5379 = vadd.f32 %v5242, %v5309
      %v5380 = vadd.f32 %v5243, %v5311
      %v5381 = vadd.f32 %v5244, %v5314
      %v5382 = vadd.f32 %v5245, %v5316
      %v5383 = vadd.f32 %v5246, %v5319
      %v5384 = vadd.f32 %v5247, %v5321
      %v5385 = vadd.f32 %v5248, %v5324
      %v5386 = vadd.f32 %v5249, %v5326
      %v5387 = vadd.f32 %v5250, %v5329
      %v5388 = vadd.f32 %v5251, %v5331
      %v5389 = vadd.f32 %v5252, %v5334
      %v5390 = vadd.f32 %v5253, %v5336
      %v5391 = vadd.f32 %v5254, %v5339
      %v5392 = vadd.f32 %v5255, %v5341
      %v5393 = vadd.f32 %v5256, %v5344
      %v5394 = vadd.f32 %v5257, %v5346
      %v5395 = vadd.f32 %v5258, %v5349
      %v5396 = vadd.f32 %v5259, %v5351
      %v5397 = vadd.f32 %v5260, %v5354
      %v5398 = vadd.f32 %v5261, %v5356
      %v5399 = vadd.f32 %v5262, %v5359
      %v5400 = vadd.f32 %v5263, %v5361
      %v5401 = vadd.f32 %v5264, %v5364
      %v5402 = vadd.f32 %v5265, %v5366
      %v5403 = vadd.f32 %v5266, %v5369
      %v5404 = vadd.f32 %v5267, %v5371
      %v5405 = vpack.c.bf16 %v4219, %v4218
      %s5406 = scalar_lea.vmem %s6, 24
      %v5407 = vld [vmem:[%s5406] sm:$0xf]
      %v5409 = vsel %vm435, %v5405, 0
      %v5412 = vsel %vm908, %v5407, 0
      %5414 = vmatpush.bf16.msra.mxu0 0
      %5415 = vmatpush.bf16.msra.mxu0 0
      %5416 = vmatpush.bf16.msra.mxu0 0
      %5417 = vmatpush.bf16.msra.mxu0 0
      %5418 = vmatpush.bf16.msra.mxu0 0
      %5419 = vmatpush.bf16.msra.mxu0 0
      %5420 = vmatpush.bf16.msra.mxu0 0
      %5421 = vmatpush.bf16.msra.mxu0 %v5412
      %5422 = vmatmul.bf16.gmra.mxu0 %v4563
      %v5423 = vpop.f32.mrf.mxu0
      %v5424 = vadd.f32 0.0, %v5423
      %v5425 = vpop.f32.mrf.mxu0
      %v5426 = vadd.f32 0.0, %v5425
      %5427 = vmatmul.bf16.gmra.mxu0 %v4566
      %v5428 = vpop.f32.mrf.mxu0
      %v5429 = vadd.f32 0.0, %v5428
      %v5430 = vpop.f32.mrf.mxu0
      %v5431 = vadd.f32 0.0, %v5430
      %5432 = vmatmul.bf16.gmra.mxu0 %v4569
      %v5433 = vpop.f32.mrf.mxu0
      %v5434 = vadd.f32 0.0, %v5433
      %v5435 = vpop.f32.mrf.mxu0
      %v5436 = vadd.f32 0.0, %v5435
      %5437 = vmatmul.bf16.gmra.mxu0 %v4572
      %v5438 = vpop.f32.mrf.mxu0
      %v5439 = vadd.f32 0.0, %v5438
      %v5440 = vpop.f32.mrf.mxu0
      %v5441 = vadd.f32 0.0, %v5440
      %5442 = vmatmul.bf16.gmra.mxu0 %v4575
      %v5443 = vpop.f32.mrf.mxu0
      %v5444 = vadd.f32 0.0, %v5443
      %v5445 = vpop.f32.mrf.mxu0
      %v5446 = vadd.f32 0.0, %v5445
      %5447 = vmatmul.bf16.gmra.mxu0 %v4578
      %v5448 = vpop.f32.mrf.mxu0
      %v5449 = vadd.f32 0.0, %v5448
      %v5450 = vpop.f32.mrf.mxu0
      %v5451 = vadd.f32 0.0, %v5450
      %5452 = vmatmul.bf16.gmra.mxu0 %v4581
      %v5453 = vpop.f32.mrf.mxu0
      %v5454 = vadd.f32 0.0, %v5453
      %v5455 = vpop.f32.mrf.mxu0
      %v5456 = vadd.f32 0.0, %v5455
      %5457 = vmatmul.bf16.gmra.mxu0 %v4584
      %v5458 = vpop.f32.mrf.mxu0
      %v5459 = vadd.f32 0.0, %v5458
      %v5460 = vpop.f32.mrf.mxu0
      %v5461 = vadd.f32 0.0, %v5460
      %5462 = vmatmul.bf16.gmra.mxu0 %v4587
      %v5463 = vpop.f32.mrf.mxu0
      %v5464 = vadd.f32 0.0, %v5463
      %v5465 = vpop.f32.mrf.mxu0
      %v5466 = vadd.f32 0.0, %v5465
      %5467 = vmatmul.bf16.gmra.mxu0 %v4590
      %v5468 = vpop.f32.mrf.mxu0
      %v5469 = vadd.f32 0.0, %v5468
      %v5470 = vpop.f32.mrf.mxu0
      %v5471 = vadd.f32 0.0, %v5470
      %5472 = vmatmul.bf16.gmra.mxu0 %v4593
      %v5473 = vpop.f32.mrf.mxu0
      %v5474 = vadd.f32 0.0, %v5473
      %v5475 = vpop.f32.mrf.mxu0
      %v5476 = vadd.f32 0.0, %v5475
      %5477 = vmatmul.bf16.gmra.mxu0 %v4596
      %v5478 = vpop.f32.mrf.mxu0
      %v5479 = vadd.f32 0.0, %v5478
      %v5480 = vpop.f32.mrf.mxu0
      %v5481 = vadd.f32 0.0, %v5480
      %5482 = vmatmul.bf16.gmra.mxu0 %v4599
      %v5483 = vpop.f32.mrf.mxu0
      %v5484 = vadd.f32 0.0, %v5483
      %v5485 = vpop.f32.mrf.mxu0
      %v5486 = vadd.f32 0.0, %v5485
      %5487 = vmatmul.bf16.gmra.mxu0 %v4602
      %v5488 = vpop.f32.mrf.mxu0
      %v5489 = vadd.f32 0.0, %v5488
      %v5490 = vpop.f32.mrf.mxu0
      %v5491 = vadd.f32 0.0, %v5490
      %5492 = vmatmul.bf16.gmra.mxu0 %v5002
      %v5493 = vpop.f32.mrf.mxu0
      %v5494 = vadd.f32 0.0, %v5493
      %v5495 = vpop.f32.mrf.mxu0
      %v5496 = vadd.f32 0.0, %v5495
      %5497 = vmatmul.bf16.gmra.mxu0 %v5409
      %v5498 = vpop.f32.mrf.mxu0
      %v5499 = vadd.f32 0.0, %v5498
      %v5500 = vpop.f32.mrf.mxu0
      %v5501 = vadd.f32 0.0, %v5500
      %5502 = vdwg.mxu0
      %v5503 = vadd.f32 %v5373, %v5424
      %v5504 = vadd.f32 %v5374, %v5426
      %v5505 = vadd.f32 %v5375, %v5429
      %v5506 = vadd.f32 %v5376, %v5431
      %v5507 = vadd.f32 %v5377, %v5434
      %v5508 = vadd.f32 %v5378, %v5436
      %v5509 = vadd.f32 %v5379, %v5439
      %v5510 = vadd.f32 %v5380, %v5441
      %v5511 = vadd.f32 %v5381, %v5444
      %v5512 = vadd.f32 %v5382, %v5446
      %v5513 = vadd.f32 %v5383, %v5449
      %v5514 = vadd.f32 %v5384, %v5451
      %v5515 = vadd.f32 %v5385, %v5454
      %v5516 = vadd.f32 %v5386, %v5456
      %v5517 = vadd.f32 %v5387, %v5459
      %v5518 = vadd.f32 %v5388, %v5461
      %v5519 = vadd.f32 %v5389, %v5464
      %v5520 = vadd.f32 %v5390, %v5466
      %v5521 = vadd.f32 %v5391, %v5469
      %v5522 = vadd.f32 %v5392, %v5471
      %v5523 = vadd.f32 %v5393, %v5474
      %v5524 = vadd.f32 %v5394, %v5476
      %v5525 = vadd.f32 %v5395, %v5479
      %v5526 = vadd.f32 %v5396, %v5481
      %v5527 = vadd.f32 %v5397, %v5484
      %v5528 = vadd.f32 %v5398, %v5486
      %v5529 = vadd.f32 %v5399, %v5489
      %v5530 = vadd.f32 %v5400, %v5491
      %v5531 = vadd.f32 %v5401, %v5494
      %v5532 = vadd.f32 %v5402, %v5496
      %v5533 = vadd.f32 %v5403, %v5499
      %v5534 = vadd.f32 %v5404, %v5501
      %v5538 = vrot.slane %v4218, 1
      %v5539 = vrot.slane %v4219, 1
      %v5540 = vsel %vm729, %v5538, %v5539
      %v5541 = vrot.slane %v4220, 1
      %v5542 = vsel %vm729, %v5539, %v5541
      %v5545 = vpack.c.bf16 %v5542, %v5540
      %s5546 = scalar_lea.vmem %s6, 28
      %v5547 = vld [vmem:[%s5546] sm:$0xf]
      %v5549 = vsel %vm435, %v5545, 0
      %v5552 = vsel %vm908, %v5547, 0
      %5554 = vmatpush.bf16.msra.mxu0 0
      %5555 = vmatpush.bf16.msra.mxu0 0
      %5556 = vmatpush.bf16.msra.mxu0 0
      %5557 = vmatpush.bf16.msra.mxu0 0
      %5558 = vmatpush.bf16.msra.mxu0 0
      %5559 = vmatpush.bf16.msra.mxu0 0
      %5560 = vmatpush.bf16.msra.mxu0 0
      %5561 = vmatpush.bf16.msra.mxu0 %v5552
      %5562 = vmatmul.bf16.gmra.mxu0 %v4423
      %v5563 = vpop.f32.mrf.mxu0
      %v5564 = vadd.f32 0.0, %v5563
      %v5565 = vpop.f32.mrf.mxu0
      %v5566 = vadd.f32 0.0, %v5565
      %5567 = vmatmul.bf16.gmra.mxu0 %v4426
      %v5568 = vpop.f32.mrf.mxu0
      %v5569 = vadd.f32 0.0, %v5568
      %v5570 = vpop.f32.mrf.mxu0
      %v5571 = vadd.f32 0.0, %v5570
      %5572 = vmatmul.bf16.gmra.mxu0 %v4429
      %v5573 = vpop.f32.mrf.mxu0
      %v5574 = vadd.f32 0.0, %v5573
      %v5575 = vpop.f32.mrf.mxu0
      %v5576 = vadd.f32 0.0, %v5575
      %5577 = vmatmul.bf16.gmra.mxu0 %v4432
      %v5578 = vpop.f32.mrf.mxu0
      %v5579 = vadd.f32 0.0, %v5578
      %v5580 = vpop.f32.mrf.mxu0
      %v5581 = vadd.f32 0.0, %v5580
      %5582 = vmatmul.bf16.gmra.mxu0 %v4435
      %v5583 = vpop.f32.mrf.mxu0
      %v5584 = vadd.f32 0.0, %v5583
      %v5585 = vpop.f32.mrf.mxu0
      %v5586 = vadd.f32 0.0, %v5585
      %5587 = vmatmul.bf16.gmra.mxu0 %v4438
      %v5588 = vpop.f32.mrf.mxu0
      %v5589 = vadd.f32 0.0, %v5588
      %v5590 = vpop.f32.mrf.mxu0
      %v5591 = vadd.f32 0.0, %v5590
      %5592 = vmatmul.bf16.gmra.mxu0 %v4441
      %v5593 = vpop.f32.mrf.mxu0
      %v5594 = vadd.f32 0.0, %v5593
      %v5595 = vpop.f32.mrf.mxu0
      %v5596 = vadd.f32 0.0, %v5595
      %5597 = vmatmul.bf16.gmra.mxu0 %v4444
      %v5598 = vpop.f32.mrf.mxu0
      %v5599 = vadd.f32 0.0, %v5598
      %v5600 = vpop.f32.mrf.mxu0
      %v5601 = vadd.f32 0.0, %v5600
      %5602 = vmatmul.bf16.gmra.mxu0 %v4447
      %v5603 = vpop.f32.mrf.mxu0
      %v5604 = vadd.f32 0.0, %v5603
      %v5605 = vpop.f32.mrf.mxu0
      %v5606 = vadd.f32 0.0, %v5605
      %5607 = vmatmul.bf16.gmra.mxu0 %v4450
      %v5608 = vpop.f32.mrf.mxu0
      %v5609 = vadd.f32 0.0, %v5608
      %v5610 = vpop.f32.mrf.mxu0
      %v5611 = vadd.f32 0.0, %v5610
      %5612 = vmatmul.bf16.gmra.mxu0 %v4453
      %v5613 = vpop.f32.mrf.mxu0
      %v5614 = vadd.f32 0.0, %v5613
      %v5615 = vpop.f32.mrf.mxu0
      %v5616 = vadd.f32 0.0, %v5615
      %5617 = vmatmul.bf16.gmra.mxu0 %v4456
      %v5618 = vpop.f32.mrf.mxu0
      %v5619 = vadd.f32 0.0, %v5618
      %v5620 = vpop.f32.mrf.mxu0
      %v5621 = vadd.f32 0.0, %v5620
      %5622 = vmatmul.bf16.gmra.mxu0 %v4459
      %v5623 = vpop.f32.mrf.mxu0
      %v5624 = vadd.f32 0.0, %v5623
      %v5625 = vpop.f32.mrf.mxu0
      %v5626 = vadd.f32 0.0, %v5625
      %5627 = vmatmul.bf16.gmra.mxu0 %v4462
      %v5628 = vpop.f32.mrf.mxu0
      %v5629 = vadd.f32 0.0, %v5628
      %v5630 = vpop.f32.mrf.mxu0
      %v5631 = vadd.f32 0.0, %v5630
      %5632 = vmatmul.bf16.gmra.mxu0 %v5142
      %v5633 = vpop.f32.mrf.mxu0
      %v5634 = vadd.f32 0.0, %v5633
      %v5635 = vpop.f32.mrf.mxu0
      %v5636 = vadd.f32 0.0, %v5635
      %5637 = vmatmul.bf16.gmra.mxu0 %v5549
      %v5638 = vpop.f32.mrf.mxu0
      %v5639 = vadd.f32 0.0, %v5638
      %v5640 = vpop.f32.mrf.mxu0
      %v5641 = vadd.f32 0.0, %v5640
      %5642 = vdwg.mxu0
      %v5643 = vadd.f32 %v5503, %v5564
      %v5644 = vadd.f32 %v5504, %v5566
      %v5645 = vadd.f32 %v5505, %v5569
      %v5646 = vadd.f32 %v5506, %v5571
      %v5647 = vadd.f32 %v5507, %v5574
      %v5648 = vadd.f32 %v5508, %v5576
      %v5649 = vadd.f32 %v5509, %v5579
      %v5650 = vadd.f32 %v5510, %v5581
      %v5651 = vadd.f32 %v5511, %v5584
      %v5652 = vadd.f32 %v5512, %v5586
      %v5653 = vadd.f32 %v5513, %v5589
      %v5654 = vadd.f32 %v5514, %v5591
      %v5655 = vadd.f32 %v5515, %v5594
      %v5656 = vadd.f32 %v5516, %v5596
      %v5657 = vadd.f32 %v5517, %v5599
      %v5658 = vadd.f32 %v5518, %v5601
      %v5659 = vadd.f32 %v5519, %v5604
      %v5660 = vadd.f32 %v5520, %v5606
      %v5661 = vadd.f32 %v5521, %v5609
      %v5662 = vadd.f32 %v5522, %v5611
      %v5663 = vadd.f32 %v5523, %v5614
      %v5664 = vadd.f32 %v5524, %v5616
      %v5665 = vadd.f32 %v5525, %v5619
      %v5666 = vadd.f32 %v5526, %v5621
      %v5667 = vadd.f32 %v5527, %v5624
      %v5668 = vadd.f32 %v5528, %v5626
      %v5669 = vadd.f32 %v5529, %v5629
      %v5670 = vadd.f32 %v5530, %v5631
      %v5671 = vadd.f32 %v5531, %v5634
      %v5672 = vadd.f32 %v5532, %v5636
      %v5673 = vadd.f32 %v5533, %v5639
      %v5674 = vadd.f32 %v5534, %v5641
      %v5675 = vrot.slane %v4218, 2
      %v5676 = vrot.slane %v4219, 2
      %v5677 = vsel %vm1141, %v5675, %v5676
      %v5678 = vrot.slane %v4220, 2
      %v5679 = vsel %vm1141, %v5676, %v5678
      %v5682 = vpack.c.bf16 %v5679, %v5677
      %s5683 = scalar_lea.vmem %s6, 32
      %v5684 = vld [vmem:[%s5683] sm:$0xf]
      %v5686 = vsel %vm435, %v5682, 0
      %v5689 = vsel %vm908, %v5684, 0
      %5691 = vmatpush.bf16.msra.mxu0 0
      %5692 = vmatpush.bf16.msra.mxu0 0
      %5693 = vmatpush.bf16.msra.mxu0 0
      %5694 = vmatpush.bf16.msra.mxu0 0
      %5695 = vmatpush.bf16.msra.mxu0 0
      %5696 = vmatpush.bf16.msra.mxu0 0
      %5697 = vmatpush.bf16.msra.mxu0 0
      %5698 = vmatpush.bf16.msra.mxu0 %v5689
      %5699 = vmatmul.bf16.gmra.mxu0 %v4833
      %v5700 = vpop.f32.mrf.mxu0
      %v5701 = vadd.f32 0.0, %v5700
      %v5702 = vpop.f32.mrf.mxu0
      %v5703 = vadd.f32 0.0, %v5702
      %5704 = vmatmul.bf16.gmra.mxu0 %v4836
      %v5705 = vpop.f32.mrf.mxu0
      %v5706 = vadd.f32 0.0, %v5705
      %v5707 = vpop.f32.mrf.mxu0
      %v5708 = vadd.f32 0.0, %v5707
      %5709 = vmatmul.bf16.gmra.mxu0 %v4839
      %v5710 = vpop.f32.mrf.mxu0
      %v5711 = vadd.f32 0.0, %v5710
      %v5712 = vpop.f32.mrf.mxu0
      %v5713 = vadd.f32 0.0, %v5712
      %5714 = vmatmul.bf16.gmra.mxu0 %v4842
      %v5715 = vpop.f32.mrf.mxu0
      %v5716 = vadd.f32 0.0, %v5715
      %v5717 = vpop.f32.mrf.mxu0
      %v5718 = vadd.f32 0.0, %v5717
      %5719 = vmatmul.bf16.gmra.mxu0 %v4845
      %v5720 = vpop.f32.mrf.mxu0
      %v5721 = vadd.f32 0.0, %v5720
      %v5722 = vpop.f32.mrf.mxu0
      %v5723 = vadd.f32 0.0, %v5722
      %5724 = vmatmul.bf16.gmra.mxu0 %v4848
      %v5725 = vpop.f32.mrf.mxu0
      %v5726 = vadd.f32 0.0, %v5725
      %v5727 = vpop.f32.mrf.mxu0
      %v5728 = vadd.f32 0.0, %v5727
      %5729 = vmatmul.bf16.gmra.mxu0 %v4851
      %v5730 = vpop.f32.mrf.mxu0
      %v5731 = vadd.f32 0.0, %v5730
      %v5732 = vpop.f32.mrf.mxu0
      %v5733 = vadd.f32 0.0, %v5732
      %5734 = vmatmul.bf16.gmra.mxu0 %v4854
      %v5735 = vpop.f32.mrf.mxu0
      %v5736 = vadd.f32 0.0, %v5735
      %v5737 = vpop.f32.mrf.mxu0
      %v5738 = vadd.f32 0.0, %v5737
      %5739 = vmatmul.bf16.gmra.mxu0 %v4857
      %v5740 = vpop.f32.mrf.mxu0
      %v5741 = vadd.f32 0.0, %v5740
      %v5742 = vpop.f32.mrf.mxu0
      %v5743 = vadd.f32 0.0, %v5742
      %5744 = vmatmul.bf16.gmra.mxu0 %v4860
      %v5745 = vpop.f32.mrf.mxu0
      %v5746 = vadd.f32 0.0, %v5745
      %v5747 = vpop.f32.mrf.mxu0
      %v5748 = vadd.f32 0.0, %v5747
      %5749 = vmatmul.bf16.gmra.mxu0 %v4863
      %v5750 = vpop.f32.mrf.mxu0
      %v5751 = vadd.f32 0.0, %v5750
      %v5752 = vpop.f32.mrf.mxu0
      %v5753 = vadd.f32 0.0, %v5752
      %5754 = vmatmul.bf16.gmra.mxu0 %v4866
      %v5755 = vpop.f32.mrf.mxu0
      %v5756 = vadd.f32 0.0, %v5755
      %v5757 = vpop.f32.mrf.mxu0
      %v5758 = vadd.f32 0.0, %v5757
      %5759 = vmatmul.bf16.gmra.mxu0 %v4869
      %v5760 = vpop.f32.mrf.mxu0
      %v5761 = vadd.f32 0.0, %v5760
      %v5762 = vpop.f32.mrf.mxu0
      %v5763 = vadd.f32 0.0, %v5762
      %5764 = vmatmul.bf16.gmra.mxu0 %v4872
      %v5765 = vpop.f32.mrf.mxu0
      %v5766 = vadd.f32 0.0, %v5765
      %v5767 = vpop.f32.mrf.mxu0
      %v5768 = vadd.f32 0.0, %v5767
      %5769 = vmatmul.bf16.gmra.mxu0 %v5279
      %v5770 = vpop.f32.mrf.mxu0
      %v5771 = vadd.f32 0.0, %v5770
      %v5772 = vpop.f32.mrf.mxu0
      %v5773 = vadd.f32 0.0, %v5772
      %5774 = vmatmul.bf16.gmra.mxu0 %v5686
      %v5775 = vpop.f32.mrf.mxu0
      %v5776 = vadd.f32 0.0, %v5775
      %v5777 = vpop.f32.mrf.mxu0
      %v5778 = vadd.f32 0.0, %v5777
      %5779 = vdwg.mxu0
      %v5780 = vadd.f32 %v5643, %v5701
      %v5781 = vadd.f32 %v5644, %v5703
      %v5782 = vadd.f32 %v5645, %v5706
      %v5783 = vadd.f32 %v5646, %v5708
      %v5784 = vadd.f32 %v5647, %v5711
      %v5785 = vadd.f32 %v5648, %v5713
      %v5786 = vadd.f32 %v5649, %v5716
      %v5787 = vadd.f32 %v5650, %v5718
      %v5788 = vadd.f32 %v5651, %v5721
      %v5789 = vadd.f32 %v5652, %v5723
      %v5790 = vadd.f32 %v5653, %v5726
      %v5791 = vadd.f32 %v5654, %v5728
      %v5792 = vadd.f32 %v5655, %v5731
      %v5793 = vadd.f32 %v5656, %v5733
      %v5794 = vadd.f32 %v5657, %v5736
      %v5795 = vadd.f32 %v5658, %v5738
      %v5796 = vadd.f32 %v5659, %v5741
      %v5797 = vadd.f32 %v5660, %v5743
      %v5798 = vadd.f32 %v5661, %v5746
      %v5799 = vadd.f32 %v5662, %v5748
      %v5800 = vadd.f32 %v5663, %v5751
      %v5801 = vadd.f32 %v5664, %v5753
      %v5802 = vadd.f32 %v5665, %v5756
      %v5803 = vadd.f32 %v5666, %v5758
      %v5804 = vadd.f32 %v5667, %v5761
      %v5805 = vadd.f32 %v5668, %v5763
      %v5806 = vadd.f32 %v5669, %v5766
      %v5807 = vadd.f32 %v5670, %v5768
      %v5808 = vadd.f32 %v5671, %v5771
      %v5809 = vadd.f32 %v5672, %v5773
      %v5810 = vadd.f32 %v5673, %v5776
      %v5811 = vadd.f32 %v5674, %v5778
      %v5812 = vld [vmem:[%s7] sm:$0x1]
      %v5814 = vperm.slane %v5812, 0
      %v5816 = vadd.f32 %v5780, %v5814
      %v5817 = vadd.f32 %v5781, %v5814
      %v5818 = vadd.f32 %v5782, %v5814
      %v5819 = vadd.f32 %v5783, %v5814
      %v5820 = vadd.f32 %v5784, %v5814
      %v5821 = vadd.f32 %v5785, %v5814
      %v5822 = vadd.f32 %v5786, %v5814
      %v5823 = vadd.f32 %v5787, %v5814
      %v5824 = vadd.f32 %v5788, %v5814
      %v5825 = vadd.f32 %v5789, %v5814
      %v5826 = vadd.f32 %v5790, %v5814
      %v5827 = vadd.f32 %v5791, %v5814
      %v5828 = vadd.f32 %v5792, %v5814
      %v5829 = vadd.f32 %v5793, %v5814
      %v5830 = vadd.f32 %v5794, %v5814
      %v5831 = vadd.f32 %v5795, %v5814
      %v5832 = vadd.f32 %v5796, %v5814
      %v5833 = vadd.f32 %v5797, %v5814
      %v5834 = vadd.f32 %v5798, %v5814
      %v5835 = vadd.f32 %v5799, %v5814
      %v5836 = vadd.f32 %v5800, %v5814
      %v5837 = vadd.f32 %v5801, %v5814
      %v5838 = vadd.f32 %v5802, %v5814
      %v5839 = vadd.f32 %v5803, %v5814
      %v5840 = vadd.f32 %v5804, %v5814
      %v5841 = vadd.f32 %v5805, %v5814
      %v5842 = vadd.f32 %v5806, %v5814
      %v5843 = vadd.f32 %v5807, %v5814
      %v5844 = vadd.f32 %v5808, %v5814
      %v5845 = vadd.f32 %v5809, %v5814
      %v5846 = vadd.f32 %v5810, %v5814
      %v5847 = vadd.f32 %v5811, %v5814
      %v5848 = vmax.f32 %v5816, 0.0
      %v5849 = vmax.f32 %v5817, 0.0
      %v5850 = vmax.f32 %v5818, 0.0
      %v5851 = vmax.f32 %v5819, 0.0
      %v5852 = vmax.f32 %v5820, 0.0
      %v5853 = vmax.f32 %v5821, 0.0
      %v5854 = vmax.f32 %v5822, 0.0
      %v5855 = vmax.f32 %v5823, 0.0
      %v5856 = vmax.f32 %v5824, 0.0
      %v5857 = vmax.f32 %v5825, 0.0
      %v5858 = vmax.f32 %v5826, 0.0
      %v5859 = vmax.f32 %v5827, 0.0
      %v5860 = vmax.f32 %v5828, 0.0
      %v5861 = vmax.f32 %v5829, 0.0
      %v5862 = vmax.f32 %v5830, 0.0
      %v5863 = vmax.f32 %v5831, 0.0
      %v5864 = vmax.f32 %v5832, 0.0
      %v5865 = vmax.f32 %v5833, 0.0
      %v5866 = vmax.f32 %v5834, 0.0
      %v5867 = vmax.f32 %v5835, 0.0
      %v5868 = vmax.f32 %v5836, 0.0
      %v5869 = vmax.f32 %v5837, 0.0
      %v5870 = vmax.f32 %v5838, 0.0
      %v5871 = vmax.f32 %v5839, 0.0
      %v5872 = vmax.f32 %v5840, 0.0
      %v5873 = vmax.f32 %v5841, 0.0
      %v5874 = vmax.f32 %v5842, 0.0
      %v5875 = vmax.f32 %v5843, 0.0
      %v5876 = vmax.f32 %v5844, 0.0
      %v5877 = vmax.f32 %v5845, 0.0
      %v5878 = vmax.f32 %v5846, 0.0
      %v5879 = vmax.f32 %v5847, 0.0
      %5880 = vst.msk [vmem:[%s577 + $0x1] sm:$0xff] %vm435, %v5848
      %5881 = vst.msk [vmem:[%s577 + $0x9] sm:$0xff] %vm435, %v5849
      %5882 = vst.msk [vmem:[%s577 + $0x19] sm:$0xff] %vm435, %v5850
      %5883 = vst.msk [vmem:[%s577 + $0x21] sm:$0xff] %vm435, %v5851
      %5884 = vst.msk [vmem:[%s577 + $0x31] sm:$0xff] %vm435, %v5852
      %5885 = vst.msk [vmem:[%s577 + $0x39] sm:$0xff] %vm435, %v5853
      %5886 = vst.msk [vmem:[%s577 + $0x49] sm:$0xff] %vm435, %v5854
      %5887 = vst.msk [vmem:[%s577 + $0x51] sm:$0xff] %vm435, %v5855
      %5888 = vst.msk [vmem:[%s577 + $0x61] sm:$0xff] %vm435, %v5856
      %5889 = vst.msk [vmem:[%s577 + $0x69] sm:$0xff] %vm435, %v5857
      %5890 = vst.msk [vmem:[%s577 + $0x79] sm:$0xff] %vm435, %v5858
      %5891 = vst.msk [vmem:[%s577 + $0x81] sm:$0xff] %vm435, %v5859
      %5892 = vst.msk [vmem:[%s577 + $0x91] sm:$0xff] %vm435, %v5860
      %5893 = vst.msk [vmem:[%s577 + $0x99] sm:$0xff] %vm435, %v5861
      %5894 = vst.msk [vmem:[%s577 + $0xa9] sm:$0xff] %vm435, %v5862
      %5895 = vst.msk [vmem:[%s577 + $0xb1] sm:$0xff] %vm435, %v5863
      %5896 = vst.msk [vmem:[%s577 + $0xc1] sm:$0xff] %vm435, %v5864
      %5897 = vst.msk [vmem:[%s577 + $0xc9] sm:$0xff] %vm435, %v5865
      %5898 = vst.msk [vmem:[%s577 + $0xd9] sm:$0xff] %vm435, %v5866
      %5899 = vst.msk [vmem:[%s577 + $0xe1] sm:$0xff] %vm435, %v5867
      %5900 = vst.msk [vmem:[%s577 + $0xf1] sm:$0xff] %vm435, %v5868
      %5901 = vst.msk [vmem:[%s577 + $0xf9] sm:$0xff] %vm435, %v5869
      %5902 = vst.msk [vmem:[%s577 + $0x109] sm:$0xff] %vm435, %v5870
      %5903 = vst.msk [vmem:[%s577 + $0x111] sm:$0xff] %vm435, %v5871
      %5904 = vst.msk [vmem:[%s577 + $0x121] sm:$0xff] %vm435, %v5872
      %5905 = vst.msk [vmem:[%s577 + $0x129] sm:$0xff] %vm435, %v5873
      %5906 = vst.msk [vmem:[%s577 + $0x139] sm:$0xff] %vm435, %v5874
      %5907 = vst.msk [vmem:[%s577 + $0x141] sm:$0xff] %vm435, %v5875
      %5908 = vst.msk [vmem:[%s577 + $0x151] sm:$0xff] %vm435, %v5876
      %5909 = vst.msk [vmem:[%s577 + $0x159] sm:$0xff] %vm435, %v5877
      %5910 = vst.msk [vmem:[%s577 + $0x169] sm:$0xff] %vm435, %v5878
      %5911 = vst.msk [vmem:[%s577 + $0x171] sm:$0xff] %vm435, %v5879
      %v5912 = vld [vmem:[#allocation2] sm:$0xff]
      %v5913 = vld [vmem:[#allocation2 + $0x8] sm:$0xff]
      %v5914 = vld [vmem:[#allocation2 + $0x10] sm:$0x3]
      %v5915 = vld [vmem:[#allocation2 + $0x18] sm:$0xff]
      %v5916 = vld [vmem:[#allocation2 + $0x20] sm:$0xff]
      %v5917 = vld [vmem:[#allocation2 + $0x28] sm:$0x3]
      %v5918 = vld [vmem:[#allocation2 + $0x30] sm:$0xff]
      %v5919 = vld [vmem:[#allocation2 + $0x38] sm:$0xff]
      %v5920 = vld [vmem:[#allocation2 + $0x40] sm:$0x3]
      %v5921 = vld [vmem:[#allocation2 + $0x48] sm:$0xff]
      %v5922 = vld [vmem:[#allocation2 + $0x50] sm:$0xff]
      %v5923 = vld [vmem:[#allocation2 + $0x58] sm:$0x3]
      %v5924 = vld [vmem:[#allocation2 + $0x60] sm:$0xff]
      %v5925 = vld [vmem:[#allocation2 + $0x68] sm:$0xff]
      %v5926 = vld [vmem:[#allocation2 + $0x70] sm:$0x3]
      %v5927 = vld [vmem:[#allocation2 + $0x78] sm:$0xff]
      %v5928 = vld [vmem:[#allocation2 + $0x80] sm:$0xff]
      %v5929 = vld [vmem:[#allocation2 + $0x88] sm:$0x3]
      %v5930 = vld [vmem:[#allocation2 + $0x90] sm:$0xff]
      %v5931 = vld [vmem:[#allocation2 + $0x98] sm:$0xff]
      %v5932 = vld [vmem:[#allocation2 + $0xa0] sm:$0x3]
      %v5933 = vld [vmem:[#allocation2 + $0xa8] sm:$0xff]
      %v5934 = vld [vmem:[#allocation2 + $0xb0] sm:$0xff]
      %v5935 = vld [vmem:[#allocation2 + $0xb8] sm:$0x3]
      %v5936 = vld [vmem:[#allocation2 + $0xc0] sm:$0xff]
      %v5937 = vld [vmem:[#allocation2 + $0xc8] sm:$0xff]
      %v5938 = vld [vmem:[#allocation2 + $0xd0] sm:$0x3]
      %v5939 = vld [vmem:[#allocation2 + $0xd8] sm:$0xff]
      %v5940 = vld [vmem:[#allocation2 + $0xe0] sm:$0xff]
      %v5941 = vld [vmem:[#allocation2 + $0xe8] sm:$0x3]
      %v5942 = vld [vmem:[#allocation2 + $0xf0] sm:$0xff]
      %v5943 = vld [vmem:[#allocation2 + $0xf8] sm:$0xff]
      %v5944 = vld [vmem:[#allocation2 + $0x100] sm:$0x3]
      %v5945 = vld [vmem:[#allocation2 + $0x108] sm:$0xff]
      %v5946 = vld [vmem:[#allocation2 + $0x110] sm:$0xff]
      %v5947 = vld [vmem:[#allocation2 + $0x118] sm:$0x3]
      %v5948 = vld [vmem:[#allocation2 + $0x120] sm:$0xff]
      %v5949 = vld [vmem:[#allocation2 + $0x128] sm:$0xff]
      %v5950 = vld [vmem:[#allocation2 + $0x130] sm:$0x3]
      %v5951 = vld [vmem:[#allocation2 + $0x138] sm:$0xff]
      %v5952 = vld [vmem:[#allocation2 + $0x140] sm:$0xff]
      %v5953 = vld [vmem:[#allocation2 + $0x148] sm:$0x3]
      %v5954 = vld [vmem:[#allocation2 + $0x150] sm:$0xff]
      %v5955 = vld [vmem:[#allocation2 + $0x158] sm:$0xff]
      %v5956 = vld [vmem:[#allocation2 + $0x160] sm:$0x3]
      %v5957 = vld [vmem:[#allocation2 + $0x168] sm:$0xff]
      %v5958 = vld [vmem:[#allocation2 + $0x170] sm:$0xff]
      %v5959 = vld [vmem:[#allocation2 + $0x178] sm:$0x3]
      %v5960 = vld [vmem:[#allocation2 + $0x180] sm:$0xff]
      %v5961 = vld [vmem:[#allocation2 + $0x188] sm:$0xff]
      %v5962 = vld [vmem:[#allocation2 + $0x190] sm:$0x3]
      %v5963 = vld [vmem:[#allocation2 + $0x198] sm:$0xff]
      %v5964 = vld [vmem:[#allocation2 + $0x1a0] sm:$0xff]
      %v5965 = vld [vmem:[#allocation2 + $0x1a8] sm:$0x3]
      %v5966 = vpack.c.bf16 %v5913, %v5912
      %v5967 = vpack.c.bf16 %v5916, %v5915
      %v5968 = vpack.c.bf16 %v5919, %v5918
      %v5969 = vpack.c.bf16 %v5922, %v5921
      %v5970 = vpack.c.bf16 %v5925, %v5924
      %v5971 = vpack.c.bf16 %v5928, %v5927
      %v5972 = vpack.c.bf16 %v5931, %v5930
      %v5973 = vpack.c.bf16 %v5934, %v5933
      %v5974 = vpack.c.bf16 %v5937, %v5936
      %v5975 = vpack.c.bf16 %v5940, %v5939
      %v5976 = vpack.c.bf16 %v5943, %v5942
      %v5977 = vpack.c.bf16 %v5946, %v5945
      %v5978 = vpack.c.bf16 %v5949, %v5948
      %v5979 = vpack.c.bf16 %v5952, %v5951
      %v5980 = vpack.c.bf16 %v5955, %v5954
      %v5981 = vpack.c.bf16 %v5958, %v5957
      %v5982 = vld [vmem:[%s8] sm:$0xf]
      %v6031 = vrot.slane %v5912, 1
      %v6032 = vrot.slane %v5913, 1
      %v6033 = vsel %vm729, %v6031, %v6032
      %v6034 = vrot.slane %v5914, 1
      %v6035 = vsel %vm729, %v6032, %v6034
      %v6036 = vrot.slane %v5915, 1
      %v6037 = vrot.slane %v5916, 1
      %v6038 = vsel %vm729, %v6036, %v6037
      %v6039 = vrot.slane %v5917, 1
      %v6040 = vsel %vm729, %v6037, %v6039
      %v6041 = vrot.slane %v5918, 1
      %v6042 = vrot.slane %v5919, 1
      %v6043 = vsel %vm729, %v6041, %v6042
      %v6044 = vrot.slane %v5920, 1
      %v6045 = vsel %vm729, %v6042, %v6044
      %v6046 = vrot.slane %v5921, 1
      %v6047 = vrot.slane %v5922, 1
      %v6048 = vsel %vm729, %v6046, %v6047
      %v6049 = vrot.slane %v5923, 1
      %v6050 = vsel %vm729, %v6047, %v6049
      %v6051 = vrot.slane %v5924, 1
      %v6052 = vrot.slane %v5925, 1
      %v6053 = vsel %vm729, %v6051, %v6052
      %v6054 = vrot.slane %v5926, 1
      %v6055 = vsel %vm729, %v6052, %v6054
      %v6056 = vrot.slane %v5927, 1
      %v6057 = vrot.slane %v5928, 1
      %v6058 = vsel %vm729, %v6056, %v6057
      %v6059 = vrot.slane %v5929, 1
      %v6060 = vsel %vm729, %v6057, %v6059
      %v6061 = vrot.slane %v5930, 1
      %v6062 = vrot.slane %v5931, 1
      %v6063 = vsel %vm729, %v6061, %v6062
      %v6064 = vrot.slane %v5932, 1
      %v6065 = vsel %vm729, %v6062, %v6064
      %v6066 = vrot.slane %v5933, 1
      %v6067 = vrot.slane %v5934, 1
      %v6068 = vsel %vm729, %v6066, %v6067
      %v6069 = vrot.slane %v5935, 1
      %v6070 = vsel %vm729, %v6067, %v6069
      %v6071 = vrot.slane %v5936, 1
      %v6072 = vrot.slane %v5937, 1
      %v6073 = vsel %vm729, %v6071, %v6072
      %v6074 = vrot.slane %v5938, 1
      %v6075 = vsel %vm729, %v6072, %v6074
      %v6076 = vrot.slane %v5939, 1
      %v6077 = vrot.slane %v5940, 1
      %v6078 = vsel %vm729, %v6076, %v6077
      %v6079 = vrot.slane %v5941, 1
      %v6080 = vsel %vm729, %v6077, %v6079
      %v6081 = vrot.slane %v5942, 1
      %v6082 = vrot.slane %v5943, 1
      %v6083 = vsel %vm729, %v6081, %v6082
      %v6084 = vrot.slane %v5944, 1
      %v6085 = vsel %vm729, %v6082, %v6084
      %v6086 = vrot.slane %v5945, 1
      %v6087 = vrot.slane %v5946, 1
      %v6088 = vsel %vm729, %v6086, %v6087
      %v6089 = vrot.slane %v5947, 1
      %v6090 = vsel %vm729, %v6087, %v6089
      %v6091 = vrot.slane %v5948, 1
      %v6092 = vrot.slane %v5949, 1
      %v6093 = vsel %vm729, %v6091, %v6092
      %v6094 = vrot.slane %v5950, 1
      %v6095 = vsel %vm729, %v6092, %v6094
      %v6096 = vrot.slane %v5951, 1
      %v6097 = vrot.slane %v5952, 1
      %v6098 = vsel %vm729, %v6096, %v6097
      %v6099 = vrot.slane %v5953, 1
      %v6100 = vsel %vm729, %v6097, %v6099
      %v6101 = vrot.slane %v5954, 1
      %v6102 = vrot.slane %v5955, 1
      %v6103 = vsel %vm729, %v6101, %v6102
      %v6104 = vrot.slane %v5956, 1
      %v6105 = vsel %vm729, %v6102, %v6104
      %v6106 = vrot.slane %v5957, 1
      %v6107 = vrot.slane %v5958, 1
      %v6108 = vsel %vm729, %v6106, %v6107
      %v6109 = vrot.slane %v5959, 1
      %v6110 = vsel %vm729, %v6107, %v6109
      %v6143 = vpack.c.bf16 %v6035, %v6033
      %v6144 = vpack.c.bf16 %v6040, %v6038
      %v6145 = vpack.c.bf16 %v6045, %v6043
      %v6146 = vpack.c.bf16 %v6050, %v6048
      %v6147 = vpack.c.bf16 %v6055, %v6053
      %v6148 = vpack.c.bf16 %v6060, %v6058
      %v6149 = vpack.c.bf16 %v6065, %v6063
      %v6150 = vpack.c.bf16 %v6070, %v6068
      %v6151 = vpack.c.bf16 %v6075, %v6073
      %v6152 = vpack.c.bf16 %v6080, %v6078
      %v6153 = vpack.c.bf16 %v6085, %v6083
      %v6154 = vpack.c.bf16 %v6090, %v6088
      %v6155 = vpack.c.bf16 %v6095, %v6093
      %v6156 = vpack.c.bf16 %v6100, %v6098
      %v6157 = vpack.c.bf16 %v6105, %v6103
      %v6158 = vpack.c.bf16 %v6110, %v6108
      %s6159 = scalar_lea.vmem %s8, 4
      %v6160 = vld [vmem:[%s6159] sm:$0xf]
      %v6162 = vsel %vm435, %v6143, 0
      %v6165 = vsel %vm435, %v6144, 0
      %v6168 = vsel %vm435, %v6145, 0
      %v6171 = vsel %vm435, %v6146, 0
      %v6174 = vsel %vm435, %v6147, 0
      %v6177 = vsel %vm435, %v6148, 0
      %v6180 = vsel %vm435, %v6149, 0
      %v6183 = vsel %vm435, %v6150, 0
      %v6186 = vsel %vm435, %v6151, 0
      %v6189 = vsel %vm435, %v6152, 0
      %v6192 = vsel %vm435, %v6153, 0
      %v6195 = vsel %vm435, %v6154, 0
      %v6198 = vsel %vm435, %v6155, 0
      %v6201 = vsel %vm435, %v6156, 0
      %v6204 = vsel %vm435, %v6157, 0
      %v6207 = vsel %vm435, %v6158, 0
      %v6210 = vsel %vm908, %v6160, 0
      %6212 = vmatpush.bf16.msra.mxu0 0
      %6213 = vmatpush.bf16.msra.mxu0 0
      %6214 = vmatpush.bf16.msra.mxu0 0
      %6215 = vmatpush.bf16.msra.mxu0 0
      %6216 = vmatpush.bf16.msra.mxu0 0
      %6217 = vmatpush.bf16.msra.mxu0 0
      %6218 = vmatpush.bf16.msra.mxu0 0
      %6219 = vmatpush.bf16.msra.mxu0 %v6210
      %6220 = vmatmul.bf16.gmra.mxu0 %v6162
      %v6221 = vpop.f32.mrf.mxu0
      %v6222 = vadd.f32 0.0, %v6221
      %v6223 = vpop.f32.mrf.mxu0
      %v6224 = vadd.f32 0.0, %v6223
      %6225 = vmatmul.bf16.gmra.mxu0 %v6165
      %v6226 = vpop.f32.mrf.mxu0
      %v6227 = vadd.f32 0.0, %v6226
      %v6228 = vpop.f32.mrf.mxu0
      %v6229 = vadd.f32 0.0, %v6228
      %6230 = vmatmul.bf16.gmra.mxu0 %v6168
      %v6231 = vpop.f32.mrf.mxu0
      %v6232 = vadd.f32 0.0, %v6231
      %v6233 = vpop.f32.mrf.mxu0
      %v6234 = vadd.f32 0.0, %v6233
      %6235 = vmatmul.bf16.gmra.mxu0 %v6171
      %v6236 = vpop.f32.mrf.mxu0
      %v6237 = vadd.f32 0.0, %v6236
      %v6238 = vpop.f32.mrf.mxu0
      %v6239 = vadd.f32 0.0, %v6238
      %6240 = vmatmul.bf16.gmra.mxu0 %v6174
      %v6241 = vpop.f32.mrf.mxu0
      %v6242 = vadd.f32 0.0, %v6241
      %v6243 = vpop.f32.mrf.mxu0
      %v6244 = vadd.f32 0.0, %v6243
      %6245 = vmatmul.bf16.gmra.mxu0 %v6177
      %v6246 = vpop.f32.mrf.mxu0
      %v6247 = vadd.f32 0.0, %v6246
      %v6248 = vpop.f32.mrf.mxu0
      %v6249 = vadd.f32 0.0, %v6248
      %6250 = vmatmul.bf16.gmra.mxu0 %v6180
      %v6251 = vpop.f32.mrf.mxu0
      %v6252 = vadd.f32 0.0, %v6251
      %v6253 = vpop.f32.mrf.mxu0
      %v6254 = vadd.f32 0.0, %v6253
      %6255 = vmatmul.bf16.gmra.mxu0 %v6183
      %v6256 = vpop.f32.mrf.mxu0
      %v6257 = vadd.f32 0.0, %v6256
      %v6258 = vpop.f32.mrf.mxu0
      %v6259 = vadd.f32 0.0, %v6258
      %6260 = vmatmul.bf16.gmra.mxu0 %v6186
      %v6261 = vpop.f32.mrf.mxu0
      %v6262 = vadd.f32 0.0, %v6261
      %v6263 = vpop.f32.mrf.mxu0
      %v6264 = vadd.f32 0.0, %v6263
      %6265 = vmatmul.bf16.gmra.mxu0 %v6189
      %v6266 = vpop.f32.mrf.mxu0
      %v6267 = vadd.f32 0.0, %v6266
      %v6268 = vpop.f32.mrf.mxu0
      %v6269 = vadd.f32 0.0, %v6268
      %6270 = vmatmul.bf16.gmra.mxu0 %v6192
      %v6271 = vpop.f32.mrf.mxu0
      %v6272 = vadd.f32 0.0, %v6271
      %v6273 = vpop.f32.mrf.mxu0
      %v6274 = vadd.f32 0.0, %v6273
      %6275 = vmatmul.bf16.gmra.mxu0 %v6195
      %v6276 = vpop.f32.mrf.mxu0
      %v6277 = vadd.f32 0.0, %v6276
      %v6278 = vpop.f32.mrf.mxu0
      %v6279 = vadd.f32 0.0, %v6278
      %6280 = vmatmul.bf16.gmra.mxu0 %v6198
      %v6281 = vpop.f32.mrf.mxu0
      %v6282 = vadd.f32 0.0, %v6281
      %v6283 = vpop.f32.mrf.mxu0
      %v6284 = vadd.f32 0.0, %v6283
      %6285 = vmatmul.bf16.gmra.mxu0 %v6201
      %v6286 = vpop.f32.mrf.mxu0
      %v6287 = vadd.f32 0.0, %v6286
      %v6288 = vpop.f32.mrf.mxu0
      %v6289 = vadd.f32 0.0, %v6288
      %6290 = vmatmul.bf16.gmra.mxu0 %v6204
      %v6291 = vpop.f32.mrf.mxu0
      %v6292 = vadd.f32 0.0, %v6291
      %v6293 = vpop.f32.mrf.mxu0
      %v6294 = vadd.f32 0.0, %v6293
      %6295 = vmatmul.bf16.gmra.mxu0 %v6207
      %v6296 = vpop.f32.mrf.mxu0
      %v6297 = vadd.f32 0.0, %v6296
      %v6298 = vpop.f32.mrf.mxu0
      %v6299 = vadd.f32 0.0, %v6298
      %6300 = vdwg.mxu0
      %v6302 = vsel %vm435, %v5966, 0
      %v6305 = vsel %vm435, %v5967, 0
      %v6308 = vsel %vm435, %v5968, 0
      %v6311 = vsel %vm435, %v5969, 0
      %v6314 = vsel %vm435, %v5970, 0
      %v6317 = vsel %vm435, %v5971, 0
      %v6320 = vsel %vm435, %v5972, 0
      %v6323 = vsel %vm435, %v5973, 0
      %v6326 = vsel %vm435, %v5974, 0
      %v6329 = vsel %vm435, %v5975, 0
      %v6332 = vsel %vm435, %v5976, 0
      %v6335 = vsel %vm435, %v5977, 0
      %v6338 = vsel %vm435, %v5978, 0
      %v6341 = vsel %vm435, %v5979, 0
      %v6344 = vsel %vm435, %v5980, 0
      %v6347 = vsel %vm435, %v5981, 0
      %v6350 = vsel %vm908, %v5982, 0
      %6352 = vmatpush.bf16.msra.mxu0 0
      %6353 = vmatpush.bf16.msra.mxu0 0
      %6354 = vmatpush.bf16.msra.mxu0 0
      %6355 = vmatpush.bf16.msra.mxu0 0
      %6356 = vmatpush.bf16.msra.mxu0 0
      %6357 = vmatpush.bf16.msra.mxu0 0
      %6358 = vmatpush.bf16.msra.mxu0 0
      %6359 = vmatpush.bf16.msra.mxu0 %v6350
      %6360 = vmatmul.bf16.gmra.mxu0 %v6302
      %v6361 = vpop.f32.mrf.mxu0
      %v6362 = vadd.f32 %v6222, %v6361
      %v6363 = vpop.f32.mrf.mxu0
      %v6364 = vadd.f32 %v6224, %v6363
      %6365 = vmatmul.bf16.gmra.mxu0 %v6305
      %v6366 = vpop.f32.mrf.mxu0
      %v6367 = vadd.f32 %v6227, %v6366
      %v6368 = vpop.f32.mrf.mxu0
      %v6369 = vadd.f32 %v6229, %v6368
      %6370 = vmatmul.bf16.gmra.mxu0 %v6308
      %v6371 = vpop.f32.mrf.mxu0
      %v6372 = vadd.f32 %v6232, %v6371
      %v6373 = vpop.f32.mrf.mxu0
      %v6374 = vadd.f32 %v6234, %v6373
      %6375 = vmatmul.bf16.gmra.mxu0 %v6311
      %v6376 = vpop.f32.mrf.mxu0
      %v6377 = vadd.f32 %v6237, %v6376
      %v6378 = vpop.f32.mrf.mxu0
      %v6379 = vadd.f32 %v6239, %v6378
      %6380 = vmatmul.bf16.gmra.mxu0 %v6314
      %v6381 = vpop.f32.mrf.mxu0
      %v6382 = vadd.f32 %v6242, %v6381
      %v6383 = vpop.f32.mrf.mxu0
      %v6384 = vadd.f32 %v6244, %v6383
      %6385 = vmatmul.bf16.gmra.mxu0 %v6317
      %v6386 = vpop.f32.mrf.mxu0
      %v6387 = vadd.f32 %v6247, %v6386
      %v6388 = vpop.f32.mrf.mxu0
      %v6389 = vadd.f32 %v6249, %v6388
      %6390 = vmatmul.bf16.gmra.mxu0 %v6320
      %v6391 = vpop.f32.mrf.mxu0
      %v6392 = vadd.f32 %v6252, %v6391
      %v6393 = vpop.f32.mrf.mxu0
      %v6394 = vadd.f32 %v6254, %v6393
      %6395 = vmatmul.bf16.gmra.mxu0 %v6323
      %v6396 = vpop.f32.mrf.mxu0
      %v6397 = vadd.f32 %v6257, %v6396
      %v6398 = vpop.f32.mrf.mxu0
      %v6399 = vadd.f32 %v6259, %v6398
      %6400 = vmatmul.bf16.gmra.mxu0 %v6326
      %v6401 = vpop.f32.mrf.mxu0
      %v6402 = vadd.f32 %v6262, %v6401
      %v6403 = vpop.f32.mrf.mxu0
      %v6404 = vadd.f32 %v6264, %v6403
      %6405 = vmatmul.bf16.gmra.mxu0 %v6329
      %v6406 = vpop.f32.mrf.mxu0
      %v6407 = vadd.f32 %v6267, %v6406
      %v6408 = vpop.f32.mrf.mxu0
      %v6409 = vadd.f32 %v6269, %v6408
      %6410 = vmatmul.bf16.gmra.mxu0 %v6332
      %v6411 = vpop.f32.mrf.mxu0
      %v6412 = vadd.f32 %v6272, %v6411
      %v6413 = vpop.f32.mrf.mxu0
      %v6414 = vadd.f32 %v6274, %v6413
      %6415 = vmatmul.bf16.gmra.mxu0 %v6335
      %v6416 = vpop.f32.mrf.mxu0
      %v6417 = vadd.f32 %v6277, %v6416
      %v6418 = vpop.f32.mrf.mxu0
      %v6419 = vadd.f32 %v6279, %v6418
      %6420 = vmatmul.bf16.gmra.mxu0 %v6338
      %v6421 = vpop.f32.mrf.mxu0
      %v6422 = vadd.f32 %v6282, %v6421
      %v6423 = vpop.f32.mrf.mxu0
      %v6424 = vadd.f32 %v6284, %v6423
      %6425 = vmatmul.bf16.gmra.mxu0 %v6341
      %v6426 = vpop.f32.mrf.mxu0
      %v6427 = vadd.f32 %v6287, %v6426
      %v6428 = vpop.f32.mrf.mxu0
      %v6429 = vadd.f32 %v6289, %v6428
      %6430 = vmatmul.bf16.gmra.mxu0 %v6344
      %v6431 = vpop.f32.mrf.mxu0
      %v6432 = vadd.f32 %v6292, %v6431
      %v6433 = vpop.f32.mrf.mxu0
      %v6434 = vadd.f32 %v6294, %v6433
      %6435 = vmatmul.bf16.gmra.mxu0 %v6347
      %v6436 = vpop.f32.mrf.mxu0
      %v6437 = vadd.f32 %v6297, %v6436
      %v6438 = vpop.f32.mrf.mxu0
      %v6439 = vadd.f32 %v6299, %v6438
      %6440 = vdwg.mxu0
      %v6441 = vrot.slane %v5912, 2
      %v6442 = vrot.slane %v5913, 2
      %v6443 = vsel %vm1141, %v6441, %v6442
      %v6444 = vrot.slane %v5914, 2
      %v6445 = vsel %vm1141, %v6442, %v6444
      %v6446 = vrot.slane %v5915, 2
      %v6447 = vrot.slane %v5916, 2
      %v6448 = vsel %vm1141, %v6446, %v6447
      %v6449 = vrot.slane %v5917, 2
      %v6450 = vsel %vm1141, %v6447, %v6449
      %v6451 = vrot.slane %v5918, 2
      %v6452 = vrot.slane %v5919, 2
      %v6453 = vsel %vm1141, %v6451, %v6452
      %v6454 = vrot.slane %v5920, 2
      %v6455 = vsel %vm1141, %v6452, %v6454
      %v6456 = vrot.slane %v5921, 2
      %v6457 = vrot.slane %v5922, 2
      %v6458 = vsel %vm1141, %v6456, %v6457
      %v6459 = vrot.slane %v5923, 2
      %v6460 = vsel %vm1141, %v6457, %v6459
      %v6461 = vrot.slane %v5924, 2
      %v6462 = vrot.slane %v5925, 2
      %v6463 = vsel %vm1141, %v6461, %v6462
      %v6464 = vrot.slane %v5926, 2
      %v6465 = vsel %vm1141, %v6462, %v6464
      %v6466 = vrot.slane %v5927, 2
      %v6467 = vrot.slane %v5928, 2
      %v6468 = vsel %vm1141, %v6466, %v6467
      %v6469 = vrot.slane %v5929, 2
      %v6470 = vsel %vm1141, %v6467, %v6469
      %v6471 = vrot.slane %v5930, 2
      %v6472 = vrot.slane %v5931, 2
      %v6473 = vsel %vm1141, %v6471, %v6472
      %v6474 = vrot.slane %v5932, 2
      %v6475 = vsel %vm1141, %v6472, %v6474
      %v6476 = vrot.slane %v5933, 2
      %v6477 = vrot.slane %v5934, 2
      %v6478 = vsel %vm1141, %v6476, %v6477
      %v6479 = vrot.slane %v5935, 2
      %v6480 = vsel %vm1141, %v6477, %v6479
      %v6481 = vrot.slane %v5936, 2
      %v6482 = vrot.slane %v5937, 2
      %v6483 = vsel %vm1141, %v6481, %v6482
      %v6484 = vrot.slane %v5938, 2
      %v6485 = vsel %vm1141, %v6482, %v6484
      %v6486 = vrot.slane %v5939, 2
      %v6487 = vrot.slane %v5940, 2
      %v6488 = vsel %vm1141, %v6486, %v6487
      %v6489 = vrot.slane %v5941, 2
      %v6490 = vsel %vm1141, %v6487, %v6489
      %v6491 = vrot.slane %v5942, 2
      %v6492 = vrot.slane %v5943, 2
      %v6493 = vsel %vm1141, %v6491, %v6492
      %v6494 = vrot.slane %v5944, 2
      %v6495 = vsel %vm1141, %v6492, %v6494
      %v6496 = vrot.slane %v5945, 2
      %v6497 = vrot.slane %v5946, 2
      %v6498 = vsel %vm1141, %v6496, %v6497
      %v6499 = vrot.slane %v5947, 2
      %v6500 = vsel %vm1141, %v6497, %v6499
      %v6501 = vrot.slane %v5948, 2
      %v6502 = vrot.slane %v5949, 2
      %v6503 = vsel %vm1141, %v6501, %v6502
      %v6504 = vrot.slane %v5950, 2
      %v6505 = vsel %vm1141, %v6502, %v6504
      %v6506 = vrot.slane %v5951, 2
      %v6507 = vrot.slane %v5952, 2
      %v6508 = vsel %vm1141, %v6506, %v6507
      %v6509 = vrot.slane %v5953, 2
      %v6510 = vsel %vm1141, %v6507, %v6509
      %v6511 = vrot.slane %v5954, 2
      %v6512 = vrot.slane %v5955, 2
      %v6513 = vsel %vm1141, %v6511, %v6512
      %v6514 = vrot.slane %v5956, 2
      %v6515 = vsel %vm1141, %v6512, %v6514
      %v6516 = vrot.slane %v5957, 2
      %v6517 = vrot.slane %v5958, 2
      %v6518 = vsel %vm1141, %v6516, %v6517
      %v6519 = vrot.slane %v5959, 2
      %v6520 = vsel %vm1141, %v6517, %v6519
      %v6553 = vpack.c.bf16 %v6445, %v6443
      %v6554 = vpack.c.bf16 %v6450, %v6448
      %v6555 = vpack.c.bf16 %v6455, %v6453
      %v6556 = vpack.c.bf16 %v6460, %v6458
      %v6557 = vpack.c.bf16 %v6465, %v6463
      %v6558 = vpack.c.bf16 %v6470, %v6468
      %v6559 = vpack.c.bf16 %v6475, %v6473
      %v6560 = vpack.c.bf16 %v6480, %v6478
      %v6561 = vpack.c.bf16 %v6485, %v6483
      %v6562 = vpack.c.bf16 %v6490, %v6488
      %v6563 = vpack.c.bf16 %v6495, %v6493
      %v6564 = vpack.c.bf16 %v6500, %v6498
      %v6565 = vpack.c.bf16 %v6505, %v6503
      %v6566 = vpack.c.bf16 %v6510, %v6508
      %v6567 = vpack.c.bf16 %v6515, %v6513
      %v6568 = vpack.c.bf16 %v6520, %v6518
      %s6569 = scalar_lea.vmem %s8, 8
      %v6570 = vld [vmem:[%s6569] sm:$0xf]
      %v6572 = vsel %vm435, %v6553, 0
      %v6575 = vsel %vm435, %v6554, 0
      %v6578 = vsel %vm435, %v6555, 0
      %v6581 = vsel %vm435, %v6556, 0
      %v6584 = vsel %vm435, %v6557, 0
      %v6587 = vsel %vm435, %v6558, 0
      %v6590 = vsel %vm435, %v6559, 0
      %v6593 = vsel %vm435, %v6560, 0
      %v6596 = vsel %vm435, %v6561, 0
      %v6599 = vsel %vm435, %v6562, 0
      %v6602 = vsel %vm435, %v6563, 0
      %v6605 = vsel %vm435, %v6564, 0
      %v6608 = vsel %vm435, %v6565, 0
      %v6611 = vsel %vm435, %v6566, 0
      %v6614 = vsel %vm435, %v6567, 0
      %v6617 = vsel %vm435, %v6568, 0
      %v6620 = vsel %vm908, %v6570, 0
      %6622 = vmatpush.bf16.msra.mxu0 0
      %6623 = vmatpush.bf16.msra.mxu0 0
      %6624 = vmatpush.bf16.msra.mxu0 0
      %6625 = vmatpush.bf16.msra.mxu0 0
      %6626 = vmatpush.bf16.msra.mxu0 0
      %6627 = vmatpush.bf16.msra.mxu0 0
      %6628 = vmatpush.bf16.msra.mxu0 0
      %6629 = vmatpush.bf16.msra.mxu0 %v6620
      %6630 = vmatmul.bf16.gmra.mxu0 %v6572
      %v6631 = vpop.f32.mrf.mxu0
      %v6632 = vadd.f32 0.0, %v6631
      %v6633 = vpop.f32.mrf.mxu0
      %v6634 = vadd.f32 0.0, %v6633
      %6635 = vmatmul.bf16.gmra.mxu0 %v6575
      %v6636 = vpop.f32.mrf.mxu0
      %v6637 = vadd.f32 0.0, %v6636
      %v6638 = vpop.f32.mrf.mxu0
      %v6639 = vadd.f32 0.0, %v6638
      %6640 = vmatmul.bf16.gmra.mxu0 %v6578
      %v6641 = vpop.f32.mrf.mxu0
      %v6642 = vadd.f32 0.0, %v6641
      %v6643 = vpop.f32.mrf.mxu0
      %v6644 = vadd.f32 0.0, %v6643
      %6645 = vmatmul.bf16.gmra.mxu0 %v6581
      %v6646 = vpop.f32.mrf.mxu0
      %v6647 = vadd.f32 0.0, %v6646
      %v6648 = vpop.f32.mrf.mxu0
      %v6649 = vadd.f32 0.0, %v6648
      %6650 = vmatmul.bf16.gmra.mxu0 %v6584
      %v6651 = vpop.f32.mrf.mxu0
      %v6652 = vadd.f32 0.0, %v6651
      %v6653 = vpop.f32.mrf.mxu0
      %v6654 = vadd.f32 0.0, %v6653
      %6655 = vmatmul.bf16.gmra.mxu0 %v6587
      %v6656 = vpop.f32.mrf.mxu0
      %v6657 = vadd.f32 0.0, %v6656
      %v6658 = vpop.f32.mrf.mxu0
      %v6659 = vadd.f32 0.0, %v6658
      %6660 = vmatmul.bf16.gmra.mxu0 %v6590
      %v6661 = vpop.f32.mrf.mxu0
      %v6662 = vadd.f32 0.0, %v6661
      %v6663 = vpop.f32.mrf.mxu0
      %v6664 = vadd.f32 0.0, %v6663
      %6665 = vmatmul.bf16.gmra.mxu0 %v6593
      %v6666 = vpop.f32.mrf.mxu0
      %v6667 = vadd.f32 0.0, %v6666
      %v6668 = vpop.f32.mrf.mxu0
      %v6669 = vadd.f32 0.0, %v6668
      %6670 = vmatmul.bf16.gmra.mxu0 %v6596
      %v6671 = vpop.f32.mrf.mxu0
      %v6672 = vadd.f32 0.0, %v6671
      %v6673 = vpop.f32.mrf.mxu0
      %v6674 = vadd.f32 0.0, %v6673
      %6675 = vmatmul.bf16.gmra.mxu0 %v6599
      %v6676 = vpop.f32.mrf.mxu0
      %v6677 = vadd.f32 0.0, %v6676
      %v6678 = vpop.f32.mrf.mxu0
      %v6679 = vadd.f32 0.0, %v6678
      %6680 = vmatmul.bf16.gmra.mxu0 %v6602
      %v6681 = vpop.f32.mrf.mxu0
      %v6682 = vadd.f32 0.0, %v6681
      %v6683 = vpop.f32.mrf.mxu0
      %v6684 = vadd.f32 0.0, %v6683
      %6685 = vmatmul.bf16.gmra.mxu0 %v6605
      %v6686 = vpop.f32.mrf.mxu0
      %v6687 = vadd.f32 0.0, %v6686
      %v6688 = vpop.f32.mrf.mxu0
      %v6689 = vadd.f32 0.0, %v6688
      %6690 = vmatmul.bf16.gmra.mxu0 %v6608
      %v6691 = vpop.f32.mrf.mxu0
      %v6692 = vadd.f32 0.0, %v6691
      %v6693 = vpop.f32.mrf.mxu0
      %v6694 = vadd.f32 0.0, %v6693
      %6695 = vmatmul.bf16.gmra.mxu0 %v6611
      %v6696 = vpop.f32.mrf.mxu0
      %v6697 = vadd.f32 0.0, %v6696
      %v6698 = vpop.f32.mrf.mxu0
      %v6699 = vadd.f32 0.0, %v6698
      %6700 = vmatmul.bf16.gmra.mxu0 %v6614
      %v6701 = vpop.f32.mrf.mxu0
      %v6702 = vadd.f32 0.0, %v6701
      %v6703 = vpop.f32.mrf.mxu0
      %v6704 = vadd.f32 0.0, %v6703
      %6705 = vmatmul.bf16.gmra.mxu0 %v6617
      %v6706 = vpop.f32.mrf.mxu0
      %v6707 = vadd.f32 0.0, %v6706
      %v6708 = vpop.f32.mrf.mxu0
      %v6709 = vadd.f32 0.0, %v6708
      %6710 = vdwg.mxu0
      %v6711 = vadd.f32 %v6362, %v6632
      %v6712 = vadd.f32 %v6364, %v6634
      %v6713 = vadd.f32 %v6367, %v6637
      %v6714 = vadd.f32 %v6369, %v6639
      %v6715 = vadd.f32 %v6372, %v6642
      %v6716 = vadd.f32 %v6374, %v6644
      %v6717 = vadd.f32 %v6377, %v6647
      %v6718 = vadd.f32 %v6379, %v6649
      %v6719 = vadd.f32 %v6382, %v6652
      %v6720 = vadd.f32 %v6384, %v6654
      %v6721 = vadd.f32 %v6387, %v6657
      %v6722 = vadd.f32 %v6389, %v6659
      %v6723 = vadd.f32 %v6392, %v6662
      %v6724 = vadd.f32 %v6394, %v6664
      %v6725 = vadd.f32 %v6397, %v6667
      %v6726 = vadd.f32 %v6399, %v6669
      %v6727 = vadd.f32 %v6402, %v6672
      %v6728 = vadd.f32 %v6404, %v6674
      %v6729 = vadd.f32 %v6407, %v6677
      %v6730 = vadd.f32 %v6409, %v6679
      %v6731 = vadd.f32 %v6412, %v6682
      %v6732 = vadd.f32 %v6414, %v6684
      %v6733 = vadd.f32 %v6417, %v6687
      %v6734 = vadd.f32 %v6419, %v6689
      %v6735 = vadd.f32 %v6422, %v6692
      %v6736 = vadd.f32 %v6424, %v6694
      %v6737 = vadd.f32 %v6427, %v6697
      %v6738 = vadd.f32 %v6429, %v6699
      %v6739 = vadd.f32 %v6432, %v6702
      %v6740 = vadd.f32 %v6434, %v6704
      %v6741 = vadd.f32 %v6437, %v6707
      %v6742 = vadd.f32 %v6439, %v6709
      %v6743 = vpack.c.bf16 %v5961, %v5960
      %s6744 = scalar_lea.vmem %s8, 12
      %v6745 = vld [vmem:[%s6744] sm:$0xf]
      %v6747 = vsel %vm435, %v6743, 0
      %v6750 = vsel %vm908, %v6745, 0
      %6752 = vmatpush.bf16.msra.mxu0 0
      %6753 = vmatpush.bf16.msra.mxu0 0
      %6754 = vmatpush.bf16.msra.mxu0 0
      %6755 = vmatpush.bf16.msra.mxu0 0
      %6756 = vmatpush.bf16.msra.mxu0 0
      %6757 = vmatpush.bf16.msra.mxu0 0
      %6758 = vmatpush.bf16.msra.mxu0 0
      %6759 = vmatpush.bf16.msra.mxu0 %v6750
      %6760 = vmatmul.bf16.gmra.mxu0 %v6305
      %v6761 = vpop.f32.mrf.mxu0
      %v6762 = vadd.f32 0.0, %v6761
      %v6763 = vpop.f32.mrf.mxu0
      %v6764 = vadd.f32 0.0, %v6763
      %6765 = vmatmul.bf16.gmra.mxu0 %v6308
      %v6766 = vpop.f32.mrf.mxu0
      %v6767 = vadd.f32 0.0, %v6766
      %v6768 = vpop.f32.mrf.mxu0
      %v6769 = vadd.f32 0.0, %v6768
      %6770 = vmatmul.bf16.gmra.mxu0 %v6311
      %v6771 = vpop.f32.mrf.mxu0
      %v6772 = vadd.f32 0.0, %v6771
      %v6773 = vpop.f32.mrf.mxu0
      %v6774 = vadd.f32 0.0, %v6773
      %6775 = vmatmul.bf16.gmra.mxu0 %v6314
      %v6776 = vpop.f32.mrf.mxu0
      %v6777 = vadd.f32 0.0, %v6776
      %v6778 = vpop.f32.mrf.mxu0
      %v6779 = vadd.f32 0.0, %v6778
      %6780 = vmatmul.bf16.gmra.mxu0 %v6317
      %v6781 = vpop.f32.mrf.mxu0
      %v6782 = vadd.f32 0.0, %v6781
      %v6783 = vpop.f32.mrf.mxu0
      %v6784 = vadd.f32 0.0, %v6783
      %6785 = vmatmul.bf16.gmra.mxu0 %v6320
      %v6786 = vpop.f32.mrf.mxu0
      %v6787 = vadd.f32 0.0, %v6786
      %v6788 = vpop.f32.mrf.mxu0
      %v6789 = vadd.f32 0.0, %v6788
      %6790 = vmatmul.bf16.gmra.mxu0 %v6323
      %v6791 = vpop.f32.mrf.mxu0
      %v6792 = vadd.f32 0.0, %v6791
      %v6793 = vpop.f32.mrf.mxu0
      %v6794 = vadd.f32 0.0, %v6793
      %6795 = vmatmul.bf16.gmra.mxu0 %v6326
      %v6796 = vpop.f32.mrf.mxu0
      %v6797 = vadd.f32 0.0, %v6796
      %v6798 = vpop.f32.mrf.mxu0
      %v6799 = vadd.f32 0.0, %v6798
      %6800 = vmatmul.bf16.gmra.mxu0 %v6329
      %v6801 = vpop.f32.mrf.mxu0
      %v6802 = vadd.f32 0.0, %v6801
      %v6803 = vpop.f32.mrf.mxu0
      %v6804 = vadd.f32 0.0, %v6803
      %6805 = vmatmul.bf16.gmra.mxu0 %v6332
      %v6806 = vpop.f32.mrf.mxu0
      %v6807 = vadd.f32 0.0, %v6806
      %v6808 = vpop.f32.mrf.mxu0
      %v6809 = vadd.f32 0.0, %v6808
      %6810 = vmatmul.bf16.gmra.mxu0 %v6335
      %v6811 = vpop.f32.mrf.mxu0
      %v6812 = vadd.f32 0.0, %v6811
      %v6813 = vpop.f32.mrf.mxu0
      %v6814 = vadd.f32 0.0, %v6813
      %6815 = vmatmul.bf16.gmra.mxu0 %v6338
      %v6816 = vpop.f32.mrf.mxu0
      %v6817 = vadd.f32 0.0, %v6816
      %v6818 = vpop.f32.mrf.mxu0
      %v6819 = vadd.f32 0.0, %v6818
      %6820 = vmatmul.bf16.gmra.mxu0 %v6341
      %v6821 = vpop.f32.mrf.mxu0
      %v6822 = vadd.f32 0.0, %v6821
      %v6823 = vpop.f32.mrf.mxu0
      %v6824 = vadd.f32 0.0, %v6823
      %6825 = vmatmul.bf16.gmra.mxu0 %v6344
      %v6826 = vpop.f32.mrf.mxu0
      %v6827 = vadd.f32 0.0, %v6826
      %v6828 = vpop.f32.mrf.mxu0
      %v6829 = vadd.f32 0.0, %v6828
      %6830 = vmatmul.bf16.gmra.mxu0 %v6347
      %v6831 = vpop.f32.mrf.mxu0
      %v6832 = vadd.f32 0.0, %v6831
      %v6833 = vpop.f32.mrf.mxu0
      %v6834 = vadd.f32 0.0, %v6833
      %6835 = vmatmul.bf16.gmra.mxu0 %v6747
      %v6836 = vpop.f32.mrf.mxu0
      %v6837 = vadd.f32 0.0, %v6836
      %v6838 = vpop.f32.mrf.mxu0
      %v6839 = vadd.f32 0.0, %v6838
      %6840 = vdwg.mxu0
      %v6841 = vadd.f32 %v6711, %v6762
      %v6842 = vadd.f32 %v6712, %v6764
      %v6843 = vadd.f32 %v6713, %v6767
      %v6844 = vadd.f32 %v6714, %v6769
      %v6845 = vadd.f32 %v6715, %v6772
      %v6846 = vadd.f32 %v6716, %v6774
      %v6847 = vadd.f32 %v6717, %v6777
      %v6848 = vadd.f32 %v6718, %v6779
      %v6849 = vadd.f32 %v6719, %v6782
      %v6850 = vadd.f32 %v6720, %v6784
      %v6851 = vadd.f32 %v6721, %v6787
      %v6852 = vadd.f32 %v6722, %v6789
      %v6853 = vadd.f32 %v6723, %v6792
      %v6854 = vadd.f32 %v6724, %v6794
      %v6855 = vadd.f32 %v6725, %v6797
      %v6856 = vadd.f32 %v6726, %v6799
      %v6857 = vadd.f32 %v6727, %v6802
      %v6858 = vadd.f32 %v6728, %v6804
      %v6859 = vadd.f32 %v6729, %v6807
      %v6860 = vadd.f32 %v6730, %v6809
      %v6861 = vadd.f32 %v6731, %v6812
      %v6862 = vadd.f32 %v6732, %v6814
      %v6863 = vadd.f32 %v6733, %v6817
      %v6864 = vadd.f32 %v6734, %v6819
      %v6865 = vadd.f32 %v6735, %v6822
      %v6866 = vadd.f32 %v6736, %v6824
      %v6867 = vadd.f32 %v6737, %v6827
      %v6868 = vadd.f32 %v6738, %v6829
      %v6869 = vadd.f32 %v6739, %v6832
      %v6870 = vadd.f32 %v6740, %v6834
      %v6871 = vadd.f32 %v6741, %v6837
      %v6872 = vadd.f32 %v6742, %v6839
      %v6876 = vrot.slane %v5960, 1
      %v6877 = vrot.slane %v5961, 1
      %v6878 = vsel %vm729, %v6876, %v6877
      %v6879 = vrot.slane %v5962, 1
      %v6880 = vsel %vm729, %v6877, %v6879
      %v6883 = vpack.c.bf16 %v6880, %v6878
      %s6884 = scalar_lea.vmem %s8, 16
      %v6885 = vld [vmem:[%s6884] sm:$0xf]
      %v6887 = vsel %vm435, %v6883, 0
      %v6890 = vsel %vm908, %v6885, 0
      %6892 = vmatpush.bf16.msra.mxu0 0
      %6893 = vmatpush.bf16.msra.mxu0 0
      %6894 = vmatpush.bf16.msra.mxu0 0
      %6895 = vmatpush.bf16.msra.mxu0 0
      %6896 = vmatpush.bf16.msra.mxu0 0
      %6897 = vmatpush.bf16.msra.mxu0 0
      %6898 = vmatpush.bf16.msra.mxu0 0
      %6899 = vmatpush.bf16.msra.mxu0 %v6890
      %6900 = vmatmul.bf16.gmra.mxu0 %v6165
      %v6901 = vpop.f32.mrf.mxu0
      %v6902 = vadd.f32 0.0, %v6901
      %v6903 = vpop.f32.mrf.mxu0
      %v6904 = vadd.f32 0.0, %v6903
      %6905 = vmatmul.bf16.gmra.mxu0 %v6168
      %v6906 = vpop.f32.mrf.mxu0
      %v6907 = vadd.f32 0.0, %v6906
      %v6908 = vpop.f32.mrf.mxu0
      %v6909 = vadd.f32 0.0, %v6908
      %6910 = vmatmul.bf16.gmra.mxu0 %v6171
      %v6911 = vpop.f32.mrf.mxu0
      %v6912 = vadd.f32 0.0, %v6911
      %v6913 = vpop.f32.mrf.mxu0
      %v6914 = vadd.f32 0.0, %v6913
      %6915 = vmatmul.bf16.gmra.mxu0 %v6174
      %v6916 = vpop.f32.mrf.mxu0
      %v6917 = vadd.f32 0.0, %v6916
      %v6918 = vpop.f32.mrf.mxu0
      %v6919 = vadd.f32 0.0, %v6918
      %6920 = vmatmul.bf16.gmra.mxu0 %v6177
      %v6921 = vpop.f32.mrf.mxu0
      %v6922 = vadd.f32 0.0, %v6921
      %v6923 = vpop.f32.mrf.mxu0
      %v6924 = vadd.f32 0.0, %v6923
      %6925 = vmatmul.bf16.gmra.mxu0 %v6180
      %v6926 = vpop.f32.mrf.mxu0
      %v6927 = vadd.f32 0.0, %v6926
      %v6928 = vpop.f32.mrf.mxu0
      %v6929 = vadd.f32 0.0, %v6928
      %6930 = vmatmul.bf16.gmra.mxu0 %v6183
      %v6931 = vpop.f32.mrf.mxu0
      %v6932 = vadd.f32 0.0, %v6931
      %v6933 = vpop.f32.mrf.mxu0
      %v6934 = vadd.f32 0.0, %v6933
      %6935 = vmatmul.bf16.gmra.mxu0 %v6186
      %v6936 = vpop.f32.mrf.mxu0
      %v6937 = vadd.f32 0.0, %v6936
      %v6938 = vpop.f32.mrf.mxu0
      %v6939 = vadd.f32 0.0, %v6938
      %6940 = vmatmul.bf16.gmra.mxu0 %v6189
      %v6941 = vpop.f32.mrf.mxu0
      %v6942 = vadd.f32 0.0, %v6941
      %v6943 = vpop.f32.mrf.mxu0
      %v6944 = vadd.f32 0.0, %v6943
      %6945 = vmatmul.bf16.gmra.mxu0 %v6192
      %v6946 = vpop.f32.mrf.mxu0
      %v6947 = vadd.f32 0.0, %v6946
      %v6948 = vpop.f32.mrf.mxu0
      %v6949 = vadd.f32 0.0, %v6948
      %6950 = vmatmul.bf16.gmra.mxu0 %v6195
      %v6951 = vpop.f32.mrf.mxu0
      %v6952 = vadd.f32 0.0, %v6951
      %v6953 = vpop.f32.mrf.mxu0
      %v6954 = vadd.f32 0.0, %v6953
      %6955 = vmatmul.bf16.gmra.mxu0 %v6198
      %v6956 = vpop.f32.mrf.mxu0
      %v6957 = vadd.f32 0.0, %v6956
      %v6958 = vpop.f32.mrf.mxu0
      %v6959 = vadd.f32 0.0, %v6958
      %6960 = vmatmul.bf16.gmra.mxu0 %v6201
      %v6961 = vpop.f32.mrf.mxu0
      %v6962 = vadd.f32 0.0, %v6961
      %v6963 = vpop.f32.mrf.mxu0
      %v6964 = vadd.f32 0.0, %v6963
      %6965 = vmatmul.bf16.gmra.mxu0 %v6204
      %v6966 = vpop.f32.mrf.mxu0
      %v6967 = vadd.f32 0.0, %v6966
      %v6968 = vpop.f32.mrf.mxu0
      %v6969 = vadd.f32 0.0, %v6968
      %6970 = vmatmul.bf16.gmra.mxu0 %v6207
      %v6971 = vpop.f32.mrf.mxu0
      %v6972 = vadd.f32 0.0, %v6971
      %v6973 = vpop.f32.mrf.mxu0
      %v6974 = vadd.f32 0.0, %v6973
      %6975 = vmatmul.bf16.gmra.mxu0 %v6887
      %v6976 = vpop.f32.mrf.mxu0
      %v6977 = vadd.f32 0.0, %v6976
      %v6978 = vpop.f32.mrf.mxu0
      %v6979 = vadd.f32 0.0, %v6978
      %6980 = vdwg.mxu0
      %v6981 = vadd.f32 %v6841, %v6902
      %v6982 = vadd.f32 %v6842, %v6904
      %v6983 = vadd.f32 %v6843, %v6907
      %v6984 = vadd.f32 %v6844, %v6909
      %v6985 = vadd.f32 %v6845, %v6912
      %v6986 = vadd.f32 %v6846, %v6914
      %v6987 = vadd.f32 %v6847, %v6917
      %v6988 = vadd.f32 %v6848, %v6919
      %v6989 = vadd.f32 %v6849, %v6922
      %v6990 = vadd.f32 %v6850, %v6924
      %v6991 = vadd.f32 %v6851, %v6927
      %v6992 = vadd.f32 %v6852, %v6929
      %v6993 = vadd.f32 %v6853, %v6932
      %v6994 = vadd.f32 %v6854, %v6934
      %v6995 = vadd.f32 %v6855, %v6937
      %v6996 = vadd.f32 %v6856, %v6939
      %v6997 = vadd.f32 %v6857, %v6942
      %v6998 = vadd.f32 %v6858, %v6944
      %v6999 = vadd.f32 %v6859, %v6947
      %v7000 = vadd.f32 %v6860, %v6949
      %v7001 = vadd.f32 %v6861, %v6952
      %v7002 = vadd.f32 %v6862, %v6954
      %v7003 = vadd.f32 %v6863, %v6957
      %v7004 = vadd.f32 %v6864, %v6959
      %v7005 = vadd.f32 %v6865, %v6962
      %v7006 = vadd.f32 %v6866, %v6964
      %v7007 = vadd.f32 %v6867, %v6967
      %v7008 = vadd.f32 %v6868, %v6969
      %v7009 = vadd.f32 %v6869, %v6972
      %v7010 = vadd.f32 %v6870, %v6974
      %v7011 = vadd.f32 %v6871, %v6977
      %v7012 = vadd.f32 %v6872, %v6979
      %v7013 = vrot.slane %v5960, 2
      %v7014 = vrot.slane %v5961, 2
      %v7015 = vsel %vm1141, %v7013, %v7014
      %v7016 = vrot.slane %v5962, 2
      %v7017 = vsel %vm1141, %v7014, %v7016
      %v7020 = vpack.c.bf16 %v7017, %v7015
      %s7021 = scalar_lea.vmem %s8, 20
      %v7022 = vld [vmem:[%s7021] sm:$0xf]
      %v7024 = vsel %vm435, %v7020, 0
      %v7027 = vsel %vm908, %v7022, 0
      %7029 = vmatpush.bf16.msra.mxu0 0
      %7030 = vmatpush.bf16.msra.mxu0 0
      %7031 = vmatpush.bf16.msra.mxu0 0
      %7032 = vmatpush.bf16.msra.mxu0 0
      %7033 = vmatpush.bf16.msra.mxu0 0
      %7034 = vmatpush.bf16.msra.mxu0 0
      %7035 = vmatpush.bf16.msra.mxu0 0
      %7036 = vmatpush.bf16.msra.mxu0 %v7027
      %7037 = vmatmul.bf16.gmra.mxu0 %v6575
      %v7038 = vpop.f32.mrf.mxu0
      %v7039 = vadd.f32 0.0, %v7038
      %v7040 = vpop.f32.mrf.mxu0
      %v7041 = vadd.f32 0.0, %v7040
      %7042 = vmatmul.bf16.gmra.mxu0 %v6578
      %v7043 = vpop.f32.mrf.mxu0
      %v7044 = vadd.f32 0.0, %v7043
      %v7045 = vpop.f32.mrf.mxu0
      %v7046 = vadd.f32 0.0, %v7045
      %7047 = vmatmul.bf16.gmra.mxu0 %v6581
      %v7048 = vpop.f32.mrf.mxu0
      %v7049 = vadd.f32 0.0, %v7048
      %v7050 = vpop.f32.mrf.mxu0
      %v7051 = vadd.f32 0.0, %v7050
      %7052 = vmatmul.bf16.gmra.mxu0 %v6584
      %v7053 = vpop.f32.mrf.mxu0
      %v7054 = vadd.f32 0.0, %v7053
      %v7055 = vpop.f32.mrf.mxu0
      %v7056 = vadd.f32 0.0, %v7055
      %7057 = vmatmul.bf16.gmra.mxu0 %v6587
      %v7058 = vpop.f32.mrf.mxu0
      %v7059 = vadd.f32 0.0, %v7058
      %v7060 = vpop.f32.mrf.mxu0
      %v7061 = vadd.f32 0.0, %v7060
      %7062 = vmatmul.bf16.gmra.mxu0 %v6590
      %v7063 = vpop.f32.mrf.mxu0
      %v7064 = vadd.f32 0.0, %v7063
      %v7065 = vpop.f32.mrf.mxu0
      %v7066 = vadd.f32 0.0, %v7065
      %7067 = vmatmul.bf16.gmra.mxu0 %v6593
      %v7068 = vpop.f32.mrf.mxu0
      %v7069 = vadd.f32 0.0, %v7068
      %v7070 = vpop.f32.mrf.mxu0
      %v7071 = vadd.f32 0.0, %v7070
      %7072 = vmatmul.bf16.gmra.mxu0 %v6596
      %v7073 = vpop.f32.mrf.mxu0
      %v7074 = vadd.f32 0.0, %v7073
      %v7075 = vpop.f32.mrf.mxu0
      %v7076 = vadd.f32 0.0, %v7075
      %7077 = vmatmul.bf16.gmra.mxu0 %v6599
      %v7078 = vpop.f32.mrf.mxu0
      %v7079 = vadd.f32 0.0, %v7078
      %v7080 = vpop.f32.mrf.mxu0
      %v7081 = vadd.f32 0.0, %v7080
      %7082 = vmatmul.bf16.gmra.mxu0 %v6602
      %v7083 = vpop.f32.mrf.mxu0
      %v7084 = vadd.f32 0.0, %v7083
      %v7085 = vpop.f32.mrf.mxu0
      %v7086 = vadd.f32 0.0, %v7085
      %7087 = vmatmul.bf16.gmra.mxu0 %v6605
      %v7088 = vpop.f32.mrf.mxu0
      %v7089 = vadd.f32 0.0, %v7088
      %v7090 = vpop.f32.mrf.mxu0
      %v7091 = vadd.f32 0.0, %v7090
      %7092 = vmatmul.bf16.gmra.mxu0 %v6608
      %v7093 = vpop.f32.mrf.mxu0
      %v7094 = vadd.f32 0.0, %v7093
      %v7095 = vpop.f32.mrf.mxu0
      %v7096 = vadd.f32 0.0, %v7095
      %7097 = vmatmul.bf16.gmra.mxu0 %v6611
      %v7098 = vpop.f32.mrf.mxu0
      %v7099 = vadd.f32 0.0, %v7098
      %v7100 = vpop.f32.mrf.mxu0
      %v7101 = vadd.f32 0.0, %v7100
      %7102 = vmatmul.bf16.gmra.mxu0 %v6614
      %v7103 = vpop.f32.mrf.mxu0
      %v7104 = vadd.f32 0.0, %v7103
      %v7105 = vpop.f32.mrf.mxu0
      %v7106 = vadd.f32 0.0, %v7105
      %7107 = vmatmul.bf16.gmra.mxu0 %v6617
      %v7108 = vpop.f32.mrf.mxu0
      %v7109 = vadd.f32 0.0, %v7108
      %v7110 = vpop.f32.mrf.mxu0
      %v7111 = vadd.f32 0.0, %v7110
      %7112 = vmatmul.bf16.gmra.mxu0 %v7024
      %v7113 = vpop.f32.mrf.mxu0
      %v7114 = vadd.f32 0.0, %v7113
      %v7115 = vpop.f32.mrf.mxu0
      %v7116 = vadd.f32 0.0, %v7115
      %7117 = vdwg.mxu0
      %v7118 = vadd.f32 %v6981, %v7039
      %v7119 = vadd.f32 %v6982, %v7041
      %v7120 = vadd.f32 %v6983, %v7044
      %v7121 = vadd.f32 %v6984, %v7046
      %v7122 = vadd.f32 %v6985, %v7049
      %v7123 = vadd.f32 %v6986, %v7051
      %v7124 = vadd.f32 %v6987, %v7054
      %v7125 = vadd.f32 %v6988, %v7056
      %v7126 = vadd.f32 %v6989, %v7059
      %v7127 = vadd.f32 %v6990, %v7061
      %v7128 = vadd.f32 %v6991, %v7064
      %v7129 = vadd.f32 %v6992, %v7066
      %v7130 = vadd.f32 %v6993, %v7069
      %v7131 = vadd.f32 %v6994, %v7071
      %v7132 = vadd.f32 %v6995, %v7074
      %v7133 = vadd.f32 %v6996, %v7076
      %v7134 = vadd.f32 %v6997, %v7079
      %v7135 = vadd.f32 %v6998, %v7081
      %v7136 = vadd.f32 %v6999, %v7084
      %v7137 = vadd.f32 %v7000, %v7086
      %v7138 = vadd.f32 %v7001, %v7089
      %v7139 = vadd.f32 %v7002, %v7091
      %v7140 = vadd.f32 %v7003, %v7094
      %v7141 = vadd.f32 %v7004, %v7096
      %v7142 = vadd.f32 %v7005, %v7099
      %v7143 = vadd.f32 %v7006, %v7101
      %v7144 = vadd.f32 %v7007, %v7104
      %v7145 = vadd.f32 %v7008, %v7106
      %v7146 = vadd.f32 %v7009, %v7109
      %v7147 = vadd.f32 %v7010, %v7111
      %v7148 = vadd.f32 %v7011, %v7114
      %v7149 = vadd.f32 %v7012, %v7116
      %v7150 = vpack.c.bf16 %v5964, %v5963
      %s7151 = scalar_lea.vmem %s8, 24
      %v7152 = vld [vmem:[%s7151] sm:$0xf]
      %v7154 = vsel %vm435, %v7150, 0
      %v7157 = vsel %vm908, %v7152, 0
      %7159 = vmatpush.bf16.msra.mxu0 0
      %7160 = vmatpush.bf16.msra.mxu0 0
      %7161 = vmatpush.bf16.msra.mxu0 0
      %7162 = vmatpush.bf16.msra.mxu0 0
      %7163 = vmatpush.bf16.msra.mxu0 0
      %7164 = vmatpush.bf16.msra.mxu0 0
      %7165 = vmatpush.bf16.msra.mxu0 0
      %7166 = vmatpush.bf16.msra.mxu0 %v7157
      %7167 = vmatmul.bf16.gmra.mxu0 %v6308
      %v7168 = vpop.f32.mrf.mxu0
      %v7169 = vadd.f32 0.0, %v7168
      %v7170 = vpop.f32.mrf.mxu0
      %v7171 = vadd.f32 0.0, %v7170
      %7172 = vmatmul.bf16.gmra.mxu0 %v6311
      %v7173 = vpop.f32.mrf.mxu0
      %v7174 = vadd.f32 0.0, %v7173
      %v7175 = vpop.f32.mrf.mxu0
      %v7176 = vadd.f32 0.0, %v7175
      %7177 = vmatmul.bf16.gmra.mxu0 %v6314
      %v7178 = vpop.f32.mrf.mxu0
      %v7179 = vadd.f32 0.0, %v7178
      %v7180 = vpop.f32.mrf.mxu0
      %v7181 = vadd.f32 0.0, %v7180
      %7182 = vmatmul.bf16.gmra.mxu0 %v6317
      %v7183 = vpop.f32.mrf.mxu0
      %v7184 = vadd.f32 0.0, %v7183
      %v7185 = vpop.f32.mrf.mxu0
      %v7186 = vadd.f32 0.0, %v7185
      %7187 = vmatmul.bf16.gmra.mxu0 %v6320
      %v7188 = vpop.f32.mrf.mxu0
      %v7189 = vadd.f32 0.0, %v7188
      %v7190 = vpop.f32.mrf.mxu0
      %v7191 = vadd.f32 0.0, %v7190
      %7192 = vmatmul.bf16.gmra.mxu0 %v6323
      %v7193 = vpop.f32.mrf.mxu0
      %v7194 = vadd.f32 0.0, %v7193
      %v7195 = vpop.f32.mrf.mxu0
      %v7196 = vadd.f32 0.0, %v7195
      %7197 = vmatmul.bf16.gmra.mxu0 %v6326
      %v7198 = vpop.f32.mrf.mxu0
      %v7199 = vadd.f32 0.0, %v7198
      %v7200 = vpop.f32.mrf.mxu0
      %v7201 = vadd.f32 0.0, %v7200
      %7202 = vmatmul.bf16.gmra.mxu0 %v6329
      %v7203 = vpop.f32.mrf.mxu0
      %v7204 = vadd.f32 0.0, %v7203
      %v7205 = vpop.f32.mrf.mxu0
      %v7206 = vadd.f32 0.0, %v7205
      %7207 = vmatmul.bf16.gmra.mxu0 %v6332
      %v7208 = vpop.f32.mrf.mxu0
      %v7209 = vadd.f32 0.0, %v7208
      %v7210 = vpop.f32.mrf.mxu0
      %v7211 = vadd.f32 0.0, %v7210
      %7212 = vmatmul.bf16.gmra.mxu0 %v6335
      %v7213 = vpop.f32.mrf.mxu0
      %v7214 = vadd.f32 0.0, %v7213
      %v7215 = vpop.f32.mrf.mxu0
      %v7216 = vadd.f32 0.0, %v7215
      %7217 = vmatmul.bf16.gmra.mxu0 %v6338
      %v7218 = vpop.f32.mrf.mxu0
      %v7219 = vadd.f32 0.0, %v7218
      %v7220 = vpop.f32.mrf.mxu0
      %v7221 = vadd.f32 0.0, %v7220
      %7222 = vmatmul.bf16.gmra.mxu0 %v6341
      %v7223 = vpop.f32.mrf.mxu0
      %v7224 = vadd.f32 0.0, %v7223
      %v7225 = vpop.f32.mrf.mxu0
      %v7226 = vadd.f32 0.0, %v7225
      %7227 = vmatmul.bf16.gmra.mxu0 %v6344
      %v7228 = vpop.f32.mrf.mxu0
      %v7229 = vadd.f32 0.0, %v7228
      %v7230 = vpop.f32.mrf.mxu0
      %v7231 = vadd.f32 0.0, %v7230
      %7232 = vmatmul.bf16.gmra.mxu0 %v6347
      %v7233 = vpop.f32.mrf.mxu0
      %v7234 = vadd.f32 0.0, %v7233
      %v7235 = vpop.f32.mrf.mxu0
      %v7236 = vadd.f32 0.0, %v7235
      %7237 = vmatmul.bf16.gmra.mxu0 %v6747
      %v7238 = vpop.f32.mrf.mxu0
      %v7239 = vadd.f32 0.0, %v7238
      %v7240 = vpop.f32.mrf.mxu0
      %v7241 = vadd.f32 0.0, %v7240
      %7242 = vmatmul.bf16.gmra.mxu0 %v7154
      %v7243 = vpop.f32.mrf.mxu0
      %v7244 = vadd.f32 0.0, %v7243
      %v7245 = vpop.f32.mrf.mxu0
      %v7246 = vadd.f32 0.0, %v7245
      %7247 = vdwg.mxu0
      %v7248 = vadd.f32 %v7118, %v7169
      %v7249 = vadd.f32 %v7119, %v7171
      %v7250 = vadd.f32 %v7120, %v7174
      %v7251 = vadd.f32 %v7121, %v7176
      %v7252 = vadd.f32 %v7122, %v7179
      %v7253 = vadd.f32 %v7123, %v7181
      %v7254 = vadd.f32 %v7124, %v7184
      %v7255 = vadd.f32 %v7125, %v7186
      %v7256 = vadd.f32 %v7126, %v7189
      %v7257 = vadd.f32 %v7127, %v7191
      %v7258 = vadd.f32 %v7128, %v7194
      %v7259 = vadd.f32 %v7129, %v7196
      %v7260 = vadd.f32 %v7130, %v7199
      %v7261 = vadd.f32 %v7131, %v7201
      %v7262 = vadd.f32 %v7132, %v7204
      %v7263 = vadd.f32 %v7133, %v7206
      %v7264 = vadd.f32 %v7134, %v7209
      %v7265 = vadd.f32 %v7135, %v7211
      %v7266 = vadd.f32 %v7136, %v7214
      %v7267 = vadd.f32 %v7137, %v7216
      %v7268 = vadd.f32 %v7138, %v7219
      %v7269 = vadd.f32 %v7139, %v7221
      %v7270 = vadd.f32 %v7140, %v7224
      %v7271 = vadd.f32 %v7141, %v7226
      %v7272 = vadd.f32 %v7142, %v7229
      %v7273 = vadd.f32 %v7143, %v7231
      %v7274 = vadd.f32 %v7144, %v7234
      %v7275 = vadd.f32 %v7145, %v7236
      %v7276 = vadd.f32 %v7146, %v7239
      %v7277 = vadd.f32 %v7147, %v7241
      %v7278 = vadd.f32 %v7148, %v7244
      %v7279 = vadd.f32 %v7149, %v7246
      %v7283 = vrot.slane %v5963, 1
      %v7284 = vrot.slane %v5964, 1
      %v7285 = vsel %vm729, %v7283, %v7284
      %v7286 = vrot.slane %v5965, 1
      %v7287 = vsel %vm729, %v7284, %v7286
      %v7290 = vpack.c.bf16 %v7287, %v7285
      %s7291 = scalar_lea.vmem %s8, 28
      %v7292 = vld [vmem:[%s7291] sm:$0xf]
      %v7294 = vsel %vm435, %v7290, 0
      %v7297 = vsel %vm908, %v7292, 0
      %7299 = vmatpush.bf16.msra.mxu0 0
      %7300 = vmatpush.bf16.msra.mxu0 0
      %7301 = vmatpush.bf16.msra.mxu0 0
      %7302 = vmatpush.bf16.msra.mxu0 0
      %7303 = vmatpush.bf16.msra.mxu0 0
      %7304 = vmatpush.bf16.msra.mxu0 0
      %7305 = vmatpush.bf16.msra.mxu0 0
      %7306 = vmatpush.bf16.msra.mxu0 %v7297
      %7307 = vmatmul.bf16.gmra.mxu0 %v6168
      %v7308 = vpop.f32.mrf.mxu0
      %v7309 = vadd.f32 0.0, %v7308
      %v7310 = vpop.f32.mrf.mxu0
      %v7311 = vadd.f32 0.0, %v7310
      %7312 = vmatmul.bf16.gmra.mxu0 %v6171
      %v7313 = vpop.f32.mrf.mxu0
      %v7314 = vadd.f32 0.0, %v7313
      %v7315 = vpop.f32.mrf.mxu0
      %v7316 = vadd.f32 0.0, %v7315
      %7317 = vmatmul.bf16.gmra.mxu0 %v6174
      %v7318 = vpop.f32.mrf.mxu0
      %v7319 = vadd.f32 0.0, %v7318
      %v7320 = vpop.f32.mrf.mxu0
      %v7321 = vadd.f32 0.0, %v7320
      %7322 = vmatmul.bf16.gmra.mxu0 %v6177
      %v7323 = vpop.f32.mrf.mxu0
      %v7324 = vadd.f32 0.0, %v7323
      %v7325 = vpop.f32.mrf.mxu0
      %v7326 = vadd.f32 0.0, %v7325
      %7327 = vmatmul.bf16.gmra.mxu0 %v6180
      %v7328 = vpop.f32.mrf.mxu0
      %v7329 = vadd.f32 0.0, %v7328
      %v7330 = vpop.f32.mrf.mxu0
      %v7331 = vadd.f32 0.0, %v7330
      %7332 = vmatmul.bf16.gmra.mxu0 %v6183
      %v7333 = vpop.f32.mrf.mxu0
      %v7334 = vadd.f32 0.0, %v7333
      %v7335 = vpop.f32.mrf.mxu0
      %v7336 = vadd.f32 0.0, %v7335
      %7337 = vmatmul.bf16.gmra.mxu0 %v6186
      %v7338 = vpop.f32.mrf.mxu0
      %v7339 = vadd.f32 0.0, %v7338
      %v7340 = vpop.f32.mrf.mxu0
      %v7341 = vadd.f32 0.0, %v7340
      %7342 = vmatmul.bf16.gmra.mxu0 %v6189
      %v7343 = vpop.f32.mrf.mxu0
      %v7344 = vadd.f32 0.0, %v7343
      %v7345 = vpop.f32.mrf.mxu0
      %v7346 = vadd.f32 0.0, %v7345
      %7347 = vmatmul.bf16.gmra.mxu0 %v6192
      %v7348 = vpop.f32.mrf.mxu0
      %v7349 = vadd.f32 0.0, %v7348
      %v7350 = vpop.f32.mrf.mxu0
      %v7351 = vadd.f32 0.0, %v7350
      %7352 = vmatmul.bf16.gmra.mxu0 %v6195
      %v7353 = vpop.f32.mrf.mxu0
      %v7354 = vadd.f32 0.0, %v7353
      %v7355 = vpop.f32.mrf.mxu0
      %v7356 = vadd.f32 0.0, %v7355
      %7357 = vmatmul.bf16.gmra.mxu0 %v6198
      %v7358 = vpop.f32.mrf.mxu0
      %v7359 = vadd.f32 0.0, %v7358
      %v7360 = vpop.f32.mrf.mxu0
      %v7361 = vadd.f32 0.0, %v7360
      %7362 = vmatmul.bf16.gmra.mxu0 %v6201
      %v7363 = vpop.f32.mrf.mxu0
      %v7364 = vadd.f32 0.0, %v7363
      %v7365 = vpop.f32.mrf.mxu0
      %v7366 = vadd.f32 0.0, %v7365
      %7367 = vmatmul.bf16.gmra.mxu0 %v6204
      %v7368 = vpop.f32.mrf.mxu0
      %v7369 = vadd.f32 0.0, %v7368
      %v7370 = vpop.f32.mrf.mxu0
      %v7371 = vadd.f32 0.0, %v7370
      %7372 = vmatmul.bf16.gmra.mxu0 %v6207
      %v7373 = vpop.f32.mrf.mxu0
      %v7374 = vadd.f32 0.0, %v7373
      %v7375 = vpop.f32.mrf.mxu0
      %v7376 = vadd.f32 0.0, %v7375
      %7377 = vmatmul.bf16.gmra.mxu0 %v6887
      %v7378 = vpop.f32.mrf.mxu0
      %v7379 = vadd.f32 0.0, %v7378
      %v7380 = vpop.f32.mrf.mxu0
      %v7381 = vadd.f32 0.0, %v7380
      %7382 = vmatmul.bf16.gmra.mxu0 %v7294
      %v7383 = vpop.f32.mrf.mxu0
      %v7384 = vadd.f32 0.0, %v7383
      %v7385 = vpop.f32.mrf.mxu0
      %v7386 = vadd.f32 0.0, %v7385
      %7387 = vdwg.mxu0
      %v7388 = vadd.f32 %v7248, %v7309
      %v7389 = vadd.f32 %v7249, %v7311
      %v7390 = vadd.f32 %v7250, %v7314
      %v7391 = vadd.f32 %v7251, %v7316
      %v7392 = vadd.f32 %v7252, %v7319
      %v7393 = vadd.f32 %v7253, %v7321
      %v7394 = vadd.f32 %v7254, %v7324
      %v7395 = vadd.f32 %v7255, %v7326
      %v7396 = vadd.f32 %v7256, %v7329
      %v7397 = vadd.f32 %v7257, %v7331
      %v7398 = vadd.f32 %v7258, %v7334
      %v7399 = vadd.f32 %v7259, %v7336
      %v7400 = vadd.f32 %v7260, %v7339
      %v7401 = vadd.f32 %v7261, %v7341
      %v7402 = vadd.f32 %v7262, %v7344
      %v7403 = vadd.f32 %v7263, %v7346
      %v7404 = vadd.f32 %v7264, %v7349
      %v7405 = vadd.f32 %v7265, %v7351
      %v7406 = vadd.f32 %v7266, %v7354
      %v7407 = vadd.f32 %v7267, %v7356
      %v7408 = vadd.f32 %v7268, %v7359
      %v7409 = vadd.f32 %v7269, %v7361
      %v7410 = vadd.f32 %v7270, %v7364
      %v7411 = vadd.f32 %v7271, %v7366
      %v7412 = vadd.f32 %v7272, %v7369
      %v7413 = vadd.f32 %v7273, %v7371
      %v7414 = vadd.f32 %v7274, %v7374
      %v7415 = vadd.f32 %v7275, %v7376
      %v7416 = vadd.f32 %v7276, %v7379
      %v7417 = vadd.f32 %v7277, %v7381
      %v7418 = vadd.f32 %v7278, %v7384
      %v7419 = vadd.f32 %v7279, %v7386
      %v7420 = vrot.slane %v5963, 2
      %v7421 = vrot.slane %v5964, 2
      %v7422 = vsel %vm1141, %v7420, %v7421
      %v7423 = vrot.slane %v5965, 2
      %v7424 = vsel %vm1141, %v7421, %v7423
      %v7427 = vpack.c.bf16 %v7424, %v7422
      %s7428 = scalar_lea.vmem %s8, 32
      %v7429 = vld [vmem:[%s7428] sm:$0xf]
      %v7431 = vsel %vm435, %v7427, 0
      %v7434 = vsel %vm908, %v7429, 0
      %7436 = vmatpush.bf16.msra.mxu0 0
      %7437 = vmatpush.bf16.msra.mxu0 0
      %7438 = vmatpush.bf16.msra.mxu0 0
      %7439 = vmatpush.bf16.msra.mxu0 0
      %7440 = vmatpush.bf16.msra.mxu0 0
      %7441 = vmatpush.bf16.msra.mxu0 0
      %7442 = vmatpush.bf16.msra.mxu0 0
      %7443 = vmatpush.bf16.msra.mxu0 %v7434
      %7444 = vmatmul.bf16.gmra.mxu0 %v6578
      %v7445 = vpop.f32.mrf.mxu0
      %v7446 = vadd.f32 0.0, %v7445
      %v7447 = vpop.f32.mrf.mxu0
      %v7448 = vadd.f32 0.0, %v7447
      %7449 = vmatmul.bf16.gmra.mxu0 %v6581
      %v7450 = vpop.f32.mrf.mxu0
      %v7451 = vadd.f32 0.0, %v7450
      %v7452 = vpop.f32.mrf.mxu0
      %v7453 = vadd.f32 0.0, %v7452
      %7454 = vmatmul.bf16.gmra.mxu0 %v6584
      %v7455 = vpop.f32.mrf.mxu0
      %v7456 = vadd.f32 0.0, %v7455
      %v7457 = vpop.f32.mrf.mxu0
      %v7458 = vadd.f32 0.0, %v7457
      %7459 = vmatmul.bf16.gmra.mxu0 %v6587
      %v7460 = vpop.f32.mrf.mxu0
      %v7461 = vadd.f32 0.0, %v7460
      %v7462 = vpop.f32.mrf.mxu0
      %v7463 = vadd.f32 0.0, %v7462
      %7464 = vmatmul.bf16.gmra.mxu0 %v6590
      %v7465 = vpop.f32.mrf.mxu0
      %v7466 = vadd.f32 0.0, %v7465
      %v7467 = vpop.f32.mrf.mxu0
      %v7468 = vadd.f32 0.0, %v7467
      %7469 = vmatmul.bf16.gmra.mxu0 %v6593
      %v7470 = vpop.f32.mrf.mxu0
      %v7471 = vadd.f32 0.0, %v7470
      %v7472 = vpop.f32.mrf.mxu0
      %v7473 = vadd.f32 0.0, %v7472
      %7474 = vmatmul.bf16.gmra.mxu0 %v6596
      %v7475 = vpop.f32.mrf.mxu0
      %v7476 = vadd.f32 0.0, %v7475
      %v7477 = vpop.f32.mrf.mxu0
      %v7478 = vadd.f32 0.0, %v7477
      %7479 = vmatmul.bf16.gmra.mxu0 %v6599
      %v7480 = vpop.f32.mrf.mxu0
      %v7481 = vadd.f32 0.0, %v7480
      %v7482 = vpop.f32.mrf.mxu0
      %v7483 = vadd.f32 0.0, %v7482
      %7484 = vmatmul.bf16.gmra.mxu0 %v6602
      %v7485 = vpop.f32.mrf.mxu0
      %v7486 = vadd.f32 0.0, %v7485
      %v7487 = vpop.f32.mrf.mxu0
      %v7488 = vadd.f32 0.0, %v7487
      %7489 = vmatmul.bf16.gmra.mxu0 %v6605
      %v7490 = vpop.f32.mrf.mxu0
      %v7491 = vadd.f32 0.0, %v7490
      %v7492 = vpop.f32.mrf.mxu0
      %v7493 = vadd.f32 0.0, %v7492
      %7494 = vmatmul.bf16.gmra.mxu0 %v6608
      %v7495 = vpop.f32.mrf.mxu0
      %v7496 = vadd.f32 0.0, %v7495
      %v7497 = vpop.f32.mrf.mxu0
      %v7498 = vadd.f32 0.0, %v7497
      %7499 = vmatmul.bf16.gmra.mxu0 %v6611
      %v7500 = vpop.f32.mrf.mxu0
      %v7501 = vadd.f32 0.0, %v7500
      %v7502 = vpop.f32.mrf.mxu0
      %v7503 = vadd.f32 0.0, %v7502
      %7504 = vmatmul.bf16.gmra.mxu0 %v6614
      %v7505 = vpop.f32.mrf.mxu0
      %v7506 = vadd.f32 0.0, %v7505
      %v7507 = vpop.f32.mrf.mxu0
      %v7508 = vadd.f32 0.0, %v7507
      %7509 = vmatmul.bf16.gmra.mxu0 %v6617
      %v7510 = vpop.f32.mrf.mxu0
      %v7511 = vadd.f32 0.0, %v7510
      %v7512 = vpop.f32.mrf.mxu0
      %v7513 = vadd.f32 0.0, %v7512
      %7514 = vmatmul.bf16.gmra.mxu0 %v7024
      %v7515 = vpop.f32.mrf.mxu0
      %v7516 = vadd.f32 0.0, %v7515
      %v7517 = vpop.f32.mrf.mxu0
      %v7518 = vadd.f32 0.0, %v7517
      %7519 = vmatmul.bf16.gmra.mxu0 %v7431
      %v7520 = vpop.f32.mrf.mxu0
      %v7521 = vadd.f32 0.0, %v7520
      %v7522 = vpop.f32.mrf.mxu0
      %v7523 = vadd.f32 0.0, %v7522
      %7524 = vdwg.mxu0
      %v7525 = vadd.f32 %v7388, %v7446
      %v7526 = vadd.f32 %v7389, %v7448
      %v7527 = vadd.f32 %v7390, %v7451
      %v7528 = vadd.f32 %v7391, %v7453
      %v7529 = vadd.f32 %v7392, %v7456
      %v7530 = vadd.f32 %v7393, %v7458
      %v7531 = vadd.f32 %v7394, %v7461
      %v7532 = vadd.f32 %v7395, %v7463
      %v7533 = vadd.f32 %v7396, %v7466
      %v7534 = vadd.f32 %v7397, %v7468
      %v7535 = vadd.f32 %v7398, %v7471
      %v7536 = vadd.f32 %v7399, %v7473
      %v7537 = vadd.f32 %v7400, %v7476
      %v7538 = vadd.f32 %v7401, %v7478
      %v7539 = vadd.f32 %v7402, %v7481
      %v7540 = vadd.f32 %v7403, %v7483
      %v7541 = vadd.f32 %v7404, %v7486
      %v7542 = vadd.f32 %v7405, %v7488
      %v7543 = vadd.f32 %v7406, %v7491
      %v7544 = vadd.f32 %v7407, %v7493
      %v7545 = vadd.f32 %v7408, %v7496
      %v7546 = vadd.f32 %v7409, %v7498
      %v7547 = vadd.f32 %v7410, %v7501
      %v7548 = vadd.f32 %v7411, %v7503
      %v7549 = vadd.f32 %v7412, %v7506
      %v7550 = vadd.f32 %v7413, %v7508
      %v7551 = vadd.f32 %v7414, %v7511
      %v7552 = vadd.f32 %v7415, %v7513
      %v7553 = vadd.f32 %v7416, %v7516
      %v7554 = vadd.f32 %v7417, %v7518
      %v7555 = vadd.f32 %v7418, %v7521
      %v7556 = vadd.f32 %v7419, %v7523
      %v7557 = vld [vmem:[%s9] sm:$0x1]
      %v7559 = vperm.slane %v7557, 0
      %v7561 = vadd.f32 %v7525, %v7559
      %v7562 = vadd.f32 %v7526, %v7559
      %v7563 = vadd.f32 %v7527, %v7559
      %v7564 = vadd.f32 %v7528, %v7559
      %v7565 = vadd.f32 %v7529, %v7559
      %v7566 = vadd.f32 %v7530, %v7559
      %v7567 = vadd.f32 %v7531, %v7559
      %v7568 = vadd.f32 %v7532, %v7559
      %v7569 = vadd.f32 %v7533, %v7559
      %v7570 = vadd.f32 %v7534, %v7559
      %v7571 = vadd.f32 %v7535, %v7559
      %v7572 = vadd.f32 %v7536, %v7559
      %v7573 = vadd.f32 %v7537, %v7559
      %v7574 = vadd.f32 %v7538, %v7559
      %v7575 = vadd.f32 %v7539, %v7559
      %v7576 = vadd.f32 %v7540, %v7559
      %v7577 = vadd.f32 %v7541, %v7559
      %v7578 = vadd.f32 %v7542, %v7559
      %v7579 = vadd.f32 %v7543, %v7559
      %v7580 = vadd.f32 %v7544, %v7559
      %v7581 = vadd.f32 %v7545, %v7559
      %v7582 = vadd.f32 %v7546, %v7559
      %v7583 = vadd.f32 %v7547, %v7559
      %v7584 = vadd.f32 %v7548, %v7559
      %v7585 = vadd.f32 %v7549, %v7559
      %v7586 = vadd.f32 %v7550, %v7559
      %v7587 = vadd.f32 %v7551, %v7559
      %v7588 = vadd.f32 %v7552, %v7559
      %v7589 = vadd.f32 %v7553, %v7559
      %v7590 = vadd.f32 %v7554, %v7559
      %v7591 = vadd.f32 %v7555, %v7559
      %v7592 = vadd.f32 %v7556, %v7559
      %v7593 = vadd.f32 %v7561, %v4071
      %v7594 = vadd.f32 %v7562, %v4072
      %v7595 = vadd.f32 %v7563, %v4073
      %v7596 = vadd.f32 %v7564, %v4074
      %v7597 = vadd.f32 %v7565, %v4075
      %v7598 = vadd.f32 %v7566, %v4076
      %v7599 = vadd.f32 %v7567, %v4077
      %v7600 = vadd.f32 %v7568, %v4078
      %v7601 = vadd.f32 %v7569, %v4079
      %v7602 = vadd.f32 %v7570, %v4080
      %v7603 = vadd.f32 %v7571, %v4081
      %v7604 = vadd.f32 %v7572, %v4082
      %v7605 = vadd.f32 %v7573, %v4083
      %v7606 = vadd.f32 %v7574, %v4084
      %v7607 = vadd.f32 %v7575, %v4085
      %v7608 = vadd.f32 %v7576, %v4086
      %v7609 = vadd.f32 %v7577, %v4087
      %v7610 = vadd.f32 %v7578, %v4088
      %v7611 = vadd.f32 %v7579, %v4089
      %v7612 = vadd.f32 %v7580, %v4090
      %v7613 = vadd.f32 %v7581, %v4091
      %v7614 = vadd.f32 %v7582, %v4092
      %v7615 = vadd.f32 %v7583, %v4093
      %v7616 = vadd.f32 %v7584, %v4094
      %v7617 = vadd.f32 %v7585, %v4095
      %v7618 = vadd.f32 %v7586, %v4096
      %v7619 = vadd.f32 %v7587, %v4097
      %v7620 = vadd.f32 %v7588, %v4098
      %v7621 = vadd.f32 %v7589, %v4099
      %v7622 = vadd.f32 %v7590, %v4100
      %v7623 = vadd.f32 %v7591, %v4101
      %v7624 = vadd.f32 %v7592, %v4102
      %v7625 = vpack.c.bf16 %v7594, %v7593
      %v7626 = vpack.c.bf16 %v7596, %v7595
      %v7627 = vpack.c.bf16 %v7598, %v7597
      %v7628 = vpack.c.bf16 %v7600, %v7599
      %v7629 = vpack.c.bf16 %v7602, %v7601
      %v7630 = vpack.c.bf16 %v7604, %v7603
      %v7631 = vpack.c.bf16 %v7606, %v7605
      %v7632 = vpack.c.bf16 %v7608, %v7607
      %v7633 = vpack.c.bf16 %v7610, %v7609
      %v7634 = vpack.c.bf16 %v7612, %v7611
      %v7635 = vpack.c.bf16 %v7614, %v7613
      %v7636 = vpack.c.bf16 %v7616, %v7615
      %v7637 = vpack.c.bf16 %v7618, %v7617
      %v7638 = vpack.c.bf16 %v7620, %v7619
      %v7639 = vpack.c.bf16 %v7622, %v7621
      %v7640 = vpack.c.bf16 %v7624, %v7623
      %v7641 = vld [vmem:[%s10] sm:$0xf]
      %v7642 = vld [vmem:[%s11] sm:$0x1]
      %v7644 = vperm.slane %v7642, 0
      %v7647 = vsel %vm435, %v7625, 0
      %v7650 = vsel %vm435, %v7626, 0
      %v7653 = vsel %vm435, %v7627, 0
      %v7656 = vsel %vm435, %v7628, 0
      %v7659 = vsel %vm435, %v7629, 0
      %v7662 = vsel %vm435, %v7630, 0
      %v7665 = vsel %vm435, %v7631, 0
      %v7668 = vsel %vm435, %v7632, 0
      %v7671 = vsel %vm435, %v7633, 0
      %v7674 = vsel %vm435, %v7634, 0
      %v7677 = vsel %vm435, %v7635, 0
      %v7680 = vsel %vm435, %v7636, 0
      %v7683 = vsel %vm435, %v7637, 0
      %v7686 = vsel %vm435, %v7638, 0
      %v7689 = vsel %vm435, %v7639, 0
      %v7692 = vsel %vm435, %v7640, 0
      %v7695 = vsel %vm908, %v7641, 0
      %7697 = vmatpush.bf16.msra.mxu0 0
      %7698 = vmatpush.bf16.msra.mxu0 0
      %7699 = vmatpush.bf16.msra.mxu0 0
      %7700 = vmatpush.bf16.msra.mxu0 0
      %7701 = vmatpush.bf16.msra.mxu0 0
      %7702 = vmatpush.bf16.msra.mxu0 0
      %7703 = vmatpush.bf16.msra.mxu0 0
      %7704 = vmatpush.bf16.msra.mxu0 %v7695
      %7705 = vmatmul.bf16.gmra.mxu0 %v7647
      %v7706 = vpop.f32.mrf.mxu0
      %v7707 = vadd.f32 %v7644, %v7706
      %v7708 = vpop.f32.mrf.mxu0
      %v7709 = vadd.f32 %v7644, %v7708
      %7710 = vmatmul.bf16.gmra.mxu0 %v7650
      %v7711 = vpop.f32.mrf.mxu0
      %v7712 = vadd.f32 %v7644, %v7711
      %v7713 = vpop.f32.mrf.mxu0
      %v7714 = vadd.f32 %v7644, %v7713
      %7715 = vmatmul.bf16.gmra.mxu0 %v7653
      %v7716 = vpop.f32.mrf.mxu0
      %v7717 = vadd.f32 %v7644, %v7716
      %v7718 = vpop.f32.mrf.mxu0
      %v7719 = vadd.f32 %v7644, %v7718
      %7720 = vmatmul.bf16.gmra.mxu0 %v7656
      %v7721 = vpop.f32.mrf.mxu0
      %v7722 = vadd.f32 %v7644, %v7721
      %v7723 = vpop.f32.mrf.mxu0
      %v7724 = vadd.f32 %v7644, %v7723
      %7725 = vmatmul.bf16.gmra.mxu0 %v7659
      %v7726 = vpop.f32.mrf.mxu0
      %v7727 = vadd.f32 %v7644, %v7726
      %v7728 = vpop.f32.mrf.mxu0
      %v7729 = vadd.f32 %v7644, %v7728
      %7730 = vmatmul.bf16.gmra.mxu0 %v7662
      %v7731 = vpop.f32.mrf.mxu0
      %v7732 = vadd.f32 %v7644, %v7731
      %v7733 = vpop.f32.mrf.mxu0
      %v7734 = vadd.f32 %v7644, %v7733
      %7735 = vmatmul.bf16.gmra.mxu0 %v7665
      %v7736 = vpop.f32.mrf.mxu0
      %v7737 = vadd.f32 %v7644, %v7736
      %v7738 = vpop.f32.mrf.mxu0
      %v7739 = vadd.f32 %v7644, %v7738
      %7740 = vmatmul.bf16.gmra.mxu0 %v7668
      %v7741 = vpop.f32.mrf.mxu0
      %v7742 = vadd.f32 %v7644, %v7741
      %v7743 = vpop.f32.mrf.mxu0
      %v7744 = vadd.f32 %v7644, %v7743
      %7745 = vmatmul.bf16.gmra.mxu0 %v7671
      %v7746 = vpop.f32.mrf.mxu0
      %v7747 = vadd.f32 %v7644, %v7746
      %v7748 = vpop.f32.mrf.mxu0
      %v7749 = vadd.f32 %v7644, %v7748
      %7750 = vmatmul.bf16.gmra.mxu0 %v7674
      %v7751 = vpop.f32.mrf.mxu0
      %v7752 = vadd.f32 %v7644, %v7751
      %v7753 = vpop.f32.mrf.mxu0
      %v7754 = vadd.f32 %v7644, %v7753
      %7755 = vmatmul.bf16.gmra.mxu0 %v7677
      %v7756 = vpop.f32.mrf.mxu0
      %v7757 = vadd.f32 %v7644, %v7756
      %v7758 = vpop.f32.mrf.mxu0
      %v7759 = vadd.f32 %v7644, %v7758
      %7760 = vmatmul.bf16.gmra.mxu0 %v7680
      %v7761 = vpop.f32.mrf.mxu0
      %v7762 = vadd.f32 %v7644, %v7761
      %v7763 = vpop.f32.mrf.mxu0
      %v7764 = vadd.f32 %v7644, %v7763
      %7765 = vmatmul.bf16.gmra.mxu0 %v7683
      %v7766 = vpop.f32.mrf.mxu0
      %v7767 = vadd.f32 %v7644, %v7766
      %v7768 = vpop.f32.mrf.mxu0
      %v7769 = vadd.f32 %v7644, %v7768
      %7770 = vmatmul.bf16.gmra.mxu0 %v7686
      %v7771 = vpop.f32.mrf.mxu0
      %v7772 = vadd.f32 %v7644, %v7771
      %v7773 = vpop.f32.mrf.mxu0
      %v7774 = vadd.f32 %v7644, %v7773
      %7775 = vmatmul.bf16.gmra.mxu0 %v7689
      %v7776 = vpop.f32.mrf.mxu0
      %v7777 = vadd.f32 %v7644, %v7776
      %v7778 = vpop.f32.mrf.mxu0
      %v7779 = vadd.f32 %v7644, %v7778
      %7780 = vmatmul.bf16.gmra.mxu0 %v7692
      %v7781 = vpop.f32.mrf.mxu0
      %v7782 = vadd.f32 %v7644, %v7781
      %v7783 = vpop.f32.mrf.mxu0
      %v7784 = vadd.f32 %v7644, %v7783
      %7785 = vdwg.mxu0
      %7786 = vst.msk [vmem:[%s433] sm:$0xff] %vm435, %v7707
      %7787 = vst.msk [vmem:[%s433 + $0x8] sm:$0xff] %vm435, %v7709
      %7788 = vst.msk [vmem:[%s433 + $0x10] sm:$0xff] %vm435, %v7712
      %7789 = vst.msk [vmem:[%s433 + $0x18] sm:$0xff] %vm435, %v7714
      %7790 = vst.msk [vmem:[%s433 + $0x20] sm:$0xff] %vm435, %v7717
      %7791 = vst.msk [vmem:[%s433 + $0x28] sm:$0xff] %vm435, %v7719
      %7792 = vst.msk [vmem:[%s433 + $0x30] sm:$0xff] %vm435, %v7722
      %7793 = vst.msk [vmem:[%s433 + $0x38] sm:$0xff] %vm435, %v7724
      %7794 = vst.msk [vmem:[%s433 + $0x40] sm:$0xff] %vm435, %v7727
      %7795 = vst.msk [vmem:[%s433 + $0x48] sm:$0xff] %vm435, %v7729
      %7796 = vst.msk [vmem:[%s433 + $0x50] sm:$0xff] %vm435, %v7732
      %7797 = vst.msk [vmem:[%s433 + $0x58] sm:$0xff] %vm435, %v7734
      %7798 = vst.msk [vmem:[%s433 + $0x60] sm:$0xff] %vm435, %v7737
      %7799 = vst.msk [vmem:[%s433 + $0x68] sm:$0xff] %vm435, %v7739
      %7800 = vst.msk [vmem:[%s433 + $0x70] sm:$0xff] %vm435, %v7742
      %7801 = vst.msk [vmem:[%s433 + $0x78] sm:$0xff] %vm435, %v7744
      %7802 = vst.msk [vmem:[%s433 + $0x80] sm:$0xff] %vm435, %v7747
      %7803 = vst.msk [vmem:[%s433 + $0x88] sm:$0xff] %vm435, %v7749
      %7804 = vst.msk [vmem:[%s433 + $0x90] sm:$0xff] %vm435, %v7752
      %7805 = vst.msk [vmem:[%s433 + $0x98] sm:$0xff] %vm435, %v7754
      %7806 = vst.msk [vmem:[%s433 + $0xa0] sm:$0xff] %vm435, %v7757
      %7807 = vst.msk [vmem:[%s433 + $0xa8] sm:$0xff] %vm435, %v7759
      %7808 = vst.msk [vmem:[%s433 + $0xb0] sm:$0xff] %vm435, %v7762
      %7809 = vst.msk [vmem:[%s433 + $0xb8] sm:$0xff] %vm435, %v7764
      %7810 = vst.msk [vmem:[%s433 + $0xc0] sm:$0xff] %vm435, %v7767
      %7811 = vst.msk [vmem:[%s433 + $0xc8] sm:$0xff] %vm435, %v7769
      %7812 = vst.msk [vmem:[%s433 + $0xd0] sm:$0xff] %vm435, %v7772
      %7813 = vst.msk [vmem:[%s433 + $0xd8] sm:$0xff] %vm435, %v7774
      %7814 = vst.msk [vmem:[%s433 + $0xe0] sm:$0xff] %vm435, %v7777
      %7815 = vst.msk [vmem:[%s433 + $0xe8] sm:$0xff] %vm435, %v7779
      %7816 = vst.msk [vmem:[%s433 + $0xf0] sm:$0xff] %vm435, %v7782
      %7817 = vst.msk [vmem:[%s433 + $0xf8] sm:$0xff] %vm435, %v7784
      %p7818 = scmp.lt.s32.totalorder %s23, 1
      %s7819 = scalar_select %p7818, %s23, 1
      %s7820 = smul.addr %s7819, 32
      %s7821 = smul.addr %s7820, 8
      %s7822 = scalar_lea.vmem %s12, %s7821
      // Predicated region
      $region69: #{_lambda_.2} parent=67 // pred_check
        %p7823 = pneg %p303
      $region70: #{_lambda_.2} parent=67 // pred_check_branch
        %7825 = sbr.rel (%p7823) target = $region72
      $region71: #{_lambda_.2} parent=67 // pred_region
        _
      $region72: #{_lambda_.2} parent=67 // pred_fallthru
        _
    $region68: #{_lambda_.2} parent=5 // pred_fallthru
      _
    %p7826 = scmp.le.s32.totalorder 2, %s18
    // Predicated region
    $region73: #{_lambda_.2} parent=5 // pred_check
      %p7827 = pneg %p7826
    $region74: #{_lambda_.2} parent=5 // pred_check_branch
      %7829 = sbr.rel (%p7827) target = $region76
    $region75: #{_lambda_.2} parent=5 // pred_region
      %s7830 = ssub.s32 %s18, 2
      // Predicated region
      $region77: #{_lambda_.2} parent=75 // pred_check
        %p7831 = pneg %p309
      $region78: #{_lambda_.2} parent=75 // pred_check_branch
        %7833 = sbr.rel (%p7831) target = $region80
      $region79: #{_lambda_.2} parent=75 // pred_region
        %p7834 = scmp.lt.s32.totalorder %s24, 1
        %s7835 = scalar_select %p7834, %s24, 1
        %s7836 = smul.addr %s7835, 32
        %s7837 = smul.addr %s7836, 8
        %s7838 = scalar_lea.vmem %s12, %s7837
      $region80: #{_lambda_.2} parent=75 // pred_fallthru
        _
    $region76: #{_lambda_.2} parent=5 // pred_fallthru
      _
  $region6: #{_lambda_.2} parent=0 // loop_footer
    %s22 = sadd.s32 1, %s18
  $region7: #{_lambda_.2} parent=0 // loop_footer_branch
    %17 = sbr.rel target = $region3
  $region8: #{_lambda_.2} parent=0 // loop_exit
    _

</llo_original>
